<compile_context>
chip_gen: v6e
topology: v6e:2x2x1
jax: 0.10.0
libtpu: 0.0.40
codegen_flags: <defaults>
</compile_context>

<pallas_src>
import jax
import jax.numpy as jnp
from jax.experimental import pallas as pl
from jax.experimental.pallas import tpu as pltpu


# ------------------------------ kernel helpers ------------------------------ #

def _ln(x, g, b, eps=1e-5):
    """Row-wise LayerNorm in f32. x: (M, C); g, b: (1, C)."""
    m = jnp.mean(x, axis=-1, keepdims=True)
    v = jnp.mean((x - m) ** 2, axis=-1, keepdims=True)
    return (x - m) * jax.lax.rsqrt(v + eps) * g + b


def _make_kernel(Bt, N, C, num_heads, scale, sr, H, W):
    hd = C // num_heads
    f32, bf16 = jnp.float32, jnp.bfloat16
    if sr > 1:
        Hs, Ws = H // sr, W // sr
        Nk = Hs * Ws
    else:
        Nk = N

    def kernel(*refs):
        if sr > 1:
            x_ref, vec_ref, w_ref, wsr_ref, o_ref, xs_ref = refs
        else:
            x_ref, vec_ref, w_ref, o_ref = refs

        # ---- LayerNorm over all Bt sequences at once (f32) -------------------
        x = x_ref[...].astype(f32).reshape(Bt * N, C)
        xn = _ln(x, vec_ref[0:1, :], vec_ref[1:2, :])           # (Bt*N, C) f32
        xn_bf = xn.astype(bf16)

        # ---- q projection; softmax scale folded into q, not the scores -------
        q = (jnp.dot(xn_bf, w_ref[0], preferred_element_type=f32)
             + vec_ref[2:3, :]) * scale                         # (Bt*N, C) f32

        # ---- key/value source -------------------------------------------------
        if sr > 1:
            # Conv2d(C, C, k=sr, stride=sr) as im2col + a single matmul.
            # Patch rows are gathered with sublane-strided reads from a VMEM
            # scratch holding the normalized activations (no one-hot selector).
            xs_ref[...] = xn
            cols = []
            for d in range(sr * sr):                 # static taps (dh, dw)
                dh, dw = d // sr, d % sr
                rows = []
                for b in range(Bt):
                    for hs in range(Hs):
                        start = b * N + (hs * sr + dh) * W + dw
                        rows.append(xs_ref[pl.ds(start, Ws, stride=sr), :])
                cols.append(jnp.concatenate(rows, axis=0))      # (Bt*Nk, C)
            patches = jnp.concatenate(cols, axis=-1)            # (Bt*Nk, sr*sr*C)
            conv = jnp.dot(patches.astype(bf16), wsr_ref[...],
                           preferred_element_type=f32) + vec_ref[6:7, :]
            kv_in = _ln(conv, vec_ref[7:8, :], vec_ref[8:9, :])  # (Bt*Nk, C)
        else:
            kv_in = xn                                          # (Bt*N, C)

        # ---- separate k / v projections (no lane slice of a fused kv) --------
        kv_bf = kv_in.astype(bf16)
        k = jnp.dot(kv_bf, w_ref[1], preferred_element_type=f32) + vec_ref[3:4, :]
        v = jnp.dot(kv_bf, w_ref[2], preferred_element_type=f32) + vec_ref[4:5, :]

        # ---- heads-batched attention, per batch element (Bt is small) --------
        outs = []
        for b in range(Bt):                                     # static loop
            qb = q[b * N:(b + 1) * N].reshape(N, num_heads, hd)
            kb = k[b * Nk:(b + 1) * Nk].reshape(Nk, num_heads, hd)
            vb = v[b * Nk:(b + 1) * Nk].reshape(Nk, num_heads, hd)
            qb = jnp.transpose(qb, (1, 0, 2)).astype(bf16)      # (h, N,  hd)
            kb = jnp.transpose(kb, (1, 0, 2)).astype(bf16)      # (h, Nk, hd)
            vb = jnp.transpose(vb, (1, 0, 2)).astype(bf16)      # (h, Nk, hd)
            s = jax.lax.dot_general(qb, kb, (((2,), (2,)), ((0,), (0,))),
                                    preferred_element_type=f32)  # (h, N, Nk)
            s = s - jnp.max(s, axis=-1, keepdims=True)
            p = jnp.exp(s)
            p = p / jnp.sum(p, axis=-1, keepdims=True)          # exact divide
            ob = jax.lax.dot_general(p.astype(bf16), vb,
                                     (((2,), (1,)), ((0,), (0,))),
                                     preferred_element_type=f32)  # (h, N, hd)
            outs.append(jnp.transpose(ob, (1, 0, 2)).reshape(N, C))
        attn_out = jnp.concatenate(outs, axis=0)                # (Bt*N, C)

        # ---- output projection; single full-width lane-dense store -----------
        out = jnp.dot(attn_out.astype(bf16), w_ref[3],
                      preferred_element_type=f32) + vec_ref[5:6, :]
        o_ref[...] = out.reshape(Bt, N, C).astype(o_ref.dtype)

    return kernel


# ------------------------------- wrapper utils ------------------------------- #

def _choose_bt(B, N):
    """Batch elements per grid step: grow the projection-matmul M toward the
    MXU height, but keep >=2 parallel grid steps (v7x has 2 TensorCores)."""
    best = 1
    for bt in range(1, min(B, 16) + 1):
        if B % bt:
            continue
        if bt > 1 and B // bt < 2:
            continue
        best = bt
        if bt * N >= 256:
            break
    return best


def _vmem_limit_bytes():
    """Per-generation VMEM limit: ~3/4 of physical, capped at 100 MiB
    (~48 MiB on v7x's 64 MiB, ~96-100 MiB on v5e/v6e's 128 MiB)."""
    try:
        cap = int(pltpu.get_tpu_info().vmem_capacity_bytes)
    except Exception:
        cap = 64 * 1024 * 1024
    return int(min(cap * 3 // 4, 100 * 1024 * 1024))


# ------------------------------- forward pass ------------------------------- #

def fglobal_mixer(x, H, W, params, num_heads, sr_ratio):
    B, N, C = x.shape
    assert N == H * W
    sr = sr_ratio
    hd = C // num_heads
    scale = hd ** (-0.5)
    f32, bf16 = jnp.float32, jnp.bfloat16

    Bt = _choose_bt(B, N)
    grid = (B // Bt,)

    # One-time weight prep: bf16 MXU operands; biases / LN params stay f32.
    wkv = params['wkv']
    w_stack = jnp.stack(
        [params['wq'], wkv[:, :C], wkv[:, C:], params['wproj']],
        axis=0).astype(bf16)                                     # (4, C, C)

    vec_rows = [params['norm_g'], params['norm_b'], params['bq'],
                params['bkv'][:C], params['bkv'][C:], params['bproj']]
    if sr > 1:
        vec_rows += [params['b_sr'], params['norm_sr_g'], params['norm_sr_b']]
    vecs = jnp.stack(vec_rows, axis=0).astype(f32)               # (kvec, C)
    kvec = vecs.shape[0]

    inputs = [x, vecs, w_stack]
    in_specs = [pl.BlockSpec((Bt, N, C), lambda b: (b, 0, 0)),
                pl.BlockSpec((kvec, C), lambda b: (0, 0)),
                pl.BlockSpec((4, C, C), lambda b: (0, 0, 0))]
    scratch_shapes = []

    if sr > 1:
        # Conv2d weight (Cout, Cin, kh, kw) -> (kh*kw*Cin, Cout) matmul form,
        # matching the (dh, dw, cin) column order of the in-kernel im2col.
        w_sr = jnp.transpose(params['w_conv'], (2, 3, 1, 0)).reshape(
            sr * sr * C, C).astype(bf16)
        inputs.append(w_sr)
        in_specs.append(pl.BlockSpec((sr * sr * C, C), lambda b: (0, 0)))
        scratch_shapes.append(pltpu.VMEM((Bt * N, C), f32))

    kernel = _make_kernel(Bt, N, C, num_heads, scale, sr, H, W)

    return pl.pallas_call(
        kernel,
        out_shape=jax.ShapeDtypeStruct((B, N, C), jnp.float32),
        grid=grid,
        in_specs=in_specs,
        out_specs=pl.BlockSpec((Bt, N, C), lambda b: (b, 0, 0)),
        scratch_shapes=scratch_shapes,
        compiler_params=pltpu.CompilerParams(
            dimension_semantics=("parallel",),        # megacore on v7x
            vmem_limit_bytes=_vmem_limit_bytes()),
    )(*inputs)


# ----------------------------- parameter setup ------------------------------ #

def init_params(key, dim, sr_ratio):
    ks = jax.random.split(key, 8)
    s = 0.05
    p = {
        'norm_g': jnp.ones((dim,), jnp.float32),
        'norm_b': jnp.zeros((dim,), jnp.float32),
        'wq': jax.random.normal(ks[0], (dim, dim), jnp.float32) * s,
        'bq': jax.random.normal(ks[1], (dim,), jnp.float32) * s,
        'wkv': jax.random.normal(ks[2], (dim, 2 * dim), jnp.float32) * s,
        'bkv': jax.random.normal(ks[3], (2 * dim,), jnp.float32) * s,
        'wproj': jax.random.normal(ks[4], (dim, dim), jnp.float32) * s,
        'bproj': jax.random.normal(ks[5], (dim,), jnp.float32) * s,
    }
    if sr_ratio > 1:
        # PyTorch Conv2d(dim, dim, k=sr, stride=sr) weight layout (Cout, Cin, kh, kw).
        p['w_conv'] = jax.random.normal(
            ks[6], (dim, dim, sr_ratio, sr_ratio), jnp.float32) * s
        p['b_sr'] = jax.random.normal(ks[7], (dim,), jnp.float32) * s
        p['norm_sr_g'] = jnp.ones((dim,), jnp.float32)
        p['norm_sr_b'] = jnp.zeros((dim,), jnp.float32)
    return p


# ------------------------------ pure-JAX reference -------------------------- #

def _ln_ref(x, g, b, eps=1e-5):
    m = jnp.mean(x, axis=-1, keepdims=True)
    v = jnp.mean((x - m) ** 2, axis=-1, keepdims=True)
    return (x - m) * jax.lax.rsqrt(v + eps) * g + b


def fglobal_mixer_ref(x, H, W, params, num_heads, sr_ratio):
    B, N, C = x.shape
    hd = C // num_heads
    scale = hd ** (-0.5)
    sr = sr_ratio

    xn = _ln_ref(x, params['norm_g'], params['norm_b'])
    q = (xn @ params['wq'] + params['bq']).reshape(B, N, num_heads, hd).transpose(0, 2, 1, 3)

    if sr > 1:
        Hs, Ws = H // sr, W // sr
        Nk = Hs * Ws
        x_sp = xn.transpose(0, 2, 1).reshape(B, C, H, W)
        x_sr = jax.lax.conv_general_dilated(
            x_sp, params['w_conv'], window_strides=(sr, sr), padding='VALID',
            dimension_numbers=('NCHW', 'OIHW', 'NCHW'))
        x_sr = x_sr + params['b_sr'][None, :, None, None]
        x_sr = x_sr.reshape(B, C, Nk).transpose(0, 2, 1)
        kv_in = _ln_ref(x_sr, params['norm_sr_g'], params['norm_sr_b'])
    else:
        kv_in = xn
        Nk = N

    kv = (kv_in @ params['wkv'] + params['bkv']).reshape(B, Nk, 2, num_heads, hd)
    kv = kv.transpose(2, 0, 3, 1, 4)
    k, v = kv[0], kv[1]

    attn = jnp.einsum('bhqd,bhkd->bhqk', q, k) * scale
    attn = jax.nn.softmax(attn, axis=-1)
    out = jnp.einsum('bhqk,bhkd->bhqd', attn, v).transpose(0, 2, 1, 3).reshape(B, N, C)
    return out @ params['wproj'] + params['bproj']


# ----------------------------------- main ------------------------------------ #

if __name__ == "__main__":
    B, dim, num_heads = 2, 32, 8
    H, W = 8, 8
    N = H * W

    key = jax.random.PRNGKey(0)
    kx, kp = jax.random.split(key)
    x = jax.random.normal(kx, (B, N, dim), jnp.float32)

    for sr_ratio in (2, 1):
        params = init_params(kp, dim, sr_ratio)
        out = jax.block_until_ready(
            fglobal_mixer(x, H, W, params, num_heads, sr_ratio))
        ref = fglobal_mixer_ref(x, H, W, params, num_heads, sr_ratio)
        assert out.shape == (B, N, dim)
        max_err = float(jnp.max(jnp.abs(out - ref)))
        # bf16 MXU operands vs f32 reference.
        assert jnp.allclose(out, ref, atol=2e-2, rtol=2e-2), (
            f"mismatch vs JAX reference (sr={sr_ratio}, max_err={max_err})")

    print("KERNEL_OK")
</pallas_src>

<mosaic_0001>
module attributes {stable_mosaic.version = 11 : i64} {
  func.func @kernel(%arg0: i32, %arg1: memref<1x64x32xf32, #tpu.memory_space<vmem>>, %arg2: memref<9x32xf32, #tpu.memory_space<vmem>>, %arg3: memref<4x32x32xbf16, #tpu.memory_space<vmem>>, %arg4: memref<128x32xbf16, #tpu.memory_space<vmem>>, %arg5: memref<1x64x32xf32, #tpu.memory_space<vmem>>, %arg6: memref<64x32xf32, #tpu.memory_space<vmem>>) attributes {dimension_semantics = [#tpu.dimension_semantics<parallel>], iteration_bounds = array<i64: 2>, scalar_prefetch = 0 : i64, scratch_operands = 1 : i64, tpu.core_type = #tpu.core_type<tc>, window_params = [{transform_indices = @transform_0, window_bounds = array<i64: 1, 64, 32>}, {pipeline_mode = #tpu.pipeline_mode<synchronous>, transform_indices = @transform_1, window_bounds = array<i64: 9, 32>}, {pipeline_mode = #tpu.pipeline_mode<synchronous>, transform_indices = @transform_2, window_bounds = array<i64: 4, 32, 32>}, {pipeline_mode = #tpu.pipeline_mode<synchronous>, transform_indices = @transform_3, window_bounds = array<i64: 128, 32>}, {transform_indices = @transform_4, window_bounds = array<i64: 1, 64, 32>}]} {
    %c0 = arith.constant 0 : index
    %c0_0 = arith.constant 0 : index
    %c0_1 = arith.constant 0 : index
    %0 = vector.load %arg1[%c0, %c0_0, %c0_1] : memref<1x64x32xf32, #tpu.memory_space<vmem>>, vector<1x64x32xf32>
    %1 = vector.shape_cast %0 : vector<1x64x32xf32> to vector<64x32xf32>
    %c0_2 = arith.constant 0 : index
    %c0_3 = arith.constant 0 : index
    %2 = vector.load %arg2[%c0_2, %c0_3] : memref<9x32xf32, #tpu.memory_space<vmem>>, vector<1x32xf32>
    %c1 = arith.constant 1 : index
    %c0_4 = arith.constant 0 : index
    %3 = vector.load %arg2[%c1, %c0_4] : memref<9x32xf32, #tpu.memory_space<vmem>>, vector<1x32xf32>
    %cst = arith.constant dense<0.000000e+00> : vector<64xf32>
    %4 = vector.multi_reduction <add>, %1, %cst [1] : vector<64x32xf32> to vector<64xf32>
    %5 = vector.shape_cast %4 : vector<64xf32> to vector<64x1xf32>
    %cst_5 = arith.constant 3.200000e+01 : f32
    %6 = vector.broadcast %cst_5 : f32 to vector<64x1xf32>
    %7 = arith.divf %5, %6 : vector<64x1xf32>
    %8 = vector.broadcast %7 : vector<64x1xf32> to vector<64x32xf32>
    %9 = arith.subf %1, %8 : vector<64x32xf32>
    %10 = arith.mulf %9, %9 : vector<64x32xf32>
    %cst_6 = arith.constant dense<0.000000e+00> : vector<64xf32>
    %11 = vector.multi_reduction <add>, %10, %cst_6 [1] : vector<64x32xf32> to vector<64xf32>
    %12 = vector.shape_cast %11 : vector<64xf32> to vector<64x1xf32>
    %cst_7 = arith.constant 3.200000e+01 : f32
    %13 = vector.broadcast %cst_7 : f32 to vector<64x1xf32>
    %14 = arith.divf %12, %13 : vector<64x1xf32>
    %15 = vector.broadcast %7 : vector<64x1xf32> to vector<64x32xf32>
    %16 = arith.subf %1, %15 : vector<64x32xf32>
    %cst_8 = arith.constant 9.99999974E-6 : f32
    %17 = vector.broadcast %cst_8 : f32 to vector<64x1xf32>
    %18 = arith.addf %14, %17 : vector<64x1xf32>
    %19 = math.rsqrt %18 : vector<64x1xf32>
    %20 = vector.broadcast %19 : vector<64x1xf32> to vector<64x32xf32>
    %21 = arith.mulf %16, %20 : vector<64x32xf32>
    %22 = vector.broadcast %2 : vector<1x32xf32> to vector<64x32xf32>
    %23 = arith.mulf %21, %22 : vector<64x32xf32>
    %24 = vector.broadcast %3 : vector<1x32xf32> to vector<64x32xf32>
    %25 = arith.addf %23, %24 : vector<64x32xf32>
    %26 = arith.truncf %25 : vector<64x32xf32> to vector<64x32xbf16>
    %c0_9 = arith.constant 0 : index
    %c0_10 = arith.constant 0 : index
    %c0_11 = arith.constant 0 : index
    %27 = vector.load %arg3[%c0_9, %c0_10, %c0_11] : memref<4x32x32xbf16, #tpu.memory_space<vmem>>, vector<1x32x32xbf16>
    %28 = vector.shape_cast %27 : vector<1x32x32xbf16> to vector<32x32xbf16>
    %cst_12 = arith.constant dense<0.000000e+00> : vector<64x32xf32>
    %29 = tpu.matmul %26, %28, %cst_12 {dimension_numbers = #tpu.dot_dimension_numbers<[1], [0], [0], [1], [0, 0, 1, 1], [], []>} : vector<64x32xbf16>, vector<32x32xbf16>, vector<64x32xf32> -> vector<64x32xf32>
    %c2 = arith.constant 2 : index
    %c0_13 = arith.constant 0 : index
    %30 = vector.load %arg2[%c2, %c0_13] : memref<9x32xf32, #tpu.memory_space<vmem>>, vector<1x32xf32>
    %31 = vector.broadcast %30 : vector<1x32xf32> to vector<64x32xf32>
    %32 = arith.addf %29, %31 : vector<64x32xf32>
    %cst_14 = arith.constant 5.000000e-01 : f32
    %33 = vector.broadcast %cst_14 : f32 to vector<64x32xf32>
    %34 = arith.mulf %32, %33 : vector<64x32xf32>
    %c0_15 = arith.constant 0 : index
    %c0_16 = arith.constant 0 : index
    %35 = vector.load %arg6[%c0_15, %c0_16] : memref<64x32xf32, #tpu.memory_space<vmem>>, vector<64x32xf32>
    tpu.vector_store %arg6[%c0_15, %c0_16], %25 {strides = array<i32>} : memref<64x32xf32, #tpu.memory_space<vmem>>, vector<64x32xf32>,
    %c0_17 = arith.constant 0 : index
    %c0_18 = arith.constant 0 : index
    %36 = tpu.strided_load %arg6[%c0_17, %c0_18] {strides = array<i32: 2, 1>} : memref<64x32xf32, #tpu.memory_space<vmem>>, vector<4x32xf32>
    %c16 = arith.constant 16 : index
    %c0_19 = arith.constant 0 : index
    %37 = tpu.strided_load %arg6[%c16, %c0_19] {strides = array<i32: 2, 1>} : memref<64x32xf32, #tpu.memory_space<vmem>>, vector<4x32xf32>
    %c32 = arith.constant 32 : index
    %c0_20 = arith.constant 0 : index
    %38 = tpu.strided_load %arg6[%c32, %c0_20] {strides = array<i32: 2, 1>} : memref<64x32xf32, #tpu.memory_space<vmem>>, vector<4x32xf32>
    %c48 = arith.constant 48 : index
    %c0_21 = arith.constant 0 : index
    %39 = tpu.strided_load %arg6[%c48, %c0_21] {strides = array<i32: 2, 1>} : memref<64x32xf32, #tpu.memory_space<vmem>>, vector<4x32xf32>
    %40 = tpu.concatenate %36, %37, %38, %39 in 0 : vector<4x32xf32>, vector<4x32xf32>, vector<4x32xf32>, vector<4x32xf32> -> vector<16x32xf32>
    %c1_22 = arith.constant 1 : index
    %c0_23 = arith.constant 0 : index
    %41 = tpu.strided_load %arg6[%c1_22, %c0_23] {strides = array<i32: 2, 1>} : memref<64x32xf32, #tpu.memory_space<vmem>>, vector<4x32xf32>
    %c17 = arith.constant 17 : index
    %c0_24 = arith.constant 0 : index
    %42 = tpu.strided_load %arg6[%c17, %c0_24] {strides = array<i32: 2, 1>} : memref<64x32xf32, #tpu.memory_space<vmem>>, vector<4x32xf32>
    %c33 = arith.constant 33 : index
    %c0_25 = arith.constant 0 : index
    %43 = tpu.strided_load %arg6[%c33, %c0_25] {strides = array<i32: 2, 1>} : memref<64x32xf32, #tpu.memory_space<vmem>>, vector<4x32xf32>
    %c49 = arith.constant 49 : index
    %c0_26 = arith.constant 0 : index
    %44 = tpu.strided_load %arg6[%c49, %c0_26] {strides = array<i32: 2, 1>} : memref<64x32xf32, #tpu.memory_space<vmem>>, vector<4x32xf32>
    %45 = tpu.concatenate %41, %42, %43, %44 in 0 : vector<4x32xf32>, vector<4x32xf32>, vector<4x32xf32>, vector<4x32xf32> -> vector<16x32xf32>
    %c8 = arith.constant 8 : index
    %c0_27 = arith.constant 0 : index
    %46 = tpu.strided_load %arg6[%c8, %c0_27] {strides = array<i32: 2, 1>} : memref<64x32xf32, #tpu.memory_space<vmem>>, vector<4x32xf32>
    %c24 = arith.constant 24 : index
    %c0_28 = arith.constant 0 : index
    %47 = tpu.strided_load %arg6[%c24, %c0_28] {strides = array<i32: 2, 1>} : memref<64x32xf32, #tpu.memory_space<vmem>>, vector<4x32xf32>
    %c40 = arith.constant 40 : index
    %c0_29 = arith.constant 0 : index
    %48 = tpu.strided_load %arg6[%c40, %c0_29] {strides = array<i32: 2, 1>} : memref<64x32xf32, #tpu.memory_space<vmem>>, vector<4x32xf32>
    %c56 = arith.constant 56 : index
    %c0_30 = arith.constant 0 : index
    %49 = tpu.strided_load %arg6[%c56, %c0_30] {strides = array<i32: 2, 1>} : memref<64x32xf32, #tpu.memory_space<vmem>>, vector<4x32xf32>
    %50 = tpu.concatenate %46, %47, %48, %49 in 0 : vector<4x32xf32>, vector<4x32xf32>, vector<4x32xf32>, vector<4x32xf32> -> vector<16x32xf32>
    %c9 = arith.constant 9 : index
    %c0_31 = arith.constant 0 : index
    %51 = tpu.strided_load %arg6[%c9, %c0_31] {strides = array<i32: 2, 1>} : memref<64x32xf32, #tpu.memory_space<vmem>>, vector<4x32xf32>
    %c25 = arith.constant 25 : index
    %c0_32 = arith.constant 0 : index
    %52 = tpu.strided_load %arg6[%c25, %c0_32] {strides = array<i32: 2, 1>} : memref<64x32xf32, #tpu.memory_space<vmem>>, vector<4x32xf32>
    %c41 = arith.constant 41 : index
    %c0_33 = arith.constant 0 : index
    %53 = tpu.strided_load %arg6[%c41, %c0_33] {strides = array<i32: 2, 1>} : memref<64x32xf32, #tpu.memory_space<vmem>>, vector<4x32xf32>
    %c57 = arith.constant 57 : index
    %c0_34 = arith.constant 0 : index
    %54 = tpu.strided_load %arg6[%c57, %c0_34] {strides = array<i32: 2, 1>} : memref<64x32xf32, #tpu.memory_space<vmem>>, vector<4x32xf32>
    %55 = tpu.concatenate %51, %52, %53, %54 in 0 : vector<4x32xf32>, vector<4x32xf32>, vector<4x32xf32>, vector<4x32xf32> -> vector<16x32xf32>
    %56 = tpu.concatenate %40, %45, %50, %55 in 1 : vector<16x32xf32>, vector<16x32xf32>, vector<16x32xf32>, vector<16x32xf32> -> vector<16x128xf32>
    %57 = arith.truncf %56 : vector<16x128xf32> to vector<16x128xbf16>
    %c0_35 = arith.constant 0 : index
    %c0_36 = arith.constant 0 : index
    %58 = vector.load %arg4[%c0_35, %c0_36] : memref<128x32xbf16, #tpu.memory_space<vmem>>, vector<128x32xbf16>
    %cst_37 = arith.constant dense<0.000000e+00> : vector<16x32xf32>
    %59 = tpu.matmul %57, %58, %cst_37 {dimension_numbers = #tpu.dot_dimension_numbers<[1], [0], [0], [1], [0, 0, 1, 1], [], []>} : vector<16x128xbf16>, vector<128x32xbf16>, vector<16x32xf32> -> vector<16x32xf32>
    %c6 = arith.constant 6 : index
    %c0_38 = arith.constant 0 : index
    %60 = vector.load %arg2[%c6, %c0_38] : memref<9x32xf32, #tpu.memory_space<vmem>>, vector<1x32xf32>
    %61 = vector.broadcast %60 : vector<1x32xf32> to vector<16x32xf32>
    %62 = arith.addf %59, %61 : vector<16x32xf32>
    %c7 = arith.constant 7 : index
    %c0_39 = arith.constant 0 : index
    %63 = vector.load %arg2[%c7, %c0_39] : memref<9x32xf32, #tpu.memory_space<vmem>>, vector<1x32xf32>
    %c8_40 = arith.constant 8 : index
    %c0_41 = arith.constant 0 : index
    %64 = vector.load %arg2[%c8_40, %c0_41] : memref<9x32xf32, #tpu.memory_space<vmem>>, vector<1x32xf32>
    %cst_42 = arith.constant dense<0.000000e+00> : vector<16xf32>
    %65 = vector.multi_reduction <add>, %62, %cst_42 [1] : vector<16x32xf32> to vector<16xf32>
    %66 = vector.shape_cast %65 : vector<16xf32> to vector<16x1xf32>
    %cst_43 = arith.constant 3.200000e+01 : f32
    %67 = vector.broadcast %cst_43 : f32 to vector<16x1xf32>
    %68 = arith.divf %66, %67 : vector<16x1xf32>
    %69 = vector.broadcast %68 : vector<16x1xf32> to vector<16x32xf32>
    %70 = arith.subf %62, %69 : vector<16x32xf32>
    %71 = arith.mulf %70, %70 : vector<16x32xf32>
    %cst_44 = arith.constant dense<0.000000e+00> : vector<16xf32>
    %72 = vector.multi_reduction <add>, %71, %cst_44 [1] : vector<16x32xf32> to vector<16xf32>
    %73 = vector.shape_cast %72 : vector<16xf32> to vector<16x1xf32>
    %cst_45 = arith.constant 3.200000e+01 : f32
    %74 = vector.broadcast %cst_45 : f32 to vector<16x1xf32>
    %75 = arith.divf %73, %74 : vector<16x1xf32>
    %76 = vector.broadcast %68 : vector<16x1xf32> to vector<16x32xf32>
    %77 = arith.subf %62, %76 : vector<16x32xf32>
    %cst_46 = arith.constant 9.99999974E-6 : f32
    %78 = vector.broadcast %cst_46 : f32 to vector<16x1xf32>
    %79 = arith.addf %75, %78 : vector<16x1xf32>
    %80 = math.rsqrt %79 : vector<16x1xf32>
    %81 = vector.broadcast %80 : vector<16x1xf32> to vector<16x32xf32>
    %82 = arith.mulf %77, %81 : vector<16x32xf32>
    %83 = vector.broadcast %63 : vector<1x32xf32> to vector<16x32xf32>
    %84 = arith.mulf %82, %83 : vector<16x32xf32>
    %85 = vector.broadcast %64 : vector<1x32xf32> to vector<16x32xf32>
    %86 = arith.addf %84, %85 : vector<16x32xf32>
    %87 = arith.truncf %86 : vector<16x32xf32> to vector<16x32xbf16>
    %c1_47 = arith.constant 1 : index
    %c0_48 = arith.constant 0 : index
    %c0_49 = arith.constant 0 : index
    %88 = vector.load %arg3[%c1_47, %c0_48, %c0_49] : memref<4x32x32xbf16, #tpu.memory_space<vmem>>, vector<1x32x32xbf16>
    %89 = vector.shape_cast %88 : vector<1x32x32xbf16> to vector<32x32xbf16>
    %cst_50 = arith.constant dense<0.000000e+00> : vector<16x32xf32>
    %90 = tpu.matmul %87, %89, %cst_50 {dimension_numbers = #tpu.dot_dimension_numbers<[1], [0], [0], [1], [0, 0, 1, 1], [], []>} : vector<16x32xbf16>, vector<32x32xbf16>, vector<16x32xf32> -> vector<16x32xf32>
    %c3 = arith.constant 3 : index
    %c0_51 = arith.constant 0 : index
    %91 = vector.load %arg2[%c3, %c0_51] : memref<9x32xf32, #tpu.memory_space<vmem>>, vector<1x32xf32>
    %92 = vector.broadcast %91 : vector<1x32xf32> to vector<16x32xf32>
    %93 = arith.addf %90, %92 : vector<16x32xf32>
    %c2_52 = arith.constant 2 : index
    %c0_53 = arith.constant 0 : index
    %c0_54 = arith.constant 0 : index
    %94 = vector.load %arg3[%c2_52, %c0_53, %c0_54] : memref<4x32x32xbf16, #tpu.memory_space<vmem>>, vector<1x32x32xbf16>
    %95 = vector.shape_cast %94 : vector<1x32x32xbf16> to vector<32x32xbf16>
    %cst_55 = arith.constant dense<0.000000e+00> : vector<16x32xf32>
    %96 = tpu.matmul %87, %95, %cst_55 {dimension_numbers = #tpu.dot_dimension_numbers<[1], [0], [0], [1], [0, 0, 1, 1], [], []>} : vector<16x32xbf16>, vector<32x32xbf16>, vector<16x32xf32> -> vector<16x32xf32>
    %c4 = arith.constant 4 : index
    %c0_56 = arith.constant 0 : index
    %97 = vector.load %arg2[%c4, %c0_56] : memref<9x32xf32, #tpu.memory_space<vmem>>, vector<1x32xf32>
    %98 = vector.broadcast %97 : vector<1x32xf32> to vector<16x32xf32>
    %99 = arith.addf %96, %98 : vector<16x32xf32>
    %100 = vector.shape_cast %34 : vector<64x32xf32> to vector<64x8x4xf32>
    %101 = vector.shape_cast %93 : vector<16x32xf32> to vector<16x8x4xf32>
    %102 = vector.shape_cast %99 : vector<16x32xf32> to vector<16x8x4xf32>
    %103 = tpu.transpose %100, [1, 0, 2] : vector<64x8x4xf32> -> vector<8x64x4xf32>
    %104 = arith.truncf %103 : vector<8x64x4xf32> to vector<8x64x4xbf16>
    %105 = tpu.transpose %101, [1, 0, 2] : vector<16x8x4xf32> -> vector<8x16x4xf32>
    %106 = arith.truncf %105 : vector<8x16x4xf32> to vector<8x16x4xbf16>
    %107 = tpu.transpose %102, [1, 0, 2] : vector<16x8x4xf32> -> vector<8x16x4xf32>
    %108 = arith.truncf %107 : vector<8x16x4xf32> to vector<8x16x4xbf16>
    %cst_57 = arith.constant dense<0.000000e+00> : vector<8x64x16xf32>
    %109 = tpu.matmul %104, %106, %cst_57 {dimension_numbers = #tpu.dot_dimension_numbers<[2], [2], [1], [1], [0, 0, 0, 1, 1, 1], [0], [0]>} : vector<8x64x4xbf16>, vector<8x16x4xbf16>, vector<8x64x16xf32> -> vector<8x64x16xf32>
    %cst_58 = arith.constant dense<0xFF800000> : vector<8x64xf32>
    %110 = vector.multi_reduction <maximumf>, %109, %cst_58 [2] : vector<8x64x16xf32> to vector<8x64xf32>
    %111 = vector.shape_cast %110 : vector<8x64xf32> to vector<8x64x1xf32>
    %112 = vector.broadcast %111 : vector<8x64x1xf32> to vector<8x64x16xf32>
    %113 = arith.subf %109, %112 : vector<8x64x16xf32>
    %114 = math.exp %113 : vector<8x64x16xf32>
    %cst_59 = arith.constant dense<0.000000e+00> : vector<8x64xf32>
    %115 = vector.multi_reduction <add>, %114, %cst_59 [2] : vector<8x64x16xf32> to vector<8x64xf32>
    %116 = vector.shape_cast %115 : vector<8x64xf32> to vector<8x64x1xf32>
    %117 = vector.broadcast %116 : vector<8x64x1xf32> to vector<8x64x16xf32>
    %118 = arith.divf %114, %117 : vector<8x64x16xf32>
    %119 = arith.truncf %118 : vector<8x64x16xf32> to vector<8x64x16xbf16>
    %cst_60 = arith.constant dense<0.000000e+00> : vector<8x64x4xf32>
    %120 = tpu.matmul %119, %108, %cst_60 {dimension_numbers = #tpu.dot_dimension_numbers<[2], [1], [1], [2], [0, 0, 0, 1, 1, 2], [0], [0]>} : vector<8x64x16xbf16>, vector<8x16x4xbf16>, vector<8x64x4xf32> -> vector<8x64x4xf32>
    %121 = tpu.transpose %120, [1, 0, 2] : vector<8x64x4xf32> -> vector<64x8x4xf32>
    %122 = vector.shape_cast %121 : vector<64x8x4xf32> to vector<64x32xf32>
    %123 = arith.truncf %122 : vector<64x32xf32> to vector<64x32xbf16>
    %c3_61 = arith.constant 3 : index
    %c0_62 = arith.constant 0 : index
    %c0_63 = arith.constant 0 : index
    %124 = vector.load %arg3[%c3_61, %c0_62, %c0_63] : memref<4x32x32xbf16, #tpu.memory_space<vmem>>, vector<1x32x32xbf16>
    %125 = vector.shape_cast %124 : vector<1x32x32xbf16> to vector<32x32xbf16>
    %cst_64 = arith.constant dense<0.000000e+00> : vector<64x32xf32>
    %126 = tpu.matmul %123, %125, %cst_64 {dimension_numbers = #tpu.dot_dimension_numbers<[1], [0], [0], [1], [0, 0, 1, 1], [], []>} : vector<64x32xbf16>, vector<32x32xbf16>, vector<64x32xf32> -> vector<64x32xf32>
    %c5 = arith.constant 5 : index
    %c0_65 = arith.constant 0 : index
    %127 = vector.load %arg2[%c5, %c0_65] : memref<9x32xf32, #tpu.memory_space<vmem>>, vector<1x32xf32>
    %128 = vector.broadcast %127 : vector<1x32xf32> to vector<64x32xf32>
    %129 = arith.addf %126, %128 : vector<64x32xf32>
    %130 = vector.shape_cast %129 : vector<64x32xf32> to vector<1x64x32xf32>
    %c0_66 = arith.constant 0 : index
    %c0_67 = arith.constant 0 : index
    %c0_68 = arith.constant 0 : index
    %131 = vector.load %arg5[%c0_66, %c0_67, %c0_68] : memref<1x64x32xf32, #tpu.memory_space<vmem>>, vector<1x64x32xf32>
    tpu.vector_store %arg5[%c0_66, %c0_67, %c0_68], %130 {strides = array<i32>} : memref<1x64x32xf32, #tpu.memory_space<vmem>>, vector<1x64x32xf32>,
    return
  }
  func.func @transform_0(%arg0: i32) -> (i32, i32, i32) {
    %c0_i32 = arith.constant 0 : i32
    %c0_i32_0 = arith.constant 0 : i32
    %c0_i32_1 = arith.constant 0 : i32
    return %arg0, %c0_i32, %c0_i32_0 : i32, i32, i32
  }
  func.func @transform_1(%arg0: i32) -> (i32, i32) {
    %c0_i32 = arith.constant 0 : i32
    %c0_i32_0 = arith.constant 0 : i32
    %c0_i32_1 = arith.constant 0 : i32
    return %c0_i32, %c0_i32_0 : i32, i32
  }
  func.func @transform_2(%arg0: i32) -> (i32, i32, i32) {
    %c0_i32 = arith.constant 0 : i32
    %c0_i32_0 = arith.constant 0 : i32
    %c0_i32_1 = arith.constant 0 : i32
    %c0_i32_2 = arith.constant 0 : i32
    return %c0_i32, %c0_i32_0, %c0_i32_1 : i32, i32, i32
  }
  func.func @transform_3(%arg0: i32) -> (i32, i32) {
    %c0_i32 = arith.constant 0 : i32
    %c0_i32_0 = arith.constant 0 : i32
    %c0_i32_1 = arith.constant 0 : i32
    return %c0_i32, %c0_i32_0 : i32, i32
  }
  func.func @transform_4(%arg0: i32) -> (i32, i32, i32) {
    %c0_i32 = arith.constant 0 : i32
    %c0_i32_0 = arith.constant 0 : i32
    %c0_i32_1 = arith.constant 0 : i32
    return %arg0, %c0_i32, %c0_i32_0 : i32, i32, i32
  }
}

</mosaic_0001>

<llo_original>
// kernel: tpu_custom_call.1
$region0: #{tpu_custom_call.1}
  #allocation0 [shape = 'u32[]', space=smem, size = 0x4, offset = 0x4, fixed_abs, tag = 'smem constant byte address 0x4 - core index']
  #allocation1 [shape = 'u32[144,128]{1,0:T(1,128)}', space=vmem, size = 0x12000, scoped, tag = 'internal scratch']
  #allocation2 [shape = 'f32[64,32]{1,0:T(8,128)}', space=vmem, size = 0x8000, scoped, tag = 'scratch operand']
  %s0 = inlined_call_operand.vmem [shape: f32[2,64,32], index: 0, kind: input, shape index: {}]
  %s1 = inlined_call_operand.vmem [shape: f32[9,32], index: 1, kind: input, shape index: {}]
  %s2 = inlined_call_operand.vmem [shape: bf16[4,32,32], index: 2, kind: input, shape index: {}]
  %s3 = inlined_call_operand.vmem [shape: bf16[128,32], index: 3, kind: input, shape index: {}]
  %s4 = inlined_call_operand.vmem [shape: f32[2,64,32], index: 4, kind: output, shape index: {}]
  %s5 = sld [smem:[#allocation0]]
  $region49: #{tpu_custom_call.1} parent=0
    _
  %s7 = ssub.s32 1, %s5
  %s8 = scalar_select 0, %s7, %s5
  loop: start=0, step=1, limit=4
  $region2: #{tpu_custom_call.1} parent=0 // loop_pre_header
    _
  $region3: #{tpu_custom_call.1} parent=0 // loop_header
    %s10 = sphi 0, %s14
    %p11 = scmp.ge.s32.totalorder %s10, 4
    %s20 = sphi 0, %s22
    %s23 = sphi 0, %s20
    %s24 = sphi 0, %s23
    %s40 = sphi 0, %s24
    %s44 = sphi 0, %s44
    %s46 = sphi 0, %s44
    %s47 = sphi 0, %s46
    %s61 = sphi 0, %s47
    %s65 = sphi 0, %s65
    %s67 = sphi 0, %s65
    %s68 = sphi 0, %s67
    %s82 = sphi 0, %s68
    %s86 = sphi 0, %s86
    %s88 = sphi 0, %s86
    %s89 = sphi 0, %s88
    %s103 = sphi 0, %s89
    %s109 = sphi 0, %s111
    %s112 = sphi 0, %s109
    %s113 = sphi 0, %s112
    %s129 = sphi 0, %s113
  $region4: #{tpu_custom_call.1} parent=0 // loop_header_branch
    %13 = sbr.rel (%p11) target = $region8
  $region5: #{tpu_custom_call.1} parent=0 // loop_body
    %s15 = ssub.s32 %s10, 1
    %s16 = ssub.s32 %s10, 2
    %s17 = sadd.s32 %s10, 1
    %s18 = ssub.s32 %s10, %s17
    %p19 = scmp.eq.s32.totalorder %s18, 0
    %s21 = sadd.s32 %s20, 1
    %s22 = scalar_select %p19, %s20, %s21
    %p25 = pneg %p19
    %p26 = scmp.eq.s32.totalorder %s10, 1
    %p27 = por %p25, %p26
    %p28 = scmp.ne.s32.totalorder %s20, %s23
    %p29 = scmp.eq.s32.totalorder %s10, 0
    %p30 = por %p28, %p29
    %p31 = scmp.ne.s32.totalorder %s20, %s23
    %p32 = scmp.eq.s32.totalorder %s15, 1
    %p33 = por %p31, %p32
    %p34 = scmp.ne.s32.totalorder %s23, %s24
    %p35 = scmp.eq.s32.totalorder %s15, 0
    %p36 = por %p34, %p35
    %p37 = scmp.ne.s32.totalorder %s23, %s24
    %p38 = scmp.eq.s32.totalorder %s16, 1
    %p39 = por %p37, %p38
    %p41 = scmp.ne.s32.totalorder %s24, %s40
    %p42 = scmp.eq.s32.totalorder %s16, 0
    %p43 = por %p41, %p42
    %s45 = sadd.s32 %s44, 1
    %p48 = scmp.eq.s32.totalorder %s10, 1
    %p49 = scmp.ne.s32.totalorder %s44, %s46
    %p50 = scmp.eq.s32.totalorder %s10, 0
    %p51 = por %p49, %p50
    %p52 = scmp.ne.s32.totalorder %s44, %s46
    %p53 = scmp.eq.s32.totalorder %s15, 1
    %p54 = por %p52, %p53
    %p55 = scmp.ne.s32.totalorder %s46, %s47
    %p56 = scmp.eq.s32.totalorder %s15, 0
    %p57 = por %p55, %p56
    %p58 = scmp.ne.s32.totalorder %s46, %s47
    %p59 = scmp.eq.s32.totalorder %s16, 1
    %p60 = por %p58, %p59
    %p62 = scmp.ne.s32.totalorder %s47, %s61
    %p63 = scmp.eq.s32.totalorder %s16, 0
    %p64 = por %p62, %p63
    %s66 = sadd.s32 %s65, 1
    %p69 = scmp.eq.s32.totalorder %s10, 1
    %p70 = scmp.ne.s32.totalorder %s65, %s67
    %p71 = scmp.eq.s32.totalorder %s10, 0
    %p72 = por %p70, %p71
    %p73 = scmp.ne.s32.totalorder %s65, %s67
    %p74 = scmp.eq.s32.totalorder %s15, 1
    %p75 = por %p73, %p74
    %p76 = scmp.ne.s32.totalorder %s67, %s68
    %p77 = scmp.eq.s32.totalorder %s15, 0
    %p78 = por %p76, %p77
    %p79 = scmp.ne.s32.totalorder %s67, %s68
    %p80 = scmp.eq.s32.totalorder %s16, 1
    %p81 = por %p79, %p80
    %p83 = scmp.ne.s32.totalorder %s68, %s82
    %p84 = scmp.eq.s32.totalorder %s16, 0
    %p85 = por %p83, %p84
    %s87 = sadd.s32 %s86, 1
    %p90 = scmp.eq.s32.totalorder %s10, 1
    %p91 = scmp.ne.s32.totalorder %s86, %s88
    %p92 = scmp.eq.s32.totalorder %s10, 0
    %p93 = por %p91, %p92
    %p94 = scmp.ne.s32.totalorder %s86, %s88
    %p95 = scmp.eq.s32.totalorder %s15, 1
    %p96 = por %p94, %p95
    %p97 = scmp.ne.s32.totalorder %s88, %s89
    %p98 = scmp.eq.s32.totalorder %s15, 0
    %p99 = por %p97, %p98
    %p100 = scmp.ne.s32.totalorder %s88, %s89
    %p101 = scmp.eq.s32.totalorder %s16, 1
    %p102 = por %p100, %p101
    %p104 = scmp.ne.s32.totalorder %s89, %s103
    %p105 = scmp.eq.s32.totalorder %s16, 0
    %p106 = por %p104, %p105
    %s107 = ssub.s32 %s10, %s17
    %p108 = scmp.eq.s32.totalorder %s107, 0
    %s110 = sadd.s32 %s109, 1
    %s111 = scalar_select %p108, %s109, %s110
    %p114 = pneg %p108
    %p115 = scmp.eq.s32.totalorder %s10, 1
    %p116 = por %p114, %p115
    %p117 = scmp.ne.s32.totalorder %s109, %s112
    %p118 = scmp.eq.s32.totalorder %s10, 0
    %p119 = por %p117, %p118
    %p120 = scmp.ne.s32.totalorder %s109, %s112
    %p121 = scmp.eq.s32.totalorder %s15, 1
    %p122 = por %p120, %p121
    %p123 = scmp.ne.s32.totalorder %s112, %s113
    %p124 = scmp.eq.s32.totalorder %s15, 0
    %p125 = por %p123, %p124
    %p126 = scmp.ne.s32.totalorder %s112, %s113
    %p127 = scmp.eq.s32.totalorder %s16, 1
    %p128 = por %p126, %p127
    %p130 = scmp.ne.s32.totalorder %s113, %s129
    %p131 = scmp.eq.s32.totalorder %s16, 0
    %p132 = por %p130, %p131
    %p133 = scmp.le.s32.totalorder 1, %s10
    %p134 = scmp.lt.s32.totalorder %s10, 3
    %p135 = pnand %p133, %p134
    %p136 = pneg %p135
    // Predicated region
    $region9: #{tpu_custom_call.1} parent=5 // pred_check
      _
    $region10: #{tpu_custom_call.1} parent=5 // pred_check_branch
      %138 = sbr.rel (%p135) target = $region12
    $region11: #{tpu_custom_call.1} parent=5 // pred_region
      %s139 = ssub.s32 %s10, 1
      // Predicated region
      $region13: #{tpu_custom_call.1} parent=11 // pred_check
        %p140 = pneg %p57
      $region14: #{tpu_custom_call.1} parent=11 // pred_check_branch
        %142 = sbr.rel (%p140) target = $region16
      $region15: #{tpu_custom_call.1} parent=11 // pred_region
        _
      $region16: #{tpu_custom_call.1} parent=11 // pred_fallthru
        _
      // Predicated region
      $region17: #{tpu_custom_call.1} parent=11 // pred_check
        %p143 = pneg %p78
      $region18: #{tpu_custom_call.1} parent=11 // pred_check_branch
        %145 = sbr.rel (%p143) target = $region20
      $region19: #{tpu_custom_call.1} parent=11 // pred_region
        _
      $region20: #{tpu_custom_call.1} parent=11 // pred_fallthru
        _
      // Predicated region
      $region21: #{tpu_custom_call.1} parent=11 // pred_check
        %p146 = pneg %p99
      $region22: #{tpu_custom_call.1} parent=11 // pred_check_branch
        %148 = sbr.rel (%p146) target = $region24
      $region23: #{tpu_custom_call.1} parent=11 // pred_region
        _
      $region24: #{tpu_custom_call.1} parent=11 // pred_fallthru
        _
    $region12: #{tpu_custom_call.1} parent=5 // pred_fallthru
      _
    %p149 = scmp.lt.s32.totalorder %s10, 2
    // Predicated region
    $region25: #{tpu_custom_call.1} parent=5 // pred_check
      %p150 = pneg %p149
    $region26: #{tpu_custom_call.1} parent=5 // pred_check_branch
      %152 = sbr.rel (%p150) target = $region28
    $region27: #{tpu_custom_call.1} parent=5 // pred_region
      // Predicated region
      $region29: #{tpu_custom_call.1} parent=27 // pred_check
        %p153 = pneg %p30
      $region30: #{tpu_custom_call.1} parent=27 // pred_check_branch
        %155 = sbr.rel (%p153) target = $region32
      $region31: #{tpu_custom_call.1} parent=27 // pred_region
        %p156 = scmp.lt.s32.totalorder %s10, 1
        %s157 = scalar_select %p156, %s10, 1
        %s158 = smul.addr %s157, 8
        %s159 = smul.addr %s158, 8
        %s160 = scalar_lea.vmem %s0, %s159
      $region32: #{tpu_custom_call.1} parent=27 // pred_fallthru
        _
    $region28: #{tpu_custom_call.1} parent=5 // pred_fallthru
      _
    %p161 = scmp.le.s32.totalorder 1, %s10
    %p162 = scmp.lt.s32.totalorder %s10, 3
    %p163 = pnand %p161, %p162
    %p164 = pneg %p163
    // Predicated region
    $region33: #{tpu_custom_call.1} parent=5 // pred_check
      _
    $region34: #{tpu_custom_call.1} parent=5 // pred_check_branch
      %166 = sbr.rel (%p163) target = $region36
    $region35: #{tpu_custom_call.1} parent=5 // pred_region
      %s167 = ssub.s32 %s10, 1
      %p168 = scmp.lt.s32.totalorder %s15, 1
      %s169 = scalar_select %p168, %s15, 1
      %s170 = smul.addr %s169, 8
      %s171 = smul.addr %s170, 8
      %s172 = scalar_lea.vmem %s0, %s171
      %p173 = pneg %p36
      %p174 = pneg %p33
      %p175 = pneg %p57
      %p176 = pneg %p54
      %p177 = pneg %p78
      %p178 = pneg %p75
      %p179 = pneg %p99
      %p180 = pneg %p96
      %p181 = pneg %p125
      %p182 = pneg %p122
      %p183 = scmp.lt.s32.totalorder %s15, 1
      %s184 = scalar_select %p183, %s15, 1
      %s185 = smul.addr %s184, 8
      %s186 = smul.addr %s185, 8
      %s187 = scalar_lea.vmem %s4, %s186
      %p188 = scmp.lt.s32.totalorder %s15, 1
      %s189 = scalar_select %p188, %s15, 1
      %s190 = smul.addr %s189, 8
      %s191 = smul.addr %s190, 8
      %s192 = scalar_lea.vmem %s0, %s191
      %p193 = scmp.lt.s32.totalorder %s15, 1
      %s194 = scalar_select %p193, %s15, 1
      %s195 = smul.addr %s194, 8
      %s196 = smul.addr %s195, 8
      %s197 = scalar_lea.vmem %s4, %s196
      %v199 = vld [vmem:[%s192] sm:$0xff]
      %v200 = vld [vmem:[%s192 + $0x8] sm:$0xff]
      %v201 = vld [vmem:[%s192 + $0x10] sm:$0xff]
      %v202 = vld [vmem:[%s192 + $0x18] sm:$0xff]
      %v203 = vld [vmem:[%s192 + $0x20] sm:$0xff]
      %v204 = vld [vmem:[%s192 + $0x28] sm:$0xff]
      %v205 = vld [vmem:[%s192 + $0x30] sm:$0xff]
      %v206 = vld [vmem:[%s192 + $0x38] sm:$0xff]
      %v207 = vld [vmem:[%s1] sm:$0x1]
      %v208 = vld [vmem:[%s1 + $0x1] sm:$0x1]
      %vm209 = vcmask 261120
      %v210 = vsel %vm209, %v199, 0.0
      %211 = vadd.xlane.f32.xlu0 %v210
      %v212 = vpop.xlane.xlu0 %211
      %v213 = vsel %vm209, %v200, 0.0
      %214 = vadd.xlane.f32.xlu0 %v213
      %v215 = vpop.xlane.xlu0 %214
      %v216 = vsel %vm209, %v201, 0.0
      %217 = vadd.xlane.f32.xlu0 %v216
      %v218 = vpop.xlane.xlu0 %217
      %v219 = vsel %vm209, %v202, 0.0
      %220 = vadd.xlane.f32.xlu0 %v219
      %v221 = vpop.xlane.xlu0 %220
      %v222 = vsel %vm209, %v203, 0.0
      %223 = vadd.xlane.f32.xlu0 %v222
      %v224 = vpop.xlane.xlu0 %223
      %v225 = vsel %vm209, %v204, 0.0
      %226 = vadd.xlane.f32.xlu0 %v225
      %v227 = vpop.xlane.xlu0 %226
      %v228 = vsel %vm209, %v205, 0.0
      %229 = vadd.xlane.f32.xlu0 %v228
      %v230 = vpop.xlane.xlu0 %229
      %v231 = vsel %vm209, %v206, 0.0
      %232 = vadd.xlane.f32.xlu0 %v231
      %v233 = vpop.xlane.xlu0 %232
      %v234 = vrcp.pop 32.0
      %v235 = vmul.f32 %v212, %v234
      %v236 = vmul.f32 %v215, %v234
      %v237 = vmul.f32 %v218, %v234
      %v238 = vmul.f32 %v221, %v234
      %v239 = vmul.f32 %v224, %v234
      %v240 = vmul.f32 %v227, %v234
      %v241 = vmul.f32 %v230, %v234
      %v242 = vmul.f32 %v233, %v234
      %v243 = vsub.f32 %v199, %v235
      %v244 = vsub.f32 %v200, %v236
      %v245 = vsub.f32 %v201, %v237
      %v246 = vsub.f32 %v202, %v238
      %v247 = vsub.f32 %v203, %v239
      %v248 = vsub.f32 %v204, %v240
      %v249 = vsub.f32 %v205, %v241
      %v250 = vsub.f32 %v206, %v242
      %v251 = vmul.f32 %v243, %v243
      %v252 = vmul.f32 %v244, %v244
      %v253 = vmul.f32 %v245, %v245
      %v254 = vmul.f32 %v246, %v246
      %v255 = vmul.f32 %v247, %v247
      %v256 = vmul.f32 %v248, %v248
      %v257 = vmul.f32 %v249, %v249
      %v258 = vmul.f32 %v250, %v250
      %v259 = vsel %vm209, %v251, 0.0
      %260 = vadd.xlane.f32.xlu0 %v259
      %v261 = vpop.xlane.xlu0 %260
      %v262 = vsel %vm209, %v252, 0.0
      %263 = vadd.xlane.f32.xlu0 %v262
      %v264 = vpop.xlane.xlu0 %263
      %v265 = vsel %vm209, %v253, 0.0
      %266 = vadd.xlane.f32.xlu0 %v265
      %v267 = vpop.xlane.xlu0 %266
      %v268 = vsel %vm209, %v254, 0.0
      %269 = vadd.xlane.f32.xlu0 %v268
      %v270 = vpop.xlane.xlu0 %269
      %v271 = vsel %vm209, %v255, 0.0
      %272 = vadd.xlane.f32.xlu0 %v271
      %v273 = vpop.xlane.xlu0 %272
      %v274 = vsel %vm209, %v256, 0.0
      %275 = vadd.xlane.f32.xlu0 %v274
      %v276 = vpop.xlane.xlu0 %275
      %v277 = vsel %vm209, %v257, 0.0
      %278 = vadd.xlane.f32.xlu0 %v277
      %v279 = vpop.xlane.xlu0 %278
      %v280 = vsel %vm209, %v258, 0.0
      %281 = vadd.xlane.f32.xlu0 %v280
      %v282 = vpop.xlane.xlu0 %281
      %v283 = vmul.f32 %v261, %v234
      %v284 = vmul.f32 %v264, %v234
      %v285 = vmul.f32 %v267, %v234
      %v286 = vmul.f32 %v270, %v234
      %v287 = vmul.f32 %v273, %v234
      %v288 = vmul.f32 %v276, %v234
      %v289 = vmul.f32 %v279, %v234
      %v290 = vmul.f32 %v282, %v234
      %v291 = vadd.f32 %v283, 1e-05
      %v292 = vadd.f32 %v284, 1e-05
      %v293 = vadd.f32 %v285, 1e-05
      %v294 = vadd.f32 %v286, 1e-05
      %v295 = vadd.f32 %v287, 1e-05
      %v296 = vadd.f32 %v288, 1e-05
      %v297 = vadd.f32 %v289, 1e-05
      %v298 = vadd.f32 %v290, 1e-05
      %v299 = vrsqrt.pop %v291
      %v300 = vrsqrt.pop %v292
      %v301 = vrsqrt.pop %v293
      %v302 = vrsqrt.pop %v294
      %v303 = vrsqrt.pop %v295
      %v304 = vrsqrt.pop %v296
      %v305 = vrsqrt.pop %v297
      %v306 = vrsqrt.pop %v298
      %v307 = vmul.f32 %v243, %v299
      %v308 = vmul.f32 %v244, %v300
      %v309 = vmul.f32 %v245, %v301
      %v310 = vmul.f32 %v246, %v302
      %v311 = vmul.f32 %v247, %v303
      %v312 = vmul.f32 %v248, %v304
      %v313 = vmul.f32 %v249, %v305
      %v314 = vmul.f32 %v250, %v306
      %v315 = vlaneseq
      %v316 = vshrl.u32 %v315, 7
      %v317 = vsub.s32 0, %v316
      %v318 = vrot.slane %v207, %v317
      %v319 = vmul.f32 %v307, %v318
      %v320 = vmul.f32 %v308, %v318
      %v321 = vmul.f32 %v309, %v318
      %v322 = vmul.f32 %v310, %v318
      %v323 = vmul.f32 %v311, %v318
      %v324 = vmul.f32 %v312, %v318
      %v325 = vmul.f32 %v313, %v318
      %v326 = vmul.f32 %v314, %v318
      %v327 = vlaneseq
      %v328 = vshrl.u32 %v327, 7
      %v329 = vsub.s32 0, %v328
      %v330 = vrot.slane %v208, %v329
      %v331 = vadd.f32 %v319, %v330
      %v332 = vadd.f32 %v320, %v330
      %v333 = vadd.f32 %v321, %v330
      %v334 = vadd.f32 %v322, %v330
      %v335 = vadd.f32 %v323, %v330
      %v336 = vadd.f32 %v324, %v330
      %v337 = vadd.f32 %v325, %v330
      %v338 = vadd.f32 %v326, %v330
      %v339 = vpack.c.bf16 %v332, %v331
      %v340 = vpack.c.bf16 %v334, %v333
      %v341 = vpack.c.bf16 %v336, %v335
      %v342 = vpack.c.bf16 %v338, %v337
      %v343 = vld [vmem:[%s2] sm:$0xf]
      %v344 = vld [vmem:[%s2 + $0x4] sm:$0xf]
      %v345 = vld [vmem:[%s2 + $0x8] sm:$0xf]
      %v346 = vld [vmem:[%s2 + $0xc] sm:$0xf]
      %v347 = vld [vmem:[%s1 + $0x2] sm:$0x1]
      %v348 = vlaneseq
      %v349 = vshrl.u32 %v348, 7
      %v350 = vsub.s32 0, %v349
      %v351 = vrot.slane %v347, %v350
      %v356 = vunpack.c.l.b16 %v343
      %v357 = vunpack.c.l.b16 %v344
      %v358 = vunpack.c.l.b16 %v345
      %v359 = vunpack.c.l.b16 %v346
      %v360 = vpack.c.b16 %v357, %v356
      %v361 = vpack.c.b16 %v359, %v358
      %v365 = vsel %vm209, %v339, 0
      %v368 = vsel %vm209, %v340, 0
      %v371 = vsel %vm209, %v341, 0
      %v374 = vsel %vm209, %v342, 0
      %376 = vmatprep.subr.bf16.mxu0 0
      %377 = vmatpush1.bf16.msra.mxu0 0
      %378 = vmatprep.subr.bf16.mxu0 0
      %379 = vmatpush1.bf16.msra.mxu0 0
      %380 = vmatprep.subr.bf16.mxu0 0
      %381 = vmatpush1.bf16.msra.mxu0 0
      %382 = vmatprep.subr.bf16.mxu0 0
      %383 = vmatpush1.bf16.msra.mxu0 0
      %384 = vmatprep.subr.bf16.mxu0 0
      %385 = vmatpush1.bf16.msra.mxu0 0
      %386 = vmatprep.subr.bf16.mxu0 0
      %387 = vmatpush1.bf16.msra.mxu0 0
      %388 = vmatprep.subr.bf16.mxu0 0
      %389 = vmatpush1.bf16.msra.mxu0 %v361
      %390 = vmatprep.subr.bf16.mxu0 0
      %391 = vmatpush1.bf16.msra.mxu0 %v360
      %392 = vmatprep.subr.bf16.mxu0 0
      %393 = vmatpush2.bf16.msra.mxu0 0
      %394 = vmatprep.subr.bf16.mxu0 0
      %395 = vmatpush2.bf16.msra.mxu0 0
      %396 = vmatprep.subr.bf16.mxu0 0
      %397 = vmatpush2.bf16.msra.mxu0 0
      %398 = vmatprep.subr.bf16.mxu0 0
      %399 = vmatpush2.bf16.msra.mxu0 0
      %400 = vmatprep.subr.bf16.mxu0 0
      %401 = vmatpush2.bf16.msra.mxu0 0
      %402 = vmatprep.subr.bf16.mxu0 0
      %403 = vmatpush2.bf16.msra.mxu0 0
      %404 = vmatprep.subr.bf16.mxu0 0
      %405 = vmatpush2.bf16.msra.mxu0 0
      %406 = vmatprep.subr.bf16.mxu0 0
      %407 = vmatpush2.bf16.msra.mxu0 0
      %408 = vmatprep.mubr.bf16.mxu0 0
      %409 = vmatmul.mubr.bf16.gmra.mxu0 %v365
      %v410 = vpop.f32.mrf.mxu0
      %v411 = vadd.f32 %v351, %v410
      %v412 = vpop.f32.mrf.mxu0
      %v413 = vpop.f32.mrf.mxu0
      %v414 = vadd.f32 %v351, %v413
      %v415 = vpop.f32.mrf.mxu0
      %416 = vmatprep.mubr.bf16.mxu0 0
      %417 = vmatmul.mubr.bf16.gmra.mxu0 %v368
      %v418 = vpop.f32.mrf.mxu0
      %v419 = vadd.f32 %v351, %v418
      %v420 = vpop.f32.mrf.mxu0
      %v421 = vpop.f32.mrf.mxu0
      %v422 = vadd.f32 %v351, %v421
      %v423 = vpop.f32.mrf.mxu0
      %424 = vmatprep.mubr.bf16.mxu0 0
      %425 = vmatmul.mubr.bf16.gmra.mxu0 %v371
      %v426 = vpop.f32.mrf.mxu0
      %v427 = vadd.f32 %v351, %v426
      %v428 = vpop.f32.mrf.mxu0
      %v429 = vpop.f32.mrf.mxu0
      %v430 = vadd.f32 %v351, %v429
      %v431 = vpop.f32.mrf.mxu0
      %432 = vmatprep.mubr.bf16.mxu0 0
      %433 = vmatmul.mubr.bf16.gmra.mxu0 %v374
      %v434 = vpop.f32.mrf.mxu0
      %v435 = vadd.f32 %v351, %v434
      %v436 = vpop.f32.mrf.mxu0
      %v437 = vpop.f32.mrf.mxu0
      %v438 = vadd.f32 %v351, %v437
      %v439 = vpop.f32.mrf.mxu0
      %440 = vdwg.mxu0
      %v441 = vmul.f32 %v411, 0.5
      %v442 = vmul.f32 %v414, 0.5
      %v443 = vmul.f32 %v419, 0.5
      %v444 = vmul.f32 %v422, 0.5
      %v445 = vmul.f32 %v427, 0.5
      %v446 = vmul.f32 %v430, 0.5
      %v447 = vmul.f32 %v435, 0.5
      %v448 = vmul.f32 %v438, 0.5
      %449 = vst.msk [vmem:[#allocation2] sm:$0xff] %vm209, %v331
      %450 = vst.msk [vmem:[#allocation2 + $0x8] sm:$0xff] %vm209, %v332
      %451 = vst.msk [vmem:[#allocation2 + $0x10] sm:$0xff] %vm209, %v333
      %452 = vst.msk [vmem:[#allocation2 + $0x18] sm:$0xff] %vm209, %v334
      %453 = vst.msk [vmem:[#allocation2 + $0x20] sm:$0xff] %vm209, %v335
      %454 = vst.msk [vmem:[#allocation2 + $0x28] sm:$0xff] %vm209, %v336
      %455 = vst.msk [vmem:[#allocation2 + $0x30] sm:$0xff] %vm209, %v337
      %456 = vst.msk [vmem:[#allocation2 + $0x38] sm:$0xff] %vm209, %v338
      %v457 = vld [vmem:[#allocation2] ss:$2 sm:$0xf]
      %s458 = scalar_lea.vmem [#allocation2], 16
      %v459 = vld [vmem:[%s458] ss:$2 sm:$0xf]
      %s460 = scalar_lea.vmem [#allocation2], 32
      %v461 = vld [vmem:[%s460] ss:$2 sm:$0xf]
      %s462 = scalar_lea.vmem [#allocation2], 48
      %v463 = vld [vmem:[%s462] ss:$2 sm:$0xf]
      %v465 = vrot.slane %v459, 4
      %v468 = vrot.slane %v463, 4
      %vm470 = vcmask 1043456
      %v471 = vsel %vm470, %v457, %v465
      %v472 = vsel %vm470, %v461, %v468
      %s473 = scalar_lea.vmem [#allocation2], 1
      %v474 = vld [vmem:[%s473] ss:$2 sm:$0xf]
      %s475 = scalar_lea.vmem [#allocation2], 17
      %v476 = vld [vmem:[%s475] ss:$2 sm:$0xf]
      %s477 = scalar_lea.vmem [#allocation2], 33
      %v478 = vld [vmem:[%s477] ss:$2 sm:$0xf]
      %s479 = scalar_lea.vmem [#allocation2], 49
      %v480 = vld [vmem:[%s479] ss:$2 sm:$0xf]
      %v482 = vrot.slane %v476, 4
      %v485 = vrot.slane %v480, 4
      %v487 = vsel %vm470, %v474, %v482
      %v488 = vsel %vm470, %v478, %v485
      %s489 = scalar_lea.vmem [#allocation2], 8
      %v490 = vld [vmem:[%s489] ss:$2 sm:$0xf]
      %s491 = scalar_lea.vmem [#allocation2], 24
      %v492 = vld [vmem:[%s491] ss:$2 sm:$0xf]
      %s493 = scalar_lea.vmem [#allocation2], 40
      %v494 = vld [vmem:[%s493] ss:$2 sm:$0xf]
      %s495 = scalar_lea.vmem [#allocation2], 56
      %v496 = vld [vmem:[%s495] ss:$2 sm:$0xf]
      %v498 = vrot.slane %v492, 4
      %v501 = vrot.slane %v496, 4
      %v503 = vsel %vm470, %v490, %v498
      %v504 = vsel %vm470, %v494, %v501
      %s505 = scalar_lea.vmem [#allocation2], 9
      %v506 = vld [vmem:[%s505] ss:$2 sm:$0xf]
      %s507 = scalar_lea.vmem [#allocation2], 25
      %v508 = vld [vmem:[%s507] ss:$2 sm:$0xf]
      %s509 = scalar_lea.vmem [#allocation2], 41
      %v510 = vld [vmem:[%s509] ss:$2 sm:$0xf]
      %s511 = scalar_lea.vmem [#allocation2], 57
      %v512 = vld [vmem:[%s511] ss:$2 sm:$0xf]
      %v514 = vrot.slane %v508, 4
      %v517 = vrot.slane %v512, 4
      %v519 = vsel %vm470, %v506, %v514
      %v520 = vsel %vm470, %v510, %v517
      %523 = vrot.lane.b32.xlu0 %v487, 32
      %v524 = vpop.permute.xlu0 %523
      %525 = vrot.lane.b32.xlu0 %v488, 32
      %v526 = vpop.permute.xlu0 %525
      %531 = vrot.lane.b32.xlu0 %v503, 64
      %v532 = vpop.permute.xlu0 %531
      %533 = vrot.lane.b32.xlu0 %v504, 64
      %v534 = vpop.permute.xlu0 %533
      %539 = vrot.lane.b32.xlu0 %v519, 96
      %v540 = vpop.permute.xlu0 %539
      %541 = vrot.lane.b32.xlu0 %v520, 96
      %v542 = vpop.permute.xlu0 %541
      %v545 = vsel %vm209, %v471, %v524
      %v546 = vsel %vm209, %v472, %v526
      %vm547 = vcmask 523264
      %v548 = vsel %vm547, %v545, %v532
      %v549 = vsel %vm547, %v546, %v534
      %vm550 = vcmask 785408
      %v551 = vsel %vm550, %v548, %v540
      %v552 = vsel %vm550, %v549, %v542
      %v553 = vpack.c.bf16 %v552, %v551
      %v554 = vld [vmem:[%s3] sm:$0xf]
      %v555 = vld [vmem:[%s3 + $0x4] sm:$0xf]
      %v556 = vld [vmem:[%s3 + $0x8] sm:$0xf]
      %v557 = vld [vmem:[%s3 + $0xc] sm:$0xf]
      %v558 = vld [vmem:[%s3 + $0x10] sm:$0xf]
      %v559 = vld [vmem:[%s3 + $0x14] sm:$0xf]
      %v560 = vld [vmem:[%s3 + $0x18] sm:$0xf]
      %v561 = vld [vmem:[%s3 + $0x1c] sm:$0xf]
      %v562 = vld [vmem:[%s3 + $0x20] sm:$0xf]
      %v563 = vld [vmem:[%s3 + $0x24] sm:$0xf]
      %v564 = vld [vmem:[%s3 + $0x28] sm:$0xf]
      %v565 = vld [vmem:[%s3 + $0x2c] sm:$0xf]
      %v566 = vld [vmem:[%s3 + $0x30] sm:$0xf]
      %v567 = vld [vmem:[%s3 + $0x34] sm:$0xf]
      %v568 = vld [vmem:[%s3 + $0x38] sm:$0xf]
      %v569 = vld [vmem:[%s3 + $0x3c] sm:$0xf]
      %v570 = vld [vmem:[%s1 + $0x6] sm:$0x1]
      %v571 = vlaneseq
      %v572 = vshrl.u32 %v571, 7
      %v573 = vsub.s32 0, %v572
      %v574 = vrot.slane %v570, %v573
      %v591 = vunpack.c.l.b16 %v554
      %v592 = vunpack.c.l.b16 %v555
      %v593 = vunpack.c.l.b16 %v556
      %v594 = vunpack.c.l.b16 %v557
      %v595 = vunpack.c.l.b16 %v558
      %v596 = vunpack.c.l.b16 %v559
      %v597 = vunpack.c.l.b16 %v560
      %v598 = vunpack.c.l.b16 %v561
      %v599 = vunpack.c.l.b16 %v562
      %v600 = vunpack.c.l.b16 %v563
      %v601 = vunpack.c.l.b16 %v564
      %v602 = vunpack.c.l.b16 %v565
      %v603 = vunpack.c.l.b16 %v566
      %v604 = vunpack.c.l.b16 %v567
      %v605 = vunpack.c.l.b16 %v568
      %v606 = vunpack.c.l.b16 %v569
      %v607 = vpack.c.b16 %v592, %v591
      %v608 = vpack.c.b16 %v594, %v593
      %v609 = vpack.c.b16 %v596, %v595
      %v610 = vpack.c.b16 %v598, %v597
      %v611 = vpack.c.b16 %v600, %v599
      %v612 = vpack.c.b16 %v602, %v601
      %v613 = vpack.c.b16 %v604, %v603
      %v614 = vpack.c.b16 %v606, %v605
      %623 = vmatprep.subr.bf16.mxu0 0
      %624 = vmatpush1.bf16.msra.mxu0 %v614
      %625 = vmatprep.subr.bf16.mxu0 0
      %626 = vmatpush1.bf16.msra.mxu0 %v613
      %627 = vmatprep.subr.bf16.mxu0 0
      %628 = vmatpush1.bf16.msra.mxu0 %v612
      %629 = vmatprep.subr.bf16.mxu0 0
      %630 = vmatpush1.bf16.msra.mxu0 %v611
      %631 = vmatprep.subr.bf16.mxu0 0
      %632 = vmatpush1.bf16.msra.mxu0 %v610
      %633 = vmatprep.subr.bf16.mxu0 0
      %634 = vmatpush1.bf16.msra.mxu0 %v609
      %635 = vmatprep.subr.bf16.mxu0 0
      %636 = vmatpush1.bf16.msra.mxu0 %v608
      %637 = vmatprep.subr.bf16.mxu0 0
      %638 = vmatpush1.bf16.msra.mxu0 %v607
      %639 = vmatprep.subr.bf16.mxu0 0
      %640 = vmatpush2.bf16.msra.mxu0 0
      %641 = vmatprep.subr.bf16.mxu0 0
      %642 = vmatpush2.bf16.msra.mxu0 0
      %643 = vmatprep.subr.bf16.mxu0 0
      %644 = vmatpush2.bf16.msra.mxu0 0
      %645 = vmatprep.subr.bf16.mxu0 0
      %646 = vmatpush2.bf16.msra.mxu0 0
      %647 = vmatprep.subr.bf16.mxu0 0
      %648 = vmatpush2.bf16.msra.mxu0 0
      %649 = vmatprep.subr.bf16.mxu0 0
      %650 = vmatpush2.bf16.msra.mxu0 0
      %651 = vmatprep.subr.bf16.mxu0 0
      %652 = vmatpush2.bf16.msra.mxu0 0
      %653 = vmatprep.subr.bf16.mxu0 0
      %654 = vmatpush2.bf16.msra.mxu0 0
      %655 = vmatprep.mubr.bf16.mxu0 0
      %656 = vmatmul.mubr.bf16.gmra.mxu0 %v553
      %v657 = vpop.f32.mrf.mxu0
      %v658 = vadd.f32 %v574, %v657
      %v659 = vpop.f32.mrf.mxu0
      %v660 = vpop.f32.mrf.mxu0
      %v661 = vadd.f32 %v574, %v660
      %v662 = vpop.f32.mrf.mxu0
      %663 = vdwg.mxu0
      %v664 = vld [vmem:[%s1 + $0x7] sm:$0x1]
      %v665 = vld [vmem:[%s1 + $0x8] sm:$0x1]
      %v666 = vsel %vm209, %v658, 0.0
      %667 = vadd.xlane.f32.xlu0 %v666
      %v668 = vpop.xlane.xlu0 %667
      %v669 = vsel %vm209, %v661, 0.0
      %670 = vadd.xlane.f32.xlu0 %v669
      %v671 = vpop.xlane.xlu0 %670
      %v672 = vmul.f32 %v668, %v234
      %v673 = vmul.f32 %v671, %v234
      %v674 = vsub.f32 %v658, %v672
      %v675 = vsub.f32 %v661, %v673
      %v676 = vmul.f32 %v674, %v674
      %v677 = vmul.f32 %v675, %v675
      %v678 = vsel %vm209, %v676, 0.0
      %679 = vadd.xlane.f32.xlu0 %v678
      %v680 = vpop.xlane.xlu0 %679
      %v681 = vsel %vm209, %v677, 0.0
      %682 = vadd.xlane.f32.xlu0 %v681
      %v683 = vpop.xlane.xlu0 %682
      %v684 = vmul.f32 %v680, %v234
      %v685 = vmul.f32 %v683, %v234
      %v686 = vadd.f32 %v684, 1e-05
      %v687 = vadd.f32 %v685, 1e-05
      %v688 = vrsqrt.pop %v686
      %v689 = vrsqrt.pop %v687
      %v690 = vmul.f32 %v674, %v688
      %v691 = vmul.f32 %v675, %v689
      %v692 = vlaneseq
      %v693 = vshrl.u32 %v692, 7
      %v694 = vsub.s32 0, %v693
      %v695 = vrot.slane %v664, %v694
      %v696 = vmul.f32 %v690, %v695
      %v697 = vmul.f32 %v691, %v695
      %v698 = vlaneseq
      %v699 = vshrl.u32 %v698, 7
      %v700 = vsub.s32 0, %v699
      %v701 = vrot.slane %v665, %v700
      %v702 = vadd.f32 %v696, %v701
      %v703 = vadd.f32 %v697, %v701
      %v704 = vpack.c.bf16 %v703, %v702
      %s705 = scalar_lea.vmem %s2, 16
      %v706 = vld [vmem:[%s705] sm:$0xf]
      %v707 = vld [vmem:[%s705 + $0x4] sm:$0xf]
      %v708 = vld [vmem:[%s705 + $0x8] sm:$0xf]
      %v709 = vld [vmem:[%s705 + $0xc] sm:$0xf]
      %v710 = vld [vmem:[%s1 + $0x3] sm:$0x1]
      %v711 = vlaneseq
      %v712 = vshrl.u32 %v711, 7
      %v713 = vsub.s32 0, %v712
      %v714 = vrot.slane %v710, %v713
      %v719 = vunpack.c.l.b16 %v706
      %v720 = vunpack.c.l.b16 %v707
      %v721 = vunpack.c.l.b16 %v708
      %v722 = vunpack.c.l.b16 %v709
      %v723 = vpack.c.b16 %v720, %v719
      %v724 = vpack.c.b16 %v722, %v721
      %v728 = vsel %vm209, %v704, 0
      %730 = vmatprep.subr.bf16.mxu0 0
      %731 = vmatpush1.bf16.msra.mxu0 0
      %732 = vmatprep.subr.bf16.mxu0 0
      %733 = vmatpush1.bf16.msra.mxu0 0
      %734 = vmatprep.subr.bf16.mxu0 0
      %735 = vmatpush1.bf16.msra.mxu0 0
      %736 = vmatprep.subr.bf16.mxu0 0
      %737 = vmatpush1.bf16.msra.mxu0 0
      %738 = vmatprep.subr.bf16.mxu0 0
      %739 = vmatpush1.bf16.msra.mxu0 0
      %740 = vmatprep.subr.bf16.mxu0 0
      %741 = vmatpush1.bf16.msra.mxu0 0
      %742 = vmatprep.subr.bf16.mxu0 0
      %743 = vmatpush1.bf16.msra.mxu0 %v724
      %744 = vmatprep.subr.bf16.mxu0 0
      %745 = vmatpush1.bf16.msra.mxu0 %v723
      %746 = vmatprep.subr.bf16.mxu0 0
      %747 = vmatpush2.bf16.msra.mxu0 0
      %748 = vmatprep.subr.bf16.mxu0 0
      %749 = vmatpush2.bf16.msra.mxu0 0
      %750 = vmatprep.subr.bf16.mxu0 0
      %751 = vmatpush2.bf16.msra.mxu0 0
      %752 = vmatprep.subr.bf16.mxu0 0
      %753 = vmatpush2.bf16.msra.mxu0 0
      %754 = vmatprep.subr.bf16.mxu0 0
      %755 = vmatpush2.bf16.msra.mxu0 0
      %756 = vmatprep.subr.bf16.mxu0 0
      %757 = vmatpush2.bf16.msra.mxu0 0
      %758 = vmatprep.subr.bf16.mxu0 0
      %759 = vmatpush2.bf16.msra.mxu0 0
      %760 = vmatprep.subr.bf16.mxu0 0
      %761 = vmatpush2.bf16.msra.mxu0 0
      %762 = vmatprep.mubr.bf16.mxu0 0
      %763 = vmatmul.mubr.bf16.gmra.mxu0 %v728
      %v764 = vpop.f32.mrf.mxu0
      %v765 = vadd.f32 %v714, %v764
      %v766 = vpop.f32.mrf.mxu0
      %v767 = vpop.f32.mrf.mxu0
      %v768 = vadd.f32 %v714, %v767
      %v769 = vpop.f32.mrf.mxu0
      %770 = vdwg.mxu0
      %s771 = scalar_lea.vmem %s2, 32
      %v772 = vld [vmem:[%s771] sm:$0xf]
      %v773 = vld [vmem:[%s771 + $0x4] sm:$0xf]
      %v774 = vld [vmem:[%s771 + $0x8] sm:$0xf]
      %v775 = vld [vmem:[%s771 + $0xc] sm:$0xf]
      %v776 = vld [vmem:[%s1 + $0x4] sm:$0x1]
      %v777 = vlaneseq
      %v778 = vshrl.u32 %v777, 7
      %v779 = vsub.s32 0, %v778
      %v780 = vrot.slane %v776, %v779
      %v785 = vunpack.c.l.b16 %v772
      %v786 = vunpack.c.l.b16 %v773
      %v787 = vunpack.c.l.b16 %v774
      %v788 = vunpack.c.l.b16 %v775
      %v789 = vpack.c.b16 %v786, %v785
      %v790 = vpack.c.b16 %v788, %v787
      %793 = vmatprep.subr.bf16.mxu0 0
      %794 = vmatpush1.bf16.msra.mxu0 0
      %795 = vmatprep.subr.bf16.mxu0 0
      %796 = vmatpush1.bf16.msra.mxu0 0
      %797 = vmatprep.subr.bf16.mxu0 0
      %798 = vmatpush1.bf16.msra.mxu0 0
      %799 = vmatprep.subr.bf16.mxu0 0
      %800 = vmatpush1.bf16.msra.mxu0 0
      %801 = vmatprep.subr.bf16.mxu0 0
      %802 = vmatpush1.bf16.msra.mxu0 0
      %803 = vmatprep.subr.bf16.mxu0 0
      %804 = vmatpush1.bf16.msra.mxu0 0
      %805 = vmatprep.subr.bf16.mxu0 0
      %806 = vmatpush1.bf16.msra.mxu0 %v790
      %807 = vmatprep.subr.bf16.mxu0 0
      %808 = vmatpush1.bf16.msra.mxu0 %v789
      %809 = vmatprep.subr.bf16.mxu0 0
      %810 = vmatpush2.bf16.msra.mxu0 0
      %811 = vmatprep.subr.bf16.mxu0 0
      %812 = vmatpush2.bf16.msra.mxu0 0
      %813 = vmatprep.subr.bf16.mxu0 0
      %814 = vmatpush2.bf16.msra.mxu0 0
      %815 = vmatprep.subr.bf16.mxu0 0
      %816 = vmatpush2.bf16.msra.mxu0 0
      %817 = vmatprep.subr.bf16.mxu0 0
      %818 = vmatpush2.bf16.msra.mxu0 0
      %819 = vmatprep.subr.bf16.mxu0 0
      %820 = vmatpush2.bf16.msra.mxu0 0
      %821 = vmatprep.subr.bf16.mxu0 0
      %822 = vmatpush2.bf16.msra.mxu0 0
      %823 = vmatprep.subr.bf16.mxu0 0
      %824 = vmatpush2.bf16.msra.mxu0 0
      %825 = vmatprep.mubr.bf16.mxu0 0
      %826 = vmatmul.mubr.bf16.gmra.mxu0 %v728
      %v827 = vpop.f32.mrf.mxu0
      %v828 = vadd.f32 %v780, %v827
      %v829 = vpop.f32.mrf.mxu0
      %v830 = vpop.f32.mrf.mxu0
      %v831 = vadd.f32 %v780, %v830
      %v832 = vpop.f32.mrf.mxu0
      %833 = vdwg.mxu0
      %842 = vrot.lane.b32.xlu0 %v441, 124
      %v843 = vpop.permute.xlu0 %842
      %844 = vrot.lane.b32.xlu0 %v442, 124
      %v845 = vpop.permute.xlu0 %844
      %846 = vrot.lane.b32.xlu0 %v443, 124
      %v847 = vpop.permute.xlu0 %846
      %848 = vrot.lane.b32.xlu0 %v444, 124
      %v849 = vpop.permute.xlu0 %848
      %850 = vrot.lane.b32.xlu0 %v445, 124
      %v851 = vpop.permute.xlu0 %850
      %852 = vrot.lane.b32.xlu0 %v446, 124
      %v853 = vpop.permute.xlu0 %852
      %854 = vrot.lane.b32.xlu0 %v447, 124
      %v855 = vpop.permute.xlu0 %854
      %856 = vrot.lane.b32.xlu0 %v448, 124
      %v857 = vpop.permute.xlu0 %856
      %866 = vrot.lane.b32.xlu0 %v441, 120
      %v867 = vpop.permute.xlu0 %866
      %868 = vrot.lane.b32.xlu0 %v442, 120
      %v869 = vpop.permute.xlu0 %868
      %870 = vrot.lane.b32.xlu0 %v443, 120
      %v871 = vpop.permute.xlu0 %870
      %872 = vrot.lane.b32.xlu0 %v444, 120
      %v873 = vpop.permute.xlu0 %872
      %874 = vrot.lane.b32.xlu0 %v445, 120
      %v875 = vpop.permute.xlu0 %874
      %876 = vrot.lane.b32.xlu0 %v446, 120
      %v877 = vpop.permute.xlu0 %876
      %878 = vrot.lane.b32.xlu0 %v447, 120
      %v879 = vpop.permute.xlu0 %878
      %880 = vrot.lane.b32.xlu0 %v448, 120
      %v881 = vpop.permute.xlu0 %880
      %890 = vrot.lane.b32.xlu0 %v441, 116
      %v891 = vpop.permute.xlu0 %890
      %892 = vrot.lane.b32.xlu0 %v442, 116
      %v893 = vpop.permute.xlu0 %892
      %894 = vrot.lane.b32.xlu0 %v443, 116
      %v895 = vpop.permute.xlu0 %894
      %896 = vrot.lane.b32.xlu0 %v444, 116
      %v897 = vpop.permute.xlu0 %896
      %898 = vrot.lane.b32.xlu0 %v445, 116
      %v899 = vpop.permute.xlu0 %898
      %900 = vrot.lane.b32.xlu0 %v446, 116
      %v901 = vpop.permute.xlu0 %900
      %902 = vrot.lane.b32.xlu0 %v447, 116
      %v903 = vpop.permute.xlu0 %902
      %904 = vrot.lane.b32.xlu0 %v448, 116
      %v905 = vpop.permute.xlu0 %904
      %914 = vrot.lane.b32.xlu0 %v441, 112
      %v915 = vpop.permute.xlu0 %914
      %916 = vrot.lane.b32.xlu0 %v442, 112
      %v917 = vpop.permute.xlu0 %916
      %918 = vrot.lane.b32.xlu0 %v443, 112
      %v919 = vpop.permute.xlu0 %918
      %920 = vrot.lane.b32.xlu0 %v444, 112
      %v921 = vpop.permute.xlu0 %920
      %922 = vrot.lane.b32.xlu0 %v445, 112
      %v923 = vpop.permute.xlu0 %922
      %924 = vrot.lane.b32.xlu0 %v446, 112
      %v925 = vpop.permute.xlu0 %924
      %926 = vrot.lane.b32.xlu0 %v447, 112
      %v927 = vpop.permute.xlu0 %926
      %928 = vrot.lane.b32.xlu0 %v448, 112
      %v929 = vpop.permute.xlu0 %928
      %938 = vrot.lane.b32.xlu0 %v441, 108
      %v939 = vpop.permute.xlu0 %938
      %940 = vrot.lane.b32.xlu0 %v442, 108
      %v941 = vpop.permute.xlu0 %940
      %942 = vrot.lane.b32.xlu0 %v443, 108
      %v943 = vpop.permute.xlu0 %942
      %944 = vrot.lane.b32.xlu0 %v444, 108
      %v945 = vpop.permute.xlu0 %944
      %946 = vrot.lane.b32.xlu0 %v445, 108
      %v947 = vpop.permute.xlu0 %946
      %948 = vrot.lane.b32.xlu0 %v446, 108
      %v949 = vpop.permute.xlu0 %948
      %950 = vrot.lane.b32.xlu0 %v447, 108
      %v951 = vpop.permute.xlu0 %950
      %952 = vrot.lane.b32.xlu0 %v448, 108
      %v953 = vpop.permute.xlu0 %952
      %962 = vrot.lane.b32.xlu0 %v441, 104
      %v963 = vpop.permute.xlu0 %962
      %964 = vrot.lane.b32.xlu0 %v442, 104
      %v965 = vpop.permute.xlu0 %964
      %966 = vrot.lane.b32.xlu0 %v443, 104
      %v967 = vpop.permute.xlu0 %966
      %968 = vrot.lane.b32.xlu0 %v444, 104
      %v969 = vpop.permute.xlu0 %968
      %970 = vrot.lane.b32.xlu0 %v445, 104
      %v971 = vpop.permute.xlu0 %970
      %972 = vrot.lane.b32.xlu0 %v446, 104
      %v973 = vpop.permute.xlu0 %972
      %974 = vrot.lane.b32.xlu0 %v447, 104
      %v975 = vpop.permute.xlu0 %974
      %976 = vrot.lane.b32.xlu0 %v448, 104
      %v977 = vpop.permute.xlu0 %976
      %986 = vrot.lane.b32.xlu0 %v441, 100
      %v987 = vpop.permute.xlu0 %986
      %988 = vrot.lane.b32.xlu0 %v442, 100
      %v989 = vpop.permute.xlu0 %988
      %990 = vrot.lane.b32.xlu0 %v443, 100
      %v991 = vpop.permute.xlu0 %990
      %992 = vrot.lane.b32.xlu0 %v444, 100
      %v993 = vpop.permute.xlu0 %992
      %994 = vrot.lane.b32.xlu0 %v445, 100
      %v995 = vpop.permute.xlu0 %994
      %996 = vrot.lane.b32.xlu0 %v446, 100
      %v997 = vpop.permute.xlu0 %996
      %998 = vrot.lane.b32.xlu0 %v447, 100
      %v999 = vpop.permute.xlu0 %998
      %1000 = vrot.lane.b32.xlu0 %v448, 100
      %v1001 = vpop.permute.xlu0 %1000
      %v1010 = vcombine.low %v441, %v867
      %v1011 = vcombine.high %v441, %v867
      %v1013 = vunpack.c.l.s4 1983009808
      %v1014 = vunpack.c.0.s8 %v1013
      %v1015 = vlaneseq
      %v1016 = vshrl.u32 %v1015, 7
      %v1017 = vsub.s32 %v1014, %v1016
      %v1018 = vrot.slane %v1010, %v1017
      %v1020 = vunpack.c.l.s4 1983009808
      %v1021 = vunpack.c.0.s8 %v1020
      %v1022 = vlaneseq
      %v1023 = vshrl.u32 %v1022, 7
      %v1024 = vsub.s32 %v1021, %v1023
      %v1025 = vrot.slane %v1011, %v1024
      %v1026 = vcombine.low %v843, %v891
      %v1027 = vcombine.high %v843, %v891
      %v1029 = vunpack.c.l.s4 1983009808
      %v1030 = vunpack.c.0.s8 %v1029
      %v1031 = vlaneseq
      %v1032 = vshrl.u32 %v1031, 7
      %v1033 = vsub.s32 %v1030, %v1032
      %v1034 = vrot.slane %v1026, %v1033
      %v1036 = vunpack.c.l.s4 1983009808
      %v1037 = vunpack.c.0.s8 %v1036
      %v1038 = vlaneseq
      %v1039 = vshrl.u32 %v1038, 7
      %v1040 = vsub.s32 %v1037, %v1039
      %v1041 = vrot.slane %v1027, %v1040
      %v1042 = vcombine.low %v915, %v963
      %v1043 = vcombine.high %v915, %v963
      %v1045 = vunpack.c.l.s4 1983009808
      %v1046 = vunpack.c.0.s8 %v1045
      %v1047 = vlaneseq
      %v1048 = vshrl.u32 %v1047, 7
      %v1049 = vsub.s32 %v1046, %v1048
      %v1050 = vrot.slane %v1042, %v1049
      %v1052 = vunpack.c.l.s4 1983009808
      %v1053 = vunpack.c.0.s8 %v1052
      %v1054 = vlaneseq
      %v1055 = vshrl.u32 %v1054, 7
      %v1056 = vsub.s32 %v1053, %v1055
      %v1057 = vrot.slane %v1043, %v1056
      %v1058 = vcombine.low %v939, %v987
      %v1059 = vcombine.high %v939, %v987
      %v1061 = vunpack.c.l.s4 1983009808
      %v1062 = vunpack.c.0.s8 %v1061
      %v1063 = vlaneseq
      %v1064 = vshrl.u32 %v1063, 7
      %v1065 = vsub.s32 %v1062, %v1064
      %v1066 = vrot.slane %v1058, %v1065
      %v1068 = vunpack.c.l.s4 1983009808
      %v1069 = vunpack.c.0.s8 %v1068
      %v1070 = vlaneseq
      %v1071 = vshrl.u32 %v1070, 7
      %v1072 = vsub.s32 %v1069, %v1071
      %v1073 = vrot.slane %v1059, %v1072
      %v1074 = vcombine.low %v1018, %v1034
      %v1075 = vcombine.high %v1018, %v1034
      %v1077 = vunpack.c.l.s4 1934713408
      %v1078 = vunpack.c.0.s8 %v1077
      %v1079 = vlaneseq
      %v1080 = vshrl.u32 %v1079, 7
      %v1081 = vsub.s32 %v1078, %v1080
      %v1082 = vrot.slane %v1074, %v1081
      %v1084 = vunpack.c.l.s4 1934713408
      %v1085 = vunpack.c.0.s8 %v1084
      %v1086 = vlaneseq
      %v1087 = vshrl.u32 %v1086, 7
      %v1088 = vsub.s32 %v1085, %v1087
      %v1089 = vrot.slane %v1075, %v1088
      %v1090 = vcombine.low %v1025, %v1041
      %v1091 = vcombine.high %v1025, %v1041
      %v1093 = vunpack.c.l.s4 1934713408
      %v1094 = vunpack.c.0.s8 %v1093
      %v1095 = vlaneseq
      %v1096 = vshrl.u32 %v1095, 7
      %v1097 = vsub.s32 %v1094, %v1096
      %v1098 = vrot.slane %v1090, %v1097
      %v1100 = vunpack.c.l.s4 1934713408
      %v1101 = vunpack.c.0.s8 %v1100
      %v1102 = vlaneseq
      %v1103 = vshrl.u32 %v1102, 7
      %v1104 = vsub.s32 %v1101, %v1103
      %v1105 = vrot.slane %v1091, %v1104
      %v1106 = vcombine.low %v1050, %v1066
      %v1107 = vcombine.high %v1050, %v1066
      %v1109 = vunpack.c.l.s4 1934713408
      %v1110 = vunpack.c.0.s8 %v1109
      %v1111 = vlaneseq
      %v1112 = vshrl.u32 %v1111, 7
      %v1113 = vsub.s32 %v1110, %v1112
      %v1114 = vrot.slane %v1106, %v1113
      %v1116 = vunpack.c.l.s4 1934713408
      %v1117 = vunpack.c.0.s8 %v1116
      %v1118 = vlaneseq
      %v1119 = vshrl.u32 %v1118, 7
      %v1120 = vsub.s32 %v1117, %v1119
      %v1121 = vrot.slane %v1107, %v1120
      %v1122 = vcombine.low %v1057, %v1073
      %v1123 = vcombine.high %v1057, %v1073
      %v1125 = vunpack.c.l.s4 1934713408
      %v1126 = vunpack.c.0.s8 %v1125
      %v1127 = vlaneseq
      %v1128 = vshrl.u32 %v1127, 7
      %v1129 = vsub.s32 %v1126, %v1128
      %v1130 = vrot.slane %v1122, %v1129
      %v1132 = vunpack.c.l.s4 1934713408
      %v1133 = vunpack.c.0.s8 %v1132
      %v1134 = vlaneseq
      %v1135 = vshrl.u32 %v1134, 7
      %v1136 = vsub.s32 %v1133, %v1135
      %v1137 = vrot.slane %v1123, %v1136
      %v1138 = vcombine.low %v1082, %v1114
      %v1139 = vcombine.high %v1082, %v1114
      %v1140 = vcombine.low %v1089, %v1121
      %v1141 = vcombine.high %v1089, %v1121
      %v1142 = vcombine.low %v1098, %v1130
      %v1143 = vcombine.high %v1098, %v1130
      %v1144 = vcombine.low %v1105, %v1137
      %v1145 = vcombine.high %v1105, %v1137
      %v1146 = vcombine.low %v442, %v869
      %v1147 = vcombine.high %v442, %v869
      %v1149 = vunpack.c.l.s4 1983009808
      %v1150 = vunpack.c.0.s8 %v1149
      %v1151 = vlaneseq
      %v1152 = vshrl.u32 %v1151, 7
      %v1153 = vsub.s32 %v1150, %v1152
      %v1154 = vrot.slane %v1146, %v1153
      %v1156 = vunpack.c.l.s4 1983009808
      %v1157 = vunpack.c.0.s8 %v1156
      %v1158 = vlaneseq
      %v1159 = vshrl.u32 %v1158, 7
      %v1160 = vsub.s32 %v1157, %v1159
      %v1161 = vrot.slane %v1147, %v1160
      %v1162 = vcombine.low %v845, %v893
      %v1163 = vcombine.high %v845, %v893
      %v1165 = vunpack.c.l.s4 1983009808
      %v1166 = vunpack.c.0.s8 %v1165
      %v1167 = vlaneseq
      %v1168 = vshrl.u32 %v1167, 7
      %v1169 = vsub.s32 %v1166, %v1168
      %v1170 = vrot.slane %v1162, %v1169
      %v1172 = vunpack.c.l.s4 1983009808
      %v1173 = vunpack.c.0.s8 %v1172
      %v1174 = vlaneseq
      %v1175 = vshrl.u32 %v1174, 7
      %v1176 = vsub.s32 %v1173, %v1175
      %v1177 = vrot.slane %v1163, %v1176
      %v1178 = vcombine.low %v917, %v965
      %v1179 = vcombine.high %v917, %v965
      %v1181 = vunpack.c.l.s4 1983009808
      %v1182 = vunpack.c.0.s8 %v1181
      %v1183 = vlaneseq
      %v1184 = vshrl.u32 %v1183, 7
      %v1185 = vsub.s32 %v1182, %v1184
      %v1186 = vrot.slane %v1178, %v1185
      %v1188 = vunpack.c.l.s4 1983009808
      %v1189 = vunpack.c.0.s8 %v1188
      %v1190 = vlaneseq
      %v1191 = vshrl.u32 %v1190, 7
      %v1192 = vsub.s32 %v1189, %v1191
      %v1193 = vrot.slane %v1179, %v1192
      %v1194 = vcombine.low %v941, %v989
      %v1195 = vcombine.high %v941, %v989
      %v1197 = vunpack.c.l.s4 1983009808
      %v1198 = vunpack.c.0.s8 %v1197
      %v1199 = vlaneseq
      %v1200 = vshrl.u32 %v1199, 7
      %v1201 = vsub.s32 %v1198, %v1200
      %v1202 = vrot.slane %v1194, %v1201
      %v1204 = vunpack.c.l.s4 1983009808
      %v1205 = vunpack.c.0.s8 %v1204
      %v1206 = vlaneseq
      %v1207 = vshrl.u32 %v1206, 7
      %v1208 = vsub.s32 %v1205, %v1207
      %v1209 = vrot.slane %v1195, %v1208
      %v1210 = vcombine.low %v1154, %v1170
      %v1211 = vcombine.high %v1154, %v1170
      %v1213 = vunpack.c.l.s4 1934713408
      %v1214 = vunpack.c.0.s8 %v1213
      %v1215 = vlaneseq
      %v1216 = vshrl.u32 %v1215, 7
      %v1217 = vsub.s32 %v1214, %v1216
      %v1218 = vrot.slane %v1210, %v1217
      %v1220 = vunpack.c.l.s4 1934713408
      %v1221 = vunpack.c.0.s8 %v1220
      %v1222 = vlaneseq
      %v1223 = vshrl.u32 %v1222, 7
      %v1224 = vsub.s32 %v1221, %v1223
      %v1225 = vrot.slane %v1211, %v1224
      %v1226 = vcombine.low %v1161, %v1177
      %v1227 = vcombine.high %v1161, %v1177
      %v1229 = vunpack.c.l.s4 1934713408
      %v1230 = vunpack.c.0.s8 %v1229
      %v1231 = vlaneseq
      %v1232 = vshrl.u32 %v1231, 7
      %v1233 = vsub.s32 %v1230, %v1232
      %v1234 = vrot.slane %v1226, %v1233
      %v1236 = vunpack.c.l.s4 1934713408
      %v1237 = vunpack.c.0.s8 %v1236
      %v1238 = vlaneseq
      %v1239 = vshrl.u32 %v1238, 7
      %v1240 = vsub.s32 %v1237, %v1239
      %v1241 = vrot.slane %v1227, %v1240
      %v1242 = vcombine.low %v1186, %v1202
      %v1243 = vcombine.high %v1186, %v1202
      %v1245 = vunpack.c.l.s4 1934713408
      %v1246 = vunpack.c.0.s8 %v1245
      %v1247 = vlaneseq
      %v1248 = vshrl.u32 %v1247, 7
      %v1249 = vsub.s32 %v1246, %v1248
      %v1250 = vrot.slane %v1242, %v1249
      %v1252 = vunpack.c.l.s4 1934713408
      %v1253 = vunpack.c.0.s8 %v1252
      %v1254 = vlaneseq
      %v1255 = vshrl.u32 %v1254, 7
      %v1256 = vsub.s32 %v1253, %v1255
      %v1257 = vrot.slane %v1243, %v1256
      %v1258 = vcombine.low %v1193, %v1209
      %v1259 = vcombine.high %v1193, %v1209
      %v1261 = vunpack.c.l.s4 1934713408
      %v1262 = vunpack.c.0.s8 %v1261
      %v1263 = vlaneseq
      %v1264 = vshrl.u32 %v1263, 7
      %v1265 = vsub.s32 %v1262, %v1264
      %v1266 = vrot.slane %v1258, %v1265
      %v1268 = vunpack.c.l.s4 1934713408
      %v1269 = vunpack.c.0.s8 %v1268
      %v1270 = vlaneseq
      %v1271 = vshrl.u32 %v1270, 7
      %v1272 = vsub.s32 %v1269, %v1271
      %v1273 = vrot.slane %v1259, %v1272
      %v1274 = vcombine.low %v1218, %v1250
      %v1275 = vcombine.high %v1218, %v1250
      %v1276 = vcombine.low %v1225, %v1257
      %v1277 = vcombine.high %v1225, %v1257
      %v1278 = vcombine.low %v1234, %v1266
      %v1279 = vcombine.high %v1234, %v1266
      %v1280 = vcombine.low %v1241, %v1273
      %v1281 = vcombine.high %v1241, %v1273
      %v1282 = vcombine.low %v443, %v871
      %v1283 = vcombine.high %v443, %v871
      %v1285 = vunpack.c.l.s4 1983009808
      %v1286 = vunpack.c.0.s8 %v1285
      %v1287 = vlaneseq
      %v1288 = vshrl.u32 %v1287, 7
      %v1289 = vsub.s32 %v1286, %v1288
      %v1290 = vrot.slane %v1282, %v1289
      %v1292 = vunpack.c.l.s4 1983009808
      %v1293 = vunpack.c.0.s8 %v1292
      %v1294 = vlaneseq
      %v1295 = vshrl.u32 %v1294, 7
      %v1296 = vsub.s32 %v1293, %v1295
      %v1297 = vrot.slane %v1283, %v1296
      %v1298 = vcombine.low %v847, %v895
      %v1299 = vcombine.high %v847, %v895
      %v1301 = vunpack.c.l.s4 1983009808
      %v1302 = vunpack.c.0.s8 %v1301
      %v1303 = vlaneseq
      %v1304 = vshrl.u32 %v1303, 7
      %v1305 = vsub.s32 %v1302, %v1304
      %v1306 = vrot.slane %v1298, %v1305
      %v1308 = vunpack.c.l.s4 1983009808
      %v1309 = vunpack.c.0.s8 %v1308
      %v1310 = vlaneseq
      %v1311 = vshrl.u32 %v1310, 7
      %v1312 = vsub.s32 %v1309, %v1311
      %v1313 = vrot.slane %v1299, %v1312
      %v1314 = vcombine.low %v919, %v967
      %v1315 = vcombine.high %v919, %v967
      %v1317 = vunpack.c.l.s4 1983009808
      %v1318 = vunpack.c.0.s8 %v1317
      %v1319 = vlaneseq
      %v1320 = vshrl.u32 %v1319, 7
      %v1321 = vsub.s32 %v1318, %v1320
      %v1322 = vrot.slane %v1314, %v1321
      %v1324 = vunpack.c.l.s4 1983009808
      %v1325 = vunpack.c.0.s8 %v1324
      %v1326 = vlaneseq
      %v1327 = vshrl.u32 %v1326, 7
      %v1328 = vsub.s32 %v1325, %v1327
      %v1329 = vrot.slane %v1315, %v1328
      %v1330 = vcombine.low %v943, %v991
      %v1331 = vcombine.high %v943, %v991
      %v1333 = vunpack.c.l.s4 1983009808
      %v1334 = vunpack.c.0.s8 %v1333
      %v1335 = vlaneseq
      %v1336 = vshrl.u32 %v1335, 7
      %v1337 = vsub.s32 %v1334, %v1336
      %v1338 = vrot.slane %v1330, %v1337
      %v1340 = vunpack.c.l.s4 1983009808
      %v1341 = vunpack.c.0.s8 %v1340
      %v1342 = vlaneseq
      %v1343 = vshrl.u32 %v1342, 7
      %v1344 = vsub.s32 %v1341, %v1343
      %v1345 = vrot.slane %v1331, %v1344
      %v1346 = vcombine.low %v1290, %v1306
      %v1347 = vcombine.high %v1290, %v1306
      %v1349 = vunpack.c.l.s4 1934713408
      %v1350 = vunpack.c.0.s8 %v1349
      %v1351 = vlaneseq
      %v1352 = vshrl.u32 %v1351, 7
      %v1353 = vsub.s32 %v1350, %v1352
      %v1354 = vrot.slane %v1346, %v1353
      %v1356 = vunpack.c.l.s4 1934713408
      %v1357 = vunpack.c.0.s8 %v1356
      %v1358 = vlaneseq
      %v1359 = vshrl.u32 %v1358, 7
      %v1360 = vsub.s32 %v1357, %v1359
      %v1361 = vrot.slane %v1347, %v1360
      %v1362 = vcombine.low %v1297, %v1313
      %v1363 = vcombine.high %v1297, %v1313
      %v1365 = vunpack.c.l.s4 1934713408
      %v1366 = vunpack.c.0.s8 %v1365
      %v1367 = vlaneseq
      %v1368 = vshrl.u32 %v1367, 7
      %v1369 = vsub.s32 %v1366, %v1368
      %v1370 = vrot.slane %v1362, %v1369
      %v1372 = vunpack.c.l.s4 1934713408
      %v1373 = vunpack.c.0.s8 %v1372
      %v1374 = vlaneseq
      %v1375 = vshrl.u32 %v1374, 7
      %v1376 = vsub.s32 %v1373, %v1375
      %v1377 = vrot.slane %v1363, %v1376
      %v1378 = vcombine.low %v1322, %v1338
      %v1379 = vcombine.high %v1322, %v1338
      %v1381 = vunpack.c.l.s4 1934713408
      %v1382 = vunpack.c.0.s8 %v1381
      %v1383 = vlaneseq
      %v1384 = vshrl.u32 %v1383, 7
      %v1385 = vsub.s32 %v1382, %v1384
      %v1386 = vrot.slane %v1378, %v1385
      %v1388 = vunpack.c.l.s4 1934713408
      %v1389 = vunpack.c.0.s8 %v1388
      %v1390 = vlaneseq
      %v1391 = vshrl.u32 %v1390, 7
      %v1392 = vsub.s32 %v1389, %v1391
      %v1393 = vrot.slane %v1379, %v1392
      %v1394 = vcombine.low %v1329, %v1345
      %v1395 = vcombine.high %v1329, %v1345
      %v1397 = vunpack.c.l.s4 1934713408
      %v1398 = vunpack.c.0.s8 %v1397
      %v1399 = vlaneseq
      %v1400 = vshrl.u32 %v1399, 7
      %v1401 = vsub.s32 %v1398, %v1400
      %v1402 = vrot.slane %v1394, %v1401
      %v1404 = vunpack.c.l.s4 1934713408
      %v1405 = vunpack.c.0.s8 %v1404
      %v1406 = vlaneseq
      %v1407 = vshrl.u32 %v1406, 7
      %v1408 = vsub.s32 %v1405, %v1407
      %v1409 = vrot.slane %v1395, %v1408
      %v1410 = vcombine.low %v1354, %v1386
      %v1411 = vcombine.high %v1354, %v1386
      %v1412 = vcombine.low %v1361, %v1393
      %v1413 = vcombine.high %v1361, %v1393
      %v1414 = vcombine.low %v1370, %v1402
      %v1415 = vcombine.high %v1370, %v1402
      %v1416 = vcombine.low %v1377, %v1409
      %v1417 = vcombine.high %v1377, %v1409
      %v1418 = vcombine.low %v444, %v873
      %v1419 = vcombine.high %v444, %v873
      %v1421 = vunpack.c.l.s4 1983009808
      %v1422 = vunpack.c.0.s8 %v1421
      %v1423 = vlaneseq
      %v1424 = vshrl.u32 %v1423, 7
      %v1425 = vsub.s32 %v1422, %v1424
      %v1426 = vrot.slane %v1418, %v1425
      %v1428 = vunpack.c.l.s4 1983009808
      %v1429 = vunpack.c.0.s8 %v1428
      %v1430 = vlaneseq
      %v1431 = vshrl.u32 %v1430, 7
      %v1432 = vsub.s32 %v1429, %v1431
      %v1433 = vrot.slane %v1419, %v1432
      %v1434 = vcombine.low %v849, %v897
      %v1435 = vcombine.high %v849, %v897
      %v1437 = vunpack.c.l.s4 1983009808
      %v1438 = vunpack.c.0.s8 %v1437
      %v1439 = vlaneseq
      %v1440 = vshrl.u32 %v1439, 7
      %v1441 = vsub.s32 %v1438, %v1440
      %v1442 = vrot.slane %v1434, %v1441
      %v1444 = vunpack.c.l.s4 1983009808
      %v1445 = vunpack.c.0.s8 %v1444
      %v1446 = vlaneseq
      %v1447 = vshrl.u32 %v1446, 7
      %v1448 = vsub.s32 %v1445, %v1447
      %v1449 = vrot.slane %v1435, %v1448
      %v1450 = vcombine.low %v921, %v969
      %v1451 = vcombine.high %v921, %v969
      %v1453 = vunpack.c.l.s4 1983009808
      %v1454 = vunpack.c.0.s8 %v1453
      %v1455 = vlaneseq
      %v1456 = vshrl.u32 %v1455, 7
      %v1457 = vsub.s32 %v1454, %v1456
      %v1458 = vrot.slane %v1450, %v1457
      %v1460 = vunpack.c.l.s4 1983009808
      %v1461 = vunpack.c.0.s8 %v1460
      %v1462 = vlaneseq
      %v1463 = vshrl.u32 %v1462, 7
      %v1464 = vsub.s32 %v1461, %v1463
      %v1465 = vrot.slane %v1451, %v1464
      %v1466 = vcombine.low %v945, %v993
      %v1467 = vcombine.high %v945, %v993
      %v1469 = vunpack.c.l.s4 1983009808
      %v1470 = vunpack.c.0.s8 %v1469
      %v1471 = vlaneseq
      %v1472 = vshrl.u32 %v1471, 7
      %v1473 = vsub.s32 %v1470, %v1472
      %v1474 = vrot.slane %v1466, %v1473
      %v1476 = vunpack.c.l.s4 1983009808
      %v1477 = vunpack.c.0.s8 %v1476
      %v1478 = vlaneseq
      %v1479 = vshrl.u32 %v1478, 7
      %v1480 = vsub.s32 %v1477, %v1479
      %v1481 = vrot.slane %v1467, %v1480
      %v1482 = vcombine.low %v1426, %v1442
      %v1483 = vcombine.high %v1426, %v1442
      %v1485 = vunpack.c.l.s4 1934713408
      %v1486 = vunpack.c.0.s8 %v1485
      %v1487 = vlaneseq
      %v1488 = vshrl.u32 %v1487, 7
      %v1489 = vsub.s32 %v1486, %v1488
      %v1490 = vrot.slane %v1482, %v1489
      %v1492 = vunpack.c.l.s4 1934713408
      %v1493 = vunpack.c.0.s8 %v1492
      %v1494 = vlaneseq
      %v1495 = vshrl.u32 %v1494, 7
      %v1496 = vsub.s32 %v1493, %v1495
      %v1497 = vrot.slane %v1483, %v1496
      %v1498 = vcombine.low %v1433, %v1449
      %v1499 = vcombine.high %v1433, %v1449
      %v1501 = vunpack.c.l.s4 1934713408
      %v1502 = vunpack.c.0.s8 %v1501
      %v1503 = vlaneseq
      %v1504 = vshrl.u32 %v1503, 7
      %v1505 = vsub.s32 %v1502, %v1504
      %v1506 = vrot.slane %v1498, %v1505
      %v1508 = vunpack.c.l.s4 1934713408
      %v1509 = vunpack.c.0.s8 %v1508
      %v1510 = vlaneseq
      %v1511 = vshrl.u32 %v1510, 7
      %v1512 = vsub.s32 %v1509, %v1511
      %v1513 = vrot.slane %v1499, %v1512
      %v1514 = vcombine.low %v1458, %v1474
      %v1515 = vcombine.high %v1458, %v1474
      %v1517 = vunpack.c.l.s4 1934713408
      %v1518 = vunpack.c.0.s8 %v1517
      %v1519 = vlaneseq
      %v1520 = vshrl.u32 %v1519, 7
      %v1521 = vsub.s32 %v1518, %v1520
      %v1522 = vrot.slane %v1514, %v1521
      %v1524 = vunpack.c.l.s4 1934713408
      %v1525 = vunpack.c.0.s8 %v1524
      %v1526 = vlaneseq
      %v1527 = vshrl.u32 %v1526, 7
      %v1528 = vsub.s32 %v1525, %v1527
      %v1529 = vrot.slane %v1515, %v1528
      %v1530 = vcombine.low %v1465, %v1481
      %v1531 = vcombine.high %v1465, %v1481
      %v1533 = vunpack.c.l.s4 1934713408
      %v1534 = vunpack.c.0.s8 %v1533
      %v1535 = vlaneseq
      %v1536 = vshrl.u32 %v1535, 7
      %v1537 = vsub.s32 %v1534, %v1536
      %v1538 = vrot.slane %v1530, %v1537
      %v1540 = vunpack.c.l.s4 1934713408
      %v1541 = vunpack.c.0.s8 %v1540
      %v1542 = vlaneseq
      %v1543 = vshrl.u32 %v1542, 7
      %v1544 = vsub.s32 %v1541, %v1543
      %v1545 = vrot.slane %v1531, %v1544
      %v1546 = vcombine.low %v1490, %v1522
      %v1547 = vcombine.high %v1490, %v1522
      %v1548 = vcombine.low %v1497, %v1529
      %v1549 = vcombine.high %v1497, %v1529
      %v1550 = vcombine.low %v1506, %v1538
      %v1551 = vcombine.high %v1506, %v1538
      %v1552 = vcombine.low %v1513, %v1545
      %v1553 = vcombine.high %v1513, %v1545
      %v1554 = vcombine.low %v445, %v875
      %v1555 = vcombine.high %v445, %v875
      %v1557 = vunpack.c.l.s4 1983009808
      %v1558 = vunpack.c.0.s8 %v1557
      %v1559 = vlaneseq
      %v1560 = vshrl.u32 %v1559, 7
      %v1561 = vsub.s32 %v1558, %v1560
      %v1562 = vrot.slane %v1554, %v1561
      %v1564 = vunpack.c.l.s4 1983009808
      %v1565 = vunpack.c.0.s8 %v1564
      %v1566 = vlaneseq
      %v1567 = vshrl.u32 %v1566, 7
      %v1568 = vsub.s32 %v1565, %v1567
      %v1569 = vrot.slane %v1555, %v1568
      %v1570 = vcombine.low %v851, %v899
      %v1571 = vcombine.high %v851, %v899
      %v1573 = vunpack.c.l.s4 1983009808
      %v1574 = vunpack.c.0.s8 %v1573
      %v1575 = vlaneseq
      %v1576 = vshrl.u32 %v1575, 7
      %v1577 = vsub.s32 %v1574, %v1576
      %v1578 = vrot.slane %v1570, %v1577
      %v1580 = vunpack.c.l.s4 1983009808
      %v1581 = vunpack.c.0.s8 %v1580
      %v1582 = vlaneseq
      %v1583 = vshrl.u32 %v1582, 7
      %v1584 = vsub.s32 %v1581, %v1583
      %v1585 = vrot.slane %v1571, %v1584
      %v1586 = vcombine.low %v923, %v971
      %v1587 = vcombine.high %v923, %v971
      %v1589 = vunpack.c.l.s4 1983009808
      %v1590 = vunpack.c.0.s8 %v1589
      %v1591 = vlaneseq
      %v1592 = vshrl.u32 %v1591, 7
      %v1593 = vsub.s32 %v1590, %v1592
      %v1594 = vrot.slane %v1586, %v1593
      %v1596 = vunpack.c.l.s4 1983009808
      %v1597 = vunpack.c.0.s8 %v1596
      %v1598 = vlaneseq
      %v1599 = vshrl.u32 %v1598, 7
      %v1600 = vsub.s32 %v1597, %v1599
      %v1601 = vrot.slane %v1587, %v1600
      %v1602 = vcombine.low %v947, %v995
      %v1603 = vcombine.high %v947, %v995
      %v1605 = vunpack.c.l.s4 1983009808
      %v1606 = vunpack.c.0.s8 %v1605
      %v1607 = vlaneseq
      %v1608 = vshrl.u32 %v1607, 7
      %v1609 = vsub.s32 %v1606, %v1608
      %v1610 = vrot.slane %v1602, %v1609
      %v1612 = vunpack.c.l.s4 1983009808
      %v1613 = vunpack.c.0.s8 %v1612
      %v1614 = vlaneseq
      %v1615 = vshrl.u32 %v1614, 7
      %v1616 = vsub.s32 %v1613, %v1615
      %v1617 = vrot.slane %v1603, %v1616
      %v1618 = vcombine.low %v1562, %v1578
      %v1619 = vcombine.high %v1562, %v1578
      %v1621 = vunpack.c.l.s4 1934713408
      %v1622 = vunpack.c.0.s8 %v1621
      %v1623 = vlaneseq
      %v1624 = vshrl.u32 %v1623, 7
      %v1625 = vsub.s32 %v1622, %v1624
      %v1626 = vrot.slane %v1618, %v1625
      %v1628 = vunpack.c.l.s4 1934713408
      %v1629 = vunpack.c.0.s8 %v1628
      %v1630 = vlaneseq
      %v1631 = vshrl.u32 %v1630, 7
      %v1632 = vsub.s32 %v1629, %v1631
      %v1633 = vrot.slane %v1619, %v1632
      %v1634 = vcombine.low %v1569, %v1585
      %v1635 = vcombine.high %v1569, %v1585
      %v1637 = vunpack.c.l.s4 1934713408
      %v1638 = vunpack.c.0.s8 %v1637
      %v1639 = vlaneseq
      %v1640 = vshrl.u32 %v1639, 7
      %v1641 = vsub.s32 %v1638, %v1640
      %v1642 = vrot.slane %v1634, %v1641
      %v1644 = vunpack.c.l.s4 1934713408
      %v1645 = vunpack.c.0.s8 %v1644
      %v1646 = vlaneseq
      %v1647 = vshrl.u32 %v1646, 7
      %v1648 = vsub.s32 %v1645, %v1647
      %v1649 = vrot.slane %v1635, %v1648
      %v1650 = vcombine.low %v1594, %v1610
      %v1651 = vcombine.high %v1594, %v1610
      %v1653 = vunpack.c.l.s4 1934713408
      %v1654 = vunpack.c.0.s8 %v1653
      %v1655 = vlaneseq
      %v1656 = vshrl.u32 %v1655, 7
      %v1657 = vsub.s32 %v1654, %v1656
      %v1658 = vrot.slane %v1650, %v1657
      %v1660 = vunpack.c.l.s4 1934713408
      %v1661 = vunpack.c.0.s8 %v1660
      %v1662 = vlaneseq
      %v1663 = vshrl.u32 %v1662, 7
      %v1664 = vsub.s32 %v1661, %v1663
      %v1665 = vrot.slane %v1651, %v1664
      %v1666 = vcombine.low %v1601, %v1617
      %v1667 = vcombine.high %v1601, %v1617
      %v1669 = vunpack.c.l.s4 1934713408
      %v1670 = vunpack.c.0.s8 %v1669
      %v1671 = vlaneseq
      %v1672 = vshrl.u32 %v1671, 7
      %v1673 = vsub.s32 %v1670, %v1672
      %v1674 = vrot.slane %v1666, %v1673
      %v1676 = vunpack.c.l.s4 1934713408
      %v1677 = vunpack.c.0.s8 %v1676
      %v1678 = vlaneseq
      %v1679 = vshrl.u32 %v1678, 7
      %v1680 = vsub.s32 %v1677, %v1679
      %v1681 = vrot.slane %v1667, %v1680
      %v1682 = vcombine.low %v1626, %v1658
      %v1683 = vcombine.high %v1626, %v1658
      %v1684 = vcombine.low %v1633, %v1665
      %v1685 = vcombine.high %v1633, %v1665
      %v1686 = vcombine.low %v1642, %v1674
      %v1687 = vcombine.high %v1642, %v1674
      %v1688 = vcombine.low %v1649, %v1681
      %v1689 = vcombine.high %v1649, %v1681
      %v1690 = vcombine.low %v446, %v877
      %v1691 = vcombine.high %v446, %v877
      %v1693 = vunpack.c.l.s4 1983009808
      %v1694 = vunpack.c.0.s8 %v1693
      %v1695 = vlaneseq
      %v1696 = vshrl.u32 %v1695, 7
      %v1697 = vsub.s32 %v1694, %v1696
      %v1698 = vrot.slane %v1690, %v1697
      %v1700 = vunpack.c.l.s4 1983009808
      %v1701 = vunpack.c.0.s8 %v1700
      %v1702 = vlaneseq
      %v1703 = vshrl.u32 %v1702, 7
      %v1704 = vsub.s32 %v1701, %v1703
      %v1705 = vrot.slane %v1691, %v1704
      %v1706 = vcombine.low %v853, %v901
      %v1707 = vcombine.high %v853, %v901
      %v1709 = vunpack.c.l.s4 1983009808
      %v1710 = vunpack.c.0.s8 %v1709
      %v1711 = vlaneseq
      %v1712 = vshrl.u32 %v1711, 7
      %v1713 = vsub.s32 %v1710, %v1712
      %v1714 = vrot.slane %v1706, %v1713
      %v1716 = vunpack.c.l.s4 1983009808
      %v1717 = vunpack.c.0.s8 %v1716
      %v1718 = vlaneseq
      %v1719 = vshrl.u32 %v1718, 7
      %v1720 = vsub.s32 %v1717, %v1719
      %v1721 = vrot.slane %v1707, %v1720
      %v1722 = vcombine.low %v925, %v973
      %v1723 = vcombine.high %v925, %v973
      %v1725 = vunpack.c.l.s4 1983009808
      %v1726 = vunpack.c.0.s8 %v1725
      %v1727 = vlaneseq
      %v1728 = vshrl.u32 %v1727, 7
      %v1729 = vsub.s32 %v1726, %v1728
      %v1730 = vrot.slane %v1722, %v1729
      %v1732 = vunpack.c.l.s4 1983009808
      %v1733 = vunpack.c.0.s8 %v1732
      %v1734 = vlaneseq
      %v1735 = vshrl.u32 %v1734, 7
      %v1736 = vsub.s32 %v1733, %v1735
      %v1737 = vrot.slane %v1723, %v1736
      %v1738 = vcombine.low %v949, %v997
      %v1739 = vcombine.high %v949, %v997
      %v1741 = vunpack.c.l.s4 1983009808
      %v1742 = vunpack.c.0.s8 %v1741
      %v1743 = vlaneseq
      %v1744 = vshrl.u32 %v1743, 7
      %v1745 = vsub.s32 %v1742, %v1744
      %v1746 = vrot.slane %v1738, %v1745
      %v1748 = vunpack.c.l.s4 1983009808
      %v1749 = vunpack.c.0.s8 %v1748
      %v1750 = vlaneseq
      %v1751 = vshrl.u32 %v1750, 7
      %v1752 = vsub.s32 %v1749, %v1751
      %v1753 = vrot.slane %v1739, %v1752
      %v1754 = vcombine.low %v1698, %v1714
      %v1755 = vcombine.high %v1698, %v1714
      %v1757 = vunpack.c.l.s4 1934713408
      %v1758 = vunpack.c.0.s8 %v1757
      %v1759 = vlaneseq
      %v1760 = vshrl.u32 %v1759, 7
      %v1761 = vsub.s32 %v1758, %v1760
      %v1762 = vrot.slane %v1754, %v1761
      %v1764 = vunpack.c.l.s4 1934713408
      %v1765 = vunpack.c.0.s8 %v1764
      %v1766 = vlaneseq
      %v1767 = vshrl.u32 %v1766, 7
      %v1768 = vsub.s32 %v1765, %v1767
      %v1769 = vrot.slane %v1755, %v1768
      %v1770 = vcombine.low %v1705, %v1721
      %v1771 = vcombine.high %v1705, %v1721
      %v1773 = vunpack.c.l.s4 1934713408
      %v1774 = vunpack.c.0.s8 %v1773
      %v1775 = vlaneseq
      %v1776 = vshrl.u32 %v1775, 7
      %v1777 = vsub.s32 %v1774, %v1776
      %v1778 = vrot.slane %v1770, %v1777
      %v1780 = vunpack.c.l.s4 1934713408
      %v1781 = vunpack.c.0.s8 %v1780
      %v1782 = vlaneseq
      %v1783 = vshrl.u32 %v1782, 7
      %v1784 = vsub.s32 %v1781, %v1783
      %v1785 = vrot.slane %v1771, %v1784
      %v1786 = vcombine.low %v1730, %v1746
      %v1787 = vcombine.high %v1730, %v1746
      %v1789 = vunpack.c.l.s4 1934713408
      %v1790 = vunpack.c.0.s8 %v1789
      %v1791 = vlaneseq
      %v1792 = vshrl.u32 %v1791, 7
      %v1793 = vsub.s32 %v1790, %v1792
      %v1794 = vrot.slane %v1786, %v1793
      %v1796 = vunpack.c.l.s4 1934713408
      %v1797 = vunpack.c.0.s8 %v1796
      %v1798 = vlaneseq
      %v1799 = vshrl.u32 %v1798, 7
      %v1800 = vsub.s32 %v1797, %v1799
      %v1801 = vrot.slane %v1787, %v1800
      %v1802 = vcombine.low %v1737, %v1753
      %v1803 = vcombine.high %v1737, %v1753
      %v1805 = vunpack.c.l.s4 1934713408
      %v1806 = vunpack.c.0.s8 %v1805
      %v1807 = vlaneseq
      %v1808 = vshrl.u32 %v1807, 7
      %v1809 = vsub.s32 %v1806, %v1808
      %v1810 = vrot.slane %v1802, %v1809
      %v1812 = vunpack.c.l.s4 1934713408
      %v1813 = vunpack.c.0.s8 %v1812
      %v1814 = vlaneseq
      %v1815 = vshrl.u32 %v1814, 7
      %v1816 = vsub.s32 %v1813, %v1815
      %v1817 = vrot.slane %v1803, %v1816
      %v1818 = vcombine.low %v1762, %v1794
      %v1819 = vcombine.high %v1762, %v1794
      %v1820 = vcombine.low %v1769, %v1801
      %v1821 = vcombine.high %v1769, %v1801
      %v1822 = vcombine.low %v1778, %v1810
      %v1823 = vcombine.high %v1778, %v1810
      %v1824 = vcombine.low %v1785, %v1817
      %v1825 = vcombine.high %v1785, %v1817
      %v1826 = vcombine.low %v447, %v879
      %v1827 = vcombine.high %v447, %v879
      %v1829 = vunpack.c.l.s4 1983009808
      %v1830 = vunpack.c.0.s8 %v1829
      %v1831 = vlaneseq
      %v1832 = vshrl.u32 %v1831, 7
      %v1833 = vsub.s32 %v1830, %v1832
      %v1834 = vrot.slane %v1826, %v1833
      %v1836 = vunpack.c.l.s4 1983009808
      %v1837 = vunpack.c.0.s8 %v1836
      %v1838 = vlaneseq
      %v1839 = vshrl.u32 %v1838, 7
      %v1840 = vsub.s32 %v1837, %v1839
      %v1841 = vrot.slane %v1827, %v1840
      %v1842 = vcombine.low %v855, %v903
      %v1843 = vcombine.high %v855, %v903
      %v1845 = vunpack.c.l.s4 1983009808
      %v1846 = vunpack.c.0.s8 %v1845
      %v1847 = vlaneseq
      %v1848 = vshrl.u32 %v1847, 7
      %v1849 = vsub.s32 %v1846, %v1848
      %v1850 = vrot.slane %v1842, %v1849
      %v1852 = vunpack.c.l.s4 1983009808
      %v1853 = vunpack.c.0.s8 %v1852
      %v1854 = vlaneseq
      %v1855 = vshrl.u32 %v1854, 7
      %v1856 = vsub.s32 %v1853, %v1855
      %v1857 = vrot.slane %v1843, %v1856
      %v1858 = vcombine.low %v927, %v975
      %v1859 = vcombine.high %v927, %v975
      %v1861 = vunpack.c.l.s4 1983009808
      %v1862 = vunpack.c.0.s8 %v1861
      %v1863 = vlaneseq
      %v1864 = vshrl.u32 %v1863, 7
      %v1865 = vsub.s32 %v1862, %v1864
      %v1866 = vrot.slane %v1858, %v1865
      %v1868 = vunpack.c.l.s4 1983009808
      %v1869 = vunpack.c.0.s8 %v1868
      %v1870 = vlaneseq
      %v1871 = vshrl.u32 %v1870, 7
      %v1872 = vsub.s32 %v1869, %v1871
      %v1873 = vrot.slane %v1859, %v1872
      %v1874 = vcombine.low %v951, %v999
      %v1875 = vcombine.high %v951, %v999
      %v1877 = vunpack.c.l.s4 1983009808
      %v1878 = vunpack.c.0.s8 %v1877
      %v1879 = vlaneseq
      %v1880 = vshrl.u32 %v1879, 7
      %v1881 = vsub.s32 %v1878, %v1880
      %v1882 = vrot.slane %v1874, %v1881
      %v1884 = vunpack.c.l.s4 1983009808
      %v1885 = vunpack.c.0.s8 %v1884
      %v1886 = vlaneseq
      %v1887 = vshrl.u32 %v1886, 7
      %v1888 = vsub.s32 %v1885, %v1887
      %v1889 = vrot.slane %v1875, %v1888
      %v1890 = vcombine.low %v1834, %v1850
      %v1891 = vcombine.high %v1834, %v1850
      %v1893 = vunpack.c.l.s4 1934713408
      %v1894 = vunpack.c.0.s8 %v1893
      %v1895 = vlaneseq
      %v1896 = vshrl.u32 %v1895, 7
      %v1897 = vsub.s32 %v1894, %v1896
      %v1898 = vrot.slane %v1890, %v1897
      %v1900 = vunpack.c.l.s4 1934713408
      %v1901 = vunpack.c.0.s8 %v1900
      %v1902 = vlaneseq
      %v1903 = vshrl.u32 %v1902, 7
      %v1904 = vsub.s32 %v1901, %v1903
      %v1905 = vrot.slane %v1891, %v1904
      %v1906 = vcombine.low %v1841, %v1857
      %v1907 = vcombine.high %v1841, %v1857
      %v1909 = vunpack.c.l.s4 1934713408
      %v1910 = vunpack.c.0.s8 %v1909
      %v1911 = vlaneseq
      %v1912 = vshrl.u32 %v1911, 7
      %v1913 = vsub.s32 %v1910, %v1912
      %v1914 = vrot.slane %v1906, %v1913
      %v1916 = vunpack.c.l.s4 1934713408
      %v1917 = vunpack.c.0.s8 %v1916
      %v1918 = vlaneseq
      %v1919 = vshrl.u32 %v1918, 7
      %v1920 = vsub.s32 %v1917, %v1919
      %v1921 = vrot.slane %v1907, %v1920
      %v1922 = vcombine.low %v1866, %v1882
      %v1923 = vcombine.high %v1866, %v1882
      %v1925 = vunpack.c.l.s4 1934713408
      %v1926 = vunpack.c.0.s8 %v1925
      %v1927 = vlaneseq
      %v1928 = vshrl.u32 %v1927, 7
      %v1929 = vsub.s32 %v1926, %v1928
      %v1930 = vrot.slane %v1922, %v1929
      %v1932 = vunpack.c.l.s4 1934713408
      %v1933 = vunpack.c.0.s8 %v1932
      %v1934 = vlaneseq
      %v1935 = vshrl.u32 %v1934, 7
      %v1936 = vsub.s32 %v1933, %v1935
      %v1937 = vrot.slane %v1923, %v1936
      %v1938 = vcombine.low %v1873, %v1889
      %v1939 = vcombine.high %v1873, %v1889
      %v1941 = vunpack.c.l.s4 1934713408
      %v1942 = vunpack.c.0.s8 %v1941
      %v1943 = vlaneseq
      %v1944 = vshrl.u32 %v1943, 7
      %v1945 = vsub.s32 %v1942, %v1944
      %v1946 = vrot.slane %v1938, %v1945
      %v1948 = vunpack.c.l.s4 1934713408
      %v1949 = vunpack.c.0.s8 %v1948
      %v1950 = vlaneseq
      %v1951 = vshrl.u32 %v1950, 7
      %v1952 = vsub.s32 %v1949, %v1951
      %v1953 = vrot.slane %v1939, %v1952
      %v1954 = vcombine.low %v1898, %v1930
      %v1955 = vcombine.high %v1898, %v1930
      %v1956 = vcombine.low %v1905, %v1937
      %v1957 = vcombine.high %v1905, %v1937
      %v1958 = vcombine.low %v1914, %v1946
      %v1959 = vcombine.high %v1914, %v1946
      %v1960 = vcombine.low %v1921, %v1953
      %v1961 = vcombine.high %v1921, %v1953
      %v1962 = vcombine.low %v448, %v881
      %v1963 = vcombine.high %v448, %v881
      %v1965 = vunpack.c.l.s4 1983009808
      %v1966 = vunpack.c.0.s8 %v1965
      %v1967 = vlaneseq
      %v1968 = vshrl.u32 %v1967, 7
      %v1969 = vsub.s32 %v1966, %v1968
      %v1970 = vrot.slane %v1962, %v1969
      %v1972 = vunpack.c.l.s4 1983009808
      %v1973 = vunpack.c.0.s8 %v1972
      %v1974 = vlaneseq
      %v1975 = vshrl.u32 %v1974, 7
      %v1976 = vsub.s32 %v1973, %v1975
      %v1977 = vrot.slane %v1963, %v1976
      %v1978 = vcombine.low %v857, %v905
      %v1979 = vcombine.high %v857, %v905
      %v1981 = vunpack.c.l.s4 1983009808
      %v1982 = vunpack.c.0.s8 %v1981
      %v1983 = vlaneseq
      %v1984 = vshrl.u32 %v1983, 7
      %v1985 = vsub.s32 %v1982, %v1984
      %v1986 = vrot.slane %v1978, %v1985
      %v1988 = vunpack.c.l.s4 1983009808
      %v1989 = vunpack.c.0.s8 %v1988
      %v1990 = vlaneseq
      %v1991 = vshrl.u32 %v1990, 7
      %v1992 = vsub.s32 %v1989, %v1991
      %v1993 = vrot.slane %v1979, %v1992
      %v1994 = vcombine.low %v929, %v977
      %v1995 = vcombine.high %v929, %v977
      %v1997 = vunpack.c.l.s4 1983009808
      %v1998 = vunpack.c.0.s8 %v1997
      %v1999 = vlaneseq
      %v2000 = vshrl.u32 %v1999, 7
      %v2001 = vsub.s32 %v1998, %v2000
      %v2002 = vrot.slane %v1994, %v2001
      %v2004 = vunpack.c.l.s4 1983009808
      %v2005 = vunpack.c.0.s8 %v2004
      %v2006 = vlaneseq
      %v2007 = vshrl.u32 %v2006, 7
      %v2008 = vsub.s32 %v2005, %v2007
      %v2009 = vrot.slane %v1995, %v2008
      %v2010 = vcombine.low %v953, %v1001
      %v2011 = vcombine.high %v953, %v1001
      %v2013 = vunpack.c.l.s4 1983009808
      %v2014 = vunpack.c.0.s8 %v2013
      %v2015 = vlaneseq
      %v2016 = vshrl.u32 %v2015, 7
      %v2017 = vsub.s32 %v2014, %v2016
      %v2018 = vrot.slane %v2010, %v2017
      %v2020 = vunpack.c.l.s4 1983009808
      %v2021 = vunpack.c.0.s8 %v2020
      %v2022 = vlaneseq
      %v2023 = vshrl.u32 %v2022, 7
      %v2024 = vsub.s32 %v2021, %v2023
      %v2025 = vrot.slane %v2011, %v2024
      %v2026 = vcombine.low %v1970, %v1986
      %v2027 = vcombine.high %v1970, %v1986
      %v2029 = vunpack.c.l.s4 1934713408
      %v2030 = vunpack.c.0.s8 %v2029
      %v2031 = vlaneseq
      %v2032 = vshrl.u32 %v2031, 7
      %v2033 = vsub.s32 %v2030, %v2032
      %v2034 = vrot.slane %v2026, %v2033
      %v2036 = vunpack.c.l.s4 1934713408
      %v2037 = vunpack.c.0.s8 %v2036
      %v2038 = vlaneseq
      %v2039 = vshrl.u32 %v2038, 7
      %v2040 = vsub.s32 %v2037, %v2039
      %v2041 = vrot.slane %v2027, %v2040
      %v2042 = vcombine.low %v1977, %v1993
      %v2043 = vcombine.high %v1977, %v1993
      %v2045 = vunpack.c.l.s4 1934713408
      %v2046 = vunpack.c.0.s8 %v2045
      %v2047 = vlaneseq
      %v2048 = vshrl.u32 %v2047, 7
      %v2049 = vsub.s32 %v2046, %v2048
      %v2050 = vrot.slane %v2042, %v2049
      %v2052 = vunpack.c.l.s4 1934713408
      %v2053 = vunpack.c.0.s8 %v2052
      %v2054 = vlaneseq
      %v2055 = vshrl.u32 %v2054, 7
      %v2056 = vsub.s32 %v2053, %v2055
      %v2057 = vrot.slane %v2043, %v2056
      %v2058 = vcombine.low %v2002, %v2018
      %v2059 = vcombine.high %v2002, %v2018
      %v2061 = vunpack.c.l.s4 1934713408
      %v2062 = vunpack.c.0.s8 %v2061
      %v2063 = vlaneseq
      %v2064 = vshrl.u32 %v2063, 7
      %v2065 = vsub.s32 %v2062, %v2064
      %v2066 = vrot.slane %v2058, %v2065
      %v2068 = vunpack.c.l.s4 1934713408
      %v2069 = vunpack.c.0.s8 %v2068
      %v2070 = vlaneseq
      %v2071 = vshrl.u32 %v2070, 7
      %v2072 = vsub.s32 %v2069, %v2071
      %v2073 = vrot.slane %v2059, %v2072
      %v2074 = vcombine.low %v2009, %v2025
      %v2075 = vcombine.high %v2009, %v2025
      %v2077 = vunpack.c.l.s4 1934713408
      %v2078 = vunpack.c.0.s8 %v2077
      %v2079 = vlaneseq
      %v2080 = vshrl.u32 %v2079, 7
      %v2081 = vsub.s32 %v2078, %v2080
      %v2082 = vrot.slane %v2074, %v2081
      %v2084 = vunpack.c.l.s4 1934713408
      %v2085 = vunpack.c.0.s8 %v2084
      %v2086 = vlaneseq
      %v2087 = vshrl.u32 %v2086, 7
      %v2088 = vsub.s32 %v2085, %v2087
      %v2089 = vrot.slane %v2075, %v2088
      %v2090 = vcombine.low %v2034, %v2066
      %v2091 = vcombine.high %v2034, %v2066
      %v2092 = vcombine.low %v2041, %v2073
      %v2093 = vcombine.high %v2041, %v2073
      %v2094 = vcombine.low %v2050, %v2082
      %v2095 = vcombine.high %v2050, %v2082
      %v2096 = vcombine.low %v2057, %v2089
      %v2097 = vcombine.high %v2057, %v2089
      %2100 = vrot.lane.b32.xlu0 %v765, 124
      %v2101 = vpop.permute.xlu0 %2100
      %2102 = vrot.lane.b32.xlu0 %v768, 124
      %v2103 = vpop.permute.xlu0 %2102
      %2106 = vrot.lane.b32.xlu0 %v765, 120
      %v2107 = vpop.permute.xlu0 %2106
      %2108 = vrot.lane.b32.xlu0 %v768, 120
      %v2109 = vpop.permute.xlu0 %2108
      %2112 = vrot.lane.b32.xlu0 %v765, 116
      %v2113 = vpop.permute.xlu0 %2112
      %2114 = vrot.lane.b32.xlu0 %v768, 116
      %v2115 = vpop.permute.xlu0 %2114
      %2118 = vrot.lane.b32.xlu0 %v765, 112
      %v2119 = vpop.permute.xlu0 %2118
      %2120 = vrot.lane.b32.xlu0 %v768, 112
      %v2121 = vpop.permute.xlu0 %2120
      %2124 = vrot.lane.b32.xlu0 %v765, 108
      %v2125 = vpop.permute.xlu0 %2124
      %2126 = vrot.lane.b32.xlu0 %v768, 108
      %v2127 = vpop.permute.xlu0 %2126
      %2130 = vrot.lane.b32.xlu0 %v765, 104
      %v2131 = vpop.permute.xlu0 %2130
      %2132 = vrot.lane.b32.xlu0 %v768, 104
      %v2133 = vpop.permute.xlu0 %2132
      %2136 = vrot.lane.b32.xlu0 %v765, 100
      %v2137 = vpop.permute.xlu0 %2136
      %2138 = vrot.lane.b32.xlu0 %v768, 100
      %v2139 = vpop.permute.xlu0 %2138
      %v2142 = vcombine.low %v765, %v2107
      %v2143 = vcombine.high %v765, %v2107
      %v2145 = vunpack.c.l.s4 1983009808
      %v2146 = vunpack.c.0.s8 %v2145
      %v2147 = vlaneseq
      %v2148 = vshrl.u32 %v2147, 7
      %v2149 = vsub.s32 %v2146, %v2148
      %v2150 = vrot.slane %v2142, %v2149
      %v2152 = vunpack.c.l.s4 1983009808
      %v2153 = vunpack.c.0.s8 %v2152
      %v2154 = vlaneseq
      %v2155 = vshrl.u32 %v2154, 7
      %v2156 = vsub.s32 %v2153, %v2155
      %v2157 = vrot.slane %v2143, %v2156
      %v2158 = vcombine.low %v2101, %v2113
      %v2159 = vcombine.high %v2101, %v2113
      %v2161 = vunpack.c.l.s4 1983009808
      %v2162 = vunpack.c.0.s8 %v2161
      %v2163 = vlaneseq
      %v2164 = vshrl.u32 %v2163, 7
      %v2165 = vsub.s32 %v2162, %v2164
      %v2166 = vrot.slane %v2158, %v2165
      %v2168 = vunpack.c.l.s4 1983009808
      %v2169 = vunpack.c.0.s8 %v2168
      %v2170 = vlaneseq
      %v2171 = vshrl.u32 %v2170, 7
      %v2172 = vsub.s32 %v2169, %v2171
      %v2173 = vrot.slane %v2159, %v2172
      %v2174 = vcombine.low %v2119, %v2131
      %v2175 = vcombine.high %v2119, %v2131
      %v2177 = vunpack.c.l.s4 1983009808
      %v2178 = vunpack.c.0.s8 %v2177
      %v2179 = vlaneseq
      %v2180 = vshrl.u32 %v2179, 7
      %v2181 = vsub.s32 %v2178, %v2180
      %v2182 = vrot.slane %v2174, %v2181
      %v2184 = vunpack.c.l.s4 1983009808
      %v2185 = vunpack.c.0.s8 %v2184
      %v2186 = vlaneseq
      %v2187 = vshrl.u32 %v2186, 7
      %v2188 = vsub.s32 %v2185, %v2187
      %v2189 = vrot.slane %v2175, %v2188
      %v2190 = vcombine.low %v2125, %v2137
      %v2191 = vcombine.high %v2125, %v2137
      %v2193 = vunpack.c.l.s4 1983009808
      %v2194 = vunpack.c.0.s8 %v2193
      %v2195 = vlaneseq
      %v2196 = vshrl.u32 %v2195, 7
      %v2197 = vsub.s32 %v2194, %v2196
      %v2198 = vrot.slane %v2190, %v2197
      %v2200 = vunpack.c.l.s4 1983009808
      %v2201 = vunpack.c.0.s8 %v2200
      %v2202 = vlaneseq
      %v2203 = vshrl.u32 %v2202, 7
      %v2204 = vsub.s32 %v2201, %v2203
      %v2205 = vrot.slane %v2191, %v2204
      %v2206 = vcombine.low %v2150, %v2166
      %v2207 = vcombine.high %v2150, %v2166
      %v2209 = vunpack.c.l.s4 1934713408
      %v2210 = vunpack.c.0.s8 %v2209
      %v2211 = vlaneseq
      %v2212 = vshrl.u32 %v2211, 7
      %v2213 = vsub.s32 %v2210, %v2212
      %v2214 = vrot.slane %v2206, %v2213
      %v2216 = vunpack.c.l.s4 1934713408
      %v2217 = vunpack.c.0.s8 %v2216
      %v2218 = vlaneseq
      %v2219 = vshrl.u32 %v2218, 7
      %v2220 = vsub.s32 %v2217, %v2219
      %v2221 = vrot.slane %v2207, %v2220
      %v2222 = vcombine.low %v2157, %v2173
      %v2223 = vcombine.high %v2157, %v2173
      %v2225 = vunpack.c.l.s4 1934713408
      %v2226 = vunpack.c.0.s8 %v2225
      %v2227 = vlaneseq
      %v2228 = vshrl.u32 %v2227, 7
      %v2229 = vsub.s32 %v2226, %v2228
      %v2230 = vrot.slane %v2222, %v2229
      %v2232 = vunpack.c.l.s4 1934713408
      %v2233 = vunpack.c.0.s8 %v2232
      %v2234 = vlaneseq
      %v2235 = vshrl.u32 %v2234, 7
      %v2236 = vsub.s32 %v2233, %v2235
      %v2237 = vrot.slane %v2223, %v2236
      %v2238 = vcombine.low %v2182, %v2198
      %v2239 = vcombine.high %v2182, %v2198
      %v2241 = vunpack.c.l.s4 1934713408
      %v2242 = vunpack.c.0.s8 %v2241
      %v2243 = vlaneseq
      %v2244 = vshrl.u32 %v2243, 7
      %v2245 = vsub.s32 %v2242, %v2244
      %v2246 = vrot.slane %v2238, %v2245
      %v2248 = vunpack.c.l.s4 1934713408
      %v2249 = vunpack.c.0.s8 %v2248
      %v2250 = vlaneseq
      %v2251 = vshrl.u32 %v2250, 7
      %v2252 = vsub.s32 %v2249, %v2251
      %v2253 = vrot.slane %v2239, %v2252
      %v2254 = vcombine.low %v2189, %v2205
      %v2255 = vcombine.high %v2189, %v2205
      %v2257 = vunpack.c.l.s4 1934713408
      %v2258 = vunpack.c.0.s8 %v2257
      %v2259 = vlaneseq
      %v2260 = vshrl.u32 %v2259, 7
      %v2261 = vsub.s32 %v2258, %v2260
      %v2262 = vrot.slane %v2254, %v2261
      %v2264 = vunpack.c.l.s4 1934713408
      %v2265 = vunpack.c.0.s8 %v2264
      %v2266 = vlaneseq
      %v2267 = vshrl.u32 %v2266, 7
      %v2268 = vsub.s32 %v2265, %v2267
      %v2269 = vrot.slane %v2255, %v2268
      %v2270 = vcombine.low %v2214, %v2246
      %v2271 = vcombine.high %v2214, %v2246
      %v2272 = vcombine.low %v2221, %v2253
      %v2273 = vcombine.high %v2221, %v2253
      %v2274 = vcombine.low %v2230, %v2262
      %v2275 = vcombine.high %v2230, %v2262
      %v2276 = vcombine.low %v2237, %v2269
      %v2277 = vcombine.high %v2237, %v2269
      %v2278 = vcombine.low %v768, %v2109
      %v2279 = vcombine.high %v768, %v2109
      %v2281 = vunpack.c.l.s4 1983009808
      %v2282 = vunpack.c.0.s8 %v2281
      %v2283 = vlaneseq
      %v2284 = vshrl.u32 %v2283, 7
      %v2285 = vsub.s32 %v2282, %v2284
      %v2286 = vrot.slane %v2278, %v2285
      %v2288 = vunpack.c.l.s4 1983009808
      %v2289 = vunpack.c.0.s8 %v2288
      %v2290 = vlaneseq
      %v2291 = vshrl.u32 %v2290, 7
      %v2292 = vsub.s32 %v2289, %v2291
      %v2293 = vrot.slane %v2279, %v2292
      %v2294 = vcombine.low %v2103, %v2115
      %v2295 = vcombine.high %v2103, %v2115
      %v2297 = vunpack.c.l.s4 1983009808
      %v2298 = vunpack.c.0.s8 %v2297
      %v2299 = vlaneseq
      %v2300 = vshrl.u32 %v2299, 7
      %v2301 = vsub.s32 %v2298, %v2300
      %v2302 = vrot.slane %v2294, %v2301
      %v2304 = vunpack.c.l.s4 1983009808
      %v2305 = vunpack.c.0.s8 %v2304
      %v2306 = vlaneseq
      %v2307 = vshrl.u32 %v2306, 7
      %v2308 = vsub.s32 %v2305, %v2307
      %v2309 = vrot.slane %v2295, %v2308
      %v2310 = vcombine.low %v2121, %v2133
      %v2311 = vcombine.high %v2121, %v2133
      %v2313 = vunpack.c.l.s4 1983009808
      %v2314 = vunpack.c.0.s8 %v2313
      %v2315 = vlaneseq
      %v2316 = vshrl.u32 %v2315, 7
      %v2317 = vsub.s32 %v2314, %v2316
      %v2318 = vrot.slane %v2310, %v2317
      %v2320 = vunpack.c.l.s4 1983009808
      %v2321 = vunpack.c.0.s8 %v2320
      %v2322 = vlaneseq
      %v2323 = vshrl.u32 %v2322, 7
      %v2324 = vsub.s32 %v2321, %v2323
      %v2325 = vrot.slane %v2311, %v2324
      %v2326 = vcombine.low %v2127, %v2139
      %v2327 = vcombine.high %v2127, %v2139
      %v2329 = vunpack.c.l.s4 1983009808
      %v2330 = vunpack.c.0.s8 %v2329
      %v2331 = vlaneseq
      %v2332 = vshrl.u32 %v2331, 7
      %v2333 = vsub.s32 %v2330, %v2332
      %v2334 = vrot.slane %v2326, %v2333
      %v2336 = vunpack.c.l.s4 1983009808
      %v2337 = vunpack.c.0.s8 %v2336
      %v2338 = vlaneseq
      %v2339 = vshrl.u32 %v2338, 7
      %v2340 = vsub.s32 %v2337, %v2339
      %v2341 = vrot.slane %v2327, %v2340
      %v2342 = vcombine.low %v2286, %v2302
      %v2343 = vcombine.high %v2286, %v2302
      %v2345 = vunpack.c.l.s4 1934713408
      %v2346 = vunpack.c.0.s8 %v2345
      %v2347 = vlaneseq
      %v2348 = vshrl.u32 %v2347, 7
      %v2349 = vsub.s32 %v2346, %v2348
      %v2350 = vrot.slane %v2342, %v2349
      %v2352 = vunpack.c.l.s4 1934713408
      %v2353 = vunpack.c.0.s8 %v2352
      %v2354 = vlaneseq
      %v2355 = vshrl.u32 %v2354, 7
      %v2356 = vsub.s32 %v2353, %v2355
      %v2357 = vrot.slane %v2343, %v2356
      %v2358 = vcombine.low %v2293, %v2309
      %v2359 = vcombine.high %v2293, %v2309
      %v2361 = vunpack.c.l.s4 1934713408
      %v2362 = vunpack.c.0.s8 %v2361
      %v2363 = vlaneseq
      %v2364 = vshrl.u32 %v2363, 7
      %v2365 = vsub.s32 %v2362, %v2364
      %v2366 = vrot.slane %v2358, %v2365
      %v2368 = vunpack.c.l.s4 1934713408
      %v2369 = vunpack.c.0.s8 %v2368
      %v2370 = vlaneseq
      %v2371 = vshrl.u32 %v2370, 7
      %v2372 = vsub.s32 %v2369, %v2371
      %v2373 = vrot.slane %v2359, %v2372
      %v2374 = vcombine.low %v2318, %v2334
      %v2375 = vcombine.high %v2318, %v2334
      %v2377 = vunpack.c.l.s4 1934713408
      %v2378 = vunpack.c.0.s8 %v2377
      %v2379 = vlaneseq
      %v2380 = vshrl.u32 %v2379, 7
      %v2381 = vsub.s32 %v2378, %v2380
      %v2382 = vrot.slane %v2374, %v2381
      %v2384 = vunpack.c.l.s4 1934713408
      %v2385 = vunpack.c.0.s8 %v2384
      %v2386 = vlaneseq
      %v2387 = vshrl.u32 %v2386, 7
      %v2388 = vsub.s32 %v2385, %v2387
      %v2389 = vrot.slane %v2375, %v2388
      %v2390 = vcombine.low %v2325, %v2341
      %v2391 = vcombine.high %v2325, %v2341
      %v2393 = vunpack.c.l.s4 1934713408
      %v2394 = vunpack.c.0.s8 %v2393
      %v2395 = vlaneseq
      %v2396 = vshrl.u32 %v2395, 7
      %v2397 = vsub.s32 %v2394, %v2396
      %v2398 = vrot.slane %v2390, %v2397
      %v2400 = vunpack.c.l.s4 1934713408
      %v2401 = vunpack.c.0.s8 %v2400
      %v2402 = vlaneseq
      %v2403 = vshrl.u32 %v2402, 7
      %v2404 = vsub.s32 %v2401, %v2403
      %v2405 = vrot.slane %v2391, %v2404
      %v2406 = vcombine.low %v2350, %v2382
      %v2407 = vcombine.high %v2350, %v2382
      %v2408 = vcombine.low %v2357, %v2389
      %v2409 = vcombine.high %v2357, %v2389
      %v2410 = vcombine.low %v2366, %v2398
      %v2411 = vcombine.high %v2366, %v2398
      %v2412 = vcombine.low %v2373, %v2405
      %v2413 = vcombine.high %v2373, %v2405
      %2416 = vrot.lane.b32.xlu0 %v828, 124
      %v2417 = vpop.permute.xlu0 %2416
      %2418 = vrot.lane.b32.xlu0 %v831, 124
      %v2419 = vpop.permute.xlu0 %2418
      %2422 = vrot.lane.b32.xlu0 %v828, 120
      %v2423 = vpop.permute.xlu0 %2422
      %2424 = vrot.lane.b32.xlu0 %v831, 120
      %v2425 = vpop.permute.xlu0 %2424
      %2428 = vrot.lane.b32.xlu0 %v828, 116
      %v2429 = vpop.permute.xlu0 %2428
      %2430 = vrot.lane.b32.xlu0 %v831, 116
      %v2431 = vpop.permute.xlu0 %2430
      %2434 = vrot.lane.b32.xlu0 %v828, 112
      %v2435 = vpop.permute.xlu0 %2434
      %2436 = vrot.lane.b32.xlu0 %v831, 112
      %v2437 = vpop.permute.xlu0 %2436
      %2440 = vrot.lane.b32.xlu0 %v828, 108
      %v2441 = vpop.permute.xlu0 %2440
      %2442 = vrot.lane.b32.xlu0 %v831, 108
      %v2443 = vpop.permute.xlu0 %2442
      %2446 = vrot.lane.b32.xlu0 %v828, 104
      %v2447 = vpop.permute.xlu0 %2446
      %2448 = vrot.lane.b32.xlu0 %v831, 104
      %v2449 = vpop.permute.xlu0 %2448
      %2452 = vrot.lane.b32.xlu0 %v828, 100
      %v2453 = vpop.permute.xlu0 %2452
      %2454 = vrot.lane.b32.xlu0 %v831, 100
      %v2455 = vpop.permute.xlu0 %2454
      %v2458 = vcombine.low %v828, %v2423
      %v2459 = vcombine.high %v828, %v2423
      %v2461 = vunpack.c.l.s4 1983009808
      %v2462 = vunpack.c.0.s8 %v2461
      %v2463 = vlaneseq
      %v2464 = vshrl.u32 %v2463, 7
      %v2465 = vsub.s32 %v2462, %v2464
      %v2466 = vrot.slane %v2458, %v2465
      %v2468 = vunpack.c.l.s4 1983009808
      %v2469 = vunpack.c.0.s8 %v2468
      %v2470 = vlaneseq
      %v2471 = vshrl.u32 %v2470, 7
      %v2472 = vsub.s32 %v2469, %v2471
      %v2473 = vrot.slane %v2459, %v2472
      %v2474 = vcombine.low %v2417, %v2429
      %v2475 = vcombine.high %v2417, %v2429
      %v2477 = vunpack.c.l.s4 1983009808
      %v2478 = vunpack.c.0.s8 %v2477
      %v2479 = vlaneseq
      %v2480 = vshrl.u32 %v2479, 7
      %v2481 = vsub.s32 %v2478, %v2480
      %v2482 = vrot.slane %v2474, %v2481
      %v2484 = vunpack.c.l.s4 1983009808
      %v2485 = vunpack.c.0.s8 %v2484
      %v2486 = vlaneseq
      %v2487 = vshrl.u32 %v2486, 7
      %v2488 = vsub.s32 %v2485, %v2487
      %v2489 = vrot.slane %v2475, %v2488
      %v2490 = vcombine.low %v2435, %v2447
      %v2491 = vcombine.high %v2435, %v2447
      %v2493 = vunpack.c.l.s4 1983009808
      %v2494 = vunpack.c.0.s8 %v2493
      %v2495 = vlaneseq
      %v2496 = vshrl.u32 %v2495, 7
      %v2497 = vsub.s32 %v2494, %v2496
      %v2498 = vrot.slane %v2490, %v2497
      %v2500 = vunpack.c.l.s4 1983009808
      %v2501 = vunpack.c.0.s8 %v2500
      %v2502 = vlaneseq
      %v2503 = vshrl.u32 %v2502, 7
      %v2504 = vsub.s32 %v2501, %v2503
      %v2505 = vrot.slane %v2491, %v2504
      %v2506 = vcombine.low %v2441, %v2453
      %v2507 = vcombine.high %v2441, %v2453
      %v2509 = vunpack.c.l.s4 1983009808
      %v2510 = vunpack.c.0.s8 %v2509
      %v2511 = vlaneseq
      %v2512 = vshrl.u32 %v2511, 7
      %v2513 = vsub.s32 %v2510, %v2512
      %v2514 = vrot.slane %v2506, %v2513
      %v2516 = vunpack.c.l.s4 1983009808
      %v2517 = vunpack.c.0.s8 %v2516
      %v2518 = vlaneseq
      %v2519 = vshrl.u32 %v2518, 7
      %v2520 = vsub.s32 %v2517, %v2519
      %v2521 = vrot.slane %v2507, %v2520
      %v2522 = vcombine.low %v2466, %v2482
      %v2523 = vcombine.high %v2466, %v2482
      %v2525 = vunpack.c.l.s4 1934713408
      %v2526 = vunpack.c.0.s8 %v2525
      %v2527 = vlaneseq
      %v2528 = vshrl.u32 %v2527, 7
      %v2529 = vsub.s32 %v2526, %v2528
      %v2530 = vrot.slane %v2522, %v2529
      %v2532 = vunpack.c.l.s4 1934713408
      %v2533 = vunpack.c.0.s8 %v2532
      %v2534 = vlaneseq
      %v2535 = vshrl.u32 %v2534, 7
      %v2536 = vsub.s32 %v2533, %v2535
      %v2537 = vrot.slane %v2523, %v2536
      %v2538 = vcombine.low %v2473, %v2489
      %v2539 = vcombine.high %v2473, %v2489
      %v2541 = vunpack.c.l.s4 1934713408
      %v2542 = vunpack.c.0.s8 %v2541
      %v2543 = vlaneseq
      %v2544 = vshrl.u32 %v2543, 7
      %v2545 = vsub.s32 %v2542, %v2544
      %v2546 = vrot.slane %v2538, %v2545
      %v2548 = vunpack.c.l.s4 1934713408
      %v2549 = vunpack.c.0.s8 %v2548
      %v2550 = vlaneseq
      %v2551 = vshrl.u32 %v2550, 7
      %v2552 = vsub.s32 %v2549, %v2551
      %v2553 = vrot.slane %v2539, %v2552
      %v2554 = vcombine.low %v2498, %v2514
      %v2555 = vcombine.high %v2498, %v2514
      %v2557 = vunpack.c.l.s4 1934713408
      %v2558 = vunpack.c.0.s8 %v2557
      %v2559 = vlaneseq
      %v2560 = vshrl.u32 %v2559, 7
      %v2561 = vsub.s32 %v2558, %v2560
      %v2562 = vrot.slane %v2554, %v2561
      %v2564 = vunpack.c.l.s4 1934713408
      %v2565 = vunpack.c.0.s8 %v2564
      %v2566 = vlaneseq
      %v2567 = vshrl.u32 %v2566, 7
      %v2568 = vsub.s32 %v2565, %v2567
      %v2569 = vrot.slane %v2555, %v2568
      %v2570 = vcombine.low %v2505, %v2521
      %v2571 = vcombine.high %v2505, %v2521
      %v2573 = vunpack.c.l.s4 1934713408
      %v2574 = vunpack.c.0.s8 %v2573
      %v2575 = vlaneseq
      %v2576 = vshrl.u32 %v2575, 7
      %v2577 = vsub.s32 %v2574, %v2576
      %v2578 = vrot.slane %v2570, %v2577
      %v2580 = vunpack.c.l.s4 1934713408
      %v2581 = vunpack.c.0.s8 %v2580
      %v2582 = vlaneseq
      %v2583 = vshrl.u32 %v2582, 7
      %v2584 = vsub.s32 %v2581, %v2583
      %v2585 = vrot.slane %v2571, %v2584
      %v2586 = vcombine.low %v2530, %v2562
      %v2587 = vcombine.high %v2530, %v2562
      %v2588 = vcombine.low %v2537, %v2569
      %v2589 = vcombine.high %v2537, %v2569
      %v2590 = vcombine.low %v2546, %v2578
      %v2591 = vcombine.high %v2546, %v2578
      %v2592 = vcombine.low %v2553, %v2585
      %v2593 = vcombine.high %v2553, %v2585
      %v2594 = vcombine.low %v831, %v2425
      %v2595 = vcombine.high %v831, %v2425
      %v2597 = vunpack.c.l.s4 1983009808
      %v2598 = vunpack.c.0.s8 %v2597
      %v2599 = vlaneseq
      %v2600 = vshrl.u32 %v2599, 7
      %v2601 = vsub.s32 %v2598, %v2600
      %v2602 = vrot.slane %v2594, %v2601
      %v2604 = vunpack.c.l.s4 1983009808
      %v2605 = vunpack.c.0.s8 %v2604
      %v2606 = vlaneseq
      %v2607 = vshrl.u32 %v2606, 7
      %v2608 = vsub.s32 %v2605, %v2607
      %v2609 = vrot.slane %v2595, %v2608
      %v2610 = vcombine.low %v2419, %v2431
      %v2611 = vcombine.high %v2419, %v2431
      %v2613 = vunpack.c.l.s4 1983009808
      %v2614 = vunpack.c.0.s8 %v2613
      %v2615 = vlaneseq
      %v2616 = vshrl.u32 %v2615, 7
      %v2617 = vsub.s32 %v2614, %v2616
      %v2618 = vrot.slane %v2610, %v2617
      %v2620 = vunpack.c.l.s4 1983009808
      %v2621 = vunpack.c.0.s8 %v2620
      %v2622 = vlaneseq
      %v2623 = vshrl.u32 %v2622, 7
      %v2624 = vsub.s32 %v2621, %v2623
      %v2625 = vrot.slane %v2611, %v2624
      %v2626 = vcombine.low %v2437, %v2449
      %v2627 = vcombine.high %v2437, %v2449
      %v2629 = vunpack.c.l.s4 1983009808
      %v2630 = vunpack.c.0.s8 %v2629
      %v2631 = vlaneseq
      %v2632 = vshrl.u32 %v2631, 7
      %v2633 = vsub.s32 %v2630, %v2632
      %v2634 = vrot.slane %v2626, %v2633
      %v2636 = vunpack.c.l.s4 1983009808
      %v2637 = vunpack.c.0.s8 %v2636
      %v2638 = vlaneseq
      %v2639 = vshrl.u32 %v2638, 7
      %v2640 = vsub.s32 %v2637, %v2639
      %v2641 = vrot.slane %v2627, %v2640
      %v2642 = vcombine.low %v2443, %v2455
      %v2643 = vcombine.high %v2443, %v2455
      %v2645 = vunpack.c.l.s4 1983009808
      %v2646 = vunpack.c.0.s8 %v2645
      %v2647 = vlaneseq
      %v2648 = vshrl.u32 %v2647, 7
      %v2649 = vsub.s32 %v2646, %v2648
      %v2650 = vrot.slane %v2642, %v2649
      %v2652 = vunpack.c.l.s4 1983009808
      %v2653 = vunpack.c.0.s8 %v2652
      %v2654 = vlaneseq
      %v2655 = vshrl.u32 %v2654, 7
      %v2656 = vsub.s32 %v2653, %v2655
      %v2657 = vrot.slane %v2643, %v2656
      %v2658 = vcombine.low %v2602, %v2618
      %v2659 = vcombine.high %v2602, %v2618
      %v2661 = vunpack.c.l.s4 1934713408
      %v2662 = vunpack.c.0.s8 %v2661
      %v2663 = vlaneseq
      %v2664 = vshrl.u32 %v2663, 7
      %v2665 = vsub.s32 %v2662, %v2664
      %v2666 = vrot.slane %v2658, %v2665
      %v2668 = vunpack.c.l.s4 1934713408
      %v2669 = vunpack.c.0.s8 %v2668
      %v2670 = vlaneseq
      %v2671 = vshrl.u32 %v2670, 7
      %v2672 = vsub.s32 %v2669, %v2671
      %v2673 = vrot.slane %v2659, %v2672
      %v2674 = vcombine.low %v2609, %v2625
      %v2675 = vcombine.high %v2609, %v2625
      %v2677 = vunpack.c.l.s4 1934713408
      %v2678 = vunpack.c.0.s8 %v2677
      %v2679 = vlaneseq
      %v2680 = vshrl.u32 %v2679, 7
      %v2681 = vsub.s32 %v2678, %v2680
      %v2682 = vrot.slane %v2674, %v2681
      %v2684 = vunpack.c.l.s4 1934713408
      %v2685 = vunpack.c.0.s8 %v2684
      %v2686 = vlaneseq
      %v2687 = vshrl.u32 %v2686, 7
      %v2688 = vsub.s32 %v2685, %v2687
      %v2689 = vrot.slane %v2675, %v2688
      %v2690 = vcombine.low %v2634, %v2650
      %v2691 = vcombine.high %v2634, %v2650
      %v2693 = vunpack.c.l.s4 1934713408
      %v2694 = vunpack.c.0.s8 %v2693
      %v2695 = vlaneseq
      %v2696 = vshrl.u32 %v2695, 7
      %v2697 = vsub.s32 %v2694, %v2696
      %v2698 = vrot.slane %v2690, %v2697
      %v2700 = vunpack.c.l.s4 1934713408
      %v2701 = vunpack.c.0.s8 %v2700
      %v2702 = vlaneseq
      %v2703 = vshrl.u32 %v2702, 7
      %v2704 = vsub.s32 %v2701, %v2703
      %v2705 = vrot.slane %v2691, %v2704
      %v2706 = vcombine.low %v2641, %v2657
      %v2707 = vcombine.high %v2641, %v2657
      %v2709 = vunpack.c.l.s4 1934713408
      %v2710 = vunpack.c.0.s8 %v2709
      %v2711 = vlaneseq
      %v2712 = vshrl.u32 %v2711, 7
      %v2713 = vsub.s32 %v2710, %v2712
      %v2714 = vrot.slane %v2706, %v2713
      %v2716 = vunpack.c.l.s4 1934713408
      %v2717 = vunpack.c.0.s8 %v2716
      %v2718 = vlaneseq
      %v2719 = vshrl.u32 %v2718, 7
      %v2720 = vsub.s32 %v2717, %v2719
      %v2721 = vrot.slane %v2707, %v2720
      %v2722 = vcombine.low %v2666, %v2698
      %v2723 = vcombine.high %v2666, %v2698
      %v2724 = vcombine.low %v2673, %v2705
      %v2725 = vcombine.high %v2673, %v2705
      %v2726 = vcombine.low %v2682, %v2714
      %v2727 = vcombine.high %v2682, %v2714
      %v2728 = vcombine.low %v2689, %v2721
      %v2729 = vcombine.high %v2689, %v2721
      %v2730 = vcombine.low %v1138, %v1140
      %v2731 = vcombine.high %v1138, %v1140
      %v2733 = vunpack.c.l.s4 1983009808
      %v2734 = vunpack.c.0.s8 %v2733
      %v2735 = vlaneseq
      %v2736 = vshrl.u32 %v2735, 7
      %v2737 = vsub.s32 %v2734, %v2736
      %v2738 = vrot.slane %v2730, %v2737
      %v2740 = vunpack.c.l.s4 1983009808
      %v2741 = vunpack.c.0.s8 %v2740
      %v2742 = vlaneseq
      %v2743 = vshrl.u32 %v2742, 7
      %v2744 = vsub.s32 %v2741, %v2743
      %v2745 = vrot.slane %v2731, %v2744
      %v2746 = vcombine.low %v1139, %v1141
      %v2747 = vcombine.high %v1139, %v1141
      %v2749 = vunpack.c.l.s4 1983009808
      %v2750 = vunpack.c.0.s8 %v2749
      %v2751 = vlaneseq
      %v2752 = vshrl.u32 %v2751, 7
      %v2753 = vsub.s32 %v2750, %v2752
      %v2754 = vrot.slane %v2746, %v2753
      %v2756 = vunpack.c.l.s4 1983009808
      %v2757 = vunpack.c.0.s8 %v2756
      %v2758 = vlaneseq
      %v2759 = vshrl.u32 %v2758, 7
      %v2760 = vsub.s32 %v2757, %v2759
      %v2761 = vrot.slane %v2747, %v2760
      %v2762 = vcombine.low %v1142, %v1144
      %v2763 = vcombine.high %v1142, %v1144
      %v2765 = vunpack.c.l.s4 1983009808
      %v2766 = vunpack.c.0.s8 %v2765
      %v2767 = vlaneseq
      %v2768 = vshrl.u32 %v2767, 7
      %v2769 = vsub.s32 %v2766, %v2768
      %v2770 = vrot.slane %v2762, %v2769
      %v2772 = vunpack.c.l.s4 1983009808
      %v2773 = vunpack.c.0.s8 %v2772
      %v2774 = vlaneseq
      %v2775 = vshrl.u32 %v2774, 7
      %v2776 = vsub.s32 %v2773, %v2775
      %v2777 = vrot.slane %v2763, %v2776
      %v2778 = vcombine.low %v1143, %v1145
      %v2779 = vcombine.high %v1143, %v1145
      %v2781 = vunpack.c.l.s4 1983009808
      %v2782 = vunpack.c.0.s8 %v2781
      %v2783 = vlaneseq
      %v2784 = vshrl.u32 %v2783, 7
      %v2785 = vsub.s32 %v2782, %v2784
      %v2786 = vrot.slane %v2778, %v2785
      %v2788 = vunpack.c.l.s4 1983009808
      %v2789 = vunpack.c.0.s8 %v2788
      %v2790 = vlaneseq
      %v2791 = vshrl.u32 %v2790, 7
      %v2792 = vsub.s32 %v2789, %v2791
      %v2793 = vrot.slane %v2779, %v2792
      %v2794 = vcombine.low %v2738, %v2754
      %v2795 = vcombine.high %v2738, %v2754
      %v2797 = vunpack.c.l.s4 1934713408
      %v2798 = vunpack.c.0.s8 %v2797
      %v2799 = vlaneseq
      %v2800 = vshrl.u32 %v2799, 7
      %v2801 = vsub.s32 %v2798, %v2800
      %v2802 = vrot.slane %v2794, %v2801
      %v2804 = vunpack.c.l.s4 1934713408
      %v2805 = vunpack.c.0.s8 %v2804
      %v2806 = vlaneseq
      %v2807 = vshrl.u32 %v2806, 7
      %v2808 = vsub.s32 %v2805, %v2807
      %v2809 = vrot.slane %v2795, %v2808
      %v2810 = vcombine.low %v2745, %v2761
      %v2811 = vcombine.high %v2745, %v2761
      %v2813 = vunpack.c.l.s4 1934713408
      %v2814 = vunpack.c.0.s8 %v2813
      %v2815 = vlaneseq
      %v2816 = vshrl.u32 %v2815, 7
      %v2817 = vsub.s32 %v2814, %v2816
      %v2818 = vrot.slane %v2810, %v2817
      %v2820 = vunpack.c.l.s4 1934713408
      %v2821 = vunpack.c.0.s8 %v2820
      %v2822 = vlaneseq
      %v2823 = vshrl.u32 %v2822, 7
      %v2824 = vsub.s32 %v2821, %v2823
      %v2825 = vrot.slane %v2811, %v2824
      %v2826 = vcombine.low %v2770, %v2786
      %v2827 = vcombine.high %v2770, %v2786
      %v2829 = vunpack.c.l.s4 1934713408
      %v2830 = vunpack.c.0.s8 %v2829
      %v2831 = vlaneseq
      %v2832 = vshrl.u32 %v2831, 7
      %v2833 = vsub.s32 %v2830, %v2832
      %v2834 = vrot.slane %v2826, %v2833
      %v2836 = vunpack.c.l.s4 1934713408
      %v2837 = vunpack.c.0.s8 %v2836
      %v2838 = vlaneseq
      %v2839 = vshrl.u32 %v2838, 7
      %v2840 = vsub.s32 %v2837, %v2839
      %v2841 = vrot.slane %v2827, %v2840
      %v2842 = vcombine.low %v2777, %v2793
      %v2843 = vcombine.high %v2777, %v2793
      %v2845 = vunpack.c.l.s4 1934713408
      %v2846 = vunpack.c.0.s8 %v2845
      %v2847 = vlaneseq
      %v2848 = vshrl.u32 %v2847, 7
      %v2849 = vsub.s32 %v2846, %v2848
      %v2850 = vrot.slane %v2842, %v2849
      %v2852 = vunpack.c.l.s4 1934713408
      %v2853 = vunpack.c.0.s8 %v2852
      %v2854 = vlaneseq
      %v2855 = vshrl.u32 %v2854, 7
      %v2856 = vsub.s32 %v2853, %v2855
      %v2857 = vrot.slane %v2843, %v2856
      %v2858 = vcombine.low %v2802, %v2834
      %v2859 = vcombine.high %v2802, %v2834
      %v2860 = vcombine.low %v2809, %v2841
      %v2861 = vcombine.high %v2809, %v2841
      %v2862 = vcombine.low %v2818, %v2850
      %v2863 = vcombine.high %v2818, %v2850
      %v2864 = vcombine.low %v2825, %v2857
      %v2865 = vcombine.high %v2825, %v2857
      %v2866 = vcombine.low %v1274, %v1276
      %v2867 = vcombine.high %v1274, %v1276
      %v2869 = vunpack.c.l.s4 1983009808
      %v2870 = vunpack.c.0.s8 %v2869
      %v2871 = vlaneseq
      %v2872 = vshrl.u32 %v2871, 7
      %v2873 = vsub.s32 %v2870, %v2872
      %v2874 = vrot.slane %v2866, %v2873
      %v2876 = vunpack.c.l.s4 1983009808
      %v2877 = vunpack.c.0.s8 %v2876
      %v2878 = vlaneseq
      %v2879 = vshrl.u32 %v2878, 7
      %v2880 = vsub.s32 %v2877, %v2879
      %v2881 = vrot.slane %v2867, %v2880
      %v2882 = vcombine.low %v1275, %v1277
      %v2883 = vcombine.high %v1275, %v1277
      %v2885 = vunpack.c.l.s4 1983009808
      %v2886 = vunpack.c.0.s8 %v2885
      %v2887 = vlaneseq
      %v2888 = vshrl.u32 %v2887, 7
      %v2889 = vsub.s32 %v2886, %v2888
      %v2890 = vrot.slane %v2882, %v2889
      %v2892 = vunpack.c.l.s4 1983009808
      %v2893 = vunpack.c.0.s8 %v2892
      %v2894 = vlaneseq
      %v2895 = vshrl.u32 %v2894, 7
      %v2896 = vsub.s32 %v2893, %v2895
      %v2897 = vrot.slane %v2883, %v2896
      %v2898 = vcombine.low %v1278, %v1280
      %v2899 = vcombine.high %v1278, %v1280
      %v2901 = vunpack.c.l.s4 1983009808
      %v2902 = vunpack.c.0.s8 %v2901
      %v2903 = vlaneseq
      %v2904 = vshrl.u32 %v2903, 7
      %v2905 = vsub.s32 %v2902, %v2904
      %v2906 = vrot.slane %v2898, %v2905
      %v2908 = vunpack.c.l.s4 1983009808
      %v2909 = vunpack.c.0.s8 %v2908
      %v2910 = vlaneseq
      %v2911 = vshrl.u32 %v2910, 7
      %v2912 = vsub.s32 %v2909, %v2911
      %v2913 = vrot.slane %v2899, %v2912
      %v2914 = vcombine.low %v1279, %v1281
      %v2915 = vcombine.high %v1279, %v1281
      %v2917 = vunpack.c.l.s4 1983009808
      %v2918 = vunpack.c.0.s8 %v2917
      %v2919 = vlaneseq
      %v2920 = vshrl.u32 %v2919, 7
      %v2921 = vsub.s32 %v2918, %v2920
      %v2922 = vrot.slane %v2914, %v2921
      %v2924 = vunpack.c.l.s4 1983009808
      %v2925 = vunpack.c.0.s8 %v2924
      %v2926 = vlaneseq
      %v2927 = vshrl.u32 %v2926, 7
      %v2928 = vsub.s32 %v2925, %v2927
      %v2929 = vrot.slane %v2915, %v2928
      %v2930 = vcombine.low %v2874, %v2890
      %v2931 = vcombine.high %v2874, %v2890
      %v2933 = vunpack.c.l.s4 1934713408
      %v2934 = vunpack.c.0.s8 %v2933
      %v2935 = vlaneseq
      %v2936 = vshrl.u32 %v2935, 7
      %v2937 = vsub.s32 %v2934, %v2936
      %v2938 = vrot.slane %v2930, %v2937
      %v2940 = vunpack.c.l.s4 1934713408
      %v2941 = vunpack.c.0.s8 %v2940
      %v2942 = vlaneseq
      %v2943 = vshrl.u32 %v2942, 7
      %v2944 = vsub.s32 %v2941, %v2943
      %v2945 = vrot.slane %v2931, %v2944
      %v2946 = vcombine.low %v2881, %v2897
      %v2947 = vcombine.high %v2881, %v2897
      %v2949 = vunpack.c.l.s4 1934713408
      %v2950 = vunpack.c.0.s8 %v2949
      %v2951 = vlaneseq
      %v2952 = vshrl.u32 %v2951, 7
      %v2953 = vsub.s32 %v2950, %v2952
      %v2954 = vrot.slane %v2946, %v2953
      %v2956 = vunpack.c.l.s4 1934713408
      %v2957 = vunpack.c.0.s8 %v2956
      %v2958 = vlaneseq
      %v2959 = vshrl.u32 %v2958, 7
      %v2960 = vsub.s32 %v2957, %v2959
      %v2961 = vrot.slane %v2947, %v2960
      %v2962 = vcombine.low %v2906, %v2922
      %v2963 = vcombine.high %v2906, %v2922
      %v2965 = vunpack.c.l.s4 1934713408
      %v2966 = vunpack.c.0.s8 %v2965
      %v2967 = vlaneseq
      %v2968 = vshrl.u32 %v2967, 7
      %v2969 = vsub.s32 %v2966, %v2968
      %v2970 = vrot.slane %v2962, %v2969
      %v2972 = vunpack.c.l.s4 1934713408
      %v2973 = vunpack.c.0.s8 %v2972
      %v2974 = vlaneseq
      %v2975 = vshrl.u32 %v2974, 7
      %v2976 = vsub.s32 %v2973, %v2975
      %v2977 = vrot.slane %v2963, %v2976
      %v2978 = vcombine.low %v2913, %v2929
      %v2979 = vcombine.high %v2913, %v2929
      %v2981 = vunpack.c.l.s4 1934713408
      %v2982 = vunpack.c.0.s8 %v2981
      %v2983 = vlaneseq
      %v2984 = vshrl.u32 %v2983, 7
      %v2985 = vsub.s32 %v2982, %v2984
      %v2986 = vrot.slane %v2978, %v2985
      %v2988 = vunpack.c.l.s4 1934713408
      %v2989 = vunpack.c.0.s8 %v2988
      %v2990 = vlaneseq
      %v2991 = vshrl.u32 %v2990, 7
      %v2992 = vsub.s32 %v2989, %v2991
      %v2993 = vrot.slane %v2979, %v2992
      %v2994 = vcombine.low %v2938, %v2970
      %v2995 = vcombine.high %v2938, %v2970
      %v2996 = vcombine.low %v2945, %v2977
      %v2997 = vcombine.high %v2945, %v2977
      %v2998 = vcombine.low %v2954, %v2986
      %v2999 = vcombine.high %v2954, %v2986
      %v3000 = vcombine.low %v2961, %v2993
      %v3001 = vcombine.high %v2961, %v2993
      %v3002 = vcombine.low %v1410, %v1412
      %v3003 = vcombine.high %v1410, %v1412
      %v3005 = vunpack.c.l.s4 1983009808
      %v3006 = vunpack.c.0.s8 %v3005
      %v3007 = vlaneseq
      %v3008 = vshrl.u32 %v3007, 7
      %v3009 = vsub.s32 %v3006, %v3008
      %v3010 = vrot.slane %v3002, %v3009
      %v3012 = vunpack.c.l.s4 1983009808
      %v3013 = vunpack.c.0.s8 %v3012
      %v3014 = vlaneseq
      %v3015 = vshrl.u32 %v3014, 7
      %v3016 = vsub.s32 %v3013, %v3015
      %v3017 = vrot.slane %v3003, %v3016
      %v3018 = vcombine.low %v1411, %v1413
      %v3019 = vcombine.high %v1411, %v1413
      %v3021 = vunpack.c.l.s4 1983009808
      %v3022 = vunpack.c.0.s8 %v3021
      %v3023 = vlaneseq
      %v3024 = vshrl.u32 %v3023, 7
      %v3025 = vsub.s32 %v3022, %v3024
      %v3026 = vrot.slane %v3018, %v3025
      %v3028 = vunpack.c.l.s4 1983009808
      %v3029 = vunpack.c.0.s8 %v3028
      %v3030 = vlaneseq
      %v3031 = vshrl.u32 %v3030, 7
      %v3032 = vsub.s32 %v3029, %v3031
      %v3033 = vrot.slane %v3019, %v3032
      %v3034 = vcombine.low %v1414, %v1416
      %v3035 = vcombine.high %v1414, %v1416
      %v3037 = vunpack.c.l.s4 1983009808
      %v3038 = vunpack.c.0.s8 %v3037
      %v3039 = vlaneseq
      %v3040 = vshrl.u32 %v3039, 7
      %v3041 = vsub.s32 %v3038, %v3040
      %v3042 = vrot.slane %v3034, %v3041
      %v3044 = vunpack.c.l.s4 1983009808
      %v3045 = vunpack.c.0.s8 %v3044
      %v3046 = vlaneseq
      %v3047 = vshrl.u32 %v3046, 7
      %v3048 = vsub.s32 %v3045, %v3047
      %v3049 = vrot.slane %v3035, %v3048
      %v3050 = vcombine.low %v1415, %v1417
      %v3051 = vcombine.high %v1415, %v1417
      %v3053 = vunpack.c.l.s4 1983009808
      %v3054 = vunpack.c.0.s8 %v3053
      %v3055 = vlaneseq
      %v3056 = vshrl.u32 %v3055, 7
      %v3057 = vsub.s32 %v3054, %v3056
      %v3058 = vrot.slane %v3050, %v3057
      %v3060 = vunpack.c.l.s4 1983009808
      %v3061 = vunpack.c.0.s8 %v3060
      %v3062 = vlaneseq
      %v3063 = vshrl.u32 %v3062, 7
      %v3064 = vsub.s32 %v3061, %v3063
      %v3065 = vrot.slane %v3051, %v3064
      %v3066 = vcombine.low %v3010, %v3026
      %v3067 = vcombine.high %v3010, %v3026
      %v3069 = vunpack.c.l.s4 1934713408
      %v3070 = vunpack.c.0.s8 %v3069
      %v3071 = vlaneseq
      %v3072 = vshrl.u32 %v3071, 7
      %v3073 = vsub.s32 %v3070, %v3072
      %v3074 = vrot.slane %v3066, %v3073
      %v3076 = vunpack.c.l.s4 1934713408
      %v3077 = vunpack.c.0.s8 %v3076
      %v3078 = vlaneseq
      %v3079 = vshrl.u32 %v3078, 7
      %v3080 = vsub.s32 %v3077, %v3079
      %v3081 = vrot.slane %v3067, %v3080
      %v3082 = vcombine.low %v3017, %v3033
      %v3083 = vcombine.high %v3017, %v3033
      %v3085 = vunpack.c.l.s4 1934713408
      %v3086 = vunpack.c.0.s8 %v3085
      %v3087 = vlaneseq
      %v3088 = vshrl.u32 %v3087, 7
      %v3089 = vsub.s32 %v3086, %v3088
      %v3090 = vrot.slane %v3082, %v3089
      %v3092 = vunpack.c.l.s4 1934713408
      %v3093 = vunpack.c.0.s8 %v3092
      %v3094 = vlaneseq
      %v3095 = vshrl.u32 %v3094, 7
      %v3096 = vsub.s32 %v3093, %v3095
      %v3097 = vrot.slane %v3083, %v3096
      %v3098 = vcombine.low %v3042, %v3058
      %v3099 = vcombine.high %v3042, %v3058
      %v3101 = vunpack.c.l.s4 1934713408
      %v3102 = vunpack.c.0.s8 %v3101
      %v3103 = vlaneseq
      %v3104 = vshrl.u32 %v3103, 7
      %v3105 = vsub.s32 %v3102, %v3104
      %v3106 = vrot.slane %v3098, %v3105
      %v3108 = vunpack.c.l.s4 1934713408
      %v3109 = vunpack.c.0.s8 %v3108
      %v3110 = vlaneseq
      %v3111 = vshrl.u32 %v3110, 7
      %v3112 = vsub.s32 %v3109, %v3111
      %v3113 = vrot.slane %v3099, %v3112
      %v3114 = vcombine.low %v3049, %v3065
      %v3115 = vcombine.high %v3049, %v3065
      %v3117 = vunpack.c.l.s4 1934713408
      %v3118 = vunpack.c.0.s8 %v3117
      %v3119 = vlaneseq
      %v3120 = vshrl.u32 %v3119, 7
      %v3121 = vsub.s32 %v3118, %v3120
      %v3122 = vrot.slane %v3114, %v3121
      %v3124 = vunpack.c.l.s4 1934713408
      %v3125 = vunpack.c.0.s8 %v3124
      %v3126 = vlaneseq
      %v3127 = vshrl.u32 %v3126, 7
      %v3128 = vsub.s32 %v3125, %v3127
      %v3129 = vrot.slane %v3115, %v3128
      %v3130 = vcombine.low %v3074, %v3106
      %v3131 = vcombine.high %v3074, %v3106
      %v3132 = vcombine.low %v3081, %v3113
      %v3133 = vcombine.high %v3081, %v3113
      %v3134 = vcombine.low %v3090, %v3122
      %v3135 = vcombine.high %v3090, %v3122
      %v3136 = vcombine.low %v3097, %v3129
      %v3137 = vcombine.high %v3097, %v3129
      %v3138 = vcombine.low %v1546, %v1548
      %v3139 = vcombine.high %v1546, %v1548
      %v3141 = vunpack.c.l.s4 1983009808
      %v3142 = vunpack.c.0.s8 %v3141
      %v3143 = vlaneseq
      %v3144 = vshrl.u32 %v3143, 7
      %v3145 = vsub.s32 %v3142, %v3144
      %v3146 = vrot.slane %v3138, %v3145
      %v3148 = vunpack.c.l.s4 1983009808
      %v3149 = vunpack.c.0.s8 %v3148
      %v3150 = vlaneseq
      %v3151 = vshrl.u32 %v3150, 7
      %v3152 = vsub.s32 %v3149, %v3151
      %v3153 = vrot.slane %v3139, %v3152
      %v3154 = vcombine.low %v1547, %v1549
      %v3155 = vcombine.high %v1547, %v1549
      %v3157 = vunpack.c.l.s4 1983009808
      %v3158 = vunpack.c.0.s8 %v3157
      %v3159 = vlaneseq
      %v3160 = vshrl.u32 %v3159, 7
      %v3161 = vsub.s32 %v3158, %v3160
      %v3162 = vrot.slane %v3154, %v3161
      %v3164 = vunpack.c.l.s4 1983009808
      %v3165 = vunpack.c.0.s8 %v3164
      %v3166 = vlaneseq
      %v3167 = vshrl.u32 %v3166, 7
      %v3168 = vsub.s32 %v3165, %v3167
      %v3169 = vrot.slane %v3155, %v3168
      %v3170 = vcombine.low %v1550, %v1552
      %v3171 = vcombine.high %v1550, %v1552
      %v3173 = vunpack.c.l.s4 1983009808
      %v3174 = vunpack.c.0.s8 %v3173
      %v3175 = vlaneseq
      %v3176 = vshrl.u32 %v3175, 7
      %v3177 = vsub.s32 %v3174, %v3176
      %v3178 = vrot.slane %v3170, %v3177
      %v3180 = vunpack.c.l.s4 1983009808
      %v3181 = vunpack.c.0.s8 %v3180
      %v3182 = vlaneseq
      %v3183 = vshrl.u32 %v3182, 7
      %v3184 = vsub.s32 %v3181, %v3183
      %v3185 = vrot.slane %v3171, %v3184
      %v3186 = vcombine.low %v1551, %v1553
      %v3187 = vcombine.high %v1551, %v1553
      %v3189 = vunpack.c.l.s4 1983009808
      %v3190 = vunpack.c.0.s8 %v3189
      %v3191 = vlaneseq
      %v3192 = vshrl.u32 %v3191, 7
      %v3193 = vsub.s32 %v3190, %v3192
      %v3194 = vrot.slane %v3186, %v3193
      %v3196 = vunpack.c.l.s4 1983009808
      %v3197 = vunpack.c.0.s8 %v3196
      %v3198 = vlaneseq
      %v3199 = vshrl.u32 %v3198, 7
      %v3200 = vsub.s32 %v3197, %v3199
      %v3201 = vrot.slane %v3187, %v3200
      %v3202 = vcombine.low %v3146, %v3162
      %v3203 = vcombine.high %v3146, %v3162
      %v3205 = vunpack.c.l.s4 1934713408
      %v3206 = vunpack.c.0.s8 %v3205
      %v3207 = vlaneseq
      %v3208 = vshrl.u32 %v3207, 7
      %v3209 = vsub.s32 %v3206, %v3208
      %v3210 = vrot.slane %v3202, %v3209
      %v3212 = vunpack.c.l.s4 1934713408
      %v3213 = vunpack.c.0.s8 %v3212
      %v3214 = vlaneseq
      %v3215 = vshrl.u32 %v3214, 7
      %v3216 = vsub.s32 %v3213, %v3215
      %v3217 = vrot.slane %v3203, %v3216
      %v3218 = vcombine.low %v3153, %v3169
      %v3219 = vcombine.high %v3153, %v3169
      %v3221 = vunpack.c.l.s4 1934713408
      %v3222 = vunpack.c.0.s8 %v3221
      %v3223 = vlaneseq
      %v3224 = vshrl.u32 %v3223, 7
      %v3225 = vsub.s32 %v3222, %v3224
      %v3226 = vrot.slane %v3218, %v3225
      %v3228 = vunpack.c.l.s4 1934713408
      %v3229 = vunpack.c.0.s8 %v3228
      %v3230 = vlaneseq
      %v3231 = vshrl.u32 %v3230, 7
      %v3232 = vsub.s32 %v3229, %v3231
      %v3233 = vrot.slane %v3219, %v3232
      %v3234 = vcombine.low %v3178, %v3194
      %v3235 = vcombine.high %v3178, %v3194
      %v3237 = vunpack.c.l.s4 1934713408
      %v3238 = vunpack.c.0.s8 %v3237
      %v3239 = vlaneseq
      %v3240 = vshrl.u32 %v3239, 7
      %v3241 = vsub.s32 %v3238, %v3240
      %v3242 = vrot.slane %v3234, %v3241
      %v3244 = vunpack.c.l.s4 1934713408
      %v3245 = vunpack.c.0.s8 %v3244
      %v3246 = vlaneseq
      %v3247 = vshrl.u32 %v3246, 7
      %v3248 = vsub.s32 %v3245, %v3247
      %v3249 = vrot.slane %v3235, %v3248
      %v3250 = vcombine.low %v3185, %v3201
      %v3251 = vcombine.high %v3185, %v3201
      %v3253 = vunpack.c.l.s4 1934713408
      %v3254 = vunpack.c.0.s8 %v3253
      %v3255 = vlaneseq
      %v3256 = vshrl.u32 %v3255, 7
      %v3257 = vsub.s32 %v3254, %v3256
      %v3258 = vrot.slane %v3250, %v3257
      %v3260 = vunpack.c.l.s4 1934713408
      %v3261 = vunpack.c.0.s8 %v3260
      %v3262 = vlaneseq
      %v3263 = vshrl.u32 %v3262, 7
      %v3264 = vsub.s32 %v3261, %v3263
      %v3265 = vrot.slane %v3251, %v3264
      %v3266 = vcombine.low %v3210, %v3242
      %v3267 = vcombine.high %v3210, %v3242
      %v3268 = vcombine.low %v3217, %v3249
      %v3269 = vcombine.high %v3217, %v3249
      %v3270 = vcombine.low %v3226, %v3258
      %v3271 = vcombine.high %v3226, %v3258
      %v3272 = vcombine.low %v3233, %v3265
      %v3273 = vcombine.high %v3233, %v3265
      %v3274 = vcombine.low %v1682, %v1684
      %v3275 = vcombine.high %v1682, %v1684
      %v3277 = vunpack.c.l.s4 1983009808
      %v3278 = vunpack.c.0.s8 %v3277
      %v3279 = vlaneseq
      %v3280 = vshrl.u32 %v3279, 7
      %v3281 = vsub.s32 %v3278, %v3280
      %v3282 = vrot.slane %v3274, %v3281
      %v3284 = vunpack.c.l.s4 1983009808
      %v3285 = vunpack.c.0.s8 %v3284
      %v3286 = vlaneseq
      %v3287 = vshrl.u32 %v3286, 7
      %v3288 = vsub.s32 %v3285, %v3287
      %v3289 = vrot.slane %v3275, %v3288
      %v3290 = vcombine.low %v1683, %v1685
      %v3291 = vcombine.high %v1683, %v1685
      %v3293 = vunpack.c.l.s4 1983009808
      %v3294 = vunpack.c.0.s8 %v3293
      %v3295 = vlaneseq
      %v3296 = vshrl.u32 %v3295, 7
      %v3297 = vsub.s32 %v3294, %v3296
      %v3298 = vrot.slane %v3290, %v3297
      %v3300 = vunpack.c.l.s4 1983009808
      %v3301 = vunpack.c.0.s8 %v3300
      %v3302 = vlaneseq
      %v3303 = vshrl.u32 %v3302, 7
      %v3304 = vsub.s32 %v3301, %v3303
      %v3305 = vrot.slane %v3291, %v3304
      %v3306 = vcombine.low %v1686, %v1688
      %v3307 = vcombine.high %v1686, %v1688
      %v3309 = vunpack.c.l.s4 1983009808
      %v3310 = vunpack.c.0.s8 %v3309
      %v3311 = vlaneseq
      %v3312 = vshrl.u32 %v3311, 7
      %v3313 = vsub.s32 %v3310, %v3312
      %v3314 = vrot.slane %v3306, %v3313
      %v3316 = vunpack.c.l.s4 1983009808
      %v3317 = vunpack.c.0.s8 %v3316
      %v3318 = vlaneseq
      %v3319 = vshrl.u32 %v3318, 7
      %v3320 = vsub.s32 %v3317, %v3319
      %v3321 = vrot.slane %v3307, %v3320
      %v3322 = vcombine.low %v1687, %v1689
      %v3323 = vcombine.high %v1687, %v1689
      %v3325 = vunpack.c.l.s4 1983009808
      %v3326 = vunpack.c.0.s8 %v3325
      %v3327 = vlaneseq
      %v3328 = vshrl.u32 %v3327, 7
      %v3329 = vsub.s32 %v3326, %v3328
      %v3330 = vrot.slane %v3322, %v3329
      %v3332 = vunpack.c.l.s4 1983009808
      %v3333 = vunpack.c.0.s8 %v3332
      %v3334 = vlaneseq
      %v3335 = vshrl.u32 %v3334, 7
      %v3336 = vsub.s32 %v3333, %v3335
      %v3337 = vrot.slane %v3323, %v3336
      %v3338 = vcombine.low %v3282, %v3298
      %v3339 = vcombine.high %v3282, %v3298
      %v3341 = vunpack.c.l.s4 1934713408
      %v3342 = vunpack.c.0.s8 %v3341
      %v3343 = vlaneseq
      %v3344 = vshrl.u32 %v3343, 7
      %v3345 = vsub.s32 %v3342, %v3344
      %v3346 = vrot.slane %v3338, %v3345
      %v3348 = vunpack.c.l.s4 1934713408
      %v3349 = vunpack.c.0.s8 %v3348
      %v3350 = vlaneseq
      %v3351 = vshrl.u32 %v3350, 7
      %v3352 = vsub.s32 %v3349, %v3351
      %v3353 = vrot.slane %v3339, %v3352
      %v3354 = vcombine.low %v3289, %v3305
      %v3355 = vcombine.high %v3289, %v3305
      %v3357 = vunpack.c.l.s4 1934713408
      %v3358 = vunpack.c.0.s8 %v3357
      %v3359 = vlaneseq
      %v3360 = vshrl.u32 %v3359, 7
      %v3361 = vsub.s32 %v3358, %v3360
      %v3362 = vrot.slane %v3354, %v3361
      %v3364 = vunpack.c.l.s4 1934713408
      %v3365 = vunpack.c.0.s8 %v3364
      %v3366 = vlaneseq
      %v3367 = vshrl.u32 %v3366, 7
      %v3368 = vsub.s32 %v3365, %v3367
      %v3369 = vrot.slane %v3355, %v3368
      %v3370 = vcombine.low %v3314, %v3330
      %v3371 = vcombine.high %v3314, %v3330
      %v3373 = vunpack.c.l.s4 1934713408
      %v3374 = vunpack.c.0.s8 %v3373
      %v3375 = vlaneseq
      %v3376 = vshrl.u32 %v3375, 7
      %v3377 = vsub.s32 %v3374, %v3376
      %v3378 = vrot.slane %v3370, %v3377
      %v3380 = vunpack.c.l.s4 1934713408
      %v3381 = vunpack.c.0.s8 %v3380
      %v3382 = vlaneseq
      %v3383 = vshrl.u32 %v3382, 7
      %v3384 = vsub.s32 %v3381, %v3383
      %v3385 = vrot.slane %v3371, %v3384
      %v3386 = vcombine.low %v3321, %v3337
      %v3387 = vcombine.high %v3321, %v3337
      %v3389 = vunpack.c.l.s4 1934713408
      %v3390 = vunpack.c.0.s8 %v3389
      %v3391 = vlaneseq
      %v3392 = vshrl.u32 %v3391, 7
      %v3393 = vsub.s32 %v3390, %v3392
      %v3394 = vrot.slane %v3386, %v3393
      %v3396 = vunpack.c.l.s4 1934713408
      %v3397 = vunpack.c.0.s8 %v3396
      %v3398 = vlaneseq
      %v3399 = vshrl.u32 %v3398, 7
      %v3400 = vsub.s32 %v3397, %v3399
      %v3401 = vrot.slane %v3387, %v3400
      %v3402 = vcombine.low %v3346, %v3378
      %v3403 = vcombine.high %v3346, %v3378
      %v3404 = vcombine.low %v3353, %v3385
      %v3405 = vcombine.high %v3353, %v3385
      %v3406 = vcombine.low %v3362, %v3394
      %v3407 = vcombine.high %v3362, %v3394
      %v3408 = vcombine.low %v3369, %v3401
      %v3409 = vcombine.high %v3369, %v3401
      %v3410 = vcombine.low %v1818, %v1820
      %v3411 = vcombine.high %v1818, %v1820
      %v3413 = vunpack.c.l.s4 1983009808
      %v3414 = vunpack.c.0.s8 %v3413
      %v3415 = vlaneseq
      %v3416 = vshrl.u32 %v3415, 7
      %v3417 = vsub.s32 %v3414, %v3416
      %v3418 = vrot.slane %v3410, %v3417
      %v3420 = vunpack.c.l.s4 1983009808
      %v3421 = vunpack.c.0.s8 %v3420
      %v3422 = vlaneseq
      %v3423 = vshrl.u32 %v3422, 7
      %v3424 = vsub.s32 %v3421, %v3423
      %v3425 = vrot.slane %v3411, %v3424
      %v3426 = vcombine.low %v1819, %v1821
      %v3427 = vcombine.high %v1819, %v1821
      %v3429 = vunpack.c.l.s4 1983009808
      %v3430 = vunpack.c.0.s8 %v3429
      %v3431 = vlaneseq
      %v3432 = vshrl.u32 %v3431, 7
      %v3433 = vsub.s32 %v3430, %v3432
      %v3434 = vrot.slane %v3426, %v3433
      %v3436 = vunpack.c.l.s4 1983009808
      %v3437 = vunpack.c.0.s8 %v3436
      %v3438 = vlaneseq
      %v3439 = vshrl.u32 %v3438, 7
      %v3440 = vsub.s32 %v3437, %v3439
      %v3441 = vrot.slane %v3427, %v3440
      %v3442 = vcombine.low %v1822, %v1824
      %v3443 = vcombine.high %v1822, %v1824
      %v3445 = vunpack.c.l.s4 1983009808
      %v3446 = vunpack.c.0.s8 %v3445
      %v3447 = vlaneseq
      %v3448 = vshrl.u32 %v3447, 7
      %v3449 = vsub.s32 %v3446, %v3448
      %v3450 = vrot.slane %v3442, %v3449
      %v3452 = vunpack.c.l.s4 1983009808
      %v3453 = vunpack.c.0.s8 %v3452
      %v3454 = vlaneseq
      %v3455 = vshrl.u32 %v3454, 7
      %v3456 = vsub.s32 %v3453, %v3455
      %v3457 = vrot.slane %v3443, %v3456
      %v3458 = vcombine.low %v1823, %v1825
      %v3459 = vcombine.high %v1823, %v1825
      %v3461 = vunpack.c.l.s4 1983009808
      %v3462 = vunpack.c.0.s8 %v3461
      %v3463 = vlaneseq
      %v3464 = vshrl.u32 %v3463, 7
      %v3465 = vsub.s32 %v3462, %v3464
      %v3466 = vrot.slane %v3458, %v3465
      %v3468 = vunpack.c.l.s4 1983009808
      %v3469 = vunpack.c.0.s8 %v3468
      %v3470 = vlaneseq
      %v3471 = vshrl.u32 %v3470, 7
      %v3472 = vsub.s32 %v3469, %v3471
      %v3473 = vrot.slane %v3459, %v3472
      %v3474 = vcombine.low %v3418, %v3434
      %v3475 = vcombine.high %v3418, %v3434
      %v3477 = vunpack.c.l.s4 1934713408
      %v3478 = vunpack.c.0.s8 %v3477
      %v3479 = vlaneseq
      %v3480 = vshrl.u32 %v3479, 7
      %v3481 = vsub.s32 %v3478, %v3480
      %v3482 = vrot.slane %v3474, %v3481
      %v3484 = vunpack.c.l.s4 1934713408
      %v3485 = vunpack.c.0.s8 %v3484
      %v3486 = vlaneseq
      %v3487 = vshrl.u32 %v3486, 7
      %v3488 = vsub.s32 %v3485, %v3487
      %v3489 = vrot.slane %v3475, %v3488
      %v3490 = vcombine.low %v3425, %v3441
      %v3491 = vcombine.high %v3425, %v3441
      %v3493 = vunpack.c.l.s4 1934713408
      %v3494 = vunpack.c.0.s8 %v3493
      %v3495 = vlaneseq
      %v3496 = vshrl.u32 %v3495, 7
      %v3497 = vsub.s32 %v3494, %v3496
      %v3498 = vrot.slane %v3490, %v3497
      %v3500 = vunpack.c.l.s4 1934713408
      %v3501 = vunpack.c.0.s8 %v3500
      %v3502 = vlaneseq
      %v3503 = vshrl.u32 %v3502, 7
      %v3504 = vsub.s32 %v3501, %v3503
      %v3505 = vrot.slane %v3491, %v3504
      %v3506 = vcombine.low %v3450, %v3466
      %v3507 = vcombine.high %v3450, %v3466
      %v3509 = vunpack.c.l.s4 1934713408
      %v3510 = vunpack.c.0.s8 %v3509
      %v3511 = vlaneseq
      %v3512 = vshrl.u32 %v3511, 7
      %v3513 = vsub.s32 %v3510, %v3512
      %v3514 = vrot.slane %v3506, %v3513
      %v3516 = vunpack.c.l.s4 1934713408
      %v3517 = vunpack.c.0.s8 %v3516
      %v3518 = vlaneseq
      %v3519 = vshrl.u32 %v3518, 7
      %v3520 = vsub.s32 %v3517, %v3519
      %v3521 = vrot.slane %v3507, %v3520
      %v3522 = vcombine.low %v3457, %v3473
      %v3523 = vcombine.high %v3457, %v3473
      %v3525 = vunpack.c.l.s4 1934713408
      %v3526 = vunpack.c.0.s8 %v3525
      %v3527 = vlaneseq
      %v3528 = vshrl.u32 %v3527, 7
      %v3529 = vsub.s32 %v3526, %v3528
      %v3530 = vrot.slane %v3522, %v3529
      %v3532 = vunpack.c.l.s4 1934713408
      %v3533 = vunpack.c.0.s8 %v3532
      %v3534 = vlaneseq
      %v3535 = vshrl.u32 %v3534, 7
      %v3536 = vsub.s32 %v3533, %v3535
      %v3537 = vrot.slane %v3523, %v3536
      %v3538 = vcombine.low %v3482, %v3514
      %v3539 = vcombine.high %v3482, %v3514
      %v3540 = vcombine.low %v3489, %v3521
      %v3541 = vcombine.high %v3489, %v3521
      %v3542 = vcombine.low %v3498, %v3530
      %v3543 = vcombine.high %v3498, %v3530
      %v3544 = vcombine.low %v3505, %v3537
      %v3545 = vcombine.high %v3505, %v3537
      %v3546 = vcombine.low %v1954, %v1956
      %v3547 = vcombine.high %v1954, %v1956
      %v3549 = vunpack.c.l.s4 1983009808
      %v3550 = vunpack.c.0.s8 %v3549
      %v3551 = vlaneseq
      %v3552 = vshrl.u32 %v3551, 7
      %v3553 = vsub.s32 %v3550, %v3552
      %v3554 = vrot.slane %v3546, %v3553
      %v3556 = vunpack.c.l.s4 1983009808
      %v3557 = vunpack.c.0.s8 %v3556
      %v3558 = vlaneseq
      %v3559 = vshrl.u32 %v3558, 7
      %v3560 = vsub.s32 %v3557, %v3559
      %v3561 = vrot.slane %v3547, %v3560
      %v3562 = vcombine.low %v1955, %v1957
      %v3563 = vcombine.high %v1955, %v1957
      %v3565 = vunpack.c.l.s4 1983009808
      %v3566 = vunpack.c.0.s8 %v3565
      %v3567 = vlaneseq
      %v3568 = vshrl.u32 %v3567, 7
      %v3569 = vsub.s32 %v3566, %v3568
      %v3570 = vrot.slane %v3562, %v3569
      %v3572 = vunpack.c.l.s4 1983009808
      %v3573 = vunpack.c.0.s8 %v3572
      %v3574 = vlaneseq
      %v3575 = vshrl.u32 %v3574, 7
      %v3576 = vsub.s32 %v3573, %v3575
      %v3577 = vrot.slane %v3563, %v3576
      %v3578 = vcombine.low %v1958, %v1960
      %v3579 = vcombine.high %v1958, %v1960
      %v3581 = vunpack.c.l.s4 1983009808
      %v3582 = vunpack.c.0.s8 %v3581
      %v3583 = vlaneseq
      %v3584 = vshrl.u32 %v3583, 7
      %v3585 = vsub.s32 %v3582, %v3584
      %v3586 = vrot.slane %v3578, %v3585
      %v3588 = vunpack.c.l.s4 1983009808
      %v3589 = vunpack.c.0.s8 %v3588
      %v3590 = vlaneseq
      %v3591 = vshrl.u32 %v3590, 7
      %v3592 = vsub.s32 %v3589, %v3591
      %v3593 = vrot.slane %v3579, %v3592
      %v3594 = vcombine.low %v1959, %v1961
      %v3595 = vcombine.high %v1959, %v1961
      %v3597 = vunpack.c.l.s4 1983009808
      %v3598 = vunpack.c.0.s8 %v3597
      %v3599 = vlaneseq
      %v3600 = vshrl.u32 %v3599, 7
      %v3601 = vsub.s32 %v3598, %v3600
      %v3602 = vrot.slane %v3594, %v3601
      %v3604 = vunpack.c.l.s4 1983009808
      %v3605 = vunpack.c.0.s8 %v3604
      %v3606 = vlaneseq
      %v3607 = vshrl.u32 %v3606, 7
      %v3608 = vsub.s32 %v3605, %v3607
      %v3609 = vrot.slane %v3595, %v3608
      %v3610 = vcombine.low %v3554, %v3570
      %v3611 = vcombine.high %v3554, %v3570
      %v3613 = vunpack.c.l.s4 1934713408
      %v3614 = vunpack.c.0.s8 %v3613
      %v3615 = vlaneseq
      %v3616 = vshrl.u32 %v3615, 7
      %v3617 = vsub.s32 %v3614, %v3616
      %v3618 = vrot.slane %v3610, %v3617
      %v3620 = vunpack.c.l.s4 1934713408
      %v3621 = vunpack.c.0.s8 %v3620
      %v3622 = vlaneseq
      %v3623 = vshrl.u32 %v3622, 7
      %v3624 = vsub.s32 %v3621, %v3623
      %v3625 = vrot.slane %v3611, %v3624
      %v3626 = vcombine.low %v3561, %v3577
      %v3627 = vcombine.high %v3561, %v3577
      %v3629 = vunpack.c.l.s4 1934713408
      %v3630 = vunpack.c.0.s8 %v3629
      %v3631 = vlaneseq
      %v3632 = vshrl.u32 %v3631, 7
      %v3633 = vsub.s32 %v3630, %v3632
      %v3634 = vrot.slane %v3626, %v3633
      %v3636 = vunpack.c.l.s4 1934713408
      %v3637 = vunpack.c.0.s8 %v3636
      %v3638 = vlaneseq
      %v3639 = vshrl.u32 %v3638, 7
      %v3640 = vsub.s32 %v3637, %v3639
      %v3641 = vrot.slane %v3627, %v3640
      %v3642 = vcombine.low %v3586, %v3602
      %v3643 = vcombine.high %v3586, %v3602
      %v3645 = vunpack.c.l.s4 1934713408
      %v3646 = vunpack.c.0.s8 %v3645
      %v3647 = vlaneseq
      %v3648 = vshrl.u32 %v3647, 7
      %v3649 = vsub.s32 %v3646, %v3648
      %v3650 = vrot.slane %v3642, %v3649
      %v3652 = vunpack.c.l.s4 1934713408
      %v3653 = vunpack.c.0.s8 %v3652
      %v3654 = vlaneseq
      %v3655 = vshrl.u32 %v3654, 7
      %v3656 = vsub.s32 %v3653, %v3655
      %v3657 = vrot.slane %v3643, %v3656
      %v3658 = vcombine.low %v3593, %v3609
      %v3659 = vcombine.high %v3593, %v3609
      %v3661 = vunpack.c.l.s4 1934713408
      %v3662 = vunpack.c.0.s8 %v3661
      %v3663 = vlaneseq
      %v3664 = vshrl.u32 %v3663, 7
      %v3665 = vsub.s32 %v3662, %v3664
      %v3666 = vrot.slane %v3658, %v3665
      %v3668 = vunpack.c.l.s4 1934713408
      %v3669 = vunpack.c.0.s8 %v3668
      %v3670 = vlaneseq
      %v3671 = vshrl.u32 %v3670, 7
      %v3672 = vsub.s32 %v3669, %v3671
      %v3673 = vrot.slane %v3659, %v3672
      %v3674 = vcombine.low %v3618, %v3650
      %v3675 = vcombine.high %v3618, %v3650
      %v3676 = vcombine.low %v3625, %v3657
      %v3677 = vcombine.high %v3625, %v3657
      %v3678 = vcombine.low %v3634, %v3666
      %v3679 = vcombine.high %v3634, %v3666
      %v3680 = vcombine.low %v3641, %v3673
      %v3681 = vcombine.high %v3641, %v3673
      %v3682 = vcombine.low %v2090, %v2092
      %v3683 = vcombine.high %v2090, %v2092
      %v3685 = vunpack.c.l.s4 1983009808
      %v3686 = vunpack.c.0.s8 %v3685
      %v3687 = vlaneseq
      %v3688 = vshrl.u32 %v3687, 7
      %v3689 = vsub.s32 %v3686, %v3688
      %v3690 = vrot.slane %v3682, %v3689
      %v3692 = vunpack.c.l.s4 1983009808
      %v3693 = vunpack.c.0.s8 %v3692
      %v3694 = vlaneseq
      %v3695 = vshrl.u32 %v3694, 7
      %v3696 = vsub.s32 %v3693, %v3695
      %v3697 = vrot.slane %v3683, %v3696
      %v3698 = vcombine.low %v2091, %v2093
      %v3699 = vcombine.high %v2091, %v2093
      %v3701 = vunpack.c.l.s4 1983009808
      %v3702 = vunpack.c.0.s8 %v3701
      %v3703 = vlaneseq
      %v3704 = vshrl.u32 %v3703, 7
      %v3705 = vsub.s32 %v3702, %v3704
      %v3706 = vrot.slane %v3698, %v3705
      %v3708 = vunpack.c.l.s4 1983009808
      %v3709 = vunpack.c.0.s8 %v3708
      %v3710 = vlaneseq
      %v3711 = vshrl.u32 %v3710, 7
      %v3712 = vsub.s32 %v3709, %v3711
      %v3713 = vrot.slane %v3699, %v3712
      %v3714 = vcombine.low %v2094, %v2096
      %v3715 = vcombine.high %v2094, %v2096
      %v3717 = vunpack.c.l.s4 1983009808
      %v3718 = vunpack.c.0.s8 %v3717
      %v3719 = vlaneseq
      %v3720 = vshrl.u32 %v3719, 7
      %v3721 = vsub.s32 %v3718, %v3720
      %v3722 = vrot.slane %v3714, %v3721
      %v3724 = vunpack.c.l.s4 1983009808
      %v3725 = vunpack.c.0.s8 %v3724
      %v3726 = vlaneseq
      %v3727 = vshrl.u32 %v3726, 7
      %v3728 = vsub.s32 %v3725, %v3727
      %v3729 = vrot.slane %v3715, %v3728
      %v3730 = vcombine.low %v2095, %v2097
      %v3731 = vcombine.high %v2095, %v2097
      %v3733 = vunpack.c.l.s4 1983009808
      %v3734 = vunpack.c.0.s8 %v3733
      %v3735 = vlaneseq
      %v3736 = vshrl.u32 %v3735, 7
      %v3737 = vsub.s32 %v3734, %v3736
      %v3738 = vrot.slane %v3730, %v3737
      %v3740 = vunpack.c.l.s4 1983009808
      %v3741 = vunpack.c.0.s8 %v3740
      %v3742 = vlaneseq
      %v3743 = vshrl.u32 %v3742, 7
      %v3744 = vsub.s32 %v3741, %v3743
      %v3745 = vrot.slane %v3731, %v3744
      %v3746 = vcombine.low %v3690, %v3706
      %v3747 = vcombine.high %v3690, %v3706
      %v3749 = vunpack.c.l.s4 1934713408
      %v3750 = vunpack.c.0.s8 %v3749
      %v3751 = vlaneseq
      %v3752 = vshrl.u32 %v3751, 7
      %v3753 = vsub.s32 %v3750, %v3752
      %v3754 = vrot.slane %v3746, %v3753
      %v3756 = vunpack.c.l.s4 1934713408
      %v3757 = vunpack.c.0.s8 %v3756
      %v3758 = vlaneseq
      %v3759 = vshrl.u32 %v3758, 7
      %v3760 = vsub.s32 %v3757, %v3759
      %v3761 = vrot.slane %v3747, %v3760
      %v3762 = vcombine.low %v3697, %v3713
      %v3763 = vcombine.high %v3697, %v3713
      %v3765 = vunpack.c.l.s4 1934713408
      %v3766 = vunpack.c.0.s8 %v3765
      %v3767 = vlaneseq
      %v3768 = vshrl.u32 %v3767, 7
      %v3769 = vsub.s32 %v3766, %v3768
      %v3770 = vrot.slane %v3762, %v3769
      %v3772 = vunpack.c.l.s4 1934713408
      %v3773 = vunpack.c.0.s8 %v3772
      %v3774 = vlaneseq
      %v3775 = vshrl.u32 %v3774, 7
      %v3776 = vsub.s32 %v3773, %v3775
      %v3777 = vrot.slane %v3763, %v3776
      %v3778 = vcombine.low %v3722, %v3738
      %v3779 = vcombine.high %v3722, %v3738
      %v3781 = vunpack.c.l.s4 1934713408
      %v3782 = vunpack.c.0.s8 %v3781
      %v3783 = vlaneseq
      %v3784 = vshrl.u32 %v3783, 7
      %v3785 = vsub.s32 %v3782, %v3784
      %v3786 = vrot.slane %v3778, %v3785
      %v3788 = vunpack.c.l.s4 1934713408
      %v3789 = vunpack.c.0.s8 %v3788
      %v3790 = vlaneseq
      %v3791 = vshrl.u32 %v3790, 7
      %v3792 = vsub.s32 %v3789, %v3791
      %v3793 = vrot.slane %v3779, %v3792
      %v3794 = vcombine.low %v3729, %v3745
      %v3795 = vcombine.high %v3729, %v3745
      %v3797 = vunpack.c.l.s4 1934713408
      %v3798 = vunpack.c.0.s8 %v3797
      %v3799 = vlaneseq
      %v3800 = vshrl.u32 %v3799, 7
      %v3801 = vsub.s32 %v3798, %v3800
      %v3802 = vrot.slane %v3794, %v3801
      %v3804 = vunpack.c.l.s4 1934713408
      %v3805 = vunpack.c.0.s8 %v3804
      %v3806 = vlaneseq
      %v3807 = vshrl.u32 %v3806, 7
      %v3808 = vsub.s32 %v3805, %v3807
      %v3809 = vrot.slane %v3795, %v3808
      %v3810 = vcombine.low %v3754, %v3786
      %v3811 = vcombine.high %v3754, %v3786
      %v3812 = vcombine.low %v3761, %v3793
      %v3813 = vcombine.high %v3761, %v3793
      %v3814 = vcombine.low %v3770, %v3802
      %v3815 = vcombine.high %v3770, %v3802
      %v3816 = vcombine.low %v3777, %v3809
      %v3817 = vcombine.high %v3777, %v3809
      %v3818 = vpack.c.bf16 %v2994, %v2858
      %v3819 = vpack.c.bf16 %v3266, %v3130
      %v3820 = vpack.c.bf16 %v3538, %v3402
      %v3821 = vpack.c.bf16 %v3810, %v3674
      %v3822 = vpack.c.bf16 %v2995, %v2859
      %v3823 = vpack.c.bf16 %v3267, %v3131
      %v3824 = vpack.c.bf16 %v3539, %v3403
      %v3825 = vpack.c.bf16 %v3811, %v3675
      %v3826 = vpack.c.bf16 %v2996, %v2860
      %v3827 = vpack.c.bf16 %v3268, %v3132
      %v3828 = vpack.c.bf16 %v3540, %v3404
      %v3829 = vpack.c.bf16 %v3812, %v3676
      %v3830 = vpack.c.bf16 %v2997, %v2861
      %v3831 = vpack.c.bf16 %v3269, %v3133
      %v3832 = vpack.c.bf16 %v3541, %v3405
      %v3833 = vpack.c.bf16 %v3813, %v3677
      %v3834 = vpack.c.bf16 %v2998, %v2862
      %v3835 = vpack.c.bf16 %v3270, %v3134
      %v3836 = vpack.c.bf16 %v3542, %v3406
      %v3837 = vpack.c.bf16 %v3814, %v3678
      %v3838 = vpack.c.bf16 %v2999, %v2863
      %v3839 = vpack.c.bf16 %v3271, %v3135
      %v3840 = vpack.c.bf16 %v3543, %v3407
      %v3841 = vpack.c.bf16 %v3815, %v3679
      %v3842 = vpack.c.bf16 %v3000, %v2864
      %v3843 = vpack.c.bf16 %v3272, %v3136
      %v3844 = vpack.c.bf16 %v3544, %v3408
      %v3845 = vpack.c.bf16 %v3816, %v3680
      %v3846 = vpack.c.bf16 %v3001, %v2865
      %v3847 = vpack.c.bf16 %v3273, %v3137
      %v3848 = vpack.c.bf16 %v3545, %v3409
      %v3849 = vpack.c.bf16 %v3817, %v3681
      %v3850 = vcombine.low %v2270, %v2272
      %v3851 = vcombine.high %v2270, %v2272
      %v3853 = vunpack.c.l.s4 1983009808
      %v3854 = vunpack.c.0.s8 %v3853
      %v3855 = vlaneseq
      %v3856 = vshrl.u32 %v3855, 7
      %v3857 = vsub.s32 %v3854, %v3856
      %v3858 = vrot.slane %v3850, %v3857
      %v3860 = vunpack.c.l.s4 1983009808
      %v3861 = vunpack.c.0.s8 %v3860
      %v3862 = vlaneseq
      %v3863 = vshrl.u32 %v3862, 7
      %v3864 = vsub.s32 %v3861, %v3863
      %v3865 = vrot.slane %v3851, %v3864
      %v3866 = vcombine.low %v2271, %v2273
      %v3867 = vcombine.high %v2271, %v2273
      %v3869 = vunpack.c.l.s4 1983009808
      %v3870 = vunpack.c.0.s8 %v3869
      %v3871 = vlaneseq
      %v3872 = vshrl.u32 %v3871, 7
      %v3873 = vsub.s32 %v3870, %v3872
      %v3874 = vrot.slane %v3866, %v3873
      %v3876 = vunpack.c.l.s4 1983009808
      %v3877 = vunpack.c.0.s8 %v3876
      %v3878 = vlaneseq
      %v3879 = vshrl.u32 %v3878, 7
      %v3880 = vsub.s32 %v3877, %v3879
      %v3881 = vrot.slane %v3867, %v3880
      %v3882 = vcombine.low %v2274, %v2276
      %v3883 = vcombine.high %v2274, %v2276
      %v3885 = vunpack.c.l.s4 1983009808
      %v3886 = vunpack.c.0.s8 %v3885
      %v3887 = vlaneseq
      %v3888 = vshrl.u32 %v3887, 7
      %v3889 = vsub.s32 %v3886, %v3888
      %v3890 = vrot.slane %v3882, %v3889
      %v3892 = vunpack.c.l.s4 1983009808
      %v3893 = vunpack.c.0.s8 %v3892
      %v3894 = vlaneseq
      %v3895 = vshrl.u32 %v3894, 7
      %v3896 = vsub.s32 %v3893, %v3895
      %v3897 = vrot.slane %v3883, %v3896
      %v3898 = vcombine.low %v2275, %v2277
      %v3899 = vcombine.high %v2275, %v2277
      %v3901 = vunpack.c.l.s4 1983009808
      %v3902 = vunpack.c.0.s8 %v3901
      %v3903 = vlaneseq
      %v3904 = vshrl.u32 %v3903, 7
      %v3905 = vsub.s32 %v3902, %v3904
      %v3906 = vrot.slane %v3898, %v3905
      %v3908 = vunpack.c.l.s4 1983009808
      %v3909 = vunpack.c.0.s8 %v3908
      %v3910 = vlaneseq
      %v3911 = vshrl.u32 %v3910, 7
      %v3912 = vsub.s32 %v3909, %v3911
      %v3913 = vrot.slane %v3899, %v3912
      %v3914 = vcombine.low %v3858, %v3874
      %v3915 = vcombine.high %v3858, %v3874
      %v3917 = vunpack.c.l.s4 1934713408
      %v3918 = vunpack.c.0.s8 %v3917
      %v3919 = vlaneseq
      %v3920 = vshrl.u32 %v3919, 7
      %v3921 = vsub.s32 %v3918, %v3920
      %v3922 = vrot.slane %v3914, %v3921
      %v3924 = vunpack.c.l.s4 1934713408
      %v3925 = vunpack.c.0.s8 %v3924
      %v3926 = vlaneseq
      %v3927 = vshrl.u32 %v3926, 7
      %v3928 = vsub.s32 %v3925, %v3927
      %v3929 = vrot.slane %v3915, %v3928
      %v3930 = vcombine.low %v3865, %v3881
      %v3931 = vcombine.high %v3865, %v3881
      %v3933 = vunpack.c.l.s4 1934713408
      %v3934 = vunpack.c.0.s8 %v3933
      %v3935 = vlaneseq
      %v3936 = vshrl.u32 %v3935, 7
      %v3937 = vsub.s32 %v3934, %v3936
      %v3938 = vrot.slane %v3930, %v3937
      %v3940 = vunpack.c.l.s4 1934713408
      %v3941 = vunpack.c.0.s8 %v3940
      %v3942 = vlaneseq
      %v3943 = vshrl.u32 %v3942, 7
      %v3944 = vsub.s32 %v3941, %v3943
      %v3945 = vrot.slane %v3931, %v3944
      %v3946 = vcombine.low %v3890, %v3906
      %v3947 = vcombine.high %v3890, %v3906
      %v3949 = vunpack.c.l.s4 1934713408
      %v3950 = vunpack.c.0.s8 %v3949
      %v3951 = vlaneseq
      %v3952 = vshrl.u32 %v3951, 7
      %v3953 = vsub.s32 %v3950, %v3952
      %v3954 = vrot.slane %v3946, %v3953
      %v3956 = vunpack.c.l.s4 1934713408
      %v3957 = vunpack.c.0.s8 %v3956
      %v3958 = vlaneseq
      %v3959 = vshrl.u32 %v3958, 7
      %v3960 = vsub.s32 %v3957, %v3959
      %v3961 = vrot.slane %v3947, %v3960
      %v3962 = vcombine.low %v3897, %v3913
      %v3963 = vcombine.high %v3897, %v3913
      %v3965 = vunpack.c.l.s4 1934713408
      %v3966 = vunpack.c.0.s8 %v3965
      %v3967 = vlaneseq
      %v3968 = vshrl.u32 %v3967, 7
      %v3969 = vsub.s32 %v3966, %v3968
      %v3970 = vrot.slane %v3962, %v3969
      %v3972 = vunpack.c.l.s4 1934713408
      %v3973 = vunpack.c.0.s8 %v3972
      %v3974 = vlaneseq
      %v3975 = vshrl.u32 %v3974, 7
      %v3976 = vsub.s32 %v3973, %v3975
      %v3977 = vrot.slane %v3963, %v3976
      %v3978 = vcombine.low %v3922, %v3954
      %v3979 = vcombine.high %v3922, %v3954
      %v3980 = vcombine.low %v3929, %v3961
      %v3981 = vcombine.high %v3929, %v3961
      %v3982 = vcombine.low %v3938, %v3970
      %v3983 = vcombine.high %v3938, %v3970
      %v3984 = vcombine.low %v3945, %v3977
      %v3985 = vcombine.high %v3945, %v3977
      %v3986 = vcombine.low %v2406, %v2408
      %v3987 = vcombine.high %v2406, %v2408
      %v3989 = vunpack.c.l.s4 1983009808
      %v3990 = vunpack.c.0.s8 %v3989
      %v3991 = vlaneseq
      %v3992 = vshrl.u32 %v3991, 7
      %v3993 = vsub.s32 %v3990, %v3992
      %v3994 = vrot.slane %v3986, %v3993
      %v3996 = vunpack.c.l.s4 1983009808
      %v3997 = vunpack.c.0.s8 %v3996
      %v3998 = vlaneseq
      %v3999 = vshrl.u32 %v3998, 7
      %v4000 = vsub.s32 %v3997, %v3999
      %v4001 = vrot.slane %v3987, %v4000
      %v4002 = vcombine.low %v2407, %v2409
      %v4003 = vcombine.high %v2407, %v2409
      %v4005 = vunpack.c.l.s4 1983009808
      %v4006 = vunpack.c.0.s8 %v4005
      %v4007 = vlaneseq
      %v4008 = vshrl.u32 %v4007, 7
      %v4009 = vsub.s32 %v4006, %v4008
      %v4010 = vrot.slane %v4002, %v4009
      %v4012 = vunpack.c.l.s4 1983009808
      %v4013 = vunpack.c.0.s8 %v4012
      %v4014 = vlaneseq
      %v4015 = vshrl.u32 %v4014, 7
      %v4016 = vsub.s32 %v4013, %v4015
      %v4017 = vrot.slane %v4003, %v4016
      %v4018 = vcombine.low %v2410, %v2412
      %v4019 = vcombine.high %v2410, %v2412
      %v4021 = vunpack.c.l.s4 1983009808
      %v4022 = vunpack.c.0.s8 %v4021
      %v4023 = vlaneseq
      %v4024 = vshrl.u32 %v4023, 7
      %v4025 = vsub.s32 %v4022, %v4024
      %v4026 = vrot.slane %v4018, %v4025
      %v4028 = vunpack.c.l.s4 1983009808
      %v4029 = vunpack.c.0.s8 %v4028
      %v4030 = vlaneseq
      %v4031 = vshrl.u32 %v4030, 7
      %v4032 = vsub.s32 %v4029, %v4031
      %v4033 = vrot.slane %v4019, %v4032
      %v4034 = vcombine.low %v2411, %v2413
      %v4035 = vcombine.high %v2411, %v2413
      %v4037 = vunpack.c.l.s4 1983009808
      %v4038 = vunpack.c.0.s8 %v4037
      %v4039 = vlaneseq
      %v4040 = vshrl.u32 %v4039, 7
      %v4041 = vsub.s32 %v4038, %v4040
      %v4042 = vrot.slane %v4034, %v4041
      %v4044 = vunpack.c.l.s4 1983009808
      %v4045 = vunpack.c.0.s8 %v4044
      %v4046 = vlaneseq
      %v4047 = vshrl.u32 %v4046, 7
      %v4048 = vsub.s32 %v4045, %v4047
      %v4049 = vrot.slane %v4035, %v4048
      %v4050 = vcombine.low %v3994, %v4010
      %v4051 = vcombine.high %v3994, %v4010
      %v4053 = vunpack.c.l.s4 1934713408
      %v4054 = vunpack.c.0.s8 %v4053
      %v4055 = vlaneseq
      %v4056 = vshrl.u32 %v4055, 7
      %v4057 = vsub.s32 %v4054, %v4056
      %v4058 = vrot.slane %v4050, %v4057
      %v4060 = vunpack.c.l.s4 1934713408
      %v4061 = vunpack.c.0.s8 %v4060
      %v4062 = vlaneseq
      %v4063 = vshrl.u32 %v4062, 7
      %v4064 = vsub.s32 %v4061, %v4063
      %v4065 = vrot.slane %v4051, %v4064
      %v4066 = vcombine.low %v4001, %v4017
      %v4067 = vcombine.high %v4001, %v4017
      %v4069 = vunpack.c.l.s4 1934713408
      %v4070 = vunpack.c.0.s8 %v4069
      %v4071 = vlaneseq
      %v4072 = vshrl.u32 %v4071, 7
      %v4073 = vsub.s32 %v4070, %v4072
      %v4074 = vrot.slane %v4066, %v4073
      %v4076 = vunpack.c.l.s4 1934713408
      %v4077 = vunpack.c.0.s8 %v4076
      %v4078 = vlaneseq
      %v4079 = vshrl.u32 %v4078, 7
      %v4080 = vsub.s32 %v4077, %v4079
      %v4081 = vrot.slane %v4067, %v4080
      %v4082 = vcombine.low %v4026, %v4042
      %v4083 = vcombine.high %v4026, %v4042
      %v4085 = vunpack.c.l.s4 1934713408
      %v4086 = vunpack.c.0.s8 %v4085
      %v4087 = vlaneseq
      %v4088 = vshrl.u32 %v4087, 7
      %v4089 = vsub.s32 %v4086, %v4088
      %v4090 = vrot.slane %v4082, %v4089
      %v4092 = vunpack.c.l.s4 1934713408
      %v4093 = vunpack.c.0.s8 %v4092
      %v4094 = vlaneseq
      %v4095 = vshrl.u32 %v4094, 7
      %v4096 = vsub.s32 %v4093, %v4095
      %v4097 = vrot.slane %v4083, %v4096
      %v4098 = vcombine.low %v4033, %v4049
      %v4099 = vcombine.high %v4033, %v4049
      %v4101 = vunpack.c.l.s4 1934713408
      %v4102 = vunpack.c.0.s8 %v4101
      %v4103 = vlaneseq
      %v4104 = vshrl.u32 %v4103, 7
      %v4105 = vsub.s32 %v4102, %v4104
      %v4106 = vrot.slane %v4098, %v4105
      %v4108 = vunpack.c.l.s4 1934713408
      %v4109 = vunpack.c.0.s8 %v4108
      %v4110 = vlaneseq
      %v4111 = vshrl.u32 %v4110, 7
      %v4112 = vsub.s32 %v4109, %v4111
      %v4113 = vrot.slane %v4099, %v4112
      %v4114 = vcombine.low %v4058, %v4090
      %v4115 = vcombine.high %v4058, %v4090
      %v4116 = vcombine.low %v4065, %v4097
      %v4117 = vcombine.high %v4065, %v4097
      %v4118 = vcombine.low %v4074, %v4106
      %v4119 = vcombine.high %v4074, %v4106
      %v4120 = vcombine.low %v4081, %v4113
      %v4121 = vcombine.high %v4081, %v4113
      %v4122 = vpack.c.bf16 %v4114, %v3978
      %v4123 = vpack.c.bf16 %v4115, %v3979
      %v4124 = vpack.c.bf16 %v4116, %v3980
      %v4125 = vpack.c.bf16 %v4117, %v3981
      %v4126 = vpack.c.bf16 %v4118, %v3982
      %v4127 = vpack.c.bf16 %v4119, %v3983
      %v4128 = vpack.c.bf16 %v4120, %v3984
      %v4129 = vpack.c.bf16 %v4121, %v3985
      %v4130 = vcombine.low %v2586, %v2588
      %v4131 = vcombine.high %v2586, %v2588
      %v4133 = vunpack.c.l.s4 1983009808
      %v4134 = vunpack.c.0.s8 %v4133
      %v4135 = vlaneseq
      %v4136 = vshrl.u32 %v4135, 7
      %v4137 = vsub.s32 %v4134, %v4136
      %v4138 = vrot.slane %v4130, %v4137
      %v4140 = vunpack.c.l.s4 1983009808
      %v4141 = vunpack.c.0.s8 %v4140
      %v4142 = vlaneseq
      %v4143 = vshrl.u32 %v4142, 7
      %v4144 = vsub.s32 %v4141, %v4143
      %v4145 = vrot.slane %v4131, %v4144
      %v4146 = vcombine.low %v2587, %v2589
      %v4147 = vcombine.high %v2587, %v2589
      %v4149 = vunpack.c.l.s4 1983009808
      %v4150 = vunpack.c.0.s8 %v4149
      %v4151 = vlaneseq
      %v4152 = vshrl.u32 %v4151, 7
      %v4153 = vsub.s32 %v4150, %v4152
      %v4154 = vrot.slane %v4146, %v4153
      %v4156 = vunpack.c.l.s4 1983009808
      %v4157 = vunpack.c.0.s8 %v4156
      %v4158 = vlaneseq
      %v4159 = vshrl.u32 %v4158, 7
      %v4160 = vsub.s32 %v4157, %v4159
      %v4161 = vrot.slane %v4147, %v4160
      %v4162 = vcombine.low %v2590, %v2592
      %v4163 = vcombine.high %v2590, %v2592
      %v4165 = vunpack.c.l.s4 1983009808
      %v4166 = vunpack.c.0.s8 %v4165
      %v4167 = vlaneseq
      %v4168 = vshrl.u32 %v4167, 7
      %v4169 = vsub.s32 %v4166, %v4168
      %v4170 = vrot.slane %v4162, %v4169
      %v4172 = vunpack.c.l.s4 1983009808
      %v4173 = vunpack.c.0.s8 %v4172
      %v4174 = vlaneseq
      %v4175 = vshrl.u32 %v4174, 7
      %v4176 = vsub.s32 %v4173, %v4175
      %v4177 = vrot.slane %v4163, %v4176
      %v4178 = vcombine.low %v2591, %v2593
      %v4179 = vcombine.high %v2591, %v2593
      %v4181 = vunpack.c.l.s4 1983009808
      %v4182 = vunpack.c.0.s8 %v4181
      %v4183 = vlaneseq
      %v4184 = vshrl.u32 %v4183, 7
      %v4185 = vsub.s32 %v4182, %v4184
      %v4186 = vrot.slane %v4178, %v4185
      %v4188 = vunpack.c.l.s4 1983009808
      %v4189 = vunpack.c.0.s8 %v4188
      %v4190 = vlaneseq
      %v4191 = vshrl.u32 %v4190, 7
      %v4192 = vsub.s32 %v4189, %v4191
      %v4193 = vrot.slane %v4179, %v4192
      %v4194 = vcombine.low %v4138, %v4154
      %v4195 = vcombine.high %v4138, %v4154
      %v4197 = vunpack.c.l.s4 1934713408
      %v4198 = vunpack.c.0.s8 %v4197
      %v4199 = vlaneseq
      %v4200 = vshrl.u32 %v4199, 7
      %v4201 = vsub.s32 %v4198, %v4200
      %v4202 = vrot.slane %v4194, %v4201
      %v4204 = vunpack.c.l.s4 1934713408
      %v4205 = vunpack.c.0.s8 %v4204
      %v4206 = vlaneseq
      %v4207 = vshrl.u32 %v4206, 7
      %v4208 = vsub.s32 %v4205, %v4207
      %v4209 = vrot.slane %v4195, %v4208
      %v4210 = vcombine.low %v4145, %v4161
      %v4211 = vcombine.high %v4145, %v4161
      %v4213 = vunpack.c.l.s4 1934713408
      %v4214 = vunpack.c.0.s8 %v4213
      %v4215 = vlaneseq
      %v4216 = vshrl.u32 %v4215, 7
      %v4217 = vsub.s32 %v4214, %v4216
      %v4218 = vrot.slane %v4210, %v4217
      %v4220 = vunpack.c.l.s4 1934713408
      %v4221 = vunpack.c.0.s8 %v4220
      %v4222 = vlaneseq
      %v4223 = vshrl.u32 %v4222, 7
      %v4224 = vsub.s32 %v4221, %v4223
      %v4225 = vrot.slane %v4211, %v4224
      %v4226 = vcombine.low %v4170, %v4186
      %v4227 = vcombine.high %v4170, %v4186
      %v4229 = vunpack.c.l.s4 1934713408
      %v4230 = vunpack.c.0.s8 %v4229
      %v4231 = vlaneseq
      %v4232 = vshrl.u32 %v4231, 7
      %v4233 = vsub.s32 %v4230, %v4232
      %v4234 = vrot.slane %v4226, %v4233
      %v4236 = vunpack.c.l.s4 1934713408
      %v4237 = vunpack.c.0.s8 %v4236
      %v4238 = vlaneseq
      %v4239 = vshrl.u32 %v4238, 7
      %v4240 = vsub.s32 %v4237, %v4239
      %v4241 = vrot.slane %v4227, %v4240
      %v4242 = vcombine.low %v4177, %v4193
      %v4243 = vcombine.high %v4177, %v4193
      %v4245 = vunpack.c.l.s4 1934713408
      %v4246 = vunpack.c.0.s8 %v4245
      %v4247 = vlaneseq
      %v4248 = vshrl.u32 %v4247, 7
      %v4249 = vsub.s32 %v4246, %v4248
      %v4250 = vrot.slane %v4242, %v4249
      %v4252 = vunpack.c.l.s4 1934713408
      %v4253 = vunpack.c.0.s8 %v4252
      %v4254 = vlaneseq
      %v4255 = vshrl.u32 %v4254, 7
      %v4256 = vsub.s32 %v4253, %v4255
      %v4257 = vrot.slane %v4243, %v4256
      %v4258 = vcombine.low %v4202, %v4234
      %v4259 = vcombine.high %v4202, %v4234
      %v4260 = vcombine.low %v4209, %v4241
      %v4261 = vcombine.high %v4209, %v4241
      %v4262 = vcombine.low %v4218, %v4250
      %v4263 = vcombine.high %v4218, %v4250
      %v4264 = vcombine.low %v4225, %v4257
      %v4265 = vcombine.high %v4225, %v4257
      %v4266 = vcombine.low %v2722, %v2724
      %v4267 = vcombine.high %v2722, %v2724
      %v4269 = vunpack.c.l.s4 1983009808
      %v4270 = vunpack.c.0.s8 %v4269
      %v4271 = vlaneseq
      %v4272 = vshrl.u32 %v4271, 7
      %v4273 = vsub.s32 %v4270, %v4272
      %v4274 = vrot.slane %v4266, %v4273
      %v4276 = vunpack.c.l.s4 1983009808
      %v4277 = vunpack.c.0.s8 %v4276
      %v4278 = vlaneseq
      %v4279 = vshrl.u32 %v4278, 7
      %v4280 = vsub.s32 %v4277, %v4279
      %v4281 = vrot.slane %v4267, %v4280
      %v4282 = vcombine.low %v2723, %v2725
      %v4283 = vcombine.high %v2723, %v2725
      %v4285 = vunpack.c.l.s4 1983009808
      %v4286 = vunpack.c.0.s8 %v4285
      %v4287 = vlaneseq
      %v4288 = vshrl.u32 %v4287, 7
      %v4289 = vsub.s32 %v4286, %v4288
      %v4290 = vrot.slane %v4282, %v4289
      %v4292 = vunpack.c.l.s4 1983009808
      %v4293 = vunpack.c.0.s8 %v4292
      %v4294 = vlaneseq
      %v4295 = vshrl.u32 %v4294, 7
      %v4296 = vsub.s32 %v4293, %v4295
      %v4297 = vrot.slane %v4283, %v4296
      %v4298 = vcombine.low %v2726, %v2728
      %v4299 = vcombine.high %v2726, %v2728
      %v4301 = vunpack.c.l.s4 1983009808
      %v4302 = vunpack.c.0.s8 %v4301
      %v4303 = vlaneseq
      %v4304 = vshrl.u32 %v4303, 7
      %v4305 = vsub.s32 %v4302, %v4304
      %v4306 = vrot.slane %v4298, %v4305
      %v4308 = vunpack.c.l.s4 1983009808
      %v4309 = vunpack.c.0.s8 %v4308
      %v4310 = vlaneseq
      %v4311 = vshrl.u32 %v4310, 7
      %v4312 = vsub.s32 %v4309, %v4311
      %v4313 = vrot.slane %v4299, %v4312
      %v4314 = vcombine.low %v2727, %v2729
      %v4315 = vcombine.high %v2727, %v2729
      %v4317 = vunpack.c.l.s4 1983009808
      %v4318 = vunpack.c.0.s8 %v4317
      %v4319 = vlaneseq
      %v4320 = vshrl.u32 %v4319, 7
      %v4321 = vsub.s32 %v4318, %v4320
      %v4322 = vrot.slane %v4314, %v4321
      %v4324 = vunpack.c.l.s4 1983009808
      %v4325 = vunpack.c.0.s8 %v4324
      %v4326 = vlaneseq
      %v4327 = vshrl.u32 %v4326, 7
      %v4328 = vsub.s32 %v4325, %v4327
      %v4329 = vrot.slane %v4315, %v4328
      %v4330 = vcombine.low %v4274, %v4290
      %v4331 = vcombine.high %v4274, %v4290
      %v4333 = vunpack.c.l.s4 1934713408
      %v4334 = vunpack.c.0.s8 %v4333
      %v4335 = vlaneseq
      %v4336 = vshrl.u32 %v4335, 7
      %v4337 = vsub.s32 %v4334, %v4336
      %v4338 = vrot.slane %v4330, %v4337
      %v4340 = vunpack.c.l.s4 1934713408
      %v4341 = vunpack.c.0.s8 %v4340
      %v4342 = vlaneseq
      %v4343 = vshrl.u32 %v4342, 7
      %v4344 = vsub.s32 %v4341, %v4343
      %v4345 = vrot.slane %v4331, %v4344
      %v4346 = vcombine.low %v4281, %v4297
      %v4347 = vcombine.high %v4281, %v4297
      %v4349 = vunpack.c.l.s4 1934713408
      %v4350 = vunpack.c.0.s8 %v4349
      %v4351 = vlaneseq
      %v4352 = vshrl.u32 %v4351, 7
      %v4353 = vsub.s32 %v4350, %v4352
      %v4354 = vrot.slane %v4346, %v4353
      %v4356 = vunpack.c.l.s4 1934713408
      %v4357 = vunpack.c.0.s8 %v4356
      %v4358 = vlaneseq
      %v4359 = vshrl.u32 %v4358, 7
      %v4360 = vsub.s32 %v4357, %v4359
      %v4361 = vrot.slane %v4347, %v4360
      %v4362 = vcombine.low %v4306, %v4322
      %v4363 = vcombine.high %v4306, %v4322
      %v4365 = vunpack.c.l.s4 1934713408
      %v4366 = vunpack.c.0.s8 %v4365
      %v4367 = vlaneseq
      %v4368 = vshrl.u32 %v4367, 7
      %v4369 = vsub.s32 %v4366, %v4368
      %v4370 = vrot.slane %v4362, %v4369
      %v4372 = vunpack.c.l.s4 1934713408
      %v4373 = vunpack.c.0.s8 %v4372
      %v4374 = vlaneseq
      %v4375 = vshrl.u32 %v4374, 7
      %v4376 = vsub.s32 %v4373, %v4375
      %v4377 = vrot.slane %v4363, %v4376
      %v4378 = vcombine.low %v4313, %v4329
      %v4379 = vcombine.high %v4313, %v4329
      %v4381 = vunpack.c.l.s4 1934713408
      %v4382 = vunpack.c.0.s8 %v4381
      %v4383 = vlaneseq
      %v4384 = vshrl.u32 %v4383, 7
      %v4385 = vsub.s32 %v4382, %v4384
      %v4386 = vrot.slane %v4378, %v4385
      %v4388 = vunpack.c.l.s4 1934713408
      %v4389 = vunpack.c.0.s8 %v4388
      %v4390 = vlaneseq
      %v4391 = vshrl.u32 %v4390, 7
      %v4392 = vsub.s32 %v4389, %v4391
      %v4393 = vrot.slane %v4379, %v4392
      %v4394 = vcombine.low %v4338, %v4370
      %v4395 = vcombine.high %v4338, %v4370
      %v4396 = vcombine.low %v4345, %v4377
      %v4397 = vcombine.high %v4345, %v4377
      %v4398 = vcombine.low %v4354, %v4386
      %v4399 = vcombine.high %v4354, %v4386
      %v4400 = vcombine.low %v4361, %v4393
      %v4401 = vcombine.high %v4361, %v4393
      %v4402 = vpack.c.bf16 %v4394, %v4258
      %v4403 = vpack.c.bf16 %v4395, %v4259
      %v4404 = vpack.c.bf16 %v4396, %v4260
      %v4405 = vpack.c.bf16 %v4397, %v4261
      %v4406 = vpack.c.bf16 %v4398, %v4262
      %v4407 = vpack.c.bf16 %v4399, %v4263
      %v4408 = vpack.c.bf16 %v4400, %v4264
      %v4409 = vpack.c.bf16 %v4401, %v4265
      %vm4410 = vcmask 31744
      %v4412 = vsel %vm4410, %v3818, 0
      %v4415 = vsel %vm4410, %v3819, 0
      %v4418 = vsel %vm4410, %v3820, 0
      %v4421 = vsel %vm4410, %v3821, 0
      %v4424 = vsel %vm4410, %v4122, 0
      %4426 = vmatprep.subr.bf16.mxu0 0
      %4427 = vmatpush1.bf16.xpose.msra.mxu0 0
      %4428 = vmatprep.subr.bf16.mxu0 0
      %4429 = vmatpush1.bf16.xpose.msra.mxu0 0
      %4430 = vmatprep.subr.bf16.mxu0 0
      %4431 = vmatpush1.bf16.xpose.msra.mxu0 0
      %4432 = vmatprep.subr.bf16.mxu0 0
      %4433 = vmatpush1.bf16.xpose.msra.mxu0 0
      %4434 = vmatprep.subr.bf16.mxu0 0
      %4435 = vmatpush1.bf16.xpose.msra.mxu0 0
      %4436 = vmatprep.subr.bf16.mxu0 0
      %4437 = vmatpush1.bf16.xpose.msra.mxu0 0
      %4438 = vmatprep.subr.bf16.mxu0 0
      %4439 = vmatpush1.bf16.xpose.msra.mxu0 0
      %4440 = vmatprep.subr.bf16.mxu0 0
      %4441 = vmatpush1.bf16.xpose.msra.mxu0 %v4424
      %4442 = vmatprep.subr.bf16.mxu0 0
      %4443 = vmatpush2.bf16.xpose.msra.mxu0 0
      %4444 = vmatprep.subr.bf16.mxu0 0
      %4445 = vmatpush2.bf16.xpose.msra.mxu0 0
      %4446 = vmatprep.subr.bf16.mxu0 0
      %4447 = vmatpush2.bf16.xpose.msra.mxu0 0
      %4448 = vmatprep.subr.bf16.mxu0 0
      %4449 = vmatpush2.bf16.xpose.msra.mxu0 0
      %4450 = vmatprep.subr.bf16.mxu0 0
      %4451 = vmatpush2.bf16.xpose.msra.mxu0 0
      %4452 = vmatprep.subr.bf16.mxu0 0
      %4453 = vmatpush2.bf16.xpose.msra.mxu0 0
      %4454 = vmatprep.subr.bf16.mxu0 0
      %4455 = vmatpush2.bf16.xpose.msra.mxu0 0
      %4456 = vmatprep.subr.bf16.mxu0 0
      %4457 = vmatpush2.bf16.xpose.msra.mxu0 0
      %4458 = vmatprep.mubr.bf16.mxu0 0
      %4459 = vmatmul.mubr.bf16.gmra.mxu0 %v4412
      %v4460 = vpop.f32.mrf.mxu0
      %v4461 = vadd.f32 0.0, %v4460
      %v4462 = vpop.f32.mrf.mxu0
      %v4463 = vpop.f32.mrf.mxu0
      %v4464 = vadd.f32 0.0, %v4463
      %v4465 = vpop.f32.mrf.mxu0
      %4466 = vmatprep.mubr.bf16.mxu0 0
      %4467 = vmatmul.mubr.bf16.gmra.mxu0 %v4415
      %v4468 = vpop.f32.mrf.mxu0
      %v4469 = vadd.f32 0.0, %v4468
      %v4470 = vpop.f32.mrf.mxu0
      %v4471 = vpop.f32.mrf.mxu0
      %v4472 = vadd.f32 0.0, %v4471
      %v4473 = vpop.f32.mrf.mxu0
      %4474 = vmatprep.mubr.bf16.mxu0 0
      %4475 = vmatmul.mubr.bf16.gmra.mxu0 %v4418
      %v4476 = vpop.f32.mrf.mxu0
      %v4477 = vadd.f32 0.0, %v4476
      %v4478 = vpop.f32.mrf.mxu0
      %v4479 = vpop.f32.mrf.mxu0
      %v4480 = vadd.f32 0.0, %v4479
      %v4481 = vpop.f32.mrf.mxu0
      %4482 = vmatprep.mubr.bf16.mxu0 0
      %4483 = vmatmul.mubr.bf16.gmra.mxu0 %v4421
      %v4484 = vpop.f32.mrf.mxu0
      %v4485 = vadd.f32 0.0, %v4484
      %v4486 = vpop.f32.mrf.mxu0
      %v4487 = vpop.f32.mrf.mxu0
      %v4488 = vadd.f32 0.0, %v4487
      %v4489 = vpop.f32.mrf.mxu0
      %4490 = vdwg.mxu0
      %v4492 = vsel %vm4410, %v3822, 0
      %v4495 = vsel %vm4410, %v3823, 0
      %v4498 = vsel %vm4410, %v3824, 0
      %v4501 = vsel %vm4410, %v3825, 0
      %v4504 = vsel %vm4410, %v4123, 0
      %4506 = vmatprep.subr.bf16.mxu0 0
      %4507 = vmatpush1.bf16.xpose.msra.mxu0 0
      %4508 = vmatprep.subr.bf16.mxu0 0
      %4509 = vmatpush1.bf16.xpose.msra.mxu0 0
      %4510 = vmatprep.subr.bf16.mxu0 0
      %4511 = vmatpush1.bf16.xpose.msra.mxu0 0
      %4512 = vmatprep.subr.bf16.mxu0 0
      %4513 = vmatpush1.bf16.xpose.msra.mxu0 0
      %4514 = vmatprep.subr.bf16.mxu0 0
      %4515 = vmatpush1.bf16.xpose.msra.mxu0 0
      %4516 = vmatprep.subr.bf16.mxu0 0
      %4517 = vmatpush1.bf16.xpose.msra.mxu0 0
      %4518 = vmatprep.subr.bf16.mxu0 0
      %4519 = vmatpush1.bf16.xpose.msra.mxu0 0
      %4520 = vmatprep.subr.bf16.mxu0 0
      %4521 = vmatpush1.bf16.xpose.msra.mxu0 %v4504
      %4522 = vmatprep.subr.bf16.mxu0 0
      %4523 = vmatpush2.bf16.xpose.msra.mxu0 0
      %4524 = vmatprep.subr.bf16.mxu0 0
      %4525 = vmatpush2.bf16.xpose.msra.mxu0 0
      %4526 = vmatprep.subr.bf16.mxu0 0
      %4527 = vmatpush2.bf16.xpose.msra.mxu0 0
      %4528 = vmatprep.subr.bf16.mxu0 0
      %4529 = vmatpush2.bf16.xpose.msra.mxu0 0
      %4530 = vmatprep.subr.bf16.mxu0 0
      %4531 = vmatpush2.bf16.xpose.msra.mxu0 0
      %4532 = vmatprep.subr.bf16.mxu0 0
      %4533 = vmatpush2.bf16.xpose.msra.mxu0 0
      %4534 = vmatprep.subr.bf16.mxu0 0
      %4535 = vmatpush2.bf16.xpose.msra.mxu0 0
      %4536 = vmatprep.subr.bf16.mxu0 0
      %4537 = vmatpush2.bf16.xpose.msra.mxu0 0
      %4538 = vmatprep.mubr.bf16.mxu0 0
      %4539 = vmatmul.mubr.bf16.gmra.mxu0 %v4492
      %v4540 = vpop.f32.mrf.mxu0
      %v4541 = vadd.f32 0.0, %v4540
      %v4542 = vpop.f32.mrf.mxu0
      %v4543 = vpop.f32.mrf.mxu0
      %v4544 = vadd.f32 0.0, %v4543
      %v4545 = vpop.f32.mrf.mxu0
      %4546 = vmatprep.mubr.bf16.mxu0 0
      %4547 = vmatmul.mubr.bf16.gmra.mxu0 %v4495
      %v4548 = vpop.f32.mrf.mxu0
      %v4549 = vadd.f32 0.0, %v4548
      %v4550 = vpop.f32.mrf.mxu0
      %v4551 = vpop.f32.mrf.mxu0
      %v4552 = vadd.f32 0.0, %v4551
      %v4553 = vpop.f32.mrf.mxu0
      %4554 = vmatprep.mubr.bf16.mxu0 0
      %4555 = vmatmul.mubr.bf16.gmra.mxu0 %v4498
      %v4556 = vpop.f32.mrf.mxu0
      %v4557 = vadd.f32 0.0, %v4556
      %v4558 = vpop.f32.mrf.mxu0
      %v4559 = vpop.f32.mrf.mxu0
      %v4560 = vadd.f32 0.0, %v4559
      %v4561 = vpop.f32.mrf.mxu0
      %4562 = vmatprep.mubr.bf16.mxu0 0
      %4563 = vmatmul.mubr.bf16.gmra.mxu0 %v4501
      %v4564 = vpop.f32.mrf.mxu0
      %v4565 = vadd.f32 0.0, %v4564
      %v4566 = vpop.f32.mrf.mxu0
      %v4567 = vpop.f32.mrf.mxu0
      %v4568 = vadd.f32 0.0, %v4567
      %v4569 = vpop.f32.mrf.mxu0
      %4570 = vdwg.mxu0
      %v4572 = vsel %vm4410, %v3826, 0
      %v4575 = vsel %vm4410, %v3827, 0
      %v4578 = vsel %vm4410, %v3828, 0
      %v4581 = vsel %vm4410, %v3829, 0
      %v4584 = vsel %vm4410, %v4124, 0
      %4586 = vmatprep.subr.bf16.mxu0 0
      %4587 = vmatpush1.bf16.xpose.msra.mxu0 0
      %4588 = vmatprep.subr.bf16.mxu0 0
      %4589 = vmatpush1.bf16.xpose.msra.mxu0 0
      %4590 = vmatprep.subr.bf16.mxu0 0
      %4591 = vmatpush1.bf16.xpose.msra.mxu0 0
      %4592 = vmatprep.subr.bf16.mxu0 0
      %4593 = vmatpush1.bf16.xpose.msra.mxu0 0
      %4594 = vmatprep.subr.bf16.mxu0 0
      %4595 = vmatpush1.bf16.xpose.msra.mxu0 0
      %4596 = vmatprep.subr.bf16.mxu0 0
      %4597 = vmatpush1.bf16.xpose.msra.mxu0 0
      %4598 = vmatprep.subr.bf16.mxu0 0
      %4599 = vmatpush1.bf16.xpose.msra.mxu0 0
      %4600 = vmatprep.subr.bf16.mxu0 0
      %4601 = vmatpush1.bf16.xpose.msra.mxu0 %v4584
      %4602 = vmatprep.subr.bf16.mxu0 0
      %4603 = vmatpush2.bf16.xpose.msra.mxu0 0
      %4604 = vmatprep.subr.bf16.mxu0 0
      %4605 = vmatpush2.bf16.xpose.msra.mxu0 0
      %4606 = vmatprep.subr.bf16.mxu0 0
      %4607 = vmatpush2.bf16.xpose.msra.mxu0 0
      %4608 = vmatprep.subr.bf16.mxu0 0
      %4609 = vmatpush2.bf16.xpose.msra.mxu0 0
      %4610 = vmatprep.subr.bf16.mxu0 0
      %4611 = vmatpush2.bf16.xpose.msra.mxu0 0
      %4612 = vmatprep.subr.bf16.mxu0 0
      %4613 = vmatpush2.bf16.xpose.msra.mxu0 0
      %4614 = vmatprep.subr.bf16.mxu0 0
      %4615 = vmatpush2.bf16.xpose.msra.mxu0 0
      %4616 = vmatprep.subr.bf16.mxu0 0
      %4617 = vmatpush2.bf16.xpose.msra.mxu0 0
      %4618 = vmatprep.mubr.bf16.mxu0 0
      %4619 = vmatmul.mubr.bf16.gmra.mxu0 %v4572
      %v4620 = vpop.f32.mrf.mxu0
      %v4621 = vadd.f32 0.0, %v4620
      %v4622 = vpop.f32.mrf.mxu0
      %v4623 = vpop.f32.mrf.mxu0
      %v4624 = vadd.f32 0.0, %v4623
      %v4625 = vpop.f32.mrf.mxu0
      %4626 = vmatprep.mubr.bf16.mxu0 0
      %4627 = vmatmul.mubr.bf16.gmra.mxu0 %v4575
      %v4628 = vpop.f32.mrf.mxu0
      %v4629 = vadd.f32 0.0, %v4628
      %v4630 = vpop.f32.mrf.mxu0
      %v4631 = vpop.f32.mrf.mxu0
      %v4632 = vadd.f32 0.0, %v4631
      %v4633 = vpop.f32.mrf.mxu0
      %4634 = vmatprep.mubr.bf16.mxu0 0
      %4635 = vmatmul.mubr.bf16.gmra.mxu0 %v4578
      %v4636 = vpop.f32.mrf.mxu0
      %v4637 = vadd.f32 0.0, %v4636
      %v4638 = vpop.f32.mrf.mxu0
      %v4639 = vpop.f32.mrf.mxu0
      %v4640 = vadd.f32 0.0, %v4639
      %v4641 = vpop.f32.mrf.mxu0
      %4642 = vmatprep.mubr.bf16.mxu0 0
      %4643 = vmatmul.mubr.bf16.gmra.mxu0 %v4581
      %v4644 = vpop.f32.mrf.mxu0
      %v4645 = vadd.f32 0.0, %v4644
      %v4646 = vpop.f32.mrf.mxu0
      %v4647 = vpop.f32.mrf.mxu0
      %v4648 = vadd.f32 0.0, %v4647
      %v4649 = vpop.f32.mrf.mxu0
      %4650 = vdwg.mxu0
      %v4652 = vsel %vm4410, %v3830, 0
      %v4655 = vsel %vm4410, %v3831, 0
      %v4658 = vsel %vm4410, %v3832, 0
      %v4661 = vsel %vm4410, %v3833, 0
      %v4664 = vsel %vm4410, %v4125, 0
      %4666 = vmatprep.subr.bf16.mxu0 0
      %4667 = vmatpush1.bf16.xpose.msra.mxu0 0
      %4668 = vmatprep.subr.bf16.mxu0 0
      %4669 = vmatpush1.bf16.xpose.msra.mxu0 0
      %4670 = vmatprep.subr.bf16.mxu0 0
      %4671 = vmatpush1.bf16.xpose.msra.mxu0 0
      %4672 = vmatprep.subr.bf16.mxu0 0
      %4673 = vmatpush1.bf16.xpose.msra.mxu0 0
      %4674 = vmatprep.subr.bf16.mxu0 0
      %4675 = vmatpush1.bf16.xpose.msra.mxu0 0
      %4676 = vmatprep.subr.bf16.mxu0 0
      %4677 = vmatpush1.bf16.xpose.msra.mxu0 0
      %4678 = vmatprep.subr.bf16.mxu0 0
      %4679 = vmatpush1.bf16.xpose.msra.mxu0 0
      %4680 = vmatprep.subr.bf16.mxu0 0
      %4681 = vmatpush1.bf16.xpose.msra.mxu0 %v4664
      %4682 = vmatprep.subr.bf16.mxu0 0
      %4683 = vmatpush2.bf16.xpose.msra.mxu0 0
      %4684 = vmatprep.subr.bf16.mxu0 0
      %4685 = vmatpush2.bf16.xpose.msra.mxu0 0
      %4686 = vmatprep.subr.bf16.mxu0 0
      %4687 = vmatpush2.bf16.xpose.msra.mxu0 0
      %4688 = vmatprep.subr.bf16.mxu0 0
      %4689 = vmatpush2.bf16.xpose.msra.mxu0 0
      %4690 = vmatprep.subr.bf16.mxu0 0
      %4691 = vmatpush2.bf16.xpose.msra.mxu0 0
      %4692 = vmatprep.subr.bf16.mxu0 0
      %4693 = vmatpush2.bf16.xpose.msra.mxu0 0
      %4694 = vmatprep.subr.bf16.mxu0 0
      %4695 = vmatpush2.bf16.xpose.msra.mxu0 0
      %4696 = vmatprep.subr.bf16.mxu0 0
      %4697 = vmatpush2.bf16.xpose.msra.mxu0 0
      %4698 = vmatprep.mubr.bf16.mxu0 0
      %4699 = vmatmul.mubr.bf16.gmra.mxu0 %v4652
      %v4700 = vpop.f32.mrf.mxu0
      %v4701 = vadd.f32 0.0, %v4700
      %v4702 = vpop.f32.mrf.mxu0
      %v4703 = vpop.f32.mrf.mxu0
      %v4704 = vadd.f32 0.0, %v4703
      %v4705 = vpop.f32.mrf.mxu0
      %4706 = vmatprep.mubr.bf16.mxu0 0
      %4707 = vmatmul.mubr.bf16.gmra.mxu0 %v4655
      %v4708 = vpop.f32.mrf.mxu0
      %v4709 = vadd.f32 0.0, %v4708
      %v4710 = vpop.f32.mrf.mxu0
      %v4711 = vpop.f32.mrf.mxu0
      %v4712 = vadd.f32 0.0, %v4711
      %v4713 = vpop.f32.mrf.mxu0
      %4714 = vmatprep.mubr.bf16.mxu0 0
      %4715 = vmatmul.mubr.bf16.gmra.mxu0 %v4658
      %v4716 = vpop.f32.mrf.mxu0
      %v4717 = vadd.f32 0.0, %v4716
      %v4718 = vpop.f32.mrf.mxu0
      %v4719 = vpop.f32.mrf.mxu0
      %v4720 = vadd.f32 0.0, %v4719
      %v4721 = vpop.f32.mrf.mxu0
      %4722 = vmatprep.mubr.bf16.mxu0 0
      %4723 = vmatmul.mubr.bf16.gmra.mxu0 %v4661
      %v4724 = vpop.f32.mrf.mxu0
      %v4725 = vadd.f32 0.0, %v4724
      %v4726 = vpop.f32.mrf.mxu0
      %v4727 = vpop.f32.mrf.mxu0
      %v4728 = vadd.f32 0.0, %v4727
      %v4729 = vpop.f32.mrf.mxu0
      %4730 = vdwg.mxu0
      %v4732 = vsel %vm4410, %v3834, 0
      %v4735 = vsel %vm4410, %v3835, 0
      %v4738 = vsel %vm4410, %v3836, 0
      %v4741 = vsel %vm4410, %v3837, 0
      %v4744 = vsel %vm4410, %v4126, 0
      %4746 = vmatprep.subr.bf16.mxu0 0
      %4747 = vmatpush1.bf16.xpose.msra.mxu0 0
      %4748 = vmatprep.subr.bf16.mxu0 0
      %4749 = vmatpush1.bf16.xpose.msra.mxu0 0
      %4750 = vmatprep.subr.bf16.mxu0 0
      %4751 = vmatpush1.bf16.xpose.msra.mxu0 0
      %4752 = vmatprep.subr.bf16.mxu0 0
      %4753 = vmatpush1.bf16.xpose.msra.mxu0 0
      %4754 = vmatprep.subr.bf16.mxu0 0
      %4755 = vmatpush1.bf16.xpose.msra.mxu0 0
      %4756 = vmatprep.subr.bf16.mxu0 0
      %4757 = vmatpush1.bf16.xpose.msra.mxu0 0
      %4758 = vmatprep.subr.bf16.mxu0 0
      %4759 = vmatpush1.bf16.xpose.msra.mxu0 0
      %4760 = vmatprep.subr.bf16.mxu0 0
      %4761 = vmatpush1.bf16.xpose.msra.mxu0 %v4744
      %4762 = vmatprep.subr.bf16.mxu0 0
      %4763 = vmatpush2.bf16.xpose.msra.mxu0 0
      %4764 = vmatprep.subr.bf16.mxu0 0
      %4765 = vmatpush2.bf16.xpose.msra.mxu0 0
      %4766 = vmatprep.subr.bf16.mxu0 0
      %4767 = vmatpush2.bf16.xpose.msra.mxu0 0
      %4768 = vmatprep.subr.bf16.mxu0 0
      %4769 = vmatpush2.bf16.xpose.msra.mxu0 0
      %4770 = vmatprep.subr.bf16.mxu0 0
      %4771 = vmatpush2.bf16.xpose.msra.mxu0 0
      %4772 = vmatprep.subr.bf16.mxu0 0
      %4773 = vmatpush2.bf16.xpose.msra.mxu0 0
      %4774 = vmatprep.subr.bf16.mxu0 0
      %4775 = vmatpush2.bf16.xpose.msra.mxu0 0
      %4776 = vmatprep.subr.bf16.mxu0 0
      %4777 = vmatpush2.bf16.xpose.msra.mxu0 0
      %4778 = vmatprep.mubr.bf16.mxu0 0
      %4779 = vmatmul.mubr.bf16.gmra.mxu0 %v4732
      %v4780 = vpop.f32.mrf.mxu0
      %v4781 = vadd.f32 0.0, %v4780
      %v4782 = vpop.f32.mrf.mxu0
      %v4783 = vpop.f32.mrf.mxu0
      %v4784 = vadd.f32 0.0, %v4783
      %v4785 = vpop.f32.mrf.mxu0
      %4786 = vmatprep.mubr.bf16.mxu0 0
      %4787 = vmatmul.mubr.bf16.gmra.mxu0 %v4735
      %v4788 = vpop.f32.mrf.mxu0
      %v4789 = vadd.f32 0.0, %v4788
      %v4790 = vpop.f32.mrf.mxu0
      %v4791 = vpop.f32.mrf.mxu0
      %v4792 = vadd.f32 0.0, %v4791
      %v4793 = vpop.f32.mrf.mxu0
      %4794 = vmatprep.mubr.bf16.mxu0 0
      %4795 = vmatmul.mubr.bf16.gmra.mxu0 %v4738
      %v4796 = vpop.f32.mrf.mxu0
      %v4797 = vadd.f32 0.0, %v4796
      %v4798 = vpop.f32.mrf.mxu0
      %v4799 = vpop.f32.mrf.mxu0
      %v4800 = vadd.f32 0.0, %v4799
      %v4801 = vpop.f32.mrf.mxu0
      %4802 = vmatprep.mubr.bf16.mxu0 0
      %4803 = vmatmul.mubr.bf16.gmra.mxu0 %v4741
      %v4804 = vpop.f32.mrf.mxu0
      %v4805 = vadd.f32 0.0, %v4804
      %v4806 = vpop.f32.mrf.mxu0
      %v4807 = vpop.f32.mrf.mxu0
      %v4808 = vadd.f32 0.0, %v4807
      %v4809 = vpop.f32.mrf.mxu0
      %4810 = vdwg.mxu0
      %v4812 = vsel %vm4410, %v3838, 0
      %v4815 = vsel %vm4410, %v3839, 0
      %v4818 = vsel %vm4410, %v3840, 0
      %v4821 = vsel %vm4410, %v3841, 0
      %v4824 = vsel %vm4410, %v4127, 0
      %4826 = vmatprep.subr.bf16.mxu0 0
      %4827 = vmatpush1.bf16.xpose.msra.mxu0 0
      %4828 = vmatprep.subr.bf16.mxu0 0
      %4829 = vmatpush1.bf16.xpose.msra.mxu0 0
      %4830 = vmatprep.subr.bf16.mxu0 0
      %4831 = vmatpush1.bf16.xpose.msra.mxu0 0
      %4832 = vmatprep.subr.bf16.mxu0 0
      %4833 = vmatpush1.bf16.xpose.msra.mxu0 0
      %4834 = vmatprep.subr.bf16.mxu0 0
      %4835 = vmatpush1.bf16.xpose.msra.mxu0 0
      %4836 = vmatprep.subr.bf16.mxu0 0
      %4837 = vmatpush1.bf16.xpose.msra.mxu0 0
      %4838 = vmatprep.subr.bf16.mxu0 0
      %4839 = vmatpush1.bf16.xpose.msra.mxu0 0
      %4840 = vmatprep.subr.bf16.mxu0 0
      %4841 = vmatpush1.bf16.xpose.msra.mxu0 %v4824
      %4842 = vmatprep.subr.bf16.mxu0 0
      %4843 = vmatpush2.bf16.xpose.msra.mxu0 0
      %4844 = vmatprep.subr.bf16.mxu0 0
      %4845 = vmatpush2.bf16.xpose.msra.mxu0 0
      %4846 = vmatprep.subr.bf16.mxu0 0
      %4847 = vmatpush2.bf16.xpose.msra.mxu0 0
      %4848 = vmatprep.subr.bf16.mxu0 0
      %4849 = vmatpush2.bf16.xpose.msra.mxu0 0
      %4850 = vmatprep.subr.bf16.mxu0 0
      %4851 = vmatpush2.bf16.xpose.msra.mxu0 0
      %4852 = vmatprep.subr.bf16.mxu0 0
      %4853 = vmatpush2.bf16.xpose.msra.mxu0 0
      %4854 = vmatprep.subr.bf16.mxu0 0
      %4855 = vmatpush2.bf16.xpose.msra.mxu0 0
      %4856 = vmatprep.subr.bf16.mxu0 0
      %4857 = vmatpush2.bf16.xpose.msra.mxu0 0
      %4858 = vmatprep.mubr.bf16.mxu0 0
      %4859 = vmatmul.mubr.bf16.gmra.mxu0 %v4812
      %v4860 = vpop.f32.mrf.mxu0
      %v4861 = vadd.f32 0.0, %v4860
      %v4862 = vpop.f32.mrf.mxu0
      %v4863 = vpop.f32.mrf.mxu0
      %v4864 = vadd.f32 0.0, %v4863
      %v4865 = vpop.f32.mrf.mxu0
      %4866 = vmatprep.mubr.bf16.mxu0 0
      %4867 = vmatmul.mubr.bf16.gmra.mxu0 %v4815
      %v4868 = vpop.f32.mrf.mxu0
      %v4869 = vadd.f32 0.0, %v4868
      %v4870 = vpop.f32.mrf.mxu0
      %v4871 = vpop.f32.mrf.mxu0
      %v4872 = vadd.f32 0.0, %v4871
      %v4873 = vpop.f32.mrf.mxu0
      %4874 = vmatprep.mubr.bf16.mxu0 0
      %4875 = vmatmul.mubr.bf16.gmra.mxu0 %v4818
      %v4876 = vpop.f32.mrf.mxu0
      %v4877 = vadd.f32 0.0, %v4876
      %v4878 = vpop.f32.mrf.mxu0
      %v4879 = vpop.f32.mrf.mxu0
      %v4880 = vadd.f32 0.0, %v4879
      %v4881 = vpop.f32.mrf.mxu0
      %4882 = vmatprep.mubr.bf16.mxu0 0
      %4883 = vmatmul.mubr.bf16.gmra.mxu0 %v4821
      %v4884 = vpop.f32.mrf.mxu0
      %v4885 = vadd.f32 0.0, %v4884
      %v4886 = vpop.f32.mrf.mxu0
      %v4887 = vpop.f32.mrf.mxu0
      %v4888 = vadd.f32 0.0, %v4887
      %v4889 = vpop.f32.mrf.mxu0
      %4890 = vdwg.mxu0
      %v4892 = vsel %vm4410, %v3842, 0
      %v4895 = vsel %vm4410, %v3843, 0
      %v4898 = vsel %vm4410, %v3844, 0
      %v4901 = vsel %vm4410, %v3845, 0
      %v4904 = vsel %vm4410, %v4128, 0
      %4906 = vmatprep.subr.bf16.mxu0 0
      %4907 = vmatpush1.bf16.xpose.msra.mxu0 0
      %4908 = vmatprep.subr.bf16.mxu0 0
      %4909 = vmatpush1.bf16.xpose.msra.mxu0 0
      %4910 = vmatprep.subr.bf16.mxu0 0
      %4911 = vmatpush1.bf16.xpose.msra.mxu0 0
      %4912 = vmatprep.subr.bf16.mxu0 0
      %4913 = vmatpush1.bf16.xpose.msra.mxu0 0
      %4914 = vmatprep.subr.bf16.mxu0 0
      %4915 = vmatpush1.bf16.xpose.msra.mxu0 0
      %4916 = vmatprep.subr.bf16.mxu0 0
      %4917 = vmatpush1.bf16.xpose.msra.mxu0 0
      %4918 = vmatprep.subr.bf16.mxu0 0
      %4919 = vmatpush1.bf16.xpose.msra.mxu0 0
      %4920 = vmatprep.subr.bf16.mxu0 0
      %4921 = vmatpush1.bf16.xpose.msra.mxu0 %v4904
      %4922 = vmatprep.subr.bf16.mxu0 0
      %4923 = vmatpush2.bf16.xpose.msra.mxu0 0
      %4924 = vmatprep.subr.bf16.mxu0 0
      %4925 = vmatpush2.bf16.xpose.msra.mxu0 0
      %4926 = vmatprep.subr.bf16.mxu0 0
      %4927 = vmatpush2.bf16.xpose.msra.mxu0 0
      %4928 = vmatprep.subr.bf16.mxu0 0
      %4929 = vmatpush2.bf16.xpose.msra.mxu0 0
      %4930 = vmatprep.subr.bf16.mxu0 0
      %4931 = vmatpush2.bf16.xpose.msra.mxu0 0
      %4932 = vmatprep.subr.bf16.mxu0 0
      %4933 = vmatpush2.bf16.xpose.msra.mxu0 0
      %4934 = vmatprep.subr.bf16.mxu0 0
      %4935 = vmatpush2.bf16.xpose.msra.mxu0 0
      %4936 = vmatprep.subr.bf16.mxu0 0
      %4937 = vmatpush2.bf16.xpose.msra.mxu0 0
      %4938 = vmatprep.mubr.bf16.mxu0 0
      %4939 = vmatmul.mubr.bf16.gmra.mxu0 %v4892
      %v4940 = vpop.f32.mrf.mxu0
      %v4941 = vadd.f32 0.0, %v4940
      %v4942 = vpop.f32.mrf.mxu0
      %v4943 = vpop.f32.mrf.mxu0
      %v4944 = vadd.f32 0.0, %v4943
      %v4945 = vpop.f32.mrf.mxu0
      %4946 = vmatprep.mubr.bf16.mxu0 0
      %4947 = vmatmul.mubr.bf16.gmra.mxu0 %v4895
      %v4948 = vpop.f32.mrf.mxu0
      %v4949 = vadd.f32 0.0, %v4948
      %v4950 = vpop.f32.mrf.mxu0
      %v4951 = vpop.f32.mrf.mxu0
      %v4952 = vadd.f32 0.0, %v4951
      %v4953 = vpop.f32.mrf.mxu0
      %4954 = vmatprep.mubr.bf16.mxu0 0
      %4955 = vmatmul.mubr.bf16.gmra.mxu0 %v4898
      %v4956 = vpop.f32.mrf.mxu0
      %v4957 = vadd.f32 0.0, %v4956
      %v4958 = vpop.f32.mrf.mxu0
      %v4959 = vpop.f32.mrf.mxu0
      %v4960 = vadd.f32 0.0, %v4959
      %v4961 = vpop.f32.mrf.mxu0
      %4962 = vmatprep.mubr.bf16.mxu0 0
      %4963 = vmatmul.mubr.bf16.gmra.mxu0 %v4901
      %v4964 = vpop.f32.mrf.mxu0
      %v4965 = vadd.f32 0.0, %v4964
      %v4966 = vpop.f32.mrf.mxu0
      %v4967 = vpop.f32.mrf.mxu0
      %v4968 = vadd.f32 0.0, %v4967
      %v4969 = vpop.f32.mrf.mxu0
      %4970 = vdwg.mxu0
      %v4972 = vsel %vm4410, %v3846, 0
      %v4975 = vsel %vm4410, %v3847, 0
      %v4978 = vsel %vm4410, %v3848, 0
      %v4981 = vsel %vm4410, %v3849, 0
      %v4984 = vsel %vm4410, %v4129, 0
      %4986 = vmatprep.subr.bf16.mxu0 0
      %4987 = vmatpush1.bf16.xpose.msra.mxu0 0
      %4988 = vmatprep.subr.bf16.mxu0 0
      %4989 = vmatpush1.bf16.xpose.msra.mxu0 0
      %4990 = vmatprep.subr.bf16.mxu0 0
      %4991 = vmatpush1.bf16.xpose.msra.mxu0 0
      %4992 = vmatprep.subr.bf16.mxu0 0
      %4993 = vmatpush1.bf16.xpose.msra.mxu0 0
      %4994 = vmatprep.subr.bf16.mxu0 0
      %4995 = vmatpush1.bf16.xpose.msra.mxu0 0
      %4996 = vmatprep.subr.bf16.mxu0 0
      %4997 = vmatpush1.bf16.xpose.msra.mxu0 0
      %4998 = vmatprep.subr.bf16.mxu0 0
      %4999 = vmatpush1.bf16.xpose.msra.mxu0 0
      %5000 = vmatprep.subr.bf16.mxu0 0
      %5001 = vmatpush1.bf16.xpose.msra.mxu0 %v4984
      %5002 = vmatprep.subr.bf16.mxu0 0
      %5003 = vmatpush2.bf16.xpose.msra.mxu0 0
      %5004 = vmatprep.subr.bf16.mxu0 0
      %5005 = vmatpush2.bf16.xpose.msra.mxu0 0
      %5006 = vmatprep.subr.bf16.mxu0 0
      %5007 = vmatpush2.bf16.xpose.msra.mxu0 0
      %5008 = vmatprep.subr.bf16.mxu0 0
      %5009 = vmatpush2.bf16.xpose.msra.mxu0 0
      %5010 = vmatprep.subr.bf16.mxu0 0
      %5011 = vmatpush2.bf16.xpose.msra.mxu0 0
      %5012 = vmatprep.subr.bf16.mxu0 0
      %5013 = vmatpush2.bf16.xpose.msra.mxu0 0
      %5014 = vmatprep.subr.bf16.mxu0 0
      %5015 = vmatpush2.bf16.xpose.msra.mxu0 0
      %5016 = vmatprep.subr.bf16.mxu0 0
      %5017 = vmatpush2.bf16.xpose.msra.mxu0 0
      %5018 = vmatprep.mubr.bf16.mxu0 0
      %5019 = vmatmul.mubr.bf16.gmra.mxu0 %v4972
      %v5020 = vpop.f32.mrf.mxu0
      %v5021 = vadd.f32 0.0, %v5020
      %v5022 = vpop.f32.mrf.mxu0
      %v5023 = vpop.f32.mrf.mxu0
      %v5024 = vadd.f32 0.0, %v5023
      %v5025 = vpop.f32.mrf.mxu0
      %5026 = vmatprep.mubr.bf16.mxu0 0
      %5027 = vmatmul.mubr.bf16.gmra.mxu0 %v4975
      %v5028 = vpop.f32.mrf.mxu0
      %v5029 = vadd.f32 0.0, %v5028
      %v5030 = vpop.f32.mrf.mxu0
      %v5031 = vpop.f32.mrf.mxu0
      %v5032 = vadd.f32 0.0, %v5031
      %v5033 = vpop.f32.mrf.mxu0
      %5034 = vmatprep.mubr.bf16.mxu0 0
      %5035 = vmatmul.mubr.bf16.gmra.mxu0 %v4978
      %v5036 = vpop.f32.mrf.mxu0
      %v5037 = vadd.f32 0.0, %v5036
      %v5038 = vpop.f32.mrf.mxu0
      %v5039 = vpop.f32.mrf.mxu0
      %v5040 = vadd.f32 0.0, %v5039
      %v5041 = vpop.f32.mrf.mxu0
      %5042 = vmatprep.mubr.bf16.mxu0 0
      %5043 = vmatmul.mubr.bf16.gmra.mxu0 %v4981
      %v5044 = vpop.f32.mrf.mxu0
      %v5045 = vadd.f32 0.0, %v5044
      %v5046 = vpop.f32.mrf.mxu0
      %v5047 = vpop.f32.mrf.mxu0
      %v5048 = vadd.f32 0.0, %v5047
      %v5049 = vpop.f32.mrf.mxu0
      %5050 = vdwg.mxu0
      %vm5051 = vcmask 130048
      %v5052 = vsel %vm5051, %v4461, -inf
      %5053 = vmax.xlane.f32.xlu0 %v5052
      %v5054 = vpop.xlane.xlu0 %5053
      %v5055 = vsel %vm5051, %v4464, -inf
      %5056 = vmax.xlane.f32.xlu0 %v5055
      %v5057 = vpop.xlane.xlu0 %5056
      %v5058 = vsel %vm5051, %v4469, -inf
      %5059 = vmax.xlane.f32.xlu0 %v5058
      %v5060 = vpop.xlane.xlu0 %5059
      %v5061 = vsel %vm5051, %v4472, -inf
      %5062 = vmax.xlane.f32.xlu0 %v5061
      %v5063 = vpop.xlane.xlu0 %5062
      %v5064 = vsel %vm5051, %v4477, -inf
      %5065 = vmax.xlane.f32.xlu0 %v5064
      %v5066 = vpop.xlane.xlu0 %5065
      %v5067 = vsel %vm5051, %v4480, -inf
      %5068 = vmax.xlane.f32.xlu0 %v5067
      %v5069 = vpop.xlane.xlu0 %5068
      %v5070 = vsel %vm5051, %v4485, -inf
      %5071 = vmax.xlane.f32.xlu0 %v5070
      %v5072 = vpop.xlane.xlu0 %5071
      %v5073 = vsel %vm5051, %v4488, -inf
      %5074 = vmax.xlane.f32.xlu0 %v5073
      %v5075 = vpop.xlane.xlu0 %5074
      %v5076 = vsel %vm5051, %v4541, -inf
      %5077 = vmax.xlane.f32.xlu0 %v5076
      %v5078 = vpop.xlane.xlu0 %5077
      %v5079 = vsel %vm5051, %v4544, -inf
      %5080 = vmax.xlane.f32.xlu0 %v5079
      %v5081 = vpop.xlane.xlu0 %5080
      %v5082 = vsel %vm5051, %v4549, -inf
      %5083 = vmax.xlane.f32.xlu0 %v5082
      %v5084 = vpop.xlane.xlu0 %5083
      %v5085 = vsel %vm5051, %v4552, -inf
      %5086 = vmax.xlane.f32.xlu0 %v5085
      %v5087 = vpop.xlane.xlu0 %5086
      %v5088 = vsel %vm5051, %v4557, -inf
      %5089 = vmax.xlane.f32.xlu0 %v5088
      %v5090 = vpop.xlane.xlu0 %5089
      %v5091 = vsel %vm5051, %v4560, -inf
      %5092 = vmax.xlane.f32.xlu0 %v5091
      %v5093 = vpop.xlane.xlu0 %5092
      %v5094 = vsel %vm5051, %v4565, -inf
      %5095 = vmax.xlane.f32.xlu0 %v5094
      %v5096 = vpop.xlane.xlu0 %5095
      %v5097 = vsel %vm5051, %v4568, -inf
      %5098 = vmax.xlane.f32.xlu0 %v5097
      %v5099 = vpop.xlane.xlu0 %5098
      %v5100 = vsel %vm5051, %v4621, -inf
      %5101 = vmax.xlane.f32.xlu0 %v5100
      %v5102 = vpop.xlane.xlu0 %5101
      %v5103 = vsel %vm5051, %v4624, -inf
      %5104 = vmax.xlane.f32.xlu0 %v5103
      %v5105 = vpop.xlane.xlu0 %5104
      %v5106 = vsel %vm5051, %v4629, -inf
      %5107 = vmax.xlane.f32.xlu0 %v5106
      %v5108 = vpop.xlane.xlu0 %5107
      %v5109 = vsel %vm5051, %v4632, -inf
      %5110 = vmax.xlane.f32.xlu0 %v5109
      %v5111 = vpop.xlane.xlu0 %5110
      %v5112 = vsel %vm5051, %v4637, -inf
      %5113 = vmax.xlane.f32.xlu0 %v5112
      %v5114 = vpop.xlane.xlu0 %5113
      %v5115 = vsel %vm5051, %v4640, -inf
      %5116 = vmax.xlane.f32.xlu0 %v5115
      %v5117 = vpop.xlane.xlu0 %5116
      %v5118 = vsel %vm5051, %v4645, -inf
      %5119 = vmax.xlane.f32.xlu0 %v5118
      %v5120 = vpop.xlane.xlu0 %5119
      %v5121 = vsel %vm5051, %v4648, -inf
      %5122 = vmax.xlane.f32.xlu0 %v5121
      %v5123 = vpop.xlane.xlu0 %5122
      %v5124 = vsel %vm5051, %v4701, -inf
      %5125 = vmax.xlane.f32.xlu0 %v5124
      %v5126 = vpop.xlane.xlu0 %5125
      %v5127 = vsel %vm5051, %v4704, -inf
      %5128 = vmax.xlane.f32.xlu0 %v5127
      %v5129 = vpop.xlane.xlu0 %5128
      %v5130 = vsel %vm5051, %v4709, -inf
      %5131 = vmax.xlane.f32.xlu0 %v5130
      %v5132 = vpop.xlane.xlu0 %5131
      %v5133 = vsel %vm5051, %v4712, -inf
      %5134 = vmax.xlane.f32.xlu0 %v5133
      %v5135 = vpop.xlane.xlu0 %5134
      %v5136 = vsel %vm5051, %v4717, -inf
      %5137 = vmax.xlane.f32.xlu0 %v5136
      %v5138 = vpop.xlane.xlu0 %5137
      %v5139 = vsel %vm5051, %v4720, -inf
      %5140 = vmax.xlane.f32.xlu0 %v5139
      %v5141 = vpop.xlane.xlu0 %5140
      %v5142 = vsel %vm5051, %v4725, -inf
      %5143 = vmax.xlane.f32.xlu0 %v5142
      %v5144 = vpop.xlane.xlu0 %5143
      %v5145 = vsel %vm5051, %v4728, -inf
      %5146 = vmax.xlane.f32.xlu0 %v5145
      %v5147 = vpop.xlane.xlu0 %5146
      %v5148 = vsel %vm5051, %v4781, -inf
      %5149 = vmax.xlane.f32.xlu0 %v5148
      %v5150 = vpop.xlane.xlu0 %5149
      %v5151 = vsel %vm5051, %v4784, -inf
      %5152 = vmax.xlane.f32.xlu0 %v5151
      %v5153 = vpop.xlane.xlu0 %5152
      %v5154 = vsel %vm5051, %v4789, -inf
      %5155 = vmax.xlane.f32.xlu0 %v5154
      %v5156 = vpop.xlane.xlu0 %5155
      %v5157 = vsel %vm5051, %v4792, -inf
      %5158 = vmax.xlane.f32.xlu0 %v5157
      %v5159 = vpop.xlane.xlu0 %5158
      %v5160 = vsel %vm5051, %v4797, -inf
      %5161 = vmax.xlane.f32.xlu0 %v5160
      %v5162 = vpop.xlane.xlu0 %5161
      %v5163 = vsel %vm5051, %v4800, -inf
      %5164 = vmax.xlane.f32.xlu0 %v5163
      %v5165 = vpop.xlane.xlu0 %5164
      %v5166 = vsel %vm5051, %v4805, -inf
      %5167 = vmax.xlane.f32.xlu0 %v5166
      %v5168 = vpop.xlane.xlu0 %5167
      %v5169 = vsel %vm5051, %v4808, -inf
      %5170 = vmax.xlane.f32.xlu0 %v5169
      %v5171 = vpop.xlane.xlu0 %5170
      %v5172 = vsel %vm5051, %v4861, -inf
      %5173 = vmax.xlane.f32.xlu0 %v5172
      %v5174 = vpop.xlane.xlu0 %5173
      %v5175 = vsel %vm5051, %v4864, -inf
      %5176 = vmax.xlane.f32.xlu0 %v5175
      %v5177 = vpop.xlane.xlu0 %5176
      %v5178 = vsel %vm5051, %v4869, -inf
      %5179 = vmax.xlane.f32.xlu0 %v5178
      %v5180 = vpop.xlane.xlu0 %5179
      %v5181 = vsel %vm5051, %v4872, -inf
      %5182 = vmax.xlane.f32.xlu0 %v5181
      %v5183 = vpop.xlane.xlu0 %5182
      %v5184 = vsel %vm5051, %v4877, -inf
      %5185 = vmax.xlane.f32.xlu0 %v5184
      %v5186 = vpop.xlane.xlu0 %5185
      %v5187 = vsel %vm5051, %v4880, -inf
      %5188 = vmax.xlane.f32.xlu0 %v5187
      %v5189 = vpop.xlane.xlu0 %5188
      %v5190 = vsel %vm5051, %v4885, -inf
      %5191 = vmax.xlane.f32.xlu0 %v5190
      %v5192 = vpop.xlane.xlu0 %5191
      %v5193 = vsel %vm5051, %v4888, -inf
      %5194 = vmax.xlane.f32.xlu0 %v5193
      %v5195 = vpop.xlane.xlu0 %5194
      %v5196 = vsel %vm5051, %v4941, -inf
      %5197 = vmax.xlane.f32.xlu0 %v5196
      %v5198 = vpop.xlane.xlu0 %5197
      %v5199 = vsel %vm5051, %v4944, -inf
      %5200 = vmax.xlane.f32.xlu0 %v5199
      %v5201 = vpop.xlane.xlu0 %5200
      %v5202 = vsel %vm5051, %v4949, -inf
      %5203 = vmax.xlane.f32.xlu0 %v5202
      %v5204 = vpop.xlane.xlu0 %5203
      %v5205 = vsel %vm5051, %v4952, -inf
      %5206 = vmax.xlane.f32.xlu0 %v5205
      %v5207 = vpop.xlane.xlu0 %5206
      %v5208 = vsel %vm5051, %v4957, -inf
      %5209 = vmax.xlane.f32.xlu0 %v5208
      %v5210 = vpop.xlane.xlu0 %5209
      %v5211 = vsel %vm5051, %v4960, -inf
      %5212 = vmax.xlane.f32.xlu0 %v5211
      %v5213 = vpop.xlane.xlu0 %5212
      %v5214 = vsel %vm5051, %v4965, -inf
      %5215 = vmax.xlane.f32.xlu0 %v5214
      %v5216 = vpop.xlane.xlu0 %5215
      %v5217 = vsel %vm5051, %v4968, -inf
      %5218 = vmax.xlane.f32.xlu0 %v5217
      %v5219 = vpop.xlane.xlu0 %5218
      %v5220 = vsel %vm5051, %v5021, -inf
      %5221 = vmax.xlane.f32.xlu0 %v5220
      %v5222 = vpop.xlane.xlu0 %5221
      %v5223 = vsel %vm5051, %v5024, -inf
      %5224 = vmax.xlane.f32.xlu0 %v5223
      %v5225 = vpop.xlane.xlu0 %5224
      %v5226 = vsel %vm5051, %v5029, -inf
      %5227 = vmax.xlane.f32.xlu0 %v5226
      %v5228 = vpop.xlane.xlu0 %5227
      %v5229 = vsel %vm5051, %v5032, -inf
      %5230 = vmax.xlane.f32.xlu0 %v5229
      %v5231 = vpop.xlane.xlu0 %5230
      %v5232 = vsel %vm5051, %v5037, -inf
      %5233 = vmax.xlane.f32.xlu0 %v5232
      %v5234 = vpop.xlane.xlu0 %5233
      %v5235 = vsel %vm5051, %v5040, -inf
      %5236 = vmax.xlane.f32.xlu0 %v5235
      %v5237 = vpop.xlane.xlu0 %5236
      %v5238 = vsel %vm5051, %v5045, -inf
      %5239 = vmax.xlane.f32.xlu0 %v5238
      %v5240 = vpop.xlane.xlu0 %5239
      %v5241 = vsel %vm5051, %v5048, -inf
      %5242 = vmax.xlane.f32.xlu0 %v5241
      %v5243 = vpop.xlane.xlu0 %5242
      %v5244 = vsub.f32 %v4461, %v5054
      %v5245 = vsub.f32 %v4464, %v5057
      %v5246 = vsub.f32 %v4469, %v5060
      %v5247 = vsub.f32 %v4472, %v5063
      %v5248 = vsub.f32 %v4477, %v5066
      %v5249 = vsub.f32 %v4480, %v5069
      %v5250 = vsub.f32 %v4485, %v5072
      %v5251 = vsub.f32 %v4488, %v5075
      %v5252 = vsub.f32 %v4541, %v5078
      %v5253 = vsub.f32 %v4544, %v5081
      %v5254 = vsub.f32 %v4549, %v5084
      %v5255 = vsub.f32 %v4552, %v5087
      %v5256 = vsub.f32 %v4557, %v5090
      %v5257 = vsub.f32 %v4560, %v5093
      %v5258 = vsub.f32 %v4565, %v5096
      %v5259 = vsub.f32 %v4568, %v5099
      %v5260 = vsub.f32 %v4621, %v5102
      %v5261 = vsub.f32 %v4624, %v5105
      %v5262 = vsub.f32 %v4629, %v5108
      %v5263 = vsub.f32 %v4632, %v5111
      %v5264 = vsub.f32 %v4637, %v5114
      %v5265 = vsub.f32 %v4640, %v5117
      %v5266 = vsub.f32 %v4645, %v5120
      %v5267 = vsub.f32 %v4648, %v5123
      %v5268 = vsub.f32 %v4701, %v5126
      %v5269 = vsub.f32 %v4704, %v5129
      %v5270 = vsub.f32 %v4709, %v5132
      %v5271 = vsub.f32 %v4712, %v5135
      %v5272 = vsub.f32 %v4717, %v5138
      %v5273 = vsub.f32 %v4720, %v5141
      %v5274 = vsub.f32 %v4725, %v5144
      %v5275 = vsub.f32 %v4728, %v5147
      %v5276 = vsub.f32 %v4781, %v5150
      %v5277 = vsub.f32 %v4784, %v5153
      %v5278 = vsub.f32 %v4789, %v5156
      %v5279 = vsub.f32 %v4792, %v5159
      %v5280 = vsub.f32 %v4797, %v5162
      %v5281 = vsub.f32 %v4800, %v5165
      %v5282 = vsub.f32 %v4805, %v5168
      %v5283 = vsub.f32 %v4808, %v5171
      %v5284 = vsub.f32 %v4861, %v5174
      %v5285 = vsub.f32 %v4864, %v5177
      %v5286 = vsub.f32 %v4869, %v5180
      %v5287 = vsub.f32 %v4872, %v5183
      %v5288 = vsub.f32 %v4877, %v5186
      %v5289 = vsub.f32 %v4880, %v5189
      %v5290 = vsub.f32 %v4885, %v5192
      %v5291 = vsub.f32 %v4888, %v5195
      %v5292 = vsub.f32 %v4941, %v5198
      %v5293 = vsub.f32 %v4944, %v5201
      %v5294 = vsub.f32 %v4949, %v5204
      %v5295 = vsub.f32 %v4952, %v5207
      %v5296 = vsub.f32 %v4957, %v5210
      %v5297 = vsub.f32 %v4960, %v5213
      %v5298 = vsub.f32 %v4965, %v5216
      %v5299 = vsub.f32 %v4968, %v5219
      %v5300 = vsub.f32 %v5021, %v5222
      %v5301 = vsub.f32 %v5024, %v5225
      %v5302 = vsub.f32 %v5029, %v5228
      %v5303 = vsub.f32 %v5032, %v5231
      %v5304 = vsub.f32 %v5037, %v5234
      %v5305 = vsub.f32 %v5040, %v5237
      %v5306 = vsub.f32 %v5045, %v5240
      %v5307 = vsub.f32 %v5048, %v5243
      %v5308 = vmul.f32 %v5244, 1.442695
      %v5309 = vpow.pop %v5308
      %v5310 = vmul.f32 %v5245, 1.442695
      %v5311 = vpow.pop %v5310
      %v5312 = vmul.f32 %v5246, 1.442695
      %v5313 = vpow.pop %v5312
      %v5314 = vmul.f32 %v5247, 1.442695
      %v5315 = vpow.pop %v5314
      %v5316 = vmul.f32 %v5248, 1.442695
      %v5317 = vpow.pop %v5316
      %v5318 = vmul.f32 %v5249, 1.442695
      %v5319 = vpow.pop %v5318
      %v5320 = vmul.f32 %v5250, 1.442695
      %v5321 = vpow.pop %v5320
      %v5322 = vmul.f32 %v5251, 1.442695
      %v5323 = vpow.pop %v5322
      %v5324 = vmul.f32 %v5252, 1.442695
      %v5325 = vpow.pop %v5324
      %v5326 = vmul.f32 %v5253, 1.442695
      %v5327 = vpow.pop %v5326
      %v5328 = vmul.f32 %v5254, 1.442695
      %v5329 = vpow.pop %v5328
      %v5330 = vmul.f32 %v5255, 1.442695
      %v5331 = vpow.pop %v5330
      %v5332 = vmul.f32 %v5256, 1.442695
      %v5333 = vpow.pop %v5332
      %v5334 = vmul.f32 %v5257, 1.442695
      %v5335 = vpow.pop %v5334
      %v5336 = vmul.f32 %v5258, 1.442695
      %v5337 = vpow.pop %v5336
      %v5338 = vmul.f32 %v5259, 1.442695
      %v5339 = vpow.pop %v5338
      %v5340 = vmul.f32 %v5260, 1.442695
      %v5341 = vpow.pop %v5340
      %v5342 = vmul.f32 %v5261, 1.442695
      %v5343 = vpow.pop %v5342
      %v5344 = vmul.f32 %v5262, 1.442695
      %v5345 = vpow.pop %v5344
      %v5346 = vmul.f32 %v5263, 1.442695
      %v5347 = vpow.pop %v5346
      %v5348 = vmul.f32 %v5264, 1.442695
      %v5349 = vpow.pop %v5348
      %v5350 = vmul.f32 %v5265, 1.442695
      %v5351 = vpow.pop %v5350
      %v5352 = vmul.f32 %v5266, 1.442695
      %v5353 = vpow.pop %v5352
      %v5354 = vmul.f32 %v5267, 1.442695
      %v5355 = vpow.pop %v5354
      %v5356 = vmul.f32 %v5268, 1.442695
      %v5357 = vpow.pop %v5356
      %v5358 = vmul.f32 %v5269, 1.442695
      %v5359 = vpow.pop %v5358
      %v5360 = vmul.f32 %v5270, 1.442695
      %v5361 = vpow.pop %v5360
      %v5362 = vmul.f32 %v5271, 1.442695
      %v5363 = vpow.pop %v5362
      %v5364 = vmul.f32 %v5272, 1.442695
      %v5365 = vpow.pop %v5364
      %v5366 = vmul.f32 %v5273, 1.442695
      %v5367 = vpow.pop %v5366
      %v5368 = vmul.f32 %v5274, 1.442695
      %v5369 = vpow.pop %v5368
      %v5370 = vmul.f32 %v5275, 1.442695
      %v5371 = vpow.pop %v5370
      %v5372 = vmul.f32 %v5276, 1.442695
      %v5373 = vpow.pop %v5372
      %v5374 = vmul.f32 %v5277, 1.442695
      %v5375 = vpow.pop %v5374
      %v5376 = vmul.f32 %v5278, 1.442695
      %v5377 = vpow.pop %v5376
      %v5378 = vmul.f32 %v5279, 1.442695
      %v5379 = vpow.pop %v5378
      %v5380 = vmul.f32 %v5280, 1.442695
      %v5381 = vpow.pop %v5380
      %v5382 = vmul.f32 %v5281, 1.442695
      %v5383 = vpow.pop %v5382
      %v5384 = vmul.f32 %v5282, 1.442695
      %v5385 = vpow.pop %v5384
      %v5386 = vmul.f32 %v5283, 1.442695
      %v5387 = vpow.pop %v5386
      %v5388 = vmul.f32 %v5284, 1.442695
      %v5389 = vpow.pop %v5388
      %v5390 = vmul.f32 %v5285, 1.442695
      %v5391 = vpow.pop %v5390
      %v5392 = vmul.f32 %v5286, 1.442695
      %v5393 = vpow.pop %v5392
      %v5394 = vmul.f32 %v5287, 1.442695
      %v5395 = vpow.pop %v5394
      %v5396 = vmul.f32 %v5288, 1.442695
      %v5397 = vpow.pop %v5396
      %v5398 = vmul.f32 %v5289, 1.442695
      %v5399 = vpow.pop %v5398
      %v5400 = vmul.f32 %v5290, 1.442695
      %v5401 = vpow.pop %v5400
      %v5402 = vmul.f32 %v5291, 1.442695
      %v5403 = vpow.pop %v5402
      %v5404 = vmul.f32 %v5292, 1.442695
      %v5405 = vpow.pop %v5404
      %v5406 = vmul.f32 %v5293, 1.442695
      %v5407 = vpow.pop %v5406
      %v5408 = vmul.f32 %v5294, 1.442695
      %v5409 = vpow.pop %v5408
      %v5410 = vmul.f32 %v5295, 1.442695
      %v5411 = vpow.pop %v5410
      %v5412 = vmul.f32 %v5296, 1.442695
      %v5413 = vpow.pop %v5412
      %v5414 = vmul.f32 %v5297, 1.442695
      %v5415 = vpow.pop %v5414
      %v5416 = vmul.f32 %v5298, 1.442695
      %v5417 = vpow.pop %v5416
      %v5418 = vmul.f32 %v5299, 1.442695
      %v5419 = vpow.pop %v5418
      %v5420 = vmul.f32 %v5300, 1.442695
      %v5421 = vpow.pop %v5420
      %v5422 = vmul.f32 %v5301, 1.442695
      %v5423 = vpow.pop %v5422
      %v5424 = vmul.f32 %v5302, 1.442695
      %v5425 = vpow.pop %v5424
      %v5426 = vmul.f32 %v5303, 1.442695
      %v5427 = vpow.pop %v5426
      %v5428 = vmul.f32 %v5304, 1.442695
      %v5429 = vpow.pop %v5428
      %v5430 = vmul.f32 %v5305, 1.442695
      %v5431 = vpow.pop %v5430
      %v5432 = vmul.f32 %v5306, 1.442695
      %v5433 = vpow.pop %v5432
      %v5434 = vmul.f32 %v5307, 1.442695
      %v5435 = vpow.pop %v5434
      %v5436 = vsel %vm5051, %v5309, 0.0
      %5437 = vadd.xlane.f32.xlu0 %v5436
      %v5438 = vpop.xlane.xlu0 %5437
      %v5439 = vsel %vm5051, %v5311, 0.0
      %5440 = vadd.xlane.f32.xlu0 %v5439
      %v5441 = vpop.xlane.xlu0 %5440
      %v5442 = vsel %vm5051, %v5313, 0.0
      %5443 = vadd.xlane.f32.xlu0 %v5442
      %v5444 = vpop.xlane.xlu0 %5443
      %v5445 = vsel %vm5051, %v5315, 0.0
      %5446 = vadd.xlane.f32.xlu0 %v5445
      %v5447 = vpop.xlane.xlu0 %5446
      %v5448 = vsel %vm5051, %v5317, 0.0
      %5449 = vadd.xlane.f32.xlu0 %v5448
      %v5450 = vpop.xlane.xlu0 %5449
      %v5451 = vsel %vm5051, %v5319, 0.0
      %5452 = vadd.xlane.f32.xlu0 %v5451
      %v5453 = vpop.xlane.xlu0 %5452
      %v5454 = vsel %vm5051, %v5321, 0.0
      %5455 = vadd.xlane.f32.xlu0 %v5454
      %v5456 = vpop.xlane.xlu0 %5455
      %v5457 = vsel %vm5051, %v5323, 0.0
      %5458 = vadd.xlane.f32.xlu0 %v5457
      %v5459 = vpop.xlane.xlu0 %5458
      %v5460 = vsel %vm5051, %v5325, 0.0
      %5461 = vadd.xlane.f32.xlu0 %v5460
      %v5462 = vpop.xlane.xlu0 %5461
      %v5463 = vsel %vm5051, %v5327, 0.0
      %5464 = vadd.xlane.f32.xlu0 %v5463
      %v5465 = vpop.xlane.xlu0 %5464
      %v5466 = vsel %vm5051, %v5329, 0.0
      %5467 = vadd.xlane.f32.xlu0 %v5466
      %v5468 = vpop.xlane.xlu0 %5467
      %v5469 = vsel %vm5051, %v5331, 0.0
      %5470 = vadd.xlane.f32.xlu0 %v5469
      %v5471 = vpop.xlane.xlu0 %5470
      %v5472 = vsel %vm5051, %v5333, 0.0
      %5473 = vadd.xlane.f32.xlu0 %v5472
      %v5474 = vpop.xlane.xlu0 %5473
      %v5475 = vsel %vm5051, %v5335, 0.0
      %5476 = vadd.xlane.f32.xlu0 %v5475
      %v5477 = vpop.xlane.xlu0 %5476
      %v5478 = vsel %vm5051, %v5337, 0.0
      %5479 = vadd.xlane.f32.xlu0 %v5478
      %v5480 = vpop.xlane.xlu0 %5479
      %v5481 = vsel %vm5051, %v5339, 0.0
      %5482 = vadd.xlane.f32.xlu0 %v5481
      %v5483 = vpop.xlane.xlu0 %5482
      %v5484 = vsel %vm5051, %v5341, 0.0
      %5485 = vadd.xlane.f32.xlu0 %v5484
      %v5486 = vpop.xlane.xlu0 %5485
      %v5487 = vsel %vm5051, %v5343, 0.0
      %5488 = vadd.xlane.f32.xlu0 %v5487
      %v5489 = vpop.xlane.xlu0 %5488
      %v5490 = vsel %vm5051, %v5345, 0.0
      %5491 = vadd.xlane.f32.xlu0 %v5490
      %v5492 = vpop.xlane.xlu0 %5491
      %v5493 = vsel %vm5051, %v5347, 0.0
      %5494 = vadd.xlane.f32.xlu0 %v5493
      %v5495 = vpop.xlane.xlu0 %5494
      %v5496 = vsel %vm5051, %v5349, 0.0
      %5497 = vadd.xlane.f32.xlu0 %v5496
      %v5498 = vpop.xlane.xlu0 %5497
      %v5499 = vsel %vm5051, %v5351, 0.0
      %5500 = vadd.xlane.f32.xlu0 %v5499
      %v5501 = vpop.xlane.xlu0 %5500
      %v5502 = vsel %vm5051, %v5353, 0.0
      %5503 = vadd.xlane.f32.xlu0 %v5502
      %v5504 = vpop.xlane.xlu0 %5503
      %v5505 = vsel %vm5051, %v5355, 0.0
      %5506 = vadd.xlane.f32.xlu0 %v5505
      %v5507 = vpop.xlane.xlu0 %5506
      %v5508 = vsel %vm5051, %v5357, 0.0
      %5509 = vadd.xlane.f32.xlu0 %v5508
      %v5510 = vpop.xlane.xlu0 %5509
      %v5511 = vsel %vm5051, %v5359, 0.0
      %5512 = vadd.xlane.f32.xlu0 %v5511
      %v5513 = vpop.xlane.xlu0 %5512
      %v5514 = vsel %vm5051, %v5361, 0.0
      %5515 = vadd.xlane.f32.xlu0 %v5514
      %v5516 = vpop.xlane.xlu0 %5515
      %v5517 = vsel %vm5051, %v5363, 0.0
      %5518 = vadd.xlane.f32.xlu0 %v5517
      %v5519 = vpop.xlane.xlu0 %5518
      %v5520 = vsel %vm5051, %v5365, 0.0
      %5521 = vadd.xlane.f32.xlu0 %v5520
      %v5522 = vpop.xlane.xlu0 %5521
      %v5523 = vsel %vm5051, %v5367, 0.0
      %5524 = vadd.xlane.f32.xlu0 %v5523
      %v5525 = vpop.xlane.xlu0 %5524
      %v5526 = vsel %vm5051, %v5369, 0.0
      %5527 = vadd.xlane.f32.xlu0 %v5526
      %v5528 = vpop.xlane.xlu0 %5527
      %v5529 = vsel %vm5051, %v5371, 0.0
      %5530 = vadd.xlane.f32.xlu0 %v5529
      %v5531 = vpop.xlane.xlu0 %5530
      %v5532 = vsel %vm5051, %v5373, 0.0
      %5533 = vadd.xlane.f32.xlu0 %v5532
      %v5534 = vpop.xlane.xlu0 %5533
      %v5535 = vsel %vm5051, %v5375, 0.0
      %5536 = vadd.xlane.f32.xlu0 %v5535
      %v5537 = vpop.xlane.xlu0 %5536
      %v5538 = vsel %vm5051, %v5377, 0.0
      %5539 = vadd.xlane.f32.xlu0 %v5538
      %v5540 = vpop.xlane.xlu0 %5539
      %v5541 = vsel %vm5051, %v5379, 0.0
      %5542 = vadd.xlane.f32.xlu0 %v5541
      %v5543 = vpop.xlane.xlu0 %5542
      %v5544 = vsel %vm5051, %v5381, 0.0
      %5545 = vadd.xlane.f32.xlu0 %v5544
      %v5546 = vpop.xlane.xlu0 %5545
      %v5547 = vsel %vm5051, %v5383, 0.0
      %5548 = vadd.xlane.f32.xlu0 %v5547
      %v5549 = vpop.xlane.xlu0 %5548
      %v5550 = vsel %vm5051, %v5385, 0.0
      %5551 = vadd.xlane.f32.xlu0 %v5550
      %v5552 = vpop.xlane.xlu0 %5551
      %v5553 = vsel %vm5051, %v5387, 0.0
      %5554 = vadd.xlane.f32.xlu0 %v5553
      %v5555 = vpop.xlane.xlu0 %5554
      %v5556 = vsel %vm5051, %v5389, 0.0
      %5557 = vadd.xlane.f32.xlu0 %v5556
      %v5558 = vpop.xlane.xlu0 %5557
      %v5559 = vsel %vm5051, %v5391, 0.0
      %5560 = vadd.xlane.f32.xlu0 %v5559
      %v5561 = vpop.xlane.xlu0 %5560
      %v5562 = vsel %vm5051, %v5393, 0.0
      %5563 = vadd.xlane.f32.xlu0 %v5562
      %v5564 = vpop.xlane.xlu0 %5563
      %v5565 = vsel %vm5051, %v5395, 0.0
      %5566 = vadd.xlane.f32.xlu0 %v5565
      %v5567 = vpop.xlane.xlu0 %5566
      %v5568 = vsel %vm5051, %v5397, 0.0
      %5569 = vadd.xlane.f32.xlu0 %v5568
      %v5570 = vpop.xlane.xlu0 %5569
      %v5571 = vsel %vm5051, %v5399, 0.0
      %5572 = vadd.xlane.f32.xlu0 %v5571
      %v5573 = vpop.xlane.xlu0 %5572
      %v5574 = vsel %vm5051, %v5401, 0.0
      %5575 = vadd.xlane.f32.xlu0 %v5574
      %v5576 = vpop.xlane.xlu0 %5575
      %v5577 = vsel %vm5051, %v5403, 0.0
      %5578 = vadd.xlane.f32.xlu0 %v5577
      %v5579 = vpop.xlane.xlu0 %5578
      %v5580 = vsel %vm5051, %v5405, 0.0
      %5581 = vadd.xlane.f32.xlu0 %v5580
      %v5582 = vpop.xlane.xlu0 %5581
      %v5583 = vsel %vm5051, %v5407, 0.0
      %5584 = vadd.xlane.f32.xlu0 %v5583
      %v5585 = vpop.xlane.xlu0 %5584
      %v5586 = vsel %vm5051, %v5409, 0.0
      %5587 = vadd.xlane.f32.xlu0 %v5586
      %v5588 = vpop.xlane.xlu0 %5587
      %v5589 = vsel %vm5051, %v5411, 0.0
      %5590 = vadd.xlane.f32.xlu0 %v5589
      %v5591 = vpop.xlane.xlu0 %5590
      %v5592 = vsel %vm5051, %v5413, 0.0
      %5593 = vadd.xlane.f32.xlu0 %v5592
      %v5594 = vpop.xlane.xlu0 %5593
      %v5595 = vsel %vm5051, %v5415, 0.0
      %5596 = vadd.xlane.f32.xlu0 %v5595
      %v5597 = vpop.xlane.xlu0 %5596
      %v5598 = vsel %vm5051, %v5417, 0.0
      %5599 = vadd.xlane.f32.xlu0 %v5598
      %v5600 = vpop.xlane.xlu0 %5599
      %v5601 = vsel %vm5051, %v5419, 0.0
      %5602 = vadd.xlane.f32.xlu0 %v5601
      %v5603 = vpop.xlane.xlu0 %5602
      %v5604 = vsel %vm5051, %v5421, 0.0
      %5605 = vadd.xlane.f32.xlu0 %v5604
      %v5606 = vpop.xlane.xlu0 %5605
      %v5607 = vsel %vm5051, %v5423, 0.0
      %5608 = vadd.xlane.f32.xlu0 %v5607
      %v5609 = vpop.xlane.xlu0 %5608
      %v5610 = vsel %vm5051, %v5425, 0.0
      %5611 = vadd.xlane.f32.xlu0 %v5610
      %v5612 = vpop.xlane.xlu0 %5611
      %v5613 = vsel %vm5051, %v5427, 0.0
      %5614 = vadd.xlane.f32.xlu0 %v5613
      %v5615 = vpop.xlane.xlu0 %5614
      %v5616 = vsel %vm5051, %v5429, 0.0
      %5617 = vadd.xlane.f32.xlu0 %v5616
      %v5618 = vpop.xlane.xlu0 %5617
      %v5619 = vsel %vm5051, %v5431, 0.0
      %5620 = vadd.xlane.f32.xlu0 %v5619
      %v5621 = vpop.xlane.xlu0 %5620
      %v5622 = vsel %vm5051, %v5433, 0.0
      %5623 = vadd.xlane.f32.xlu0 %v5622
      %v5624 = vpop.xlane.xlu0 %5623
      %v5625 = vsel %vm5051, %v5435, 0.0
      %5626 = vadd.xlane.f32.xlu0 %v5625
      %v5627 = vpop.xlane.xlu0 %5626
      %v5628 = vrcp.pop %v5438
      %v5629 = vmul.f32 %v5309, %v5628
      %v5630 = vrcp.pop %v5441
      %v5631 = vmul.f32 %v5311, %v5630
      %v5632 = vrcp.pop %v5444
      %v5633 = vmul.f32 %v5313, %v5632
      %v5634 = vrcp.pop %v5447
      %v5635 = vmul.f32 %v5315, %v5634
      %v5636 = vrcp.pop %v5450
      %v5637 = vmul.f32 %v5317, %v5636
      %v5638 = vrcp.pop %v5453
      %v5639 = vmul.f32 %v5319, %v5638
      %v5640 = vrcp.pop %v5456
      %v5641 = vmul.f32 %v5321, %v5640
      %v5642 = vrcp.pop %v5459
      %v5643 = vmul.f32 %v5323, %v5642
      %v5644 = vrcp.pop %v5462
      %v5645 = vmul.f32 %v5325, %v5644
      %v5646 = vrcp.pop %v5465
      %v5647 = vmul.f32 %v5327, %v5646
      %v5648 = vrcp.pop %v5468
      %v5649 = vmul.f32 %v5329, %v5648
      %v5650 = vrcp.pop %v5471
      %v5651 = vmul.f32 %v5331, %v5650
      %v5652 = vrcp.pop %v5474
      %v5653 = vmul.f32 %v5333, %v5652
      %v5654 = vrcp.pop %v5477
      %v5655 = vmul.f32 %v5335, %v5654
      %v5656 = vrcp.pop %v5480
      %v5657 = vmul.f32 %v5337, %v5656
      %v5658 = vrcp.pop %v5483
      %v5659 = vmul.f32 %v5339, %v5658
      %v5660 = vrcp.pop %v5486
      %v5661 = vmul.f32 %v5341, %v5660
      %v5662 = vrcp.pop %v5489
      %v5663 = vmul.f32 %v5343, %v5662
      %v5664 = vrcp.pop %v5492
      %v5665 = vmul.f32 %v5345, %v5664
      %v5666 = vrcp.pop %v5495
      %v5667 = vmul.f32 %v5347, %v5666
      %v5668 = vrcp.pop %v5498
      %v5669 = vmul.f32 %v5349, %v5668
      %v5670 = vrcp.pop %v5501
      %v5671 = vmul.f32 %v5351, %v5670
      %v5672 = vrcp.pop %v5504
      %v5673 = vmul.f32 %v5353, %v5672
      %v5674 = vrcp.pop %v5507
      %v5675 = vmul.f32 %v5355, %v5674
      %v5676 = vrcp.pop %v5510
      %v5677 = vmul.f32 %v5357, %v5676
      %v5678 = vrcp.pop %v5513
      %v5679 = vmul.f32 %v5359, %v5678
      %v5680 = vrcp.pop %v5516
      %v5681 = vmul.f32 %v5361, %v5680
      %v5682 = vrcp.pop %v5519
      %v5683 = vmul.f32 %v5363, %v5682
      %v5684 = vrcp.pop %v5522
      %v5685 = vmul.f32 %v5365, %v5684
      %v5686 = vrcp.pop %v5525
      %v5687 = vmul.f32 %v5367, %v5686
      %v5688 = vrcp.pop %v5528
      %v5689 = vmul.f32 %v5369, %v5688
      %v5690 = vrcp.pop %v5531
      %v5691 = vmul.f32 %v5371, %v5690
      %v5692 = vrcp.pop %v5534
      %v5693 = vmul.f32 %v5373, %v5692
      %v5694 = vrcp.pop %v5537
      %v5695 = vmul.f32 %v5375, %v5694
      %v5696 = vrcp.pop %v5540
      %v5697 = vmul.f32 %v5377, %v5696
      %v5698 = vrcp.pop %v5543
      %v5699 = vmul.f32 %v5379, %v5698
      %v5700 = vrcp.pop %v5546
      %v5701 = vmul.f32 %v5381, %v5700
      %v5702 = vrcp.pop %v5549
      %v5703 = vmul.f32 %v5383, %v5702
      %v5704 = vrcp.pop %v5552
      %v5705 = vmul.f32 %v5385, %v5704
      %v5706 = vrcp.pop %v5555
      %v5707 = vmul.f32 %v5387, %v5706
      %v5708 = vrcp.pop %v5558
      %v5709 = vmul.f32 %v5389, %v5708
      %v5710 = vrcp.pop %v5561
      %v5711 = vmul.f32 %v5391, %v5710
      %v5712 = vrcp.pop %v5564
      %v5713 = vmul.f32 %v5393, %v5712
      %v5714 = vrcp.pop %v5567
      %v5715 = vmul.f32 %v5395, %v5714
      %v5716 = vrcp.pop %v5570
      %v5717 = vmul.f32 %v5397, %v5716
      %v5718 = vrcp.pop %v5573
      %v5719 = vmul.f32 %v5399, %v5718
      %v5720 = vrcp.pop %v5576
      %v5721 = vmul.f32 %v5401, %v5720
      %v5722 = vrcp.pop %v5579
      %v5723 = vmul.f32 %v5403, %v5722
      %v5724 = vrcp.pop %v5582
      %v5725 = vmul.f32 %v5405, %v5724
      %v5726 = vrcp.pop %v5585
      %v5727 = vmul.f32 %v5407, %v5726
      %v5728 = vrcp.pop %v5588
      %v5729 = vmul.f32 %v5409, %v5728
      %v5730 = vrcp.pop %v5591
      %v5731 = vmul.f32 %v5411, %v5730
      %v5732 = vrcp.pop %v5594
      %v5733 = vmul.f32 %v5413, %v5732
      %v5734 = vrcp.pop %v5597
      %v5735 = vmul.f32 %v5415, %v5734
      %v5736 = vrcp.pop %v5600
      %v5737 = vmul.f32 %v5417, %v5736
      %v5738 = vrcp.pop %v5603
      %v5739 = vmul.f32 %v5419, %v5738
      %v5740 = vrcp.pop %v5606
      %v5741 = vmul.f32 %v5421, %v5740
      %v5742 = vrcp.pop %v5609
      %v5743 = vmul.f32 %v5423, %v5742
      %v5744 = vrcp.pop %v5612
      %v5745 = vmul.f32 %v5425, %v5744
      %v5746 = vrcp.pop %v5615
      %v5747 = vmul.f32 %v5427, %v5746
      %v5748 = vrcp.pop %v5618
      %v5749 = vmul.f32 %v5429, %v5748
      %v5750 = vrcp.pop %v5621
      %v5751 = vmul.f32 %v5431, %v5750
      %v5752 = vrcp.pop %v5624
      %v5753 = vmul.f32 %v5433, %v5752
      %v5754 = vrcp.pop %v5627
      %v5755 = vmul.f32 %v5435, %v5754
      %v5756 = vpack.c.bf16 %v5631, %v5629
      %v5757 = vpack.c.bf16 %v5635, %v5633
      %v5758 = vpack.c.bf16 %v5639, %v5637
      %v5759 = vpack.c.bf16 %v5643, %v5641
      %v5760 = vpack.c.bf16 %v5647, %v5645
      %v5761 = vpack.c.bf16 %v5651, %v5649
      %v5762 = vpack.c.bf16 %v5655, %v5653
      %v5763 = vpack.c.bf16 %v5659, %v5657
      %v5764 = vpack.c.bf16 %v5663, %v5661
      %v5765 = vpack.c.bf16 %v5667, %v5665
      %v5766 = vpack.c.bf16 %v5671, %v5669
      %v5767 = vpack.c.bf16 %v5675, %v5673
      %v5768 = vpack.c.bf16 %v5679, %v5677
      %v5769 = vpack.c.bf16 %v5683, %v5681
      %v5770 = vpack.c.bf16 %v5687, %v5685
      %v5771 = vpack.c.bf16 %v5691, %v5689
      %v5772 = vpack.c.bf16 %v5695, %v5693
      %v5773 = vpack.c.bf16 %v5699, %v5697
      %v5774 = vpack.c.bf16 %v5703, %v5701
      %v5775 = vpack.c.bf16 %v5707, %v5705
      %v5776 = vpack.c.bf16 %v5711, %v5709
      %v5777 = vpack.c.bf16 %v5715, %v5713
      %v5778 = vpack.c.bf16 %v5719, %v5717
      %v5779 = vpack.c.bf16 %v5723, %v5721
      %v5780 = vpack.c.bf16 %v5727, %v5725
      %v5781 = vpack.c.bf16 %v5731, %v5729
      %v5782 = vpack.c.bf16 %v5735, %v5733
      %v5783 = vpack.c.bf16 %v5739, %v5737
      %v5784 = vpack.c.bf16 %v5743, %v5741
      %v5785 = vpack.c.bf16 %v5747, %v5745
      %v5786 = vpack.c.bf16 %v5751, %v5749
      %v5787 = vpack.c.bf16 %v5755, %v5753
      %v5789 = vsel %vm5051, %v5756, 0
      %v5792 = vsel %vm5051, %v5757, 0
      %v5795 = vsel %vm5051, %v5758, 0
      %v5798 = vsel %vm5051, %v5759, 0
      %5800 = vmatprep.subr.bf16.mxu0 0
      %5801 = vmatpush1.bf16.msra.mxu0 0
      %5802 = vmatprep.subr.bf16.mxu0 0
      %5803 = vmatpush1.bf16.msra.mxu0 0
      %5804 = vmatprep.subr.bf16.mxu0 0
      %5805 = vmatpush1.bf16.msra.mxu0 0
      %5806 = vmatprep.subr.bf16.mxu0 0
      %5807 = vmatpush1.bf16.msra.mxu0 0
      %5808 = vmatprep.subr.bf16.mxu0 0
      %5809 = vmatpush1.bf16.msra.mxu0 0
      %5810 = vmatprep.subr.bf16.mxu0 0
      %5811 = vmatpush1.bf16.msra.mxu0 0
      %5812 = vmatprep.subr.bf16.mxu0 0
      %5813 = vmatpush1.bf16.msra.mxu0 0
      %5814 = vmatprep.subr.bf16.mxu0 0
      %5815 = vmatpush1.bf16.msra.mxu0 %v4402
      %5816 = vmatprep.subr.bf16.mxu0 0
      %5817 = vmatpush2.bf16.msra.mxu0 0
      %5818 = vmatprep.subr.bf16.mxu0 0
      %5819 = vmatpush2.bf16.msra.mxu0 0
      %5820 = vmatprep.subr.bf16.mxu0 0
      %5821 = vmatpush2.bf16.msra.mxu0 0
      %5822 = vmatprep.subr.bf16.mxu0 0
      %5823 = vmatpush2.bf16.msra.mxu0 0
      %5824 = vmatprep.subr.bf16.mxu0 0
      %5825 = vmatpush2.bf16.msra.mxu0 0
      %5826 = vmatprep.subr.bf16.mxu0 0
      %5827 = vmatpush2.bf16.msra.mxu0 0
      %5828 = vmatprep.subr.bf16.mxu0 0
      %5829 = vmatpush2.bf16.msra.mxu0 0
      %5830 = vmatprep.subr.bf16.mxu0 0
      %5831 = vmatpush2.bf16.msra.mxu0 0
      %5832 = vmatprep.mubr.bf16.mxu0 0
      %5833 = vmatmul.mubr.bf16.gmra.mxu0 %v5789
      %v5834 = vpop.f32.mrf.mxu0
      %v5835 = vadd.f32 0.0, %v5834
      %v5836 = vpop.f32.mrf.mxu0
      %v5837 = vpop.f32.mrf.mxu0
      %v5838 = vadd.f32 0.0, %v5837
      %v5839 = vpop.f32.mrf.mxu0
      %5840 = vmatprep.mubr.bf16.mxu0 0
      %5841 = vmatmul.mubr.bf16.gmra.mxu0 %v5792
      %v5842 = vpop.f32.mrf.mxu0
      %v5843 = vadd.f32 0.0, %v5842
      %v5844 = vpop.f32.mrf.mxu0
      %v5845 = vpop.f32.mrf.mxu0
      %v5846 = vadd.f32 0.0, %v5845
      %v5847 = vpop.f32.mrf.mxu0
      %5848 = vmatprep.mubr.bf16.mxu0 0
      %5849 = vmatmul.mubr.bf16.gmra.mxu0 %v5795
      %v5850 = vpop.f32.mrf.mxu0
      %v5851 = vadd.f32 0.0, %v5850
      %v5852 = vpop.f32.mrf.mxu0
      %v5853 = vpop.f32.mrf.mxu0
      %v5854 = vadd.f32 0.0, %v5853
      %v5855 = vpop.f32.mrf.mxu0
      %5856 = vmatprep.mubr.bf16.mxu0 0
      %5857 = vmatmul.mubr.bf16.gmra.mxu0 %v5798
      %v5858 = vpop.f32.mrf.mxu0
      %v5859 = vadd.f32 0.0, %v5858
      %v5860 = vpop.f32.mrf.mxu0
      %v5861 = vpop.f32.mrf.mxu0
      %v5862 = vadd.f32 0.0, %v5861
      %v5863 = vpop.f32.mrf.mxu0
      %5864 = vdwg.mxu0
      %v5866 = vsel %vm5051, %v5760, 0
      %v5869 = vsel %vm5051, %v5761, 0
      %v5872 = vsel %vm5051, %v5762, 0
      %v5875 = vsel %vm5051, %v5763, 0
      %5877 = vmatprep.subr.bf16.mxu0 0
      %5878 = vmatpush1.bf16.msra.mxu0 0
      %5879 = vmatprep.subr.bf16.mxu0 0
      %5880 = vmatpush1.bf16.msra.mxu0 0
      %5881 = vmatprep.subr.bf16.mxu0 0
      %5882 = vmatpush1.bf16.msra.mxu0 0
      %5883 = vmatprep.subr.bf16.mxu0 0
      %5884 = vmatpush1.bf16.msra.mxu0 0
      %5885 = vmatprep.subr.bf16.mxu0 0
      %5886 = vmatpush1.bf16.msra.mxu0 0
      %5887 = vmatprep.subr.bf16.mxu0 0
      %5888 = vmatpush1.bf16.msra.mxu0 0
      %5889 = vmatprep.subr.bf16.mxu0 0
      %5890 = vmatpush1.bf16.msra.mxu0 0
      %5891 = vmatprep.subr.bf16.mxu0 0
      %5892 = vmatpush1.bf16.msra.mxu0 %v4403
      %5893 = vmatprep.subr.bf16.mxu0 0
      %5894 = vmatpush2.bf16.msra.mxu0 0
      %5895 = vmatprep.subr.bf16.mxu0 0
      %5896 = vmatpush2.bf16.msra.mxu0 0
      %5897 = vmatprep.subr.bf16.mxu0 0
      %5898 = vmatpush2.bf16.msra.mxu0 0
      %5899 = vmatprep.subr.bf16.mxu0 0
      %5900 = vmatpush2.bf16.msra.mxu0 0
      %5901 = vmatprep.subr.bf16.mxu0 0
      %5902 = vmatpush2.bf16.msra.mxu0 0
      %5903 = vmatprep.subr.bf16.mxu0 0
      %5904 = vmatpush2.bf16.msra.mxu0 0
      %5905 = vmatprep.subr.bf16.mxu0 0
      %5906 = vmatpush2.bf16.msra.mxu0 0
      %5907 = vmatprep.subr.bf16.mxu0 0
      %5908 = vmatpush2.bf16.msra.mxu0 0
      %5909 = vmatprep.mubr.bf16.mxu0 0
      %5910 = vmatmul.mubr.bf16.gmra.mxu0 %v5866
      %v5911 = vpop.f32.mrf.mxu0
      %v5912 = vadd.f32 0.0, %v5911
      %v5913 = vpop.f32.mrf.mxu0
      %v5914 = vpop.f32.mrf.mxu0
      %v5915 = vadd.f32 0.0, %v5914
      %v5916 = vpop.f32.mrf.mxu0
      %5917 = vmatprep.mubr.bf16.mxu0 0
      %5918 = vmatmul.mubr.bf16.gmra.mxu0 %v5869
      %v5919 = vpop.f32.mrf.mxu0
      %v5920 = vadd.f32 0.0, %v5919
      %v5921 = vpop.f32.mrf.mxu0
      %v5922 = vpop.f32.mrf.mxu0
      %v5923 = vadd.f32 0.0, %v5922
      %v5924 = vpop.f32.mrf.mxu0
      %5925 = vmatprep.mubr.bf16.mxu0 0
      %5926 = vmatmul.mubr.bf16.gmra.mxu0 %v5872
      %v5927 = vpop.f32.mrf.mxu0
      %v5928 = vadd.f32 0.0, %v5927
      %v5929 = vpop.f32.mrf.mxu0
      %v5930 = vpop.f32.mrf.mxu0
      %v5931 = vadd.f32 0.0, %v5930
      %v5932 = vpop.f32.mrf.mxu0
      %5933 = vmatprep.mubr.bf16.mxu0 0
      %5934 = vmatmul.mubr.bf16.gmra.mxu0 %v5875
      %v5935 = vpop.f32.mrf.mxu0
      %v5936 = vadd.f32 0.0, %v5935
      %v5937 = vpop.f32.mrf.mxu0
      %v5938 = vpop.f32.mrf.mxu0
      %v5939 = vadd.f32 0.0, %v5938
      %v5940 = vpop.f32.mrf.mxu0
      %5941 = vdwg.mxu0
      %v5943 = vsel %vm5051, %v5764, 0
      %v5946 = vsel %vm5051, %v5765, 0
      %v5949 = vsel %vm5051, %v5766, 0
      %v5952 = vsel %vm5051, %v5767, 0
      %5954 = vmatprep.subr.bf16.mxu0 0
      %5955 = vmatpush1.bf16.msra.mxu0 0
      %5956 = vmatprep.subr.bf16.mxu0 0
      %5957 = vmatpush1.bf16.msra.mxu0 0
      %5958 = vmatprep.subr.bf16.mxu0 0
      %5959 = vmatpush1.bf16.msra.mxu0 0
      %5960 = vmatprep.subr.bf16.mxu0 0
      %5961 = vmatpush1.bf16.msra.mxu0 0
      %5962 = vmatprep.subr.bf16.mxu0 0
      %5963 = vmatpush1.bf16.msra.mxu0 0
      %5964 = vmatprep.subr.bf16.mxu0 0
      %5965 = vmatpush1.bf16.msra.mxu0 0
      %5966 = vmatprep.subr.bf16.mxu0 0
      %5967 = vmatpush1.bf16.msra.mxu0 0
      %5968 = vmatprep.subr.bf16.mxu0 0
      %5969 = vmatpush1.bf16.msra.mxu0 %v4404
      %5970 = vmatprep.subr.bf16.mxu0 0
      %5971 = vmatpush2.bf16.msra.mxu0 0
      %5972 = vmatprep.subr.bf16.mxu0 0
      %5973 = vmatpush2.bf16.msra.mxu0 0
      %5974 = vmatprep.subr.bf16.mxu0 0
      %5975 = vmatpush2.bf16.msra.mxu0 0
      %5976 = vmatprep.subr.bf16.mxu0 0
      %5977 = vmatpush2.bf16.msra.mxu0 0
      %5978 = vmatprep.subr.bf16.mxu0 0
      %5979 = vmatpush2.bf16.msra.mxu0 0
      %5980 = vmatprep.subr.bf16.mxu0 0
      %5981 = vmatpush2.bf16.msra.mxu0 0
      %5982 = vmatprep.subr.bf16.mxu0 0
      %5983 = vmatpush2.bf16.msra.mxu0 0
      %5984 = vmatprep.subr.bf16.mxu0 0
      %5985 = vmatpush2.bf16.msra.mxu0 0
      %5986 = vmatprep.mubr.bf16.mxu0 0
      %5987 = vmatmul.mubr.bf16.gmra.mxu0 %v5943
      %v5988 = vpop.f32.mrf.mxu0
      %v5989 = vadd.f32 0.0, %v5988
      %v5990 = vpop.f32.mrf.mxu0
      %v5991 = vpop.f32.mrf.mxu0
      %v5992 = vadd.f32 0.0, %v5991
      %v5993 = vpop.f32.mrf.mxu0
      %5994 = vmatprep.mubr.bf16.mxu0 0
      %5995 = vmatmul.mubr.bf16.gmra.mxu0 %v5946
      %v5996 = vpop.f32.mrf.mxu0
      %v5997 = vadd.f32 0.0, %v5996
      %v5998 = vpop.f32.mrf.mxu0
      %v5999 = vpop.f32.mrf.mxu0
      %v6000 = vadd.f32 0.0, %v5999
      %v6001 = vpop.f32.mrf.mxu0
      %6002 = vmatprep.mubr.bf16.mxu0 0
      %6003 = vmatmul.mubr.bf16.gmra.mxu0 %v5949
      %v6004 = vpop.f32.mrf.mxu0
      %v6005 = vadd.f32 0.0, %v6004
      %v6006 = vpop.f32.mrf.mxu0
      %v6007 = vpop.f32.mrf.mxu0
      %v6008 = vadd.f32 0.0, %v6007
      %v6009 = vpop.f32.mrf.mxu0
      %6010 = vmatprep.mubr.bf16.mxu0 0
      %6011 = vmatmul.mubr.bf16.gmra.mxu0 %v5952
      %v6012 = vpop.f32.mrf.mxu0
      %v6013 = vadd.f32 0.0, %v6012
      %v6014 = vpop.f32.mrf.mxu0
      %v6015 = vpop.f32.mrf.mxu0
      %v6016 = vadd.f32 0.0, %v6015
      %v6017 = vpop.f32.mrf.mxu0
      %6018 = vdwg.mxu0
      %v6020 = vsel %vm5051, %v5768, 0
      %v6023 = vsel %vm5051, %v5769, 0
      %v6026 = vsel %vm5051, %v5770, 0
      %v6029 = vsel %vm5051, %v5771, 0
      %6031 = vmatprep.subr.bf16.mxu0 0
      %6032 = vmatpush1.bf16.msra.mxu0 0
      %6033 = vmatprep.subr.bf16.mxu0 0
      %6034 = vmatpush1.bf16.msra.mxu0 0
      %6035 = vmatprep.subr.bf16.mxu0 0
      %6036 = vmatpush1.bf16.msra.mxu0 0
      %6037 = vmatprep.subr.bf16.mxu0 0
      %6038 = vmatpush1.bf16.msra.mxu0 0
      %6039 = vmatprep.subr.bf16.mxu0 0
      %6040 = vmatpush1.bf16.msra.mxu0 0
      %6041 = vmatprep.subr.bf16.mxu0 0
      %6042 = vmatpush1.bf16.msra.mxu0 0
      %6043 = vmatprep.subr.bf16.mxu0 0
      %6044 = vmatpush1.bf16.msra.mxu0 0
      %6045 = vmatprep.subr.bf16.mxu0 0
      %6046 = vmatpush1.bf16.msra.mxu0 %v4405
      %6047 = vmatprep.subr.bf16.mxu0 0
      %6048 = vmatpush2.bf16.msra.mxu0 0
      %6049 = vmatprep.subr.bf16.mxu0 0
      %6050 = vmatpush2.bf16.msra.mxu0 0
      %6051 = vmatprep.subr.bf16.mxu0 0
      %6052 = vmatpush2.bf16.msra.mxu0 0
      %6053 = vmatprep.subr.bf16.mxu0 0
      %6054 = vmatpush2.bf16.msra.mxu0 0
      %6055 = vmatprep.subr.bf16.mxu0 0
      %6056 = vmatpush2.bf16.msra.mxu0 0
      %6057 = vmatprep.subr.bf16.mxu0 0
      %6058 = vmatpush2.bf16.msra.mxu0 0
      %6059 = vmatprep.subr.bf16.mxu0 0
      %6060 = vmatpush2.bf16.msra.mxu0 0
      %6061 = vmatprep.subr.bf16.mxu0 0
      %6062 = vmatpush2.bf16.msra.mxu0 0
      %6063 = vmatprep.mubr.bf16.mxu0 0
      %6064 = vmatmul.mubr.bf16.gmra.mxu0 %v6020
      %v6065 = vpop.f32.mrf.mxu0
      %v6066 = vadd.f32 0.0, %v6065
      %v6067 = vpop.f32.mrf.mxu0
      %v6068 = vpop.f32.mrf.mxu0
      %v6069 = vadd.f32 0.0, %v6068
      %v6070 = vpop.f32.mrf.mxu0
      %6071 = vmatprep.mubr.bf16.mxu0 0
      %6072 = vmatmul.mubr.bf16.gmra.mxu0 %v6023
      %v6073 = vpop.f32.mrf.mxu0
      %v6074 = vadd.f32 0.0, %v6073
      %v6075 = vpop.f32.mrf.mxu0
      %v6076 = vpop.f32.mrf.mxu0
      %v6077 = vadd.f32 0.0, %v6076
      %v6078 = vpop.f32.mrf.mxu0
      %6079 = vmatprep.mubr.bf16.mxu0 0
      %6080 = vmatmul.mubr.bf16.gmra.mxu0 %v6026
      %v6081 = vpop.f32.mrf.mxu0
      %v6082 = vadd.f32 0.0, %v6081
      %v6083 = vpop.f32.mrf.mxu0
      %v6084 = vpop.f32.mrf.mxu0
      %v6085 = vadd.f32 0.0, %v6084
      %v6086 = vpop.f32.mrf.mxu0
      %6087 = vmatprep.mubr.bf16.mxu0 0
      %6088 = vmatmul.mubr.bf16.gmra.mxu0 %v6029
      %v6089 = vpop.f32.mrf.mxu0
      %v6090 = vadd.f32 0.0, %v6089
      %v6091 = vpop.f32.mrf.mxu0
      %v6092 = vpop.f32.mrf.mxu0
      %v6093 = vadd.f32 0.0, %v6092
      %v6094 = vpop.f32.mrf.mxu0
      %6095 = vdwg.mxu0
      %v6097 = vsel %vm5051, %v5772, 0
      %v6100 = vsel %vm5051, %v5773, 0
      %v6103 = vsel %vm5051, %v5774, 0
      %v6106 = vsel %vm5051, %v5775, 0
      %6108 = vmatprep.subr.bf16.mxu0 0
      %6109 = vmatpush1.bf16.msra.mxu0 0
      %6110 = vmatprep.subr.bf16.mxu0 0
      %6111 = vmatpush1.bf16.msra.mxu0 0
      %6112 = vmatprep.subr.bf16.mxu0 0
      %6113 = vmatpush1.bf16.msra.mxu0 0
      %6114 = vmatprep.subr.bf16.mxu0 0
      %6115 = vmatpush1.bf16.msra.mxu0 0
      %6116 = vmatprep.subr.bf16.mxu0 0
      %6117 = vmatpush1.bf16.msra.mxu0 0
      %6118 = vmatprep.subr.bf16.mxu0 0
      %6119 = vmatpush1.bf16.msra.mxu0 0
      %6120 = vmatprep.subr.bf16.mxu0 0
      %6121 = vmatpush1.bf16.msra.mxu0 0
      %6122 = vmatprep.subr.bf16.mxu0 0
      %6123 = vmatpush1.bf16.msra.mxu0 %v4406
      %6124 = vmatprep.subr.bf16.mxu0 0
      %6125 = vmatpush2.bf16.msra.mxu0 0
      %6126 = vmatprep.subr.bf16.mxu0 0
      %6127 = vmatpush2.bf16.msra.mxu0 0
      %6128 = vmatprep.subr.bf16.mxu0 0
      %6129 = vmatpush2.bf16.msra.mxu0 0
      %6130 = vmatprep.subr.bf16.mxu0 0
      %6131 = vmatpush2.bf16.msra.mxu0 0
      %6132 = vmatprep.subr.bf16.mxu0 0
      %6133 = vmatpush2.bf16.msra.mxu0 0
      %6134 = vmatprep.subr.bf16.mxu0 0
      %6135 = vmatpush2.bf16.msra.mxu0 0
      %6136 = vmatprep.subr.bf16.mxu0 0
      %6137 = vmatpush2.bf16.msra.mxu0 0
      %6138 = vmatprep.subr.bf16.mxu0 0
      %6139 = vmatpush2.bf16.msra.mxu0 0
      %6140 = vmatprep.mubr.bf16.mxu0 0
      %6141 = vmatmul.mubr.bf16.gmra.mxu0 %v6097
      %v6142 = vpop.f32.mrf.mxu0
      %v6143 = vadd.f32 0.0, %v6142
      %v6144 = vpop.f32.mrf.mxu0
      %v6145 = vpop.f32.mrf.mxu0
      %v6146 = vadd.f32 0.0, %v6145
      %v6147 = vpop.f32.mrf.mxu0
      %6148 = vmatprep.mubr.bf16.mxu0 0
      %6149 = vmatmul.mubr.bf16.gmra.mxu0 %v6100
      %v6150 = vpop.f32.mrf.mxu0
      %v6151 = vadd.f32 0.0, %v6150
      %v6152 = vpop.f32.mrf.mxu0
      %v6153 = vpop.f32.mrf.mxu0
      %v6154 = vadd.f32 0.0, %v6153
      %v6155 = vpop.f32.mrf.mxu0
      %6156 = vmatprep.mubr.bf16.mxu0 0
      %6157 = vmatmul.mubr.bf16.gmra.mxu0 %v6103
      %v6158 = vpop.f32.mrf.mxu0
      %v6159 = vadd.f32 0.0, %v6158
      %v6160 = vpop.f32.mrf.mxu0
      %v6161 = vpop.f32.mrf.mxu0
      %v6162 = vadd.f32 0.0, %v6161
      %v6163 = vpop.f32.mrf.mxu0
      %6164 = vmatprep.mubr.bf16.mxu0 0
      %6165 = vmatmul.mubr.bf16.gmra.mxu0 %v6106
      %v6166 = vpop.f32.mrf.mxu0
      %v6167 = vadd.f32 0.0, %v6166
      %v6168 = vpop.f32.mrf.mxu0
      %v6169 = vpop.f32.mrf.mxu0
      %v6170 = vadd.f32 0.0, %v6169
      %v6171 = vpop.f32.mrf.mxu0
      %6172 = vdwg.mxu0
      %v6174 = vsel %vm5051, %v5776, 0
      %v6177 = vsel %vm5051, %v5777, 0
      %v6180 = vsel %vm5051, %v5778, 0
      %v6183 = vsel %vm5051, %v5779, 0
      %6185 = vmatprep.subr.bf16.mxu0 0
      %6186 = vmatpush1.bf16.msra.mxu0 0
      %6187 = vmatprep.subr.bf16.mxu0 0
      %6188 = vmatpush1.bf16.msra.mxu0 0
      %6189 = vmatprep.subr.bf16.mxu0 0
      %6190 = vmatpush1.bf16.msra.mxu0 0
      %6191 = vmatprep.subr.bf16.mxu0 0
      %6192 = vmatpush1.bf16.msra.mxu0 0
      %6193 = vmatprep.subr.bf16.mxu0 0
      %6194 = vmatpush1.bf16.msra.mxu0 0
      %6195 = vmatprep.subr.bf16.mxu0 0
      %6196 = vmatpush1.bf16.msra.mxu0 0
      %6197 = vmatprep.subr.bf16.mxu0 0
      %6198 = vmatpush1.bf16.msra.mxu0 0
      %6199 = vmatprep.subr.bf16.mxu0 0
      %6200 = vmatpush1.bf16.msra.mxu0 %v4407
      %6201 = vmatprep.subr.bf16.mxu0 0
      %6202 = vmatpush2.bf16.msra.mxu0 0
      %6203 = vmatprep.subr.bf16.mxu0 0
      %6204 = vmatpush2.bf16.msra.mxu0 0
      %6205 = vmatprep.subr.bf16.mxu0 0
      %6206 = vmatpush2.bf16.msra.mxu0 0
      %6207 = vmatprep.subr.bf16.mxu0 0
      %6208 = vmatpush2.bf16.msra.mxu0 0
      %6209 = vmatprep.subr.bf16.mxu0 0
      %6210 = vmatpush2.bf16.msra.mxu0 0
      %6211 = vmatprep.subr.bf16.mxu0 0
      %6212 = vmatpush2.bf16.msra.mxu0 0
      %6213 = vmatprep.subr.bf16.mxu0 0
      %6214 = vmatpush2.bf16.msra.mxu0 0
      %6215 = vmatprep.subr.bf16.mxu0 0
      %6216 = vmatpush2.bf16.msra.mxu0 0
      %6217 = vmatprep.mubr.bf16.mxu0 0
      %6218 = vmatmul.mubr.bf16.gmra.mxu0 %v6174
      %v6219 = vpop.f32.mrf.mxu0
      %v6220 = vadd.f32 0.0, %v6219
      %v6221 = vpop.f32.mrf.mxu0
      %v6222 = vpop.f32.mrf.mxu0
      %v6223 = vadd.f32 0.0, %v6222
      %v6224 = vpop.f32.mrf.mxu0
      %6225 = vmatprep.mubr.bf16.mxu0 0
      %6226 = vmatmul.mubr.bf16.gmra.mxu0 %v6177
      %v6227 = vpop.f32.mrf.mxu0
      %v6228 = vadd.f32 0.0, %v6227
      %v6229 = vpop.f32.mrf.mxu0
      %v6230 = vpop.f32.mrf.mxu0
      %v6231 = vadd.f32 0.0, %v6230
      %v6232 = vpop.f32.mrf.mxu0
      %6233 = vmatprep.mubr.bf16.mxu0 0
      %6234 = vmatmul.mubr.bf16.gmra.mxu0 %v6180
      %v6235 = vpop.f32.mrf.mxu0
      %v6236 = vadd.f32 0.0, %v6235
      %v6237 = vpop.f32.mrf.mxu0
      %v6238 = vpop.f32.mrf.mxu0
      %v6239 = vadd.f32 0.0, %v6238
      %v6240 = vpop.f32.mrf.mxu0
      %6241 = vmatprep.mubr.bf16.mxu0 0
      %6242 = vmatmul.mubr.bf16.gmra.mxu0 %v6183
      %v6243 = vpop.f32.mrf.mxu0
      %v6244 = vadd.f32 0.0, %v6243
      %v6245 = vpop.f32.mrf.mxu0
      %v6246 = vpop.f32.mrf.mxu0
      %v6247 = vadd.f32 0.0, %v6246
      %v6248 = vpop.f32.mrf.mxu0
      %6249 = vdwg.mxu0
      %v6251 = vsel %vm5051, %v5780, 0
      %v6254 = vsel %vm5051, %v5781, 0
      %v6257 = vsel %vm5051, %v5782, 0
      %v6260 = vsel %vm5051, %v5783, 0
      %6262 = vmatprep.subr.bf16.mxu0 0
      %6263 = vmatpush1.bf16.msra.mxu0 0
      %6264 = vmatprep.subr.bf16.mxu0 0
      %6265 = vmatpush1.bf16.msra.mxu0 0
      %6266 = vmatprep.subr.bf16.mxu0 0
      %6267 = vmatpush1.bf16.msra.mxu0 0
      %6268 = vmatprep.subr.bf16.mxu0 0
      %6269 = vmatpush1.bf16.msra.mxu0 0
      %6270 = vmatprep.subr.bf16.mxu0 0
      %6271 = vmatpush1.bf16.msra.mxu0 0
      %6272 = vmatprep.subr.bf16.mxu0 0
      %6273 = vmatpush1.bf16.msra.mxu0 0
      %6274 = vmatprep.subr.bf16.mxu0 0
      %6275 = vmatpush1.bf16.msra.mxu0 0
      %6276 = vmatprep.subr.bf16.mxu0 0
      %6277 = vmatpush1.bf16.msra.mxu0 %v4408
      %6278 = vmatprep.subr.bf16.mxu0 0
      %6279 = vmatpush2.bf16.msra.mxu0 0
      %6280 = vmatprep.subr.bf16.mxu0 0
      %6281 = vmatpush2.bf16.msra.mxu0 0
      %6282 = vmatprep.subr.bf16.mxu0 0
      %6283 = vmatpush2.bf16.msra.mxu0 0
      %6284 = vmatprep.subr.bf16.mxu0 0
      %6285 = vmatpush2.bf16.msra.mxu0 0
      %6286 = vmatprep.subr.bf16.mxu0 0
      %6287 = vmatpush2.bf16.msra.mxu0 0
      %6288 = vmatprep.subr.bf16.mxu0 0
      %6289 = vmatpush2.bf16.msra.mxu0 0
      %6290 = vmatprep.subr.bf16.mxu0 0
      %6291 = vmatpush2.bf16.msra.mxu0 0
      %6292 = vmatprep.subr.bf16.mxu0 0
      %6293 = vmatpush2.bf16.msra.mxu0 0
      %6294 = vmatprep.mubr.bf16.mxu0 0
      %6295 = vmatmul.mubr.bf16.gmra.mxu0 %v6251
      %v6296 = vpop.f32.mrf.mxu0
      %v6297 = vadd.f32 0.0, %v6296
      %v6298 = vpop.f32.mrf.mxu0
      %v6299 = vpop.f32.mrf.mxu0
      %v6300 = vadd.f32 0.0, %v6299
      %v6301 = vpop.f32.mrf.mxu0
      %6302 = vmatprep.mubr.bf16.mxu0 0
      %6303 = vmatmul.mubr.bf16.gmra.mxu0 %v6254
      %v6304 = vpop.f32.mrf.mxu0
      %v6305 = vadd.f32 0.0, %v6304
      %v6306 = vpop.f32.mrf.mxu0
      %v6307 = vpop.f32.mrf.mxu0
      %v6308 = vadd.f32 0.0, %v6307
      %v6309 = vpop.f32.mrf.mxu0
      %6310 = vmatprep.mubr.bf16.mxu0 0
      %6311 = vmatmul.mubr.bf16.gmra.mxu0 %v6257
      %v6312 = vpop.f32.mrf.mxu0
      %v6313 = vadd.f32 0.0, %v6312
      %v6314 = vpop.f32.mrf.mxu0
      %v6315 = vpop.f32.mrf.mxu0
      %v6316 = vadd.f32 0.0, %v6315
      %v6317 = vpop.f32.mrf.mxu0
      %6318 = vmatprep.mubr.bf16.mxu0 0
      %6319 = vmatmul.mubr.bf16.gmra.mxu0 %v6260
      %v6320 = vpop.f32.mrf.mxu0
      %v6321 = vadd.f32 0.0, %v6320
      %v6322 = vpop.f32.mrf.mxu0
      %v6323 = vpop.f32.mrf.mxu0
      %v6324 = vadd.f32 0.0, %v6323
      %v6325 = vpop.f32.mrf.mxu0
      %6326 = vdwg.mxu0
      %v6328 = vsel %vm5051, %v5784, 0
      %v6331 = vsel %vm5051, %v5785, 0
      %v6334 = vsel %vm5051, %v5786, 0
      %v6337 = vsel %vm5051, %v5787, 0
      %6339 = vmatprep.subr.bf16.mxu0 0
      %6340 = vmatpush1.bf16.msra.mxu0 0
      %6341 = vmatprep.subr.bf16.mxu0 0
      %6342 = vmatpush1.bf16.msra.mxu0 0
      %6343 = vmatprep.subr.bf16.mxu0 0
      %6344 = vmatpush1.bf16.msra.mxu0 0
      %6345 = vmatprep.subr.bf16.mxu0 0
      %6346 = vmatpush1.bf16.msra.mxu0 0
      %6347 = vmatprep.subr.bf16.mxu0 0
      %6348 = vmatpush1.bf16.msra.mxu0 0
      %6349 = vmatprep.subr.bf16.mxu0 0
      %6350 = vmatpush1.bf16.msra.mxu0 0
      %6351 = vmatprep.subr.bf16.mxu0 0
      %6352 = vmatpush1.bf16.msra.mxu0 0
      %6353 = vmatprep.subr.bf16.mxu0 0
      %6354 = vmatpush1.bf16.msra.mxu0 %v4409
      %6355 = vmatprep.subr.bf16.mxu0 0
      %6356 = vmatpush2.bf16.msra.mxu0 0
      %6357 = vmatprep.subr.bf16.mxu0 0
      %6358 = vmatpush2.bf16.msra.mxu0 0
      %6359 = vmatprep.subr.bf16.mxu0 0
      %6360 = vmatpush2.bf16.msra.mxu0 0
      %6361 = vmatprep.subr.bf16.mxu0 0
      %6362 = vmatpush2.bf16.msra.mxu0 0
      %6363 = vmatprep.subr.bf16.mxu0 0
      %6364 = vmatpush2.bf16.msra.mxu0 0
      %6365 = vmatprep.subr.bf16.mxu0 0
      %6366 = vmatpush2.bf16.msra.mxu0 0
      %6367 = vmatprep.subr.bf16.mxu0 0
      %6368 = vmatpush2.bf16.msra.mxu0 0
      %6369 = vmatprep.subr.bf16.mxu0 0
      %6370 = vmatpush2.bf16.msra.mxu0 0
      %6371 = vmatprep.mubr.bf16.mxu0 0
      %6372 = vmatmul.mubr.bf16.gmra.mxu0 %v6328
      %v6373 = vpop.f32.mrf.mxu0
      %v6374 = vadd.f32 0.0, %v6373
      %v6375 = vpop.f32.mrf.mxu0
      %v6376 = vpop.f32.mrf.mxu0
      %v6377 = vadd.f32 0.0, %v6376
      %v6378 = vpop.f32.mrf.mxu0
      %6379 = vmatprep.mubr.bf16.mxu0 0
      %6380 = vmatmul.mubr.bf16.gmra.mxu0 %v6331
      %v6381 = vpop.f32.mrf.mxu0
      %v6382 = vadd.f32 0.0, %v6381
      %v6383 = vpop.f32.mrf.mxu0
      %v6384 = vpop.f32.mrf.mxu0
      %v6385 = vadd.f32 0.0, %v6384
      %v6386 = vpop.f32.mrf.mxu0
      %6387 = vmatprep.mubr.bf16.mxu0 0
      %6388 = vmatmul.mubr.bf16.gmra.mxu0 %v6334
      %v6389 = vpop.f32.mrf.mxu0
      %v6390 = vadd.f32 0.0, %v6389
      %v6391 = vpop.f32.mrf.mxu0
      %v6392 = vpop.f32.mrf.mxu0
      %v6393 = vadd.f32 0.0, %v6392
      %v6394 = vpop.f32.mrf.mxu0
      %6395 = vmatprep.mubr.bf16.mxu0 0
      %6396 = vmatmul.mubr.bf16.gmra.mxu0 %v6337
      %v6397 = vpop.f32.mrf.mxu0
      %v6398 = vadd.f32 0.0, %v6397
      %v6399 = vpop.f32.mrf.mxu0
      %v6400 = vpop.f32.mrf.mxu0
      %v6401 = vadd.f32 0.0, %v6400
      %v6402 = vpop.f32.mrf.mxu0
      %6403 = vdwg.mxu0
      %v6404 = vcombine.low %v5835, %v5989
      %v6405 = vcombine.high %v5835, %v5989
      %v6407 = vunpack.c.l.s4 1983009808
      %v6408 = vunpack.c.0.s8 %v6407
      %v6409 = vlaneseq
      %v6410 = vshrl.u32 %v6409, 7
      %v6411 = vsub.s32 %v6408, %v6410
      %v6412 = vrot.slane %v6404, %v6411
      %v6414 = vunpack.c.l.s4 1983009808
      %v6415 = vunpack.c.0.s8 %v6414
      %v6416 = vlaneseq
      %v6417 = vshrl.u32 %v6416, 7
      %v6418 = vsub.s32 %v6415, %v6417
      %v6419 = vrot.slane %v6405, %v6418
      %v6420 = vcombine.low %v5912, %v6066
      %v6421 = vcombine.high %v5912, %v6066
      %v6423 = vunpack.c.l.s4 1983009808
      %v6424 = vunpack.c.0.s8 %v6423
      %v6425 = vlaneseq
      %v6426 = vshrl.u32 %v6425, 7
      %v6427 = vsub.s32 %v6424, %v6426
      %v6428 = vrot.slane %v6420, %v6427
      %v6430 = vunpack.c.l.s4 1983009808
      %v6431 = vunpack.c.0.s8 %v6430
      %v6432 = vlaneseq
      %v6433 = vshrl.u32 %v6432, 7
      %v6434 = vsub.s32 %v6431, %v6433
      %v6435 = vrot.slane %v6421, %v6434
      %v6436 = vcombine.low %v6143, %v6297
      %v6437 = vcombine.high %v6143, %v6297
      %v6439 = vunpack.c.l.s4 1983009808
      %v6440 = vunpack.c.0.s8 %v6439
      %v6441 = vlaneseq
      %v6442 = vshrl.u32 %v6441, 7
      %v6443 = vsub.s32 %v6440, %v6442
      %v6444 = vrot.slane %v6436, %v6443
      %v6446 = vunpack.c.l.s4 1983009808
      %v6447 = vunpack.c.0.s8 %v6446
      %v6448 = vlaneseq
      %v6449 = vshrl.u32 %v6448, 7
      %v6450 = vsub.s32 %v6447, %v6449
      %v6451 = vrot.slane %v6437, %v6450
      %v6452 = vcombine.low %v6220, %v6374
      %v6453 = vcombine.high %v6220, %v6374
      %v6455 = vunpack.c.l.s4 1983009808
      %v6456 = vunpack.c.0.s8 %v6455
      %v6457 = vlaneseq
      %v6458 = vshrl.u32 %v6457, 7
      %v6459 = vsub.s32 %v6456, %v6458
      %v6460 = vrot.slane %v6452, %v6459
      %v6462 = vunpack.c.l.s4 1983009808
      %v6463 = vunpack.c.0.s8 %v6462
      %v6464 = vlaneseq
      %v6465 = vshrl.u32 %v6464, 7
      %v6466 = vsub.s32 %v6463, %v6465
      %v6467 = vrot.slane %v6453, %v6466
      %v6468 = vcombine.low %v6412, %v6428
      %v6469 = vcombine.high %v6412, %v6428
      %v6471 = vunpack.c.l.s4 1934713408
      %v6472 = vunpack.c.0.s8 %v6471
      %v6473 = vlaneseq
      %v6474 = vshrl.u32 %v6473, 7
      %v6475 = vsub.s32 %v6472, %v6474
      %v6476 = vrot.slane %v6468, %v6475
      %v6478 = vunpack.c.l.s4 1934713408
      %v6479 = vunpack.c.0.s8 %v6478
      %v6480 = vlaneseq
      %v6481 = vshrl.u32 %v6480, 7
      %v6482 = vsub.s32 %v6479, %v6481
      %v6483 = vrot.slane %v6469, %v6482
      %v6484 = vcombine.low %v6419, %v6435
      %v6485 = vcombine.high %v6419, %v6435
      %v6487 = vunpack.c.l.s4 1934713408
      %v6488 = vunpack.c.0.s8 %v6487
      %v6489 = vlaneseq
      %v6490 = vshrl.u32 %v6489, 7
      %v6491 = vsub.s32 %v6488, %v6490
      %v6492 = vrot.slane %v6484, %v6491
      %v6494 = vunpack.c.l.s4 1934713408
      %v6495 = vunpack.c.0.s8 %v6494
      %v6496 = vlaneseq
      %v6497 = vshrl.u32 %v6496, 7
      %v6498 = vsub.s32 %v6495, %v6497
      %v6499 = vrot.slane %v6485, %v6498
      %v6500 = vcombine.low %v6444, %v6460
      %v6501 = vcombine.high %v6444, %v6460
      %v6503 = vunpack.c.l.s4 1934713408
      %v6504 = vunpack.c.0.s8 %v6503
      %v6505 = vlaneseq
      %v6506 = vshrl.u32 %v6505, 7
      %v6507 = vsub.s32 %v6504, %v6506
      %v6508 = vrot.slane %v6500, %v6507
      %v6510 = vunpack.c.l.s4 1934713408
      %v6511 = vunpack.c.0.s8 %v6510
      %v6512 = vlaneseq
      %v6513 = vshrl.u32 %v6512, 7
      %v6514 = vsub.s32 %v6511, %v6513
      %v6515 = vrot.slane %v6501, %v6514
      %v6516 = vcombine.low %v6451, %v6467
      %v6517 = vcombine.high %v6451, %v6467
      %v6519 = vunpack.c.l.s4 1934713408
      %v6520 = vunpack.c.0.s8 %v6519
      %v6521 = vlaneseq
      %v6522 = vshrl.u32 %v6521, 7
      %v6523 = vsub.s32 %v6520, %v6522
      %v6524 = vrot.slane %v6516, %v6523
      %v6526 = vunpack.c.l.s4 1934713408
      %v6527 = vunpack.c.0.s8 %v6526
      %v6528 = vlaneseq
      %v6529 = vshrl.u32 %v6528, 7
      %v6530 = vsub.s32 %v6527, %v6529
      %v6531 = vrot.slane %v6517, %v6530
      %v6532 = vcombine.low %v6476, %v6508
      %v6533 = vcombine.high %v6476, %v6508
      %v6534 = vcombine.low %v6483, %v6515
      %v6535 = vcombine.high %v6483, %v6515
      %v6536 = vcombine.low %v6492, %v6524
      %v6537 = vcombine.high %v6492, %v6524
      %v6538 = vcombine.low %v6499, %v6531
      %v6539 = vcombine.high %v6499, %v6531
      %v6540 = vcombine.low %v5838, %v5992
      %v6541 = vcombine.high %v5838, %v5992
      %v6543 = vunpack.c.l.s4 1983009808
      %v6544 = vunpack.c.0.s8 %v6543
      %v6545 = vlaneseq
      %v6546 = vshrl.u32 %v6545, 7
      %v6547 = vsub.s32 %v6544, %v6546
      %v6548 = vrot.slane %v6540, %v6547
      %v6550 = vunpack.c.l.s4 1983009808
      %v6551 = vunpack.c.0.s8 %v6550
      %v6552 = vlaneseq
      %v6553 = vshrl.u32 %v6552, 7
      %v6554 = vsub.s32 %v6551, %v6553
      %v6555 = vrot.slane %v6541, %v6554
      %v6556 = vcombine.low %v5915, %v6069
      %v6557 = vcombine.high %v5915, %v6069
      %v6559 = vunpack.c.l.s4 1983009808
      %v6560 = vunpack.c.0.s8 %v6559
      %v6561 = vlaneseq
      %v6562 = vshrl.u32 %v6561, 7
      %v6563 = vsub.s32 %v6560, %v6562
      %v6564 = vrot.slane %v6556, %v6563
      %v6566 = vunpack.c.l.s4 1983009808
      %v6567 = vunpack.c.0.s8 %v6566
      %v6568 = vlaneseq
      %v6569 = vshrl.u32 %v6568, 7
      %v6570 = vsub.s32 %v6567, %v6569
      %v6571 = vrot.slane %v6557, %v6570
      %v6572 = vcombine.low %v6146, %v6300
      %v6573 = vcombine.high %v6146, %v6300
      %v6575 = vunpack.c.l.s4 1983009808
      %v6576 = vunpack.c.0.s8 %v6575
      %v6577 = vlaneseq
      %v6578 = vshrl.u32 %v6577, 7
      %v6579 = vsub.s32 %v6576, %v6578
      %v6580 = vrot.slane %v6572, %v6579
      %v6582 = vunpack.c.l.s4 1983009808
      %v6583 = vunpack.c.0.s8 %v6582
      %v6584 = vlaneseq
      %v6585 = vshrl.u32 %v6584, 7
      %v6586 = vsub.s32 %v6583, %v6585
      %v6587 = vrot.slane %v6573, %v6586
      %v6588 = vcombine.low %v6223, %v6377
      %v6589 = vcombine.high %v6223, %v6377
      %v6591 = vunpack.c.l.s4 1983009808
      %v6592 = vunpack.c.0.s8 %v6591
      %v6593 = vlaneseq
      %v6594 = vshrl.u32 %v6593, 7
      %v6595 = vsub.s32 %v6592, %v6594
      %v6596 = vrot.slane %v6588, %v6595
      %v6598 = vunpack.c.l.s4 1983009808
      %v6599 = vunpack.c.0.s8 %v6598
      %v6600 = vlaneseq
      %v6601 = vshrl.u32 %v6600, 7
      %v6602 = vsub.s32 %v6599, %v6601
      %v6603 = vrot.slane %v6589, %v6602
      %v6604 = vcombine.low %v6548, %v6564
      %v6605 = vcombine.high %v6548, %v6564
      %v6607 = vunpack.c.l.s4 1934713408
      %v6608 = vunpack.c.0.s8 %v6607
      %v6609 = vlaneseq
      %v6610 = vshrl.u32 %v6609, 7
      %v6611 = vsub.s32 %v6608, %v6610
      %v6612 = vrot.slane %v6604, %v6611
      %v6614 = vunpack.c.l.s4 1934713408
      %v6615 = vunpack.c.0.s8 %v6614
      %v6616 = vlaneseq
      %v6617 = vshrl.u32 %v6616, 7
      %v6618 = vsub.s32 %v6615, %v6617
      %v6619 = vrot.slane %v6605, %v6618
      %v6620 = vcombine.low %v6555, %v6571
      %v6621 = vcombine.high %v6555, %v6571
      %v6623 = vunpack.c.l.s4 1934713408
      %v6624 = vunpack.c.0.s8 %v6623
      %v6625 = vlaneseq
      %v6626 = vshrl.u32 %v6625, 7
      %v6627 = vsub.s32 %v6624, %v6626
      %v6628 = vrot.slane %v6620, %v6627
      %v6630 = vunpack.c.l.s4 1934713408
      %v6631 = vunpack.c.0.s8 %v6630
      %v6632 = vlaneseq
      %v6633 = vshrl.u32 %v6632, 7
      %v6634 = vsub.s32 %v6631, %v6633
      %v6635 = vrot.slane %v6621, %v6634
      %v6636 = vcombine.low %v6580, %v6596
      %v6637 = vcombine.high %v6580, %v6596
      %v6639 = vunpack.c.l.s4 1934713408
      %v6640 = vunpack.c.0.s8 %v6639
      %v6641 = vlaneseq
      %v6642 = vshrl.u32 %v6641, 7
      %v6643 = vsub.s32 %v6640, %v6642
      %v6644 = vrot.slane %v6636, %v6643
      %v6646 = vunpack.c.l.s4 1934713408
      %v6647 = vunpack.c.0.s8 %v6646
      %v6648 = vlaneseq
      %v6649 = vshrl.u32 %v6648, 7
      %v6650 = vsub.s32 %v6647, %v6649
      %v6651 = vrot.slane %v6637, %v6650
      %v6652 = vcombine.low %v6587, %v6603
      %v6653 = vcombine.high %v6587, %v6603
      %v6655 = vunpack.c.l.s4 1934713408
      %v6656 = vunpack.c.0.s8 %v6655
      %v6657 = vlaneseq
      %v6658 = vshrl.u32 %v6657, 7
      %v6659 = vsub.s32 %v6656, %v6658
      %v6660 = vrot.slane %v6652, %v6659
      %v6662 = vunpack.c.l.s4 1934713408
      %v6663 = vunpack.c.0.s8 %v6662
      %v6664 = vlaneseq
      %v6665 = vshrl.u32 %v6664, 7
      %v6666 = vsub.s32 %v6663, %v6665
      %v6667 = vrot.slane %v6653, %v6666
      %v6668 = vcombine.low %v6612, %v6644
      %v6669 = vcombine.high %v6612, %v6644
      %v6670 = vcombine.low %v6619, %v6651
      %v6671 = vcombine.high %v6619, %v6651
      %v6672 = vcombine.low %v6628, %v6660
      %v6673 = vcombine.high %v6628, %v6660
      %v6674 = vcombine.low %v6635, %v6667
      %v6675 = vcombine.high %v6635, %v6667
      %v6676 = vcombine.low %v5843, %v5997
      %v6677 = vcombine.high %v5843, %v5997
      %v6679 = vunpack.c.l.s4 1983009808
      %v6680 = vunpack.c.0.s8 %v6679
      %v6681 = vlaneseq
      %v6682 = vshrl.u32 %v6681, 7
      %v6683 = vsub.s32 %v6680, %v6682
      %v6684 = vrot.slane %v6676, %v6683
      %v6686 = vunpack.c.l.s4 1983009808
      %v6687 = vunpack.c.0.s8 %v6686
      %v6688 = vlaneseq
      %v6689 = vshrl.u32 %v6688, 7
      %v6690 = vsub.s32 %v6687, %v6689
      %v6691 = vrot.slane %v6677, %v6690
      %v6692 = vcombine.low %v5920, %v6074
      %v6693 = vcombine.high %v5920, %v6074
      %v6695 = vunpack.c.l.s4 1983009808
      %v6696 = vunpack.c.0.s8 %v6695
      %v6697 = vlaneseq
      %v6698 = vshrl.u32 %v6697, 7
      %v6699 = vsub.s32 %v6696, %v6698
      %v6700 = vrot.slane %v6692, %v6699
      %v6702 = vunpack.c.l.s4 1983009808
      %v6703 = vunpack.c.0.s8 %v6702
      %v6704 = vlaneseq
      %v6705 = vshrl.u32 %v6704, 7
      %v6706 = vsub.s32 %v6703, %v6705
      %v6707 = vrot.slane %v6693, %v6706
      %v6708 = vcombine.low %v6151, %v6305
      %v6709 = vcombine.high %v6151, %v6305
      %v6711 = vunpack.c.l.s4 1983009808
      %v6712 = vunpack.c.0.s8 %v6711
      %v6713 = vlaneseq
      %v6714 = vshrl.u32 %v6713, 7
      %v6715 = vsub.s32 %v6712, %v6714
      %v6716 = vrot.slane %v6708, %v6715
      %v6718 = vunpack.c.l.s4 1983009808
      %v6719 = vunpack.c.0.s8 %v6718
      %v6720 = vlaneseq
      %v6721 = vshrl.u32 %v6720, 7
      %v6722 = vsub.s32 %v6719, %v6721
      %v6723 = vrot.slane %v6709, %v6722
      %v6724 = vcombine.low %v6228, %v6382
      %v6725 = vcombine.high %v6228, %v6382
      %v6727 = vunpack.c.l.s4 1983009808
      %v6728 = vunpack.c.0.s8 %v6727
      %v6729 = vlaneseq
      %v6730 = vshrl.u32 %v6729, 7
      %v6731 = vsub.s32 %v6728, %v6730
      %v6732 = vrot.slane %v6724, %v6731
      %v6734 = vunpack.c.l.s4 1983009808
      %v6735 = vunpack.c.0.s8 %v6734
      %v6736 = vlaneseq
      %v6737 = vshrl.u32 %v6736, 7
      %v6738 = vsub.s32 %v6735, %v6737
      %v6739 = vrot.slane %v6725, %v6738
      %v6740 = vcombine.low %v6684, %v6700
      %v6741 = vcombine.high %v6684, %v6700
      %v6743 = vunpack.c.l.s4 1934713408
      %v6744 = vunpack.c.0.s8 %v6743
      %v6745 = vlaneseq
      %v6746 = vshrl.u32 %v6745, 7
      %v6747 = vsub.s32 %v6744, %v6746
      %v6748 = vrot.slane %v6740, %v6747
      %v6750 = vunpack.c.l.s4 1934713408
      %v6751 = vunpack.c.0.s8 %v6750
      %v6752 = vlaneseq
      %v6753 = vshrl.u32 %v6752, 7
      %v6754 = vsub.s32 %v6751, %v6753
      %v6755 = vrot.slane %v6741, %v6754
      %v6756 = vcombine.low %v6691, %v6707
      %v6757 = vcombine.high %v6691, %v6707
      %v6759 = vunpack.c.l.s4 1934713408
      %v6760 = vunpack.c.0.s8 %v6759
      %v6761 = vlaneseq
      %v6762 = vshrl.u32 %v6761, 7
      %v6763 = vsub.s32 %v6760, %v6762
      %v6764 = vrot.slane %v6756, %v6763
      %v6766 = vunpack.c.l.s4 1934713408
      %v6767 = vunpack.c.0.s8 %v6766
      %v6768 = vlaneseq
      %v6769 = vshrl.u32 %v6768, 7
      %v6770 = vsub.s32 %v6767, %v6769
      %v6771 = vrot.slane %v6757, %v6770
      %v6772 = vcombine.low %v6716, %v6732
      %v6773 = vcombine.high %v6716, %v6732
      %v6775 = vunpack.c.l.s4 1934713408
      %v6776 = vunpack.c.0.s8 %v6775
      %v6777 = vlaneseq
      %v6778 = vshrl.u32 %v6777, 7
      %v6779 = vsub.s32 %v6776, %v6778
      %v6780 = vrot.slane %v6772, %v6779
      %v6782 = vunpack.c.l.s4 1934713408
      %v6783 = vunpack.c.0.s8 %v6782
      %v6784 = vlaneseq
      %v6785 = vshrl.u32 %v6784, 7
      %v6786 = vsub.s32 %v6783, %v6785
      %v6787 = vrot.slane %v6773, %v6786
      %v6788 = vcombine.low %v6723, %v6739
      %v6789 = vcombine.high %v6723, %v6739
      %v6791 = vunpack.c.l.s4 1934713408
      %v6792 = vunpack.c.0.s8 %v6791
      %v6793 = vlaneseq
      %v6794 = vshrl.u32 %v6793, 7
      %v6795 = vsub.s32 %v6792, %v6794
      %v6796 = vrot.slane %v6788, %v6795
      %v6798 = vunpack.c.l.s4 1934713408
      %v6799 = vunpack.c.0.s8 %v6798
      %v6800 = vlaneseq
      %v6801 = vshrl.u32 %v6800, 7
      %v6802 = vsub.s32 %v6799, %v6801
      %v6803 = vrot.slane %v6789, %v6802
      %v6804 = vcombine.low %v6748, %v6780
      %v6805 = vcombine.high %v6748, %v6780
      %v6806 = vcombine.low %v6755, %v6787
      %v6807 = vcombine.high %v6755, %v6787
      %v6808 = vcombine.low %v6764, %v6796
      %v6809 = vcombine.high %v6764, %v6796
      %v6810 = vcombine.low %v6771, %v6803
      %v6811 = vcombine.high %v6771, %v6803
      %v6812 = vcombine.low %v5846, %v6000
      %v6813 = vcombine.high %v5846, %v6000
      %v6815 = vunpack.c.l.s4 1983009808
      %v6816 = vunpack.c.0.s8 %v6815
      %v6817 = vlaneseq
      %v6818 = vshrl.u32 %v6817, 7
      %v6819 = vsub.s32 %v6816, %v6818
      %v6820 = vrot.slane %v6812, %v6819
      %v6822 = vunpack.c.l.s4 1983009808
      %v6823 = vunpack.c.0.s8 %v6822
      %v6824 = vlaneseq
      %v6825 = vshrl.u32 %v6824, 7
      %v6826 = vsub.s32 %v6823, %v6825
      %v6827 = vrot.slane %v6813, %v6826
      %v6828 = vcombine.low %v5923, %v6077
      %v6829 = vcombine.high %v5923, %v6077
      %v6831 = vunpack.c.l.s4 1983009808
      %v6832 = vunpack.c.0.s8 %v6831
      %v6833 = vlaneseq
      %v6834 = vshrl.u32 %v6833, 7
      %v6835 = vsub.s32 %v6832, %v6834
      %v6836 = vrot.slane %v6828, %v6835
      %v6838 = vunpack.c.l.s4 1983009808
      %v6839 = vunpack.c.0.s8 %v6838
      %v6840 = vlaneseq
      %v6841 = vshrl.u32 %v6840, 7
      %v6842 = vsub.s32 %v6839, %v6841
      %v6843 = vrot.slane %v6829, %v6842
      %v6844 = vcombine.low %v6154, %v6308
      %v6845 = vcombine.high %v6154, %v6308
      %v6847 = vunpack.c.l.s4 1983009808
      %v6848 = vunpack.c.0.s8 %v6847
      %v6849 = vlaneseq
      %v6850 = vshrl.u32 %v6849, 7
      %v6851 = vsub.s32 %v6848, %v6850
      %v6852 = vrot.slane %v6844, %v6851
      %v6854 = vunpack.c.l.s4 1983009808
      %v6855 = vunpack.c.0.s8 %v6854
      %v6856 = vlaneseq
      %v6857 = vshrl.u32 %v6856, 7
      %v6858 = vsub.s32 %v6855, %v6857
      %v6859 = vrot.slane %v6845, %v6858
      %v6860 = vcombine.low %v6231, %v6385
      %v6861 = vcombine.high %v6231, %v6385
      %v6863 = vunpack.c.l.s4 1983009808
      %v6864 = vunpack.c.0.s8 %v6863
      %v6865 = vlaneseq
      %v6866 = vshrl.u32 %v6865, 7
      %v6867 = vsub.s32 %v6864, %v6866
      %v6868 = vrot.slane %v6860, %v6867
      %v6870 = vunpack.c.l.s4 1983009808
      %v6871 = vunpack.c.0.s8 %v6870
      %v6872 = vlaneseq
      %v6873 = vshrl.u32 %v6872, 7
      %v6874 = vsub.s32 %v6871, %v6873
      %v6875 = vrot.slane %v6861, %v6874
      %v6876 = vcombine.low %v6820, %v6836
      %v6877 = vcombine.high %v6820, %v6836
      %v6879 = vunpack.c.l.s4 1934713408
      %v6880 = vunpack.c.0.s8 %v6879
      %v6881 = vlaneseq
      %v6882 = vshrl.u32 %v6881, 7
      %v6883 = vsub.s32 %v6880, %v6882
      %v6884 = vrot.slane %v6876, %v6883
      %v6886 = vunpack.c.l.s4 1934713408
      %v6887 = vunpack.c.0.s8 %v6886
      %v6888 = vlaneseq
      %v6889 = vshrl.u32 %v6888, 7
      %v6890 = vsub.s32 %v6887, %v6889
      %v6891 = vrot.slane %v6877, %v6890
      %v6892 = vcombine.low %v6827, %v6843
      %v6893 = vcombine.high %v6827, %v6843
      %v6895 = vunpack.c.l.s4 1934713408
      %v6896 = vunpack.c.0.s8 %v6895
      %v6897 = vlaneseq
      %v6898 = vshrl.u32 %v6897, 7
      %v6899 = vsub.s32 %v6896, %v6898
      %v6900 = vrot.slane %v6892, %v6899
      %v6902 = vunpack.c.l.s4 1934713408
      %v6903 = vunpack.c.0.s8 %v6902
      %v6904 = vlaneseq
      %v6905 = vshrl.u32 %v6904, 7
      %v6906 = vsub.s32 %v6903, %v6905
      %v6907 = vrot.slane %v6893, %v6906
      %v6908 = vcombine.low %v6852, %v6868
      %v6909 = vcombine.high %v6852, %v6868
      %v6911 = vunpack.c.l.s4 1934713408
      %v6912 = vunpack.c.0.s8 %v6911
      %v6913 = vlaneseq
      %v6914 = vshrl.u32 %v6913, 7
      %v6915 = vsub.s32 %v6912, %v6914
      %v6916 = vrot.slane %v6908, %v6915
      %v6918 = vunpack.c.l.s4 1934713408
      %v6919 = vunpack.c.0.s8 %v6918
      %v6920 = vlaneseq
      %v6921 = vshrl.u32 %v6920, 7
      %v6922 = vsub.s32 %v6919, %v6921
      %v6923 = vrot.slane %v6909, %v6922
      %v6924 = vcombine.low %v6859, %v6875
      %v6925 = vcombine.high %v6859, %v6875
      %v6927 = vunpack.c.l.s4 1934713408
      %v6928 = vunpack.c.0.s8 %v6927
      %v6929 = vlaneseq
      %v6930 = vshrl.u32 %v6929, 7
      %v6931 = vsub.s32 %v6928, %v6930
      %v6932 = vrot.slane %v6924, %v6931
      %v6934 = vunpack.c.l.s4 1934713408
      %v6935 = vunpack.c.0.s8 %v6934
      %v6936 = vlaneseq
      %v6937 = vshrl.u32 %v6936, 7
      %v6938 = vsub.s32 %v6935, %v6937
      %v6939 = vrot.slane %v6925, %v6938
      %v6940 = vcombine.low %v6884, %v6916
      %v6941 = vcombine.high %v6884, %v6916
      %v6942 = vcombine.low %v6891, %v6923
      %v6943 = vcombine.high %v6891, %v6923
      %v6944 = vcombine.low %v6900, %v6932
      %v6945 = vcombine.high %v6900, %v6932
      %v6946 = vcombine.low %v6907, %v6939
      %v6947 = vcombine.high %v6907, %v6939
      %v6948 = vcombine.low %v5851, %v6005
      %v6949 = vcombine.high %v5851, %v6005
      %v6951 = vunpack.c.l.s4 1983009808
      %v6952 = vunpack.c.0.s8 %v6951
      %v6953 = vlaneseq
      %v6954 = vshrl.u32 %v6953, 7
      %v6955 = vsub.s32 %v6952, %v6954
      %v6956 = vrot.slane %v6948, %v6955
      %v6958 = vunpack.c.l.s4 1983009808
      %v6959 = vunpack.c.0.s8 %v6958
      %v6960 = vlaneseq
      %v6961 = vshrl.u32 %v6960, 7
      %v6962 = vsub.s32 %v6959, %v6961
      %v6963 = vrot.slane %v6949, %v6962
      %v6964 = vcombine.low %v5928, %v6082
      %v6965 = vcombine.high %v5928, %v6082
      %v6967 = vunpack.c.l.s4 1983009808
      %v6968 = vunpack.c.0.s8 %v6967
      %v6969 = vlaneseq
      %v6970 = vshrl.u32 %v6969, 7
      %v6971 = vsub.s32 %v6968, %v6970
      %v6972 = vrot.slane %v6964, %v6971
      %v6974 = vunpack.c.l.s4 1983009808
      %v6975 = vunpack.c.0.s8 %v6974
      %v6976 = vlaneseq
      %v6977 = vshrl.u32 %v6976, 7
      %v6978 = vsub.s32 %v6975, %v6977
      %v6979 = vrot.slane %v6965, %v6978
      %v6980 = vcombine.low %v6159, %v6313
      %v6981 = vcombine.high %v6159, %v6313
      %v6983 = vunpack.c.l.s4 1983009808
      %v6984 = vunpack.c.0.s8 %v6983
      %v6985 = vlaneseq
      %v6986 = vshrl.u32 %v6985, 7
      %v6987 = vsub.s32 %v6984, %v6986
      %v6988 = vrot.slane %v6980, %v6987
      %v6990 = vunpack.c.l.s4 1983009808
      %v6991 = vunpack.c.0.s8 %v6990
      %v6992 = vlaneseq
      %v6993 = vshrl.u32 %v6992, 7
      %v6994 = vsub.s32 %v6991, %v6993
      %v6995 = vrot.slane %v6981, %v6994
      %v6996 = vcombine.low %v6236, %v6390
      %v6997 = vcombine.high %v6236, %v6390
      %v6999 = vunpack.c.l.s4 1983009808
      %v7000 = vunpack.c.0.s8 %v6999
      %v7001 = vlaneseq
      %v7002 = vshrl.u32 %v7001, 7
      %v7003 = vsub.s32 %v7000, %v7002
      %v7004 = vrot.slane %v6996, %v7003
      %v7006 = vunpack.c.l.s4 1983009808
      %v7007 = vunpack.c.0.s8 %v7006
      %v7008 = vlaneseq
      %v7009 = vshrl.u32 %v7008, 7
      %v7010 = vsub.s32 %v7007, %v7009
      %v7011 = vrot.slane %v6997, %v7010
      %v7012 = vcombine.low %v6956, %v6972
      %v7013 = vcombine.high %v6956, %v6972
      %v7015 = vunpack.c.l.s4 1934713408
      %v7016 = vunpack.c.0.s8 %v7015
      %v7017 = vlaneseq
      %v7018 = vshrl.u32 %v7017, 7
      %v7019 = vsub.s32 %v7016, %v7018
      %v7020 = vrot.slane %v7012, %v7019
      %v7022 = vunpack.c.l.s4 1934713408
      %v7023 = vunpack.c.0.s8 %v7022
      %v7024 = vlaneseq
      %v7025 = vshrl.u32 %v7024, 7
      %v7026 = vsub.s32 %v7023, %v7025
      %v7027 = vrot.slane %v7013, %v7026
      %v7028 = vcombine.low %v6963, %v6979
      %v7029 = vcombine.high %v6963, %v6979
      %v7031 = vunpack.c.l.s4 1934713408
      %v7032 = vunpack.c.0.s8 %v7031
      %v7033 = vlaneseq
      %v7034 = vshrl.u32 %v7033, 7
      %v7035 = vsub.s32 %v7032, %v7034
      %v7036 = vrot.slane %v7028, %v7035
      %v7038 = vunpack.c.l.s4 1934713408
      %v7039 = vunpack.c.0.s8 %v7038
      %v7040 = vlaneseq
      %v7041 = vshrl.u32 %v7040, 7
      %v7042 = vsub.s32 %v7039, %v7041
      %v7043 = vrot.slane %v7029, %v7042
      %v7044 = vcombine.low %v6988, %v7004
      %v7045 = vcombine.high %v6988, %v7004
      %v7047 = vunpack.c.l.s4 1934713408
      %v7048 = vunpack.c.0.s8 %v7047
      %v7049 = vlaneseq
      %v7050 = vshrl.u32 %v7049, 7
      %v7051 = vsub.s32 %v7048, %v7050
      %v7052 = vrot.slane %v7044, %v7051
      %v7054 = vunpack.c.l.s4 1934713408
      %v7055 = vunpack.c.0.s8 %v7054
      %v7056 = vlaneseq
      %v7057 = vshrl.u32 %v7056, 7
      %v7058 = vsub.s32 %v7055, %v7057
      %v7059 = vrot.slane %v7045, %v7058
      %v7060 = vcombine.low %v6995, %v7011
      %v7061 = vcombine.high %v6995, %v7011
      %v7063 = vunpack.c.l.s4 1934713408
      %v7064 = vunpack.c.0.s8 %v7063
      %v7065 = vlaneseq
      %v7066 = vshrl.u32 %v7065, 7
      %v7067 = vsub.s32 %v7064, %v7066
      %v7068 = vrot.slane %v7060, %v7067
      %v7070 = vunpack.c.l.s4 1934713408
      %v7071 = vunpack.c.0.s8 %v7070
      %v7072 = vlaneseq
      %v7073 = vshrl.u32 %v7072, 7
      %v7074 = vsub.s32 %v7071, %v7073
      %v7075 = vrot.slane %v7061, %v7074
      %v7076 = vcombine.low %v7020, %v7052
      %v7077 = vcombine.high %v7020, %v7052
      %v7078 = vcombine.low %v7027, %v7059
      %v7079 = vcombine.high %v7027, %v7059
      %v7080 = vcombine.low %v7036, %v7068
      %v7081 = vcombine.high %v7036, %v7068
      %v7082 = vcombine.low %v7043, %v7075
      %v7083 = vcombine.high %v7043, %v7075
      %v7084 = vcombine.low %v5854, %v6008
      %v7085 = vcombine.high %v5854, %v6008
      %v7087 = vunpack.c.l.s4 1983009808
      %v7088 = vunpack.c.0.s8 %v7087
      %v7089 = vlaneseq
      %v7090 = vshrl.u32 %v7089, 7
      %v7091 = vsub.s32 %v7088, %v7090
      %v7092 = vrot.slane %v7084, %v7091
      %v7094 = vunpack.c.l.s4 1983009808
      %v7095 = vunpack.c.0.s8 %v7094
      %v7096 = vlaneseq
      %v7097 = vshrl.u32 %v7096, 7
      %v7098 = vsub.s32 %v7095, %v7097
      %v7099 = vrot.slane %v7085, %v7098
      %v7100 = vcombine.low %v5931, %v6085
      %v7101 = vcombine.high %v5931, %v6085
      %v7103 = vunpack.c.l.s4 1983009808
      %v7104 = vunpack.c.0.s8 %v7103
      %v7105 = vlaneseq
      %v7106 = vshrl.u32 %v7105, 7
      %v7107 = vsub.s32 %v7104, %v7106
      %v7108 = vrot.slane %v7100, %v7107
      %v7110 = vunpack.c.l.s4 1983009808
      %v7111 = vunpack.c.0.s8 %v7110
      %v7112 = vlaneseq
      %v7113 = vshrl.u32 %v7112, 7
      %v7114 = vsub.s32 %v7111, %v7113
      %v7115 = vrot.slane %v7101, %v7114
      %v7116 = vcombine.low %v6162, %v6316
      %v7117 = vcombine.high %v6162, %v6316
      %v7119 = vunpack.c.l.s4 1983009808
      %v7120 = vunpack.c.0.s8 %v7119
      %v7121 = vlaneseq
      %v7122 = vshrl.u32 %v7121, 7
      %v7123 = vsub.s32 %v7120, %v7122
      %v7124 = vrot.slane %v7116, %v7123
      %v7126 = vunpack.c.l.s4 1983009808
      %v7127 = vunpack.c.0.s8 %v7126
      %v7128 = vlaneseq
      %v7129 = vshrl.u32 %v7128, 7
      %v7130 = vsub.s32 %v7127, %v7129
      %v7131 = vrot.slane %v7117, %v7130
      %v7132 = vcombine.low %v6239, %v6393
      %v7133 = vcombine.high %v6239, %v6393
      %v7135 = vunpack.c.l.s4 1983009808
      %v7136 = vunpack.c.0.s8 %v7135
      %v7137 = vlaneseq
      %v7138 = vshrl.u32 %v7137, 7
      %v7139 = vsub.s32 %v7136, %v7138
      %v7140 = vrot.slane %v7132, %v7139
      %v7142 = vunpack.c.l.s4 1983009808
      %v7143 = vunpack.c.0.s8 %v7142
      %v7144 = vlaneseq
      %v7145 = vshrl.u32 %v7144, 7
      %v7146 = vsub.s32 %v7143, %v7145
      %v7147 = vrot.slane %v7133, %v7146
      %v7148 = vcombine.low %v7092, %v7108
      %v7149 = vcombine.high %v7092, %v7108
      %v7151 = vunpack.c.l.s4 1934713408
      %v7152 = vunpack.c.0.s8 %v7151
      %v7153 = vlaneseq
      %v7154 = vshrl.u32 %v7153, 7
      %v7155 = vsub.s32 %v7152, %v7154
      %v7156 = vrot.slane %v7148, %v7155
      %v7158 = vunpack.c.l.s4 1934713408
      %v7159 = vunpack.c.0.s8 %v7158
      %v7160 = vlaneseq
      %v7161 = vshrl.u32 %v7160, 7
      %v7162 = vsub.s32 %v7159, %v7161
      %v7163 = vrot.slane %v7149, %v7162
      %v7164 = vcombine.low %v7099, %v7115
      %v7165 = vcombine.high %v7099, %v7115
      %v7167 = vunpack.c.l.s4 1934713408
      %v7168 = vunpack.c.0.s8 %v7167
      %v7169 = vlaneseq
      %v7170 = vshrl.u32 %v7169, 7
      %v7171 = vsub.s32 %v7168, %v7170
      %v7172 = vrot.slane %v7164, %v7171
      %v7174 = vunpack.c.l.s4 1934713408
      %v7175 = vunpack.c.0.s8 %v7174
      %v7176 = vlaneseq
      %v7177 = vshrl.u32 %v7176, 7
      %v7178 = vsub.s32 %v7175, %v7177
      %v7179 = vrot.slane %v7165, %v7178
      %v7180 = vcombine.low %v7124, %v7140
      %v7181 = vcombine.high %v7124, %v7140
      %v7183 = vunpack.c.l.s4 1934713408
      %v7184 = vunpack.c.0.s8 %v7183
      %v7185 = vlaneseq
      %v7186 = vshrl.u32 %v7185, 7
      %v7187 = vsub.s32 %v7184, %v7186
      %v7188 = vrot.slane %v7180, %v7187
      %v7190 = vunpack.c.l.s4 1934713408
      %v7191 = vunpack.c.0.s8 %v7190
      %v7192 = vlaneseq
      %v7193 = vshrl.u32 %v7192, 7
      %v7194 = vsub.s32 %v7191, %v7193
      %v7195 = vrot.slane %v7181, %v7194
      %v7196 = vcombine.low %v7131, %v7147
      %v7197 = vcombine.high %v7131, %v7147
      %v7199 = vunpack.c.l.s4 1934713408
      %v7200 = vunpack.c.0.s8 %v7199
      %v7201 = vlaneseq
      %v7202 = vshrl.u32 %v7201, 7
      %v7203 = vsub.s32 %v7200, %v7202
      %v7204 = vrot.slane %v7196, %v7203
      %v7206 = vunpack.c.l.s4 1934713408
      %v7207 = vunpack.c.0.s8 %v7206
      %v7208 = vlaneseq
      %v7209 = vshrl.u32 %v7208, 7
      %v7210 = vsub.s32 %v7207, %v7209
      %v7211 = vrot.slane %v7197, %v7210
      %v7212 = vcombine.low %v7156, %v7188
      %v7213 = vcombine.high %v7156, %v7188
      %v7214 = vcombine.low %v7163, %v7195
      %v7215 = vcombine.high %v7163, %v7195
      %v7216 = vcombine.low %v7172, %v7204
      %v7217 = vcombine.high %v7172, %v7204
      %v7218 = vcombine.low %v7179, %v7211
      %v7219 = vcombine.high %v7179, %v7211
      %v7220 = vcombine.low %v5859, %v6013
      %v7221 = vcombine.high %v5859, %v6013
      %v7223 = vunpack.c.l.s4 1983009808
      %v7224 = vunpack.c.0.s8 %v7223
      %v7225 = vlaneseq
      %v7226 = vshrl.u32 %v7225, 7
      %v7227 = vsub.s32 %v7224, %v7226
      %v7228 = vrot.slane %v7220, %v7227
      %v7230 = vunpack.c.l.s4 1983009808
      %v7231 = vunpack.c.0.s8 %v7230
      %v7232 = vlaneseq
      %v7233 = vshrl.u32 %v7232, 7
      %v7234 = vsub.s32 %v7231, %v7233
      %v7235 = vrot.slane %v7221, %v7234
      %v7236 = vcombine.low %v5936, %v6090
      %v7237 = vcombine.high %v5936, %v6090
      %v7239 = vunpack.c.l.s4 1983009808
      %v7240 = vunpack.c.0.s8 %v7239
      %v7241 = vlaneseq
      %v7242 = vshrl.u32 %v7241, 7
      %v7243 = vsub.s32 %v7240, %v7242
      %v7244 = vrot.slane %v7236, %v7243
      %v7246 = vunpack.c.l.s4 1983009808
      %v7247 = vunpack.c.0.s8 %v7246
      %v7248 = vlaneseq
      %v7249 = vshrl.u32 %v7248, 7
      %v7250 = vsub.s32 %v7247, %v7249
      %v7251 = vrot.slane %v7237, %v7250
      %v7252 = vcombine.low %v6167, %v6321
      %v7253 = vcombine.high %v6167, %v6321
      %v7255 = vunpack.c.l.s4 1983009808
      %v7256 = vunpack.c.0.s8 %v7255
      %v7257 = vlaneseq
      %v7258 = vshrl.u32 %v7257, 7
      %v7259 = vsub.s32 %v7256, %v7258
      %v7260 = vrot.slane %v7252, %v7259
      %v7262 = vunpack.c.l.s4 1983009808
      %v7263 = vunpack.c.0.s8 %v7262
      %v7264 = vlaneseq
      %v7265 = vshrl.u32 %v7264, 7
      %v7266 = vsub.s32 %v7263, %v7265
      %v7267 = vrot.slane %v7253, %v7266
      %v7268 = vcombine.low %v6244, %v6398
      %v7269 = vcombine.high %v6244, %v6398
      %v7271 = vunpack.c.l.s4 1983009808
      %v7272 = vunpack.c.0.s8 %v7271
      %v7273 = vlaneseq
      %v7274 = vshrl.u32 %v7273, 7
      %v7275 = vsub.s32 %v7272, %v7274
      %v7276 = vrot.slane %v7268, %v7275
      %v7278 = vunpack.c.l.s4 1983009808
      %v7279 = vunpack.c.0.s8 %v7278
      %v7280 = vlaneseq
      %v7281 = vshrl.u32 %v7280, 7
      %v7282 = vsub.s32 %v7279, %v7281
      %v7283 = vrot.slane %v7269, %v7282
      %v7284 = vcombine.low %v7228, %v7244
      %v7285 = vcombine.high %v7228, %v7244
      %v7287 = vunpack.c.l.s4 1934713408
      %v7288 = vunpack.c.0.s8 %v7287
      %v7289 = vlaneseq
      %v7290 = vshrl.u32 %v7289, 7
      %v7291 = vsub.s32 %v7288, %v7290
      %v7292 = vrot.slane %v7284, %v7291
      %v7294 = vunpack.c.l.s4 1934713408
      %v7295 = vunpack.c.0.s8 %v7294
      %v7296 = vlaneseq
      %v7297 = vshrl.u32 %v7296, 7
      %v7298 = vsub.s32 %v7295, %v7297
      %v7299 = vrot.slane %v7285, %v7298
      %v7300 = vcombine.low %v7235, %v7251
      %v7301 = vcombine.high %v7235, %v7251
      %v7303 = vunpack.c.l.s4 1934713408
      %v7304 = vunpack.c.0.s8 %v7303
      %v7305 = vlaneseq
      %v7306 = vshrl.u32 %v7305, 7
      %v7307 = vsub.s32 %v7304, %v7306
      %v7308 = vrot.slane %v7300, %v7307
      %v7310 = vunpack.c.l.s4 1934713408
      %v7311 = vunpack.c.0.s8 %v7310
      %v7312 = vlaneseq
      %v7313 = vshrl.u32 %v7312, 7
      %v7314 = vsub.s32 %v7311, %v7313
      %v7315 = vrot.slane %v7301, %v7314
      %v7316 = vcombine.low %v7260, %v7276
      %v7317 = vcombine.high %v7260, %v7276
      %v7319 = vunpack.c.l.s4 1934713408
      %v7320 = vunpack.c.0.s8 %v7319
      %v7321 = vlaneseq
      %v7322 = vshrl.u32 %v7321, 7
      %v7323 = vsub.s32 %v7320, %v7322
      %v7324 = vrot.slane %v7316, %v7323
      %v7326 = vunpack.c.l.s4 1934713408
      %v7327 = vunpack.c.0.s8 %v7326
      %v7328 = vlaneseq
      %v7329 = vshrl.u32 %v7328, 7
      %v7330 = vsub.s32 %v7327, %v7329
      %v7331 = vrot.slane %v7317, %v7330
      %v7332 = vcombine.low %v7267, %v7283
      %v7333 = vcombine.high %v7267, %v7283
      %v7335 = vunpack.c.l.s4 1934713408
      %v7336 = vunpack.c.0.s8 %v7335
      %v7337 = vlaneseq
      %v7338 = vshrl.u32 %v7337, 7
      %v7339 = vsub.s32 %v7336, %v7338
      %v7340 = vrot.slane %v7332, %v7339
      %v7342 = vunpack.c.l.s4 1934713408
      %v7343 = vunpack.c.0.s8 %v7342
      %v7344 = vlaneseq
      %v7345 = vshrl.u32 %v7344, 7
      %v7346 = vsub.s32 %v7343, %v7345
      %v7347 = vrot.slane %v7333, %v7346
      %v7348 = vcombine.low %v7292, %v7324
      %v7349 = vcombine.high %v7292, %v7324
      %v7350 = vcombine.low %v7299, %v7331
      %v7351 = vcombine.high %v7299, %v7331
      %v7352 = vcombine.low %v7308, %v7340
      %v7353 = vcombine.high %v7308, %v7340
      %v7354 = vcombine.low %v7315, %v7347
      %v7355 = vcombine.high %v7315, %v7347
      %v7356 = vcombine.low %v5862, %v6016
      %v7357 = vcombine.high %v5862, %v6016
      %v7359 = vunpack.c.l.s4 1983009808
      %v7360 = vunpack.c.0.s8 %v7359
      %v7361 = vlaneseq
      %v7362 = vshrl.u32 %v7361, 7
      %v7363 = vsub.s32 %v7360, %v7362
      %v7364 = vrot.slane %v7356, %v7363
      %v7366 = vunpack.c.l.s4 1983009808
      %v7367 = vunpack.c.0.s8 %v7366
      %v7368 = vlaneseq
      %v7369 = vshrl.u32 %v7368, 7
      %v7370 = vsub.s32 %v7367, %v7369
      %v7371 = vrot.slane %v7357, %v7370
      %v7372 = vcombine.low %v5939, %v6093
      %v7373 = vcombine.high %v5939, %v6093
      %v7375 = vunpack.c.l.s4 1983009808
      %v7376 = vunpack.c.0.s8 %v7375
      %v7377 = vlaneseq
      %v7378 = vshrl.u32 %v7377, 7
      %v7379 = vsub.s32 %v7376, %v7378
      %v7380 = vrot.slane %v7372, %v7379
      %v7382 = vunpack.c.l.s4 1983009808
      %v7383 = vunpack.c.0.s8 %v7382
      %v7384 = vlaneseq
      %v7385 = vshrl.u32 %v7384, 7
      %v7386 = vsub.s32 %v7383, %v7385
      %v7387 = vrot.slane %v7373, %v7386
      %v7388 = vcombine.low %v6170, %v6324
      %v7389 = vcombine.high %v6170, %v6324
      %v7391 = vunpack.c.l.s4 1983009808
      %v7392 = vunpack.c.0.s8 %v7391
      %v7393 = vlaneseq
      %v7394 = vshrl.u32 %v7393, 7
      %v7395 = vsub.s32 %v7392, %v7394
      %v7396 = vrot.slane %v7388, %v7395
      %v7398 = vunpack.c.l.s4 1983009808
      %v7399 = vunpack.c.0.s8 %v7398
      %v7400 = vlaneseq
      %v7401 = vshrl.u32 %v7400, 7
      %v7402 = vsub.s32 %v7399, %v7401
      %v7403 = vrot.slane %v7389, %v7402
      %v7404 = vcombine.low %v6247, %v6401
      %v7405 = vcombine.high %v6247, %v6401
      %v7407 = vunpack.c.l.s4 1983009808
      %v7408 = vunpack.c.0.s8 %v7407
      %v7409 = vlaneseq
      %v7410 = vshrl.u32 %v7409, 7
      %v7411 = vsub.s32 %v7408, %v7410
      %v7412 = vrot.slane %v7404, %v7411
      %v7414 = vunpack.c.l.s4 1983009808
      %v7415 = vunpack.c.0.s8 %v7414
      %v7416 = vlaneseq
      %v7417 = vshrl.u32 %v7416, 7
      %v7418 = vsub.s32 %v7415, %v7417
      %v7419 = vrot.slane %v7405, %v7418
      %v7420 = vcombine.low %v7364, %v7380
      %v7421 = vcombine.high %v7364, %v7380
      %v7423 = vunpack.c.l.s4 1934713408
      %v7424 = vunpack.c.0.s8 %v7423
      %v7425 = vlaneseq
      %v7426 = vshrl.u32 %v7425, 7
      %v7427 = vsub.s32 %v7424, %v7426
      %v7428 = vrot.slane %v7420, %v7427
      %v7430 = vunpack.c.l.s4 1934713408
      %v7431 = vunpack.c.0.s8 %v7430
      %v7432 = vlaneseq
      %v7433 = vshrl.u32 %v7432, 7
      %v7434 = vsub.s32 %v7431, %v7433
      %v7435 = vrot.slane %v7421, %v7434
      %v7436 = vcombine.low %v7371, %v7387
      %v7437 = vcombine.high %v7371, %v7387
      %v7439 = vunpack.c.l.s4 1934713408
      %v7440 = vunpack.c.0.s8 %v7439
      %v7441 = vlaneseq
      %v7442 = vshrl.u32 %v7441, 7
      %v7443 = vsub.s32 %v7440, %v7442
      %v7444 = vrot.slane %v7436, %v7443
      %v7446 = vunpack.c.l.s4 1934713408
      %v7447 = vunpack.c.0.s8 %v7446
      %v7448 = vlaneseq
      %v7449 = vshrl.u32 %v7448, 7
      %v7450 = vsub.s32 %v7447, %v7449
      %v7451 = vrot.slane %v7437, %v7450
      %v7452 = vcombine.low %v7396, %v7412
      %v7453 = vcombine.high %v7396, %v7412
      %v7455 = vunpack.c.l.s4 1934713408
      %v7456 = vunpack.c.0.s8 %v7455
      %v7457 = vlaneseq
      %v7458 = vshrl.u32 %v7457, 7
      %v7459 = vsub.s32 %v7456, %v7458
      %v7460 = vrot.slane %v7452, %v7459
      %v7462 = vunpack.c.l.s4 1934713408
      %v7463 = vunpack.c.0.s8 %v7462
      %v7464 = vlaneseq
      %v7465 = vshrl.u32 %v7464, 7
      %v7466 = vsub.s32 %v7463, %v7465
      %v7467 = vrot.slane %v7453, %v7466
      %v7468 = vcombine.low %v7403, %v7419
      %v7469 = vcombine.high %v7403, %v7419
      %v7471 = vunpack.c.l.s4 1934713408
      %v7472 = vunpack.c.0.s8 %v7471
      %v7473 = vlaneseq
      %v7474 = vshrl.u32 %v7473, 7
      %v7475 = vsub.s32 %v7472, %v7474
      %v7476 = vrot.slane %v7468, %v7475
      %v7478 = vunpack.c.l.s4 1934713408
      %v7479 = vunpack.c.0.s8 %v7478
      %v7480 = vlaneseq
      %v7481 = vshrl.u32 %v7480, 7
      %v7482 = vsub.s32 %v7479, %v7481
      %v7483 = vrot.slane %v7469, %v7482
      %v7484 = vcombine.low %v7428, %v7460
      %v7485 = vcombine.high %v7428, %v7460
      %v7486 = vcombine.low %v7435, %v7467
      %v7487 = vcombine.high %v7435, %v7467
      %v7488 = vcombine.low %v7444, %v7476
      %v7489 = vcombine.high %v7444, %v7476
      %v7490 = vcombine.low %v7451, %v7483
      %v7491 = vcombine.high %v7451, %v7483
      %v7492 = vcombine.low %v6532, %v6534
      %v7493 = vcombine.high %v6532, %v6534
      %v7495 = vunpack.c.l.s4 1983009808
      %v7496 = vunpack.c.0.s8 %v7495
      %v7497 = vlaneseq
      %v7498 = vshrl.u32 %v7497, 7
      %v7499 = vsub.s32 %v7496, %v7498
      %v7500 = vrot.slane %v7492, %v7499
      %v7502 = vunpack.c.l.s4 1983009808
      %v7503 = vunpack.c.0.s8 %v7502
      %v7504 = vlaneseq
      %v7505 = vshrl.u32 %v7504, 7
      %v7506 = vsub.s32 %v7503, %v7505
      %v7507 = vrot.slane %v7493, %v7506
      %v7508 = vcombine.low %v6533, %v6535
      %v7509 = vcombine.high %v6533, %v6535
      %v7511 = vunpack.c.l.s4 1983009808
      %v7512 = vunpack.c.0.s8 %v7511
      %v7513 = vlaneseq
      %v7514 = vshrl.u32 %v7513, 7
      %v7515 = vsub.s32 %v7512, %v7514
      %v7516 = vrot.slane %v7508, %v7515
      %v7518 = vunpack.c.l.s4 1983009808
      %v7519 = vunpack.c.0.s8 %v7518
      %v7520 = vlaneseq
      %v7521 = vshrl.u32 %v7520, 7
      %v7522 = vsub.s32 %v7519, %v7521
      %v7523 = vrot.slane %v7509, %v7522
      %v7524 = vcombine.low %v6536, %v6538
      %v7525 = vcombine.high %v6536, %v6538
      %v7527 = vunpack.c.l.s4 1983009808
      %v7528 = vunpack.c.0.s8 %v7527
      %v7529 = vlaneseq
      %v7530 = vshrl.u32 %v7529, 7
      %v7531 = vsub.s32 %v7528, %v7530
      %v7532 = vrot.slane %v7524, %v7531
      %v7534 = vunpack.c.l.s4 1983009808
      %v7535 = vunpack.c.0.s8 %v7534
      %v7536 = vlaneseq
      %v7537 = vshrl.u32 %v7536, 7
      %v7538 = vsub.s32 %v7535, %v7537
      %v7539 = vrot.slane %v7525, %v7538
      %v7540 = vcombine.low %v6537, %v6539
      %v7541 = vcombine.high %v6537, %v6539
      %v7543 = vunpack.c.l.s4 1983009808
      %v7544 = vunpack.c.0.s8 %v7543
      %v7545 = vlaneseq
      %v7546 = vshrl.u32 %v7545, 7
      %v7547 = vsub.s32 %v7544, %v7546
      %v7548 = vrot.slane %v7540, %v7547
      %v7550 = vunpack.c.l.s4 1983009808
      %v7551 = vunpack.c.0.s8 %v7550
      %v7552 = vlaneseq
      %v7553 = vshrl.u32 %v7552, 7
      %v7554 = vsub.s32 %v7551, %v7553
      %v7555 = vrot.slane %v7541, %v7554
      %v7556 = vcombine.low %v7500, %v7516
      %v7557 = vcombine.high %v7500, %v7516
      %v7559 = vunpack.c.l.s4 1934713408
      %v7560 = vunpack.c.0.s8 %v7559
      %v7561 = vlaneseq
      %v7562 = vshrl.u32 %v7561, 7
      %v7563 = vsub.s32 %v7560, %v7562
      %v7564 = vrot.slane %v7556, %v7563
      %v7566 = vunpack.c.l.s4 1934713408
      %v7567 = vunpack.c.0.s8 %v7566
      %v7568 = vlaneseq
      %v7569 = vshrl.u32 %v7568, 7
      %v7570 = vsub.s32 %v7567, %v7569
      %v7571 = vrot.slane %v7557, %v7570
      %v7572 = vcombine.low %v7507, %v7523
      %v7573 = vcombine.high %v7507, %v7523
      %v7575 = vunpack.c.l.s4 1934713408
      %v7576 = vunpack.c.0.s8 %v7575
      %v7577 = vlaneseq
      %v7578 = vshrl.u32 %v7577, 7
      %v7579 = vsub.s32 %v7576, %v7578
      %v7580 = vrot.slane %v7572, %v7579
      %v7582 = vunpack.c.l.s4 1934713408
      %v7583 = vunpack.c.0.s8 %v7582
      %v7584 = vlaneseq
      %v7585 = vshrl.u32 %v7584, 7
      %v7586 = vsub.s32 %v7583, %v7585
      %v7587 = vrot.slane %v7573, %v7586
      %v7588 = vcombine.low %v7532, %v7548
      %v7589 = vcombine.high %v7532, %v7548
      %v7591 = vunpack.c.l.s4 1934713408
      %v7592 = vunpack.c.0.s8 %v7591
      %v7593 = vlaneseq
      %v7594 = vshrl.u32 %v7593, 7
      %v7595 = vsub.s32 %v7592, %v7594
      %v7596 = vrot.slane %v7588, %v7595
      %v7598 = vunpack.c.l.s4 1934713408
      %v7599 = vunpack.c.0.s8 %v7598
      %v7600 = vlaneseq
      %v7601 = vshrl.u32 %v7600, 7
      %v7602 = vsub.s32 %v7599, %v7601
      %v7603 = vrot.slane %v7589, %v7602
      %v7604 = vcombine.low %v7539, %v7555
      %v7605 = vcombine.high %v7539, %v7555
      %v7607 = vunpack.c.l.s4 1934713408
      %v7608 = vunpack.c.0.s8 %v7607
      %v7609 = vlaneseq
      %v7610 = vshrl.u32 %v7609, 7
      %v7611 = vsub.s32 %v7608, %v7610
      %v7612 = vrot.slane %v7604, %v7611
      %v7614 = vunpack.c.l.s4 1934713408
      %v7615 = vunpack.c.0.s8 %v7614
      %v7616 = vlaneseq
      %v7617 = vshrl.u32 %v7616, 7
      %v7618 = vsub.s32 %v7615, %v7617
      %v7619 = vrot.slane %v7605, %v7618
      %v7620 = vcombine.low %v7564, %v7596
      %v7621 = vcombine.high %v7564, %v7596
      %v7622 = vcombine.low %v7571, %v7603
      %v7623 = vcombine.high %v7571, %v7603
      %v7624 = vcombine.low %v7580, %v7612
      %v7625 = vcombine.high %v7580, %v7612
      %v7626 = vcombine.low %v7587, %v7619
      %v7627 = vcombine.high %v7587, %v7619
      %v7628 = vcombine.low %v6668, %v6670
      %v7629 = vcombine.high %v6668, %v6670
      %v7631 = vunpack.c.l.s4 1983009808
      %v7632 = vunpack.c.0.s8 %v7631
      %v7633 = vlaneseq
      %v7634 = vshrl.u32 %v7633, 7
      %v7635 = vsub.s32 %v7632, %v7634
      %v7636 = vrot.slane %v7628, %v7635
      %v7638 = vunpack.c.l.s4 1983009808
      %v7639 = vunpack.c.0.s8 %v7638
      %v7640 = vlaneseq
      %v7641 = vshrl.u32 %v7640, 7
      %v7642 = vsub.s32 %v7639, %v7641
      %v7643 = vrot.slane %v7629, %v7642
      %v7644 = vcombine.low %v6669, %v6671
      %v7645 = vcombine.high %v6669, %v6671
      %v7647 = vunpack.c.l.s4 1983009808
      %v7648 = vunpack.c.0.s8 %v7647
      %v7649 = vlaneseq
      %v7650 = vshrl.u32 %v7649, 7
      %v7651 = vsub.s32 %v7648, %v7650
      %v7652 = vrot.slane %v7644, %v7651
      %v7654 = vunpack.c.l.s4 1983009808
      %v7655 = vunpack.c.0.s8 %v7654
      %v7656 = vlaneseq
      %v7657 = vshrl.u32 %v7656, 7
      %v7658 = vsub.s32 %v7655, %v7657
      %v7659 = vrot.slane %v7645, %v7658
      %v7660 = vcombine.low %v6672, %v6674
      %v7661 = vcombine.high %v6672, %v6674
      %v7663 = vunpack.c.l.s4 1983009808
      %v7664 = vunpack.c.0.s8 %v7663
      %v7665 = vlaneseq
      %v7666 = vshrl.u32 %v7665, 7
      %v7667 = vsub.s32 %v7664, %v7666
      %v7668 = vrot.slane %v7660, %v7667
      %v7670 = vunpack.c.l.s4 1983009808
      %v7671 = vunpack.c.0.s8 %v7670
      %v7672 = vlaneseq
      %v7673 = vshrl.u32 %v7672, 7
      %v7674 = vsub.s32 %v7671, %v7673
      %v7675 = vrot.slane %v7661, %v7674
      %v7676 = vcombine.low %v6673, %v6675
      %v7677 = vcombine.high %v6673, %v6675
      %v7679 = vunpack.c.l.s4 1983009808
      %v7680 = vunpack.c.0.s8 %v7679
      %v7681 = vlaneseq
      %v7682 = vshrl.u32 %v7681, 7
      %v7683 = vsub.s32 %v7680, %v7682
      %v7684 = vrot.slane %v7676, %v7683
      %v7686 = vunpack.c.l.s4 1983009808
      %v7687 = vunpack.c.0.s8 %v7686
      %v7688 = vlaneseq
      %v7689 = vshrl.u32 %v7688, 7
      %v7690 = vsub.s32 %v7687, %v7689
      %v7691 = vrot.slane %v7677, %v7690
      %v7692 = vcombine.low %v7636, %v7652
      %v7693 = vcombine.high %v7636, %v7652
      %v7695 = vunpack.c.l.s4 1934713408
      %v7696 = vunpack.c.0.s8 %v7695
      %v7697 = vlaneseq
      %v7698 = vshrl.u32 %v7697, 7
      %v7699 = vsub.s32 %v7696, %v7698
      %v7700 = vrot.slane %v7692, %v7699
      %v7702 = vunpack.c.l.s4 1934713408
      %v7703 = vunpack.c.0.s8 %v7702
      %v7704 = vlaneseq
      %v7705 = vshrl.u32 %v7704, 7
      %v7706 = vsub.s32 %v7703, %v7705
      %v7707 = vrot.slane %v7693, %v7706
      %v7708 = vcombine.low %v7643, %v7659
      %v7709 = vcombine.high %v7643, %v7659
      %v7711 = vunpack.c.l.s4 1934713408
      %v7712 = vunpack.c.0.s8 %v7711
      %v7713 = vlaneseq
      %v7714 = vshrl.u32 %v7713, 7
      %v7715 = vsub.s32 %v7712, %v7714
      %v7716 = vrot.slane %v7708, %v7715
      %v7718 = vunpack.c.l.s4 1934713408
      %v7719 = vunpack.c.0.s8 %v7718
      %v7720 = vlaneseq
      %v7721 = vshrl.u32 %v7720, 7
      %v7722 = vsub.s32 %v7719, %v7721
      %v7723 = vrot.slane %v7709, %v7722
      %v7724 = vcombine.low %v7668, %v7684
      %v7725 = vcombine.high %v7668, %v7684
      %v7727 = vunpack.c.l.s4 1934713408
      %v7728 = vunpack.c.0.s8 %v7727
      %v7729 = vlaneseq
      %v7730 = vshrl.u32 %v7729, 7
      %v7731 = vsub.s32 %v7728, %v7730
      %v7732 = vrot.slane %v7724, %v7731
      %v7734 = vunpack.c.l.s4 1934713408
      %v7735 = vunpack.c.0.s8 %v7734
      %v7736 = vlaneseq
      %v7737 = vshrl.u32 %v7736, 7
      %v7738 = vsub.s32 %v7735, %v7737
      %v7739 = vrot.slane %v7725, %v7738
      %v7740 = vcombine.low %v7675, %v7691
      %v7741 = vcombine.high %v7675, %v7691
      %v7743 = vunpack.c.l.s4 1934713408
      %v7744 = vunpack.c.0.s8 %v7743
      %v7745 = vlaneseq
      %v7746 = vshrl.u32 %v7745, 7
      %v7747 = vsub.s32 %v7744, %v7746
      %v7748 = vrot.slane %v7740, %v7747
      %v7750 = vunpack.c.l.s4 1934713408
      %v7751 = vunpack.c.0.s8 %v7750
      %v7752 = vlaneseq
      %v7753 = vshrl.u32 %v7752, 7
      %v7754 = vsub.s32 %v7751, %v7753
      %v7755 = vrot.slane %v7741, %v7754
      %v7756 = vcombine.low %v7700, %v7732
      %v7757 = vcombine.high %v7700, %v7732
      %v7758 = vcombine.low %v7707, %v7739
      %v7759 = vcombine.high %v7707, %v7739
      %v7760 = vcombine.low %v7716, %v7748
      %v7761 = vcombine.high %v7716, %v7748
      %v7762 = vcombine.low %v7723, %v7755
      %v7763 = vcombine.high %v7723, %v7755
      %v7764 = vcombine.low %v6804, %v6806
      %v7765 = vcombine.high %v6804, %v6806
      %v7767 = vunpack.c.l.s4 1983009808
      %v7768 = vunpack.c.0.s8 %v7767
      %v7769 = vlaneseq
      %v7770 = vshrl.u32 %v7769, 7
      %v7771 = vsub.s32 %v7768, %v7770
      %v7772 = vrot.slane %v7764, %v7771
      %v7774 = vunpack.c.l.s4 1983009808
      %v7775 = vunpack.c.0.s8 %v7774
      %v7776 = vlaneseq
      %v7777 = vshrl.u32 %v7776, 7
      %v7778 = vsub.s32 %v7775, %v7777
      %v7779 = vrot.slane %v7765, %v7778
      %v7780 = vcombine.low %v6805, %v6807
      %v7781 = vcombine.high %v6805, %v6807
      %v7783 = vunpack.c.l.s4 1983009808
      %v7784 = vunpack.c.0.s8 %v7783
      %v7785 = vlaneseq
      %v7786 = vshrl.u32 %v7785, 7
      %v7787 = vsub.s32 %v7784, %v7786
      %v7788 = vrot.slane %v7780, %v7787
      %v7790 = vunpack.c.l.s4 1983009808
      %v7791 = vunpack.c.0.s8 %v7790
      %v7792 = vlaneseq
      %v7793 = vshrl.u32 %v7792, 7
      %v7794 = vsub.s32 %v7791, %v7793
      %v7795 = vrot.slane %v7781, %v7794
      %v7796 = vcombine.low %v6808, %v6810
      %v7797 = vcombine.high %v6808, %v6810
      %v7799 = vunpack.c.l.s4 1983009808
      %v7800 = vunpack.c.0.s8 %v7799
      %v7801 = vlaneseq
      %v7802 = vshrl.u32 %v7801, 7
      %v7803 = vsub.s32 %v7800, %v7802
      %v7804 = vrot.slane %v7796, %v7803
      %v7806 = vunpack.c.l.s4 1983009808
      %v7807 = vunpack.c.0.s8 %v7806
      %v7808 = vlaneseq
      %v7809 = vshrl.u32 %v7808, 7
      %v7810 = vsub.s32 %v7807, %v7809
      %v7811 = vrot.slane %v7797, %v7810
      %v7812 = vcombine.low %v6809, %v6811
      %v7813 = vcombine.high %v6809, %v6811
      %v7815 = vunpack.c.l.s4 1983009808
      %v7816 = vunpack.c.0.s8 %v7815
      %v7817 = vlaneseq
      %v7818 = vshrl.u32 %v7817, 7
      %v7819 = vsub.s32 %v7816, %v7818
      %v7820 = vrot.slane %v7812, %v7819
      %v7822 = vunpack.c.l.s4 1983009808
      %v7823 = vunpack.c.0.s8 %v7822
      %v7824 = vlaneseq
      %v7825 = vshrl.u32 %v7824, 7
      %v7826 = vsub.s32 %v7823, %v7825
      %v7827 = vrot.slane %v7813, %v7826
      %v7828 = vcombine.low %v7772, %v7788
      %v7829 = vcombine.high %v7772, %v7788
      %v7831 = vunpack.c.l.s4 1934713408
      %v7832 = vunpack.c.0.s8 %v7831
      %v7833 = vlaneseq
      %v7834 = vshrl.u32 %v7833, 7
      %v7835 = vsub.s32 %v7832, %v7834
      %v7836 = vrot.slane %v7828, %v7835
      %v7838 = vunpack.c.l.s4 1934713408
      %v7839 = vunpack.c.0.s8 %v7838
      %v7840 = vlaneseq
      %v7841 = vshrl.u32 %v7840, 7
      %v7842 = vsub.s32 %v7839, %v7841
      %v7843 = vrot.slane %v7829, %v7842
      %v7844 = vcombine.low %v7779, %v7795
      %v7845 = vcombine.high %v7779, %v7795
      %v7847 = vunpack.c.l.s4 1934713408
      %v7848 = vunpack.c.0.s8 %v7847
      %v7849 = vlaneseq
      %v7850 = vshrl.u32 %v7849, 7
      %v7851 = vsub.s32 %v7848, %v7850
      %v7852 = vrot.slane %v7844, %v7851
      %v7854 = vunpack.c.l.s4 1934713408
      %v7855 = vunpack.c.0.s8 %v7854
      %v7856 = vlaneseq
      %v7857 = vshrl.u32 %v7856, 7
      %v7858 = vsub.s32 %v7855, %v7857
      %v7859 = vrot.slane %v7845, %v7858
      %v7860 = vcombine.low %v7804, %v7820
      %v7861 = vcombine.high %v7804, %v7820
      %v7863 = vunpack.c.l.s4 1934713408
      %v7864 = vunpack.c.0.s8 %v7863
      %v7865 = vlaneseq
      %v7866 = vshrl.u32 %v7865, 7
      %v7867 = vsub.s32 %v7864, %v7866
      %v7868 = vrot.slane %v7860, %v7867
      %v7870 = vunpack.c.l.s4 1934713408
      %v7871 = vunpack.c.0.s8 %v7870
      %v7872 = vlaneseq
      %v7873 = vshrl.u32 %v7872, 7
      %v7874 = vsub.s32 %v7871, %v7873
      %v7875 = vrot.slane %v7861, %v7874
      %v7876 = vcombine.low %v7811, %v7827
      %v7877 = vcombine.high %v7811, %v7827
      %v7879 = vunpack.c.l.s4 1934713408
      %v7880 = vunpack.c.0.s8 %v7879
      %v7881 = vlaneseq
      %v7882 = vshrl.u32 %v7881, 7
      %v7883 = vsub.s32 %v7880, %v7882
      %v7884 = vrot.slane %v7876, %v7883
      %v7886 = vunpack.c.l.s4 1934713408
      %v7887 = vunpack.c.0.s8 %v7886
      %v7888 = vlaneseq
      %v7889 = vshrl.u32 %v7888, 7
      %v7890 = vsub.s32 %v7887, %v7889
      %v7891 = vrot.slane %v7877, %v7890
      %v7892 = vcombine.low %v7836, %v7868
      %v7893 = vcombine.high %v7836, %v7868
      %v7894 = vcombine.low %v7843, %v7875
      %v7895 = vcombine.high %v7843, %v7875
      %v7896 = vcombine.low %v7852, %v7884
      %v7897 = vcombine.high %v7852, %v7884
      %v7898 = vcombine.low %v7859, %v7891
      %v7899 = vcombine.high %v7859, %v7891
      %v7900 = vcombine.low %v6940, %v6942
      %v7901 = vcombine.high %v6940, %v6942
      %v7903 = vunpack.c.l.s4 1983009808
      %v7904 = vunpack.c.0.s8 %v7903
      %v7905 = vlaneseq
      %v7906 = vshrl.u32 %v7905, 7
      %v7907 = vsub.s32 %v7904, %v7906
      %v7908 = vrot.slane %v7900, %v7907
      %v7910 = vunpack.c.l.s4 1983009808
      %v7911 = vunpack.c.0.s8 %v7910
      %v7912 = vlaneseq
      %v7913 = vshrl.u32 %v7912, 7
      %v7914 = vsub.s32 %v7911, %v7913
      %v7915 = vrot.slane %v7901, %v7914
      %v7916 = vcombine.low %v6941, %v6943
      %v7917 = vcombine.high %v6941, %v6943
      %v7919 = vunpack.c.l.s4 1983009808
      %v7920 = vunpack.c.0.s8 %v7919
      %v7921 = vlaneseq
      %v7922 = vshrl.u32 %v7921, 7
      %v7923 = vsub.s32 %v7920, %v7922
      %v7924 = vrot.slane %v7916, %v7923
      %v7926 = vunpack.c.l.s4 1983009808
      %v7927 = vunpack.c.0.s8 %v7926
      %v7928 = vlaneseq
      %v7929 = vshrl.u32 %v7928, 7
      %v7930 = vsub.s32 %v7927, %v7929
      %v7931 = vrot.slane %v7917, %v7930
      %v7932 = vcombine.low %v6944, %v6946
      %v7933 = vcombine.high %v6944, %v6946
      %v7935 = vunpack.c.l.s4 1983009808
      %v7936 = vunpack.c.0.s8 %v7935
      %v7937 = vlaneseq
      %v7938 = vshrl.u32 %v7937, 7
      %v7939 = vsub.s32 %v7936, %v7938
      %v7940 = vrot.slane %v7932, %v7939
      %v7942 = vunpack.c.l.s4 1983009808
      %v7943 = vunpack.c.0.s8 %v7942
      %v7944 = vlaneseq
      %v7945 = vshrl.u32 %v7944, 7
      %v7946 = vsub.s32 %v7943, %v7945
      %v7947 = vrot.slane %v7933, %v7946
      %v7948 = vcombine.low %v6945, %v6947
      %v7949 = vcombine.high %v6945, %v6947
      %v7951 = vunpack.c.l.s4 1983009808
      %v7952 = vunpack.c.0.s8 %v7951
      %v7953 = vlaneseq
      %v7954 = vshrl.u32 %v7953, 7
      %v7955 = vsub.s32 %v7952, %v7954
      %v7956 = vrot.slane %v7948, %v7955
      %v7958 = vunpack.c.l.s4 1983009808
      %v7959 = vunpack.c.0.s8 %v7958
      %v7960 = vlaneseq
      %v7961 = vshrl.u32 %v7960, 7
      %v7962 = vsub.s32 %v7959, %v7961
      %v7963 = vrot.slane %v7949, %v7962
      %v7964 = vcombine.low %v7908, %v7924
      %v7965 = vcombine.high %v7908, %v7924
      %v7967 = vunpack.c.l.s4 1934713408
      %v7968 = vunpack.c.0.s8 %v7967
      %v7969 = vlaneseq
      %v7970 = vshrl.u32 %v7969, 7
      %v7971 = vsub.s32 %v7968, %v7970
      %v7972 = vrot.slane %v7964, %v7971
      %v7974 = vunpack.c.l.s4 1934713408
      %v7975 = vunpack.c.0.s8 %v7974
      %v7976 = vlaneseq
      %v7977 = vshrl.u32 %v7976, 7
      %v7978 = vsub.s32 %v7975, %v7977
      %v7979 = vrot.slane %v7965, %v7978
      %v7980 = vcombine.low %v7915, %v7931
      %v7981 = vcombine.high %v7915, %v7931
      %v7983 = vunpack.c.l.s4 1934713408
      %v7984 = vunpack.c.0.s8 %v7983
      %v7985 = vlaneseq
      %v7986 = vshrl.u32 %v7985, 7
      %v7987 = vsub.s32 %v7984, %v7986
      %v7988 = vrot.slane %v7980, %v7987
      %v7990 = vunpack.c.l.s4 1934713408
      %v7991 = vunpack.c.0.s8 %v7990
      %v7992 = vlaneseq
      %v7993 = vshrl.u32 %v7992, 7
      %v7994 = vsub.s32 %v7991, %v7993
      %v7995 = vrot.slane %v7981, %v7994
      %v7996 = vcombine.low %v7940, %v7956
      %v7997 = vcombine.high %v7940, %v7956
      %v7999 = vunpack.c.l.s4 1934713408
      %v8000 = vunpack.c.0.s8 %v7999
      %v8001 = vlaneseq
      %v8002 = vshrl.u32 %v8001, 7
      %v8003 = vsub.s32 %v8000, %v8002
      %v8004 = vrot.slane %v7996, %v8003
      %v8006 = vunpack.c.l.s4 1934713408
      %v8007 = vunpack.c.0.s8 %v8006
      %v8008 = vlaneseq
      %v8009 = vshrl.u32 %v8008, 7
      %v8010 = vsub.s32 %v8007, %v8009
      %v8011 = vrot.slane %v7997, %v8010
      %v8012 = vcombine.low %v7947, %v7963
      %v8013 = vcombine.high %v7947, %v7963
      %v8015 = vunpack.c.l.s4 1934713408
      %v8016 = vunpack.c.0.s8 %v8015
      %v8017 = vlaneseq
      %v8018 = vshrl.u32 %v8017, 7
      %v8019 = vsub.s32 %v8016, %v8018
      %v8020 = vrot.slane %v8012, %v8019
      %v8022 = vunpack.c.l.s4 1934713408
      %v8023 = vunpack.c.0.s8 %v8022
      %v8024 = vlaneseq
      %v8025 = vshrl.u32 %v8024, 7
      %v8026 = vsub.s32 %v8023, %v8025
      %v8027 = vrot.slane %v8013, %v8026
      %v8028 = vcombine.low %v7972, %v8004
      %v8029 = vcombine.high %v7972, %v8004
      %v8030 = vcombine.low %v7979, %v8011
      %v8031 = vcombine.high %v7979, %v8011
      %v8032 = vcombine.low %v7988, %v8020
      %v8033 = vcombine.high %v7988, %v8020
      %v8034 = vcombine.low %v7995, %v8027
      %v8035 = vcombine.high %v7995, %v8027
      %v8036 = vcombine.low %v7076, %v7078
      %v8037 = vcombine.high %v7076, %v7078
      %v8039 = vunpack.c.l.s4 1983009808
      %v8040 = vunpack.c.0.s8 %v8039
      %v8041 = vlaneseq
      %v8042 = vshrl.u32 %v8041, 7
      %v8043 = vsub.s32 %v8040, %v8042
      %v8044 = vrot.slane %v8036, %v8043
      %v8046 = vunpack.c.l.s4 1983009808
      %v8047 = vunpack.c.0.s8 %v8046
      %v8048 = vlaneseq
      %v8049 = vshrl.u32 %v8048, 7
      %v8050 = vsub.s32 %v8047, %v8049
      %v8051 = vrot.slane %v8037, %v8050
      %v8052 = vcombine.low %v7077, %v7079
      %v8053 = vcombine.high %v7077, %v7079
      %v8055 = vunpack.c.l.s4 1983009808
      %v8056 = vunpack.c.0.s8 %v8055
      %v8057 = vlaneseq
      %v8058 = vshrl.u32 %v8057, 7
      %v8059 = vsub.s32 %v8056, %v8058
      %v8060 = vrot.slane %v8052, %v8059
      %v8062 = vunpack.c.l.s4 1983009808
      %v8063 = vunpack.c.0.s8 %v8062
      %v8064 = vlaneseq
      %v8065 = vshrl.u32 %v8064, 7
      %v8066 = vsub.s32 %v8063, %v8065
      %v8067 = vrot.slane %v8053, %v8066
      %v8068 = vcombine.low %v7080, %v7082
      %v8069 = vcombine.high %v7080, %v7082
      %v8071 = vunpack.c.l.s4 1983009808
      %v8072 = vunpack.c.0.s8 %v8071
      %v8073 = vlaneseq
      %v8074 = vshrl.u32 %v8073, 7
      %v8075 = vsub.s32 %v8072, %v8074
      %v8076 = vrot.slane %v8068, %v8075
      %v8078 = vunpack.c.l.s4 1983009808
      %v8079 = vunpack.c.0.s8 %v8078
      %v8080 = vlaneseq
      %v8081 = vshrl.u32 %v8080, 7
      %v8082 = vsub.s32 %v8079, %v8081
      %v8083 = vrot.slane %v8069, %v8082
      %v8084 = vcombine.low %v7081, %v7083
      %v8085 = vcombine.high %v7081, %v7083
      %v8087 = vunpack.c.l.s4 1983009808
      %v8088 = vunpack.c.0.s8 %v8087
      %v8089 = vlaneseq
      %v8090 = vshrl.u32 %v8089, 7
      %v8091 = vsub.s32 %v8088, %v8090
      %v8092 = vrot.slane %v8084, %v8091
      %v8094 = vunpack.c.l.s4 1983009808
      %v8095 = vunpack.c.0.s8 %v8094
      %v8096 = vlaneseq
      %v8097 = vshrl.u32 %v8096, 7
      %v8098 = vsub.s32 %v8095, %v8097
      %v8099 = vrot.slane %v8085, %v8098
      %v8100 = vcombine.low %v8044, %v8060
      %v8101 = vcombine.high %v8044, %v8060
      %v8103 = vunpack.c.l.s4 1934713408
      %v8104 = vunpack.c.0.s8 %v8103
      %v8105 = vlaneseq
      %v8106 = vshrl.u32 %v8105, 7
      %v8107 = vsub.s32 %v8104, %v8106
      %v8108 = vrot.slane %v8100, %v8107
      %v8110 = vunpack.c.l.s4 1934713408
      %v8111 = vunpack.c.0.s8 %v8110
      %v8112 = vlaneseq
      %v8113 = vshrl.u32 %v8112, 7
      %v8114 = vsub.s32 %v8111, %v8113
      %v8115 = vrot.slane %v8101, %v8114
      %v8116 = vcombine.low %v8051, %v8067
      %v8117 = vcombine.high %v8051, %v8067
      %v8119 = vunpack.c.l.s4 1934713408
      %v8120 = vunpack.c.0.s8 %v8119
      %v8121 = vlaneseq
      %v8122 = vshrl.u32 %v8121, 7
      %v8123 = vsub.s32 %v8120, %v8122
      %v8124 = vrot.slane %v8116, %v8123
      %v8126 = vunpack.c.l.s4 1934713408
      %v8127 = vunpack.c.0.s8 %v8126
      %v8128 = vlaneseq
      %v8129 = vshrl.u32 %v8128, 7
      %v8130 = vsub.s32 %v8127, %v8129
      %v8131 = vrot.slane %v8117, %v8130
      %v8132 = vcombine.low %v8076, %v8092
      %v8133 = vcombine.high %v8076, %v8092
      %v8135 = vunpack.c.l.s4 1934713408
      %v8136 = vunpack.c.0.s8 %v8135
      %v8137 = vlaneseq
      %v8138 = vshrl.u32 %v8137, 7
      %v8139 = vsub.s32 %v8136, %v8138
      %v8140 = vrot.slane %v8132, %v8139
      %v8142 = vunpack.c.l.s4 1934713408
      %v8143 = vunpack.c.0.s8 %v8142
      %v8144 = vlaneseq
      %v8145 = vshrl.u32 %v8144, 7
      %v8146 = vsub.s32 %v8143, %v8145
      %v8147 = vrot.slane %v8133, %v8146
      %v8148 = vcombine.low %v8083, %v8099
      %v8149 = vcombine.high %v8083, %v8099
      %v8151 = vunpack.c.l.s4 1934713408
      %v8152 = vunpack.c.0.s8 %v8151
      %v8153 = vlaneseq
      %v8154 = vshrl.u32 %v8153, 7
      %v8155 = vsub.s32 %v8152, %v8154
      %v8156 = vrot.slane %v8148, %v8155
      %v8158 = vunpack.c.l.s4 1934713408
      %v8159 = vunpack.c.0.s8 %v8158
      %v8160 = vlaneseq
      %v8161 = vshrl.u32 %v8160, 7
      %v8162 = vsub.s32 %v8159, %v8161
      %v8163 = vrot.slane %v8149, %v8162
      %v8164 = vcombine.low %v8108, %v8140
      %v8165 = vcombine.high %v8108, %v8140
      %v8166 = vcombine.low %v8115, %v8147
      %v8167 = vcombine.high %v8115, %v8147
      %v8168 = vcombine.low %v8124, %v8156
      %v8169 = vcombine.high %v8124, %v8156
      %v8170 = vcombine.low %v8131, %v8163
      %v8171 = vcombine.high %v8131, %v8163
      %v8172 = vcombine.low %v7212, %v7214
      %v8173 = vcombine.high %v7212, %v7214
      %v8175 = vunpack.c.l.s4 1983009808
      %v8176 = vunpack.c.0.s8 %v8175
      %v8177 = vlaneseq
      %v8178 = vshrl.u32 %v8177, 7
      %v8179 = vsub.s32 %v8176, %v8178
      %v8180 = vrot.slane %v8172, %v8179
      %v8182 = vunpack.c.l.s4 1983009808
      %v8183 = vunpack.c.0.s8 %v8182
      %v8184 = vlaneseq
      %v8185 = vshrl.u32 %v8184, 7
      %v8186 = vsub.s32 %v8183, %v8185
      %v8187 = vrot.slane %v8173, %v8186
      %v8188 = vcombine.low %v7213, %v7215
      %v8189 = vcombine.high %v7213, %v7215
      %v8191 = vunpack.c.l.s4 1983009808
      %v8192 = vunpack.c.0.s8 %v8191
      %v8193 = vlaneseq
      %v8194 = vshrl.u32 %v8193, 7
      %v8195 = vsub.s32 %v8192, %v8194
      %v8196 = vrot.slane %v8188, %v8195
      %v8198 = vunpack.c.l.s4 1983009808
      %v8199 = vunpack.c.0.s8 %v8198
      %v8200 = vlaneseq
      %v8201 = vshrl.u32 %v8200, 7
      %v8202 = vsub.s32 %v8199, %v8201
      %v8203 = vrot.slane %v8189, %v8202
      %v8204 = vcombine.low %v7216, %v7218
      %v8205 = vcombine.high %v7216, %v7218
      %v8207 = vunpack.c.l.s4 1983009808
      %v8208 = vunpack.c.0.s8 %v8207
      %v8209 = vlaneseq
      %v8210 = vshrl.u32 %v8209, 7
      %v8211 = vsub.s32 %v8208, %v8210
      %v8212 = vrot.slane %v8204, %v8211
      %v8214 = vunpack.c.l.s4 1983009808
      %v8215 = vunpack.c.0.s8 %v8214
      %v8216 = vlaneseq
      %v8217 = vshrl.u32 %v8216, 7
      %v8218 = vsub.s32 %v8215, %v8217
      %v8219 = vrot.slane %v8205, %v8218
      %v8220 = vcombine.low %v7217, %v7219
      %v8221 = vcombine.high %v7217, %v7219
      %v8223 = vunpack.c.l.s4 1983009808
      %v8224 = vunpack.c.0.s8 %v8223
      %v8225 = vlaneseq
      %v8226 = vshrl.u32 %v8225, 7
      %v8227 = vsub.s32 %v8224, %v8226
      %v8228 = vrot.slane %v8220, %v8227
      %v8230 = vunpack.c.l.s4 1983009808
      %v8231 = vunpack.c.0.s8 %v8230
      %v8232 = vlaneseq
      %v8233 = vshrl.u32 %v8232, 7
      %v8234 = vsub.s32 %v8231, %v8233
      %v8235 = vrot.slane %v8221, %v8234
      %v8236 = vcombine.low %v8180, %v8196
      %v8237 = vcombine.high %v8180, %v8196
      %v8239 = vunpack.c.l.s4 1934713408
      %v8240 = vunpack.c.0.s8 %v8239
      %v8241 = vlaneseq
      %v8242 = vshrl.u32 %v8241, 7
      %v8243 = vsub.s32 %v8240, %v8242
      %v8244 = vrot.slane %v8236, %v8243
      %v8246 = vunpack.c.l.s4 1934713408
      %v8247 = vunpack.c.0.s8 %v8246
      %v8248 = vlaneseq
      %v8249 = vshrl.u32 %v8248, 7
      %v8250 = vsub.s32 %v8247, %v8249
      %v8251 = vrot.slane %v8237, %v8250
      %v8252 = vcombine.low %v8187, %v8203
      %v8253 = vcombine.high %v8187, %v8203
      %v8255 = vunpack.c.l.s4 1934713408
      %v8256 = vunpack.c.0.s8 %v8255
      %v8257 = vlaneseq
      %v8258 = vshrl.u32 %v8257, 7
      %v8259 = vsub.s32 %v8256, %v8258
      %v8260 = vrot.slane %v8252, %v8259
      %v8262 = vunpack.c.l.s4 1934713408
      %v8263 = vunpack.c.0.s8 %v8262
      %v8264 = vlaneseq
      %v8265 = vshrl.u32 %v8264, 7
      %v8266 = vsub.s32 %v8263, %v8265
      %v8267 = vrot.slane %v8253, %v8266
      %v8268 = vcombine.low %v8212, %v8228
      %v8269 = vcombine.high %v8212, %v8228
      %v8271 = vunpack.c.l.s4 1934713408
      %v8272 = vunpack.c.0.s8 %v8271
      %v8273 = vlaneseq
      %v8274 = vshrl.u32 %v8273, 7
      %v8275 = vsub.s32 %v8272, %v8274
      %v8276 = vrot.slane %v8268, %v8275
      %v8278 = vunpack.c.l.s4 1934713408
      %v8279 = vunpack.c.0.s8 %v8278
      %v8280 = vlaneseq
      %v8281 = vshrl.u32 %v8280, 7
      %v8282 = vsub.s32 %v8279, %v8281
      %v8283 = vrot.slane %v8269, %v8282
      %v8284 = vcombine.low %v8219, %v8235
      %v8285 = vcombine.high %v8219, %v8235
      %v8287 = vunpack.c.l.s4 1934713408
      %v8288 = vunpack.c.0.s8 %v8287
      %v8289 = vlaneseq
      %v8290 = vshrl.u32 %v8289, 7
      %v8291 = vsub.s32 %v8288, %v8290
      %v8292 = vrot.slane %v8284, %v8291
      %v8294 = vunpack.c.l.s4 1934713408
      %v8295 = vunpack.c.0.s8 %v8294
      %v8296 = vlaneseq
      %v8297 = vshrl.u32 %v8296, 7
      %v8298 = vsub.s32 %v8295, %v8297
      %v8299 = vrot.slane %v8285, %v8298
      %v8300 = vcombine.low %v8244, %v8276
      %v8301 = vcombine.high %v8244, %v8276
      %v8302 = vcombine.low %v8251, %v8283
      %v8303 = vcombine.high %v8251, %v8283
      %v8304 = vcombine.low %v8260, %v8292
      %v8305 = vcombine.high %v8260, %v8292
      %v8306 = vcombine.low %v8267, %v8299
      %v8307 = vcombine.high %v8267, %v8299
      %v8308 = vcombine.low %v7348, %v7350
      %v8309 = vcombine.high %v7348, %v7350
      %v8311 = vunpack.c.l.s4 1983009808
      %v8312 = vunpack.c.0.s8 %v8311
      %v8313 = vlaneseq
      %v8314 = vshrl.u32 %v8313, 7
      %v8315 = vsub.s32 %v8312, %v8314
      %v8316 = vrot.slane %v8308, %v8315
      %v8318 = vunpack.c.l.s4 1983009808
      %v8319 = vunpack.c.0.s8 %v8318
      %v8320 = vlaneseq
      %v8321 = vshrl.u32 %v8320, 7
      %v8322 = vsub.s32 %v8319, %v8321
      %v8323 = vrot.slane %v8309, %v8322
      %v8324 = vcombine.low %v7349, %v7351
      %v8325 = vcombine.high %v7349, %v7351
      %v8327 = vunpack.c.l.s4 1983009808
      %v8328 = vunpack.c.0.s8 %v8327
      %v8329 = vlaneseq
      %v8330 = vshrl.u32 %v8329, 7
      %v8331 = vsub.s32 %v8328, %v8330
      %v8332 = vrot.slane %v8324, %v8331
      %v8334 = vunpack.c.l.s4 1983009808
      %v8335 = vunpack.c.0.s8 %v8334
      %v8336 = vlaneseq
      %v8337 = vshrl.u32 %v8336, 7
      %v8338 = vsub.s32 %v8335, %v8337
      %v8339 = vrot.slane %v8325, %v8338
      %v8340 = vcombine.low %v7352, %v7354
      %v8341 = vcombine.high %v7352, %v7354
      %v8343 = vunpack.c.l.s4 1983009808
      %v8344 = vunpack.c.0.s8 %v8343
      %v8345 = vlaneseq
      %v8346 = vshrl.u32 %v8345, 7
      %v8347 = vsub.s32 %v8344, %v8346
      %v8348 = vrot.slane %v8340, %v8347
      %v8350 = vunpack.c.l.s4 1983009808
      %v8351 = vunpack.c.0.s8 %v8350
      %v8352 = vlaneseq
      %v8353 = vshrl.u32 %v8352, 7
      %v8354 = vsub.s32 %v8351, %v8353
      %v8355 = vrot.slane %v8341, %v8354
      %v8356 = vcombine.low %v7353, %v7355
      %v8357 = vcombine.high %v7353, %v7355
      %v8359 = vunpack.c.l.s4 1983009808
      %v8360 = vunpack.c.0.s8 %v8359
      %v8361 = vlaneseq
      %v8362 = vshrl.u32 %v8361, 7
      %v8363 = vsub.s32 %v8360, %v8362
      %v8364 = vrot.slane %v8356, %v8363
      %v8366 = vunpack.c.l.s4 1983009808
      %v8367 = vunpack.c.0.s8 %v8366
      %v8368 = vlaneseq
      %v8369 = vshrl.u32 %v8368, 7
      %v8370 = vsub.s32 %v8367, %v8369
      %v8371 = vrot.slane %v8357, %v8370
      %v8372 = vcombine.low %v8316, %v8332
      %v8373 = vcombine.high %v8316, %v8332
      %v8375 = vunpack.c.l.s4 1934713408
      %v8376 = vunpack.c.0.s8 %v8375
      %v8377 = vlaneseq
      %v8378 = vshrl.u32 %v8377, 7
      %v8379 = vsub.s32 %v8376, %v8378
      %v8380 = vrot.slane %v8372, %v8379
      %v8382 = vunpack.c.l.s4 1934713408
      %v8383 = vunpack.c.0.s8 %v8382
      %v8384 = vlaneseq
      %v8385 = vshrl.u32 %v8384, 7
      %v8386 = vsub.s32 %v8383, %v8385
      %v8387 = vrot.slane %v8373, %v8386
      %v8388 = vcombine.low %v8323, %v8339
      %v8389 = vcombine.high %v8323, %v8339
      %v8391 = vunpack.c.l.s4 1934713408
      %v8392 = vunpack.c.0.s8 %v8391
      %v8393 = vlaneseq
      %v8394 = vshrl.u32 %v8393, 7
      %v8395 = vsub.s32 %v8392, %v8394
      %v8396 = vrot.slane %v8388, %v8395
      %v8398 = vunpack.c.l.s4 1934713408
      %v8399 = vunpack.c.0.s8 %v8398
      %v8400 = vlaneseq
      %v8401 = vshrl.u32 %v8400, 7
      %v8402 = vsub.s32 %v8399, %v8401
      %v8403 = vrot.slane %v8389, %v8402
      %v8404 = vcombine.low %v8348, %v8364
      %v8405 = vcombine.high %v8348, %v8364
      %v8407 = vunpack.c.l.s4 1934713408
      %v8408 = vunpack.c.0.s8 %v8407
      %v8409 = vlaneseq
      %v8410 = vshrl.u32 %v8409, 7
      %v8411 = vsub.s32 %v8408, %v8410
      %v8412 = vrot.slane %v8404, %v8411
      %v8414 = vunpack.c.l.s4 1934713408
      %v8415 = vunpack.c.0.s8 %v8414
      %v8416 = vlaneseq
      %v8417 = vshrl.u32 %v8416, 7
      %v8418 = vsub.s32 %v8415, %v8417
      %v8419 = vrot.slane %v8405, %v8418
      %v8420 = vcombine.low %v8355, %v8371
      %v8421 = vcombine.high %v8355, %v8371
      %v8423 = vunpack.c.l.s4 1934713408
      %v8424 = vunpack.c.0.s8 %v8423
      %v8425 = vlaneseq
      %v8426 = vshrl.u32 %v8425, 7
      %v8427 = vsub.s32 %v8424, %v8426
      %v8428 = vrot.slane %v8420, %v8427
      %v8430 = vunpack.c.l.s4 1934713408
      %v8431 = vunpack.c.0.s8 %v8430
      %v8432 = vlaneseq
      %v8433 = vshrl.u32 %v8432, 7
      %v8434 = vsub.s32 %v8431, %v8433
      %v8435 = vrot.slane %v8421, %v8434
      %v8436 = vcombine.low %v8380, %v8412
      %v8437 = vcombine.high %v8380, %v8412
      %v8438 = vcombine.low %v8387, %v8419
      %v8439 = vcombine.high %v8387, %v8419
      %v8440 = vcombine.low %v8396, %v8428
      %v8441 = vcombine.high %v8396, %v8428
      %v8442 = vcombine.low %v8403, %v8435
      %v8443 = vcombine.high %v8403, %v8435
      %v8444 = vcombine.low %v7484, %v7486
      %v8445 = vcombine.high %v7484, %v7486
      %v8447 = vunpack.c.l.s4 1983009808
      %v8448 = vunpack.c.0.s8 %v8447
      %v8449 = vlaneseq
      %v8450 = vshrl.u32 %v8449, 7
      %v8451 = vsub.s32 %v8448, %v8450
      %v8452 = vrot.slane %v8444, %v8451
      %v8454 = vunpack.c.l.s4 1983009808
      %v8455 = vunpack.c.0.s8 %v8454
      %v8456 = vlaneseq
      %v8457 = vshrl.u32 %v8456, 7
      %v8458 = vsub.s32 %v8455, %v8457
      %v8459 = vrot.slane %v8445, %v8458
      %v8460 = vcombine.low %v7485, %v7487
      %v8461 = vcombine.high %v7485, %v7487
      %v8463 = vunpack.c.l.s4 1983009808
      %v8464 = vunpack.c.0.s8 %v8463
      %v8465 = vlaneseq
      %v8466 = vshrl.u32 %v8465, 7
      %v8467 = vsub.s32 %v8464, %v8466
      %v8468 = vrot.slane %v8460, %v8467
      %v8470 = vunpack.c.l.s4 1983009808
      %v8471 = vunpack.c.0.s8 %v8470
      %v8472 = vlaneseq
      %v8473 = vshrl.u32 %v8472, 7
      %v8474 = vsub.s32 %v8471, %v8473
      %v8475 = vrot.slane %v8461, %v8474
      %v8476 = vcombine.low %v7488, %v7490
      %v8477 = vcombine.high %v7488, %v7490
      %v8479 = vunpack.c.l.s4 1983009808
      %v8480 = vunpack.c.0.s8 %v8479
      %v8481 = vlaneseq
      %v8482 = vshrl.u32 %v8481, 7
      %v8483 = vsub.s32 %v8480, %v8482
      %v8484 = vrot.slane %v8476, %v8483
      %v8486 = vunpack.c.l.s4 1983009808
      %v8487 = vunpack.c.0.s8 %v8486
      %v8488 = vlaneseq
      %v8489 = vshrl.u32 %v8488, 7
      %v8490 = vsub.s32 %v8487, %v8489
      %v8491 = vrot.slane %v8477, %v8490
      %v8492 = vcombine.low %v7489, %v7491
      %v8493 = vcombine.high %v7489, %v7491
      %v8495 = vunpack.c.l.s4 1983009808
      %v8496 = vunpack.c.0.s8 %v8495
      %v8497 = vlaneseq
      %v8498 = vshrl.u32 %v8497, 7
      %v8499 = vsub.s32 %v8496, %v8498
      %v8500 = vrot.slane %v8492, %v8499
      %v8502 = vunpack.c.l.s4 1983009808
      %v8503 = vunpack.c.0.s8 %v8502
      %v8504 = vlaneseq
      %v8505 = vshrl.u32 %v8504, 7
      %v8506 = vsub.s32 %v8503, %v8505
      %v8507 = vrot.slane %v8493, %v8506
      %v8508 = vcombine.low %v8452, %v8468
      %v8509 = vcombine.high %v8452, %v8468
      %v8511 = vunpack.c.l.s4 1934713408
      %v8512 = vunpack.c.0.s8 %v8511
      %v8513 = vlaneseq
      %v8514 = vshrl.u32 %v8513, 7
      %v8515 = vsub.s32 %v8512, %v8514
      %v8516 = vrot.slane %v8508, %v8515
      %v8518 = vunpack.c.l.s4 1934713408
      %v8519 = vunpack.c.0.s8 %v8518
      %v8520 = vlaneseq
      %v8521 = vshrl.u32 %v8520, 7
      %v8522 = vsub.s32 %v8519, %v8521
      %v8523 = vrot.slane %v8509, %v8522
      %v8524 = vcombine.low %v8459, %v8475
      %v8525 = vcombine.high %v8459, %v8475
      %v8527 = vunpack.c.l.s4 1934713408
      %v8528 = vunpack.c.0.s8 %v8527
      %v8529 = vlaneseq
      %v8530 = vshrl.u32 %v8529, 7
      %v8531 = vsub.s32 %v8528, %v8530
      %v8532 = vrot.slane %v8524, %v8531
      %v8534 = vunpack.c.l.s4 1934713408
      %v8535 = vunpack.c.0.s8 %v8534
      %v8536 = vlaneseq
      %v8537 = vshrl.u32 %v8536, 7
      %v8538 = vsub.s32 %v8535, %v8537
      %v8539 = vrot.slane %v8525, %v8538
      %v8540 = vcombine.low %v8484, %v8500
      %v8541 = vcombine.high %v8484, %v8500
      %v8543 = vunpack.c.l.s4 1934713408
      %v8544 = vunpack.c.0.s8 %v8543
      %v8545 = vlaneseq
      %v8546 = vshrl.u32 %v8545, 7
      %v8547 = vsub.s32 %v8544, %v8546
      %v8548 = vrot.slane %v8540, %v8547
      %v8550 = vunpack.c.l.s4 1934713408
      %v8551 = vunpack.c.0.s8 %v8550
      %v8552 = vlaneseq
      %v8553 = vshrl.u32 %v8552, 7
      %v8554 = vsub.s32 %v8551, %v8553
      %v8555 = vrot.slane %v8541, %v8554
      %v8556 = vcombine.low %v8491, %v8507
      %v8557 = vcombine.high %v8491, %v8507
      %v8559 = vunpack.c.l.s4 1934713408
      %v8560 = vunpack.c.0.s8 %v8559
      %v8561 = vlaneseq
      %v8562 = vshrl.u32 %v8561, 7
      %v8563 = vsub.s32 %v8560, %v8562
      %v8564 = vrot.slane %v8556, %v8563
      %v8566 = vunpack.c.l.s4 1934713408
      %v8567 = vunpack.c.0.s8 %v8566
      %v8568 = vlaneseq
      %v8569 = vshrl.u32 %v8568, 7
      %v8570 = vsub.s32 %v8567, %v8569
      %v8571 = vrot.slane %v8557, %v8570
      %v8572 = vcombine.low %v8516, %v8548
      %v8573 = vcombine.high %v8516, %v8548
      %v8574 = vcombine.low %v8523, %v8555
      %v8575 = vcombine.high %v8523, %v8555
      %v8576 = vcombine.low %v8532, %v8564
      %v8577 = vcombine.high %v8532, %v8564
      %v8578 = vcombine.low %v8539, %v8571
      %v8579 = vcombine.high %v8539, %v8571
      %8588 = vrot.lane.b32.xlu0 %v7621, 4
      %v8589 = vpop.permute.xlu0 %8588
      %8590 = vrot.lane.b32.xlu0 %v7757, 4
      %v8591 = vpop.permute.xlu0 %8590
      %8592 = vrot.lane.b32.xlu0 %v7893, 4
      %v8593 = vpop.permute.xlu0 %8592
      %8594 = vrot.lane.b32.xlu0 %v8029, 4
      %v8595 = vpop.permute.xlu0 %8594
      %8596 = vrot.lane.b32.xlu0 %v8165, 4
      %v8597 = vpop.permute.xlu0 %8596
      %8598 = vrot.lane.b32.xlu0 %v8301, 4
      %v8599 = vpop.permute.xlu0 %8598
      %8600 = vrot.lane.b32.xlu0 %v8437, 4
      %v8601 = vpop.permute.xlu0 %8600
      %8602 = vrot.lane.b32.xlu0 %v8573, 4
      %v8603 = vpop.permute.xlu0 %8602
      %8620 = vrot.lane.b32.xlu0 %v7622, 8
      %v8621 = vpop.permute.xlu0 %8620
      %8622 = vrot.lane.b32.xlu0 %v7758, 8
      %v8623 = vpop.permute.xlu0 %8622
      %8624 = vrot.lane.b32.xlu0 %v7894, 8
      %v8625 = vpop.permute.xlu0 %8624
      %8626 = vrot.lane.b32.xlu0 %v8030, 8
      %v8627 = vpop.permute.xlu0 %8626
      %8628 = vrot.lane.b32.xlu0 %v8166, 8
      %v8629 = vpop.permute.xlu0 %8628
      %8630 = vrot.lane.b32.xlu0 %v8302, 8
      %v8631 = vpop.permute.xlu0 %8630
      %8632 = vrot.lane.b32.xlu0 %v8438, 8
      %v8633 = vpop.permute.xlu0 %8632
      %8634 = vrot.lane.b32.xlu0 %v8574, 8
      %v8635 = vpop.permute.xlu0 %8634
      %8652 = vrot.lane.b32.xlu0 %v7623, 12
      %v8653 = vpop.permute.xlu0 %8652
      %8654 = vrot.lane.b32.xlu0 %v7759, 12
      %v8655 = vpop.permute.xlu0 %8654
      %8656 = vrot.lane.b32.xlu0 %v7895, 12
      %v8657 = vpop.permute.xlu0 %8656
      %8658 = vrot.lane.b32.xlu0 %v8031, 12
      %v8659 = vpop.permute.xlu0 %8658
      %8660 = vrot.lane.b32.xlu0 %v8167, 12
      %v8661 = vpop.permute.xlu0 %8660
      %8662 = vrot.lane.b32.xlu0 %v8303, 12
      %v8663 = vpop.permute.xlu0 %8662
      %8664 = vrot.lane.b32.xlu0 %v8439, 12
      %v8665 = vpop.permute.xlu0 %8664
      %8666 = vrot.lane.b32.xlu0 %v8575, 12
      %v8667 = vpop.permute.xlu0 %8666
      %8684 = vrot.lane.b32.xlu0 %v7624, 16
      %v8685 = vpop.permute.xlu0 %8684
      %8686 = vrot.lane.b32.xlu0 %v7760, 16
      %v8687 = vpop.permute.xlu0 %8686
      %8688 = vrot.lane.b32.xlu0 %v7896, 16
      %v8689 = vpop.permute.xlu0 %8688
      %8690 = vrot.lane.b32.xlu0 %v8032, 16
      %v8691 = vpop.permute.xlu0 %8690
      %8692 = vrot.lane.b32.xlu0 %v8168, 16
      %v8693 = vpop.permute.xlu0 %8692
      %8694 = vrot.lane.b32.xlu0 %v8304, 16
      %v8695 = vpop.permute.xlu0 %8694
      %8696 = vrot.lane.b32.xlu0 %v8440, 16
      %v8697 = vpop.permute.xlu0 %8696
      %8698 = vrot.lane.b32.xlu0 %v8576, 16
      %v8699 = vpop.permute.xlu0 %8698
      %8716 = vrot.lane.b32.xlu0 %v7625, 20
      %v8717 = vpop.permute.xlu0 %8716
      %8718 = vrot.lane.b32.xlu0 %v7761, 20
      %v8719 = vpop.permute.xlu0 %8718
      %8720 = vrot.lane.b32.xlu0 %v7897, 20
      %v8721 = vpop.permute.xlu0 %8720
      %8722 = vrot.lane.b32.xlu0 %v8033, 20
      %v8723 = vpop.permute.xlu0 %8722
      %8724 = vrot.lane.b32.xlu0 %v8169, 20
      %v8725 = vpop.permute.xlu0 %8724
      %8726 = vrot.lane.b32.xlu0 %v8305, 20
      %v8727 = vpop.permute.xlu0 %8726
      %8728 = vrot.lane.b32.xlu0 %v8441, 20
      %v8729 = vpop.permute.xlu0 %8728
      %8730 = vrot.lane.b32.xlu0 %v8577, 20
      %v8731 = vpop.permute.xlu0 %8730
      %8748 = vrot.lane.b32.xlu0 %v7626, 24
      %v8749 = vpop.permute.xlu0 %8748
      %8750 = vrot.lane.b32.xlu0 %v7762, 24
      %v8751 = vpop.permute.xlu0 %8750
      %8752 = vrot.lane.b32.xlu0 %v7898, 24
      %v8753 = vpop.permute.xlu0 %8752
      %8754 = vrot.lane.b32.xlu0 %v8034, 24
      %v8755 = vpop.permute.xlu0 %8754
      %8756 = vrot.lane.b32.xlu0 %v8170, 24
      %v8757 = vpop.permute.xlu0 %8756
      %8758 = vrot.lane.b32.xlu0 %v8306, 24
      %v8759 = vpop.permute.xlu0 %8758
      %8760 = vrot.lane.b32.xlu0 %v8442, 24
      %v8761 = vpop.permute.xlu0 %8760
      %8762 = vrot.lane.b32.xlu0 %v8578, 24
      %v8763 = vpop.permute.xlu0 %8762
      %8780 = vrot.lane.b32.xlu0 %v7627, 28
      %v8781 = vpop.permute.xlu0 %8780
      %8782 = vrot.lane.b32.xlu0 %v7763, 28
      %v8783 = vpop.permute.xlu0 %8782
      %8784 = vrot.lane.b32.xlu0 %v7899, 28
      %v8785 = vpop.permute.xlu0 %8784
      %8786 = vrot.lane.b32.xlu0 %v8035, 28
      %v8787 = vpop.permute.xlu0 %8786
      %8788 = vrot.lane.b32.xlu0 %v8171, 28
      %v8789 = vpop.permute.xlu0 %8788
      %8790 = vrot.lane.b32.xlu0 %v8307, 28
      %v8791 = vpop.permute.xlu0 %8790
      %8792 = vrot.lane.b32.xlu0 %v8443, 28
      %v8793 = vpop.permute.xlu0 %8792
      %8794 = vrot.lane.b32.xlu0 %v8579, 28
      %v8795 = vpop.permute.xlu0 %8794
      %v8804 = vsel %vm4410, %v7620, %v8589
      %v8805 = vsel %vm4410, %v7756, %v8591
      %v8806 = vsel %vm4410, %v7892, %v8593
      %v8807 = vsel %vm4410, %v8028, %v8595
      %v8808 = vsel %vm4410, %v8164, %v8597
      %v8809 = vsel %vm4410, %v8300, %v8599
      %v8810 = vsel %vm4410, %v8436, %v8601
      %v8811 = vsel %vm4410, %v8572, %v8603
      %vm8812 = vcmask 64512
      %v8813 = vsel %vm8812, %v8804, %v8621
      %v8814 = vsel %vm8812, %v8805, %v8623
      %v8815 = vsel %vm8812, %v8806, %v8625
      %v8816 = vsel %vm8812, %v8807, %v8627
      %v8817 = vsel %vm8812, %v8808, %v8629
      %v8818 = vsel %vm8812, %v8809, %v8631
      %v8819 = vsel %vm8812, %v8810, %v8633
      %v8820 = vsel %vm8812, %v8811, %v8635
      %vm8821 = vcmask 97280
      %v8822 = vsel %vm8821, %v8813, %v8653
      %v8823 = vsel %vm8821, %v8814, %v8655
      %v8824 = vsel %vm8821, %v8815, %v8657
      %v8825 = vsel %vm8821, %v8816, %v8659
      %v8826 = vsel %vm8821, %v8817, %v8661
      %v8827 = vsel %vm8821, %v8818, %v8663
      %v8828 = vsel %vm8821, %v8819, %v8665
      %v8829 = vsel %vm8821, %v8820, %v8667
      %v8830 = vsel %vm5051, %v8822, %v8685
      %v8831 = vsel %vm5051, %v8823, %v8687
      %v8832 = vsel %vm5051, %v8824, %v8689
      %v8833 = vsel %vm5051, %v8825, %v8691
      %v8834 = vsel %vm5051, %v8826, %v8693
      %v8835 = vsel %vm5051, %v8827, %v8695
      %v8836 = vsel %vm5051, %v8828, %v8697
      %v8837 = vsel %vm5051, %v8829, %v8699
      %vm8838 = vcmask 162816
      %v8839 = vsel %vm8838, %v8830, %v8717
      %v8840 = vsel %vm8838, %v8831, %v8719
      %v8841 = vsel %vm8838, %v8832, %v8721
      %v8842 = vsel %vm8838, %v8833, %v8723
      %v8843 = vsel %vm8838, %v8834, %v8725
      %v8844 = vsel %vm8838, %v8835, %v8727
      %v8845 = vsel %vm8838, %v8836, %v8729
      %v8846 = vsel %vm8838, %v8837, %v8731
      %vm8847 = vcmask 195584
      %v8848 = vsel %vm8847, %v8839, %v8749
      %v8849 = vsel %vm8847, %v8840, %v8751
      %v8850 = vsel %vm8847, %v8841, %v8753
      %v8851 = vsel %vm8847, %v8842, %v8755
      %v8852 = vsel %vm8847, %v8843, %v8757
      %v8853 = vsel %vm8847, %v8844, %v8759
      %v8854 = vsel %vm8847, %v8845, %v8761
      %v8855 = vsel %vm8847, %v8846, %v8763
      %vm8856 = vcmask 228352
      %v8857 = vsel %vm8856, %v8848, %v8781
      %v8858 = vsel %vm8856, %v8849, %v8783
      %v8859 = vsel %vm8856, %v8850, %v8785
      %v8860 = vsel %vm8856, %v8851, %v8787
      %v8861 = vsel %vm8856, %v8852, %v8789
      %v8862 = vsel %vm8856, %v8853, %v8791
      %v8863 = vsel %vm8856, %v8854, %v8793
      %v8864 = vsel %vm8856, %v8855, %v8795
      %v8865 = vpack.c.bf16 %v8858, %v8857
      %v8866 = vpack.c.bf16 %v8860, %v8859
      %v8867 = vpack.c.bf16 %v8862, %v8861
      %v8868 = vpack.c.bf16 %v8864, %v8863
      %s8869 = scalar_lea.vmem %s2, 48
      %v8870 = vld [vmem:[%s8869] sm:$0xf]
      %v8871 = vld [vmem:[%s8869 + $0x4] sm:$0xf]
      %v8872 = vld [vmem:[%s8869 + $0x8] sm:$0xf]
      %v8873 = vld [vmem:[%s8869 + $0xc] sm:$0xf]
      %v8874 = vld [vmem:[%s1 + $0x5] sm:$0x1]
      %v8875 = vlaneseq
      %v8876 = vshrl.u32 %v8875, 7
      %v8877 = vsub.s32 0, %v8876
      %v8878 = vrot.slane %v8874, %v8877
      %v8883 = vunpack.c.l.b16 %v8870
      %v8884 = vunpack.c.l.b16 %v8871
      %v8885 = vunpack.c.l.b16 %v8872
      %v8886 = vunpack.c.l.b16 %v8873
      %v8887 = vpack.c.b16 %v8884, %v8883
      %v8888 = vpack.c.b16 %v8886, %v8885
      %v8892 = vsel %vm209, %v8865, 0
      %v8895 = vsel %vm209, %v8866, 0
      %v8898 = vsel %vm209, %v8867, 0
      %v8901 = vsel %vm209, %v8868, 0
      %8903 = vmatprep.subr.bf16.mxu0 0
      %8904 = vmatpush1.bf16.msra.mxu0 0
      %8905 = vmatprep.subr.bf16.mxu0 0
      %8906 = vmatpush1.bf16.msra.mxu0 0
      %8907 = vmatprep.subr.bf16.mxu0 0
      %8908 = vmatpush1.bf16.msra.mxu0 0
      %8909 = vmatprep.subr.bf16.mxu0 0
      %8910 = vmatpush1.bf16.msra.mxu0 0
      %8911 = vmatprep.subr.bf16.mxu0 0
      %8912 = vmatpush1.bf16.msra.mxu0 0
      %8913 = vmatprep.subr.bf16.mxu0 0
      %8914 = vmatpush1.bf16.msra.mxu0 0
      %8915 = vmatprep.subr.bf16.mxu0 0
      %8916 = vmatpush1.bf16.msra.mxu0 %v8888
      %8917 = vmatprep.subr.bf16.mxu0 0
      %8918 = vmatpush1.bf16.msra.mxu0 %v8887
      %8919 = vmatprep.subr.bf16.mxu0 0
      %8920 = vmatpush2.bf16.msra.mxu0 0
      %8921 = vmatprep.subr.bf16.mxu0 0
      %8922 = vmatpush2.bf16.msra.mxu0 0
      %8923 = vmatprep.subr.bf16.mxu0 0
      %8924 = vmatpush2.bf16.msra.mxu0 0
      %8925 = vmatprep.subr.bf16.mxu0 0
      %8926 = vmatpush2.bf16.msra.mxu0 0
      %8927 = vmatprep.subr.bf16.mxu0 0
      %8928 = vmatpush2.bf16.msra.mxu0 0
      %8929 = vmatprep.subr.bf16.mxu0 0
      %8930 = vmatpush2.bf16.msra.mxu0 0
      %8931 = vmatprep.subr.bf16.mxu0 0
      %8932 = vmatpush2.bf16.msra.mxu0 0
      %8933 = vmatprep.subr.bf16.mxu0 0
      %8934 = vmatpush2.bf16.msra.mxu0 0
      %8935 = vmatprep.mubr.bf16.mxu0 0
      %8936 = vmatmul.mubr.bf16.gmra.mxu0 %v8892
      %v8937 = vpop.f32.mrf.mxu0
      %v8938 = vadd.f32 %v8878, %v8937
      %v8939 = vpop.f32.mrf.mxu0
      %v8940 = vpop.f32.mrf.mxu0
      %v8941 = vadd.f32 %v8878, %v8940
      %v8942 = vpop.f32.mrf.mxu0
      %8943 = vmatprep.mubr.bf16.mxu0 0
      %8944 = vmatmul.mubr.bf16.gmra.mxu0 %v8895
      %v8945 = vpop.f32.mrf.mxu0
      %v8946 = vadd.f32 %v8878, %v8945
      %v8947 = vpop.f32.mrf.mxu0
      %v8948 = vpop.f32.mrf.mxu0
      %v8949 = vadd.f32 %v8878, %v8948
      %v8950 = vpop.f32.mrf.mxu0
      %8951 = vmatprep.mubr.bf16.mxu0 0
      %8952 = vmatmul.mubr.bf16.gmra.mxu0 %v8898
      %v8953 = vpop.f32.mrf.mxu0
      %v8954 = vadd.f32 %v8878, %v8953
      %v8955 = vpop.f32.mrf.mxu0
      %v8956 = vpop.f32.mrf.mxu0
      %v8957 = vadd.f32 %v8878, %v8956
      %v8958 = vpop.f32.mrf.mxu0
      %8959 = vmatprep.mubr.bf16.mxu0 0
      %8960 = vmatmul.mubr.bf16.gmra.mxu0 %v8901
      %v8961 = vpop.f32.mrf.mxu0
      %v8962 = vadd.f32 %v8878, %v8961
      %v8963 = vpop.f32.mrf.mxu0
      %v8964 = vpop.f32.mrf.mxu0
      %v8965 = vadd.f32 %v8878, %v8964
      %v8966 = vpop.f32.mrf.mxu0
      %8967 = vdwg.mxu0
      %8968 = vst.msk [vmem:[%s197] sm:$0xff] %vm209, %v8938
      %8969 = vst.msk [vmem:[%s197 + $0x8] sm:$0xff] %vm209, %v8941
      %8970 = vst.msk [vmem:[%s197 + $0x10] sm:$0xff] %vm209, %v8946
      %8971 = vst.msk [vmem:[%s197 + $0x18] sm:$0xff] %vm209, %v8949
      %8972 = vst.msk [vmem:[%s197 + $0x20] sm:$0xff] %vm209, %v8954
      %8973 = vst.msk [vmem:[%s197 + $0x28] sm:$0xff] %vm209, %v8957
      %8974 = vst.msk [vmem:[%s197 + $0x30] sm:$0xff] %vm209, %v8962
      %8975 = vst.msk [vmem:[%s197 + $0x38] sm:$0xff] %vm209, %v8965
      %p8976 = scmp.lt.s32.totalorder %s15, 1
      %s8977 = scalar_select %p8976, %s15, 1
      %s8978 = smul.addr %s8977, 8
      %s8979 = smul.addr %s8978, 8
      %s8980 = scalar_lea.vmem %s4, %s8979
      // Predicated region
      $region37: #{tpu_custom_call.1} parent=35 // pred_check
        %p8981 = pneg %p122
      $region38: #{tpu_custom_call.1} parent=35 // pred_check_branch
        %8983 = sbr.rel (%p8981) target = $region40
      $region39: #{tpu_custom_call.1} parent=35 // pred_region
        _
      $region40: #{tpu_custom_call.1} parent=35 // pred_fallthru
        _
    $region36: #{tpu_custom_call.1} parent=5 // pred_fallthru
      _
    %p8984 = scmp.le.s32.totalorder 2, %s10
    // Predicated region
    $region41: #{tpu_custom_call.1} parent=5 // pred_check
      %p8985 = pneg %p8984
    $region42: #{tpu_custom_call.1} parent=5 // pred_check_branch
      %8987 = sbr.rel (%p8985) target = $region44
    $region43: #{tpu_custom_call.1} parent=5 // pred_region
      %s8988 = ssub.s32 %s10, 2
      // Predicated region
      $region45: #{tpu_custom_call.1} parent=43 // pred_check
        %p8989 = pneg %p128
      $region46: #{tpu_custom_call.1} parent=43 // pred_check_branch
        %8991 = sbr.rel (%p8989) target = $region48
      $region47: #{tpu_custom_call.1} parent=43 // pred_region
        %p8992 = scmp.lt.s32.totalorder %s16, 1
        %s8993 = scalar_select %p8992, %s16, 1
        %s8994 = smul.addr %s8993, 8
        %s8995 = smul.addr %s8994, 8
        %s8996 = scalar_lea.vmem %s4, %s8995
      $region48: #{tpu_custom_call.1} parent=43 // pred_fallthru
        _
    $region44: #{tpu_custom_call.1} parent=5 // pred_fallthru
      _
  $region6: #{tpu_custom_call.1} parent=0 // loop_footer
    %s14 = sadd.s32 1, %s10
  $region7: #{tpu_custom_call.1} parent=0 // loop_footer_branch
    %9 = sbr.rel target = $region3
  $region8: #{tpu_custom_call.1} parent=0 // loop_exit
    _

</llo_original>
